<compile_context>
chip_gen: v5e
topology: v5e:2x2
jax: 0.10.0
libtpu: 0.0.40
codegen_flags: <defaults>
</compile_context>

<pallas_src>
import functools

import jax
import jax.numpy as jnp
from jax.experimental import pallas as pl
from jax.experimental.pallas import tpu as pltpu


# ----------------------- fused multi-layer LSTM kernel ------------------------

def _lstm_stack_kernel(x_ref, wih_ref, whh_ref, b_ref, h0_ref, c0_ref,
                       y_ref, hN_ref, cN_ref,
                       act_sc, gates_sc):
    """All layers + all timesteps in one kernel invocation.

    x_ref   : (T*B, H)   f32   padded embedded input, time-major rows
    wih_ref : (L, H, 4H) bf16
    whh_ref : (L, H, 4H) bf16
    b_ref   : (L, 1, 4H) f32
    h0/c0   : (L, B, H)  f32
    y_ref   : (T*B, H)   f32   last-layer hidden states
    hN/cN   : (L, B, H)  f32   final states per layer
    act_sc  : (T*B, H)   f32   inter-layer activation (VMEM resident)
    gates_sc: (T*B, 4H)  f32   hoisted input-projection gates (VMEM resident)
    """
    L, B, H = h0_ref.shape
    TB = act_sc.shape[0]
    T = TB // B

    # Layer-0 input (zero-padded embedding) lives in VMEM for the whole kernel.
    act_sc[...] = x_ref[...]

    for l in range(L):                                   # static layer loop
        # Hoisted, time-independent input projection for ALL timesteps at once:
        # one (T*B, H) @ (H, 4H) MXU matmul; bias folded in here (once, not per t).
        gates_sc[...] = (
            jnp.dot(act_sc[...].astype(jnp.bfloat16), wih_ref[l],
                    preferred_element_type=jnp.float32)
            + b_ref[l]                                   # (1, 4H) broadcast
        )

        h = h0_ref[l]                                    # (B, H) f32
        c = c0_ref[l]                                    # (B, H) f32

        for t in range(T):                               # static unroll over time
            g = gates_sc[t * B:(t + 1) * B, :] + jnp.dot(
                h.astype(jnp.bfloat16), whh_ref[l],
                preferred_element_type=jnp.float32)      # (B, 4H)

            i_g = jax.nn.sigmoid(g[:, 0 * H:1 * H])
            f_g = jax.nn.sigmoid(g[:, 1 * H:2 * H])
            g_g = jnp.tanh(g[:, 2 * H:3 * H])
            o_g = jax.nn.sigmoid(g[:, 3 * H:4 * H])

            c = f_g * c + i_g * g_g
            h = o_g * jnp.tanh(c)

            act_sc[t * B:(t + 1) * B, :] = h             # becomes next layer's input

        # Final states written once per layer (not every timestep).
        hN_ref[l] = h
        cN_ref[l] = c

    y_ref[...] = act_sc[...]


def lstm_stack(x_flat, w_ih, w_hh, bias, h0, c0):
    """x_flat: (T*B, H) f32 -> y: (T*B, H), h_n/c_n: (L, B, H)."""
    TB, H = x_flat.shape
    L, B, _ = h0.shape
    G = 4 * H

    out_shapes = (
        jax.ShapeDtypeStruct((TB, H), jnp.float32),
        jax.ShapeDtypeStruct((L, B, H), jnp.float32),
        jax.ShapeDtypeStruct((L, B, H), jnp.float32),
    )

    grid_spec = pltpu.PrefetchScalarGridSpec(
        num_scalar_prefetch=0,
        grid=(1,),
        in_specs=[
            pl.BlockSpec((TB, H), lambda i: (0, 0)),        # x (padded embed)
            pl.BlockSpec((L, H, G), lambda i: (0, 0, 0)),   # W_ih stack (bf16)
            pl.BlockSpec((L, H, G), lambda i: (0, 0, 0)),   # W_hh stack (bf16)
            pl.BlockSpec((L, 1, G), lambda i: (0, 0, 0)),   # bias stack
            pl.BlockSpec((L, B, H), lambda i: (0, 0, 0)),   # h0
            pl.BlockSpec((L, B, H), lambda i: (0, 0, 0)),   # c0
        ],
        out_specs=[
            pl.BlockSpec((TB, H), lambda i: (0, 0)),        # y
            pl.BlockSpec((L, B, H), lambda i: (0, 0, 0)),   # h_n
            pl.BlockSpec((L, B, H), lambda i: (0, 0, 0)),   # c_n
        ],
        scratch_shapes=[
            pltpu.VMEM((TB, H), jnp.float32),               # inter-layer activation
            pltpu.VMEM((TB, G), jnp.float32),               # hoisted gates
        ],
    )

    return pl.pallas_call(
        _lstm_stack_kernel,
        out_shape=out_shapes,
        grid_spec=grid_spec,
        compiler_params=pltpu.CompilerParams(
            dimension_semantics=("arbitrary",),             # recurrence is sequential
            vmem_limit_bytes=32 * 1024 * 1024),
    )(x_flat, w_ih, w_hh, bias, h0, c0)


# ------------------------------- FC head kernel -------------------------------

def _fc_kernel(x_ref, w_ref, b_ref, o_ref):
    o_ref[...] = (
        jnp.dot(x_ref[...].astype(jnp.bfloat16), w_ref[...],
                preferred_element_type=jnp.float32)
        + b_ref[...]
    ).astype(o_ref.dtype)


def fc(x2d, w, b):
    """x2d: (N, H) f32 @ w: (H, V) bf16 + b: (1, V) f32 -> (N, V) f32.

    Tiled over V with a 'parallel' grid axis (v7x can split it over both TCs).
    """
    N, H = x2d.shape
    V = w.shape[-1]
    tv = min(128, V)
    assert V % tv == 0

    return pl.pallas_call(
        _fc_kernel,
        out_shape=jax.ShapeDtypeStruct((N, V), jnp.float32),
        grid_spec=pltpu.PrefetchScalarGridSpec(
            num_scalar_prefetch=0,
            grid=(V // tv,),
            in_specs=[
                pl.BlockSpec((N, H), lambda j: (0, 0)),
                pl.BlockSpec((H, tv), lambda j: (0, j)),
                pl.BlockSpec((1, tv), lambda j: (0, j)),
            ],
            out_specs=pl.BlockSpec((N, tv), lambda j: (0, j)),
        ),
        compiler_params=pltpu.CompilerParams(
            dimension_semantics=("parallel",),
            vmem_limit_bytes=32 * 1024 * 1024),
    )(x2d, w, b)


# ------------------------------ model definition ------------------------------

def init_params(key, *, vocab_size, embedding_dim, n_units, num_layers):
    """PyTorch-style init: embedding ~ N(0,1); LSTM/FC ~ U(-1/sqrt(H), 1/sqrt(H))."""
    H = n_units
    E = embedding_dim
    assert E <= H, "kernel pads embedding_dim up to hidden size"

    params = {}
    k_emb, key = jax.random.split(key)
    emb = jax.random.normal(k_emb, (vocab_size, E), jnp.float32)
    # Zero-pad embedding table to H columns so layer-0 input is already (T*B, H).
    params["embedding"] = jnp.pad(emb, ((0, 0), (0, H - E)))

    bound = 1.0 / float(H) ** 0.5
    w_ih_l, w_hh_l, b_l = [], [], []
    in_dim = E
    for _ in range(num_layers):
        k1, k2, k3, k4, key = jax.random.split(key, 5)
        w_ih = jax.random.uniform(k1, (in_dim, 4 * H), jnp.float32, -bound, bound)
        w_ih = jnp.pad(w_ih, ((0, H - in_dim), (0, 0)))   # zero rows: exact result
        w_hh = jax.random.uniform(k2, (H, 4 * H), jnp.float32, -bound, bound)
        b_ih = jax.random.uniform(k3, (4 * H,), jnp.float32, -bound, bound)
        b_hh = jax.random.uniform(k4, (4 * H,), jnp.float32, -bound, bound)
        w_ih_l.append(w_ih.astype(jnp.bfloat16))
        w_hh_l.append(w_hh.astype(jnp.bfloat16))
        b_l.append((b_ih + b_hh).reshape(1, 4 * H))
        in_dim = H
    params["w_ih"] = jnp.stack(w_ih_l)        # (L, H, 4H) bf16
    params["w_hh"] = jnp.stack(w_hh_l)        # (L, H, 4H) bf16
    params["bias"] = jnp.stack(b_l)           # (L, 1, 4H) f32

    k5, k6, key = jax.random.split(key, 3)
    params["fc_w"] = jax.random.uniform(k5, (H, vocab_size), jnp.float32,
                                        -bound, bound).astype(jnp.bfloat16)
    params["fc_b"] = jax.random.uniform(k6, (vocab_size,), jnp.float32,
                                        -bound, bound).reshape(1, vocab_size)
    return params


@functools.partial(jax.jit)
def lstm_forward(params, x_ids, h0, c0):
    """
    x_ids : (T, B) int32 token ids (B == seq_len of the reference module).
    h0, c0: (num_layers, B, H) initial states.
    Returns logits (T, B, V) and final states (num_layers, B, H).
    """
    T, B = x_ids.shape
    H = h0.shape[-1]
    V = params["fc_w"].shape[-1]

    embed = jnp.take(params["embedding"], x_ids, axis=0)   # (T, B, H) glue gather
    x_flat = embed.reshape(T * B, H)

    y_flat, h_n, c_n = lstm_stack(x_flat, params["w_ih"], params["w_hh"],
                                  params["bias"], h0, c0)

    logits = fc(y_flat, params["fc_w"], params["fc_b"])    # (T*B, V)
    return logits.reshape(T, B, V), h_n, c_n


# ----------------------------------- main -------------------------------------

if __name__ == "__main__":
    vocab_size = 256
    embedding_dim = 64
    num_layers = 2
    n_units = 128          # hidden size H
    seq_len = 8            # LSTM *batch* dim in the reference module
    T = 12                 # number of time steps fed to the LSTM

    key = jax.random.PRNGKey(0)
    k_params, k_ids = jax.random.split(key)

    params = init_params(k_params,
                         vocab_size=vocab_size,
                         embedding_dim=embedding_dim,
                         n_units=n_units,
                         num_layers=num_layers)

    # Input token ids: (T, B) with B == seq_len (matches init_state's batch dim).
    x_ids = jax.random.randint(k_ids, (T, seq_len), 0, vocab_size, dtype=jnp.int32)

    # init_state(): zeros of shape (num_layers, seq_len, n_units)
    h0 = jnp.zeros((num_layers, seq_len, n_units), jnp.float32)
    c0 = jnp.zeros((num_layers, seq_len, n_units), jnp.float32)

    logits, h_n, c_n = lstm_forward(params, x_ids, h0, c0)
    jax.block_until_ready((logits, h_n, c_n))

    assert logits.shape == (T, seq_len, vocab_size)
    assert h_n.shape == (num_layers, seq_len, n_units)
    assert c_n.shape == (num_layers, seq_len, n_units)
    assert bool(jnp.all(jnp.isfinite(logits)))
    assert bool(jnp.all(jnp.isfinite(h_n)))
    assert bool(jnp.all(jnp.isfinite(c_n)))

    print("KERNEL_OK")
</pallas_src>

<mosaic_0001>
module attributes {stable_mosaic.version = 11 : i64} {
  func.func @_fc_kernel(%arg0: i32, %arg1: memref<96x128xf32, #tpu.memory_space<vmem>>, %arg2: memref<128x128xbf16, #tpu.memory_space<vmem>>, %arg3: memref<1x128xf32, #tpu.memory_space<vmem>>, %arg4: memref<96x128xf32, #tpu.memory_space<vmem>>) attributes {dimension_semantics = [#tpu.dimension_semantics<parallel>], iteration_bounds = array<i64: 2>, scalar_prefetch = 0 : i64, scratch_operands = 0 : i64, tpu.core_type = #tpu.core_type<tc>, window_params = [{pipeline_mode = #tpu.pipeline_mode<synchronous>, transform_indices = @transform_0, window_bounds = array<i64: 96, 128>}, {transform_indices = @transform_1, window_bounds = array<i64: 128, 128>}, {transform_indices = @transform_2, window_bounds = array<i64: 1, 128>}, {transform_indices = @transform_3, window_bounds = array<i64: 96, 128>}]} {
    %c0 = arith.constant 0 : index
    %c0_0 = arith.constant 0 : index
    %0 = vector.load %arg1[%c0, %c0_0] : memref<96x128xf32, #tpu.memory_space<vmem>>, vector<96x128xf32>
    %1 = arith.truncf %0 : vector<96x128xf32> to vector<96x128xbf16>
    %c0_1 = arith.constant 0 : index
    %c0_2 = arith.constant 0 : index
    %2 = vector.load %arg2[%c0_1, %c0_2] : memref<128x128xbf16, #tpu.memory_space<vmem>>, vector<128x128xbf16>
    %cst = arith.constant dense<0.000000e+00> : vector<96x128xf32>
    %3 = tpu.matmul %1, %2, %cst {dimension_numbers = #tpu.dot_dimension_numbers<[1], [0], [0], [1], [0, 0, 1, 1], [], []>} : vector<96x128xbf16>, vector<128x128xbf16>, vector<96x128xf32> -> vector<96x128xf32>
    %c0_3 = arith.constant 0 : index
    %c0_4 = arith.constant 0 : index
    %4 = vector.load %arg3[%c0_3, %c0_4] : memref<1x128xf32, #tpu.memory_space<vmem>>, vector<1x128xf32>
    %5 = vector.broadcast %4 : vector<1x128xf32> to vector<96x128xf32>
    %6 = arith.addf %3, %5 : vector<96x128xf32>
    %c0_5 = arith.constant 0 : index
    %c0_6 = arith.constant 0 : index
    %7 = vector.load %arg4[%c0_5, %c0_6] : memref<96x128xf32, #tpu.memory_space<vmem>>, vector<96x128xf32>
    tpu.vector_store %arg4[%c0_5, %c0_6], %6 {strides = array<i32>} : memref<96x128xf32, #tpu.memory_space<vmem>>, vector<96x128xf32>,
    return
  }
  func.func @transform_0(%arg0: i32) -> (i32, i32) {
    %c0_i32 = arith.constant 0 : i32
    %c0_i32_0 = arith.constant 0 : i32
    %c0_i32_1 = arith.constant 0 : i32
    return %c0_i32, %c0_i32_0 : i32, i32
  }
  func.func @transform_1(%arg0: i32) -> (i32, i32) {
    %c0_i32 = arith.constant 0 : i32
    %c0_i32_0 = arith.constant 0 : i32
    return %c0_i32, %arg0 : i32, i32
  }
  func.func @transform_2(%arg0: i32) -> (i32, i32) {
    %c0_i32 = arith.constant 0 : i32
    %c0_i32_0 = arith.constant 0 : i32
    return %c0_i32, %arg0 : i32, i32
  }
  func.func @transform_3(%arg0: i32) -> (i32, i32) {
    %c0_i32 = arith.constant 0 : i32
    %c0_i32_0 = arith.constant 0 : i32
    return %c0_i32, %arg0 : i32, i32
  }
}

module attributes {stable_mosaic.version = 11 : i64} {
  func.func @_lstm_stack_kernel(%arg0: i32, %arg1: memref<96x128xf32, #tpu.memory_space<vmem>>, %arg2: memref<2x128x512xbf16, #tpu.memory_space<vmem>>, %arg3: memref<2x128x512xbf16, #tpu.memory_space<vmem>>, %arg4: memref<2x1x512xf32, #tpu.memory_space<vmem>>, %arg5: memref<2x8x128xf32, #tpu.memory_space<vmem>>, %arg6: memref<2x8x128xf32, #tpu.memory_space<vmem>>, %arg7: memref<96x128xf32, #tpu.memory_space<vmem>>, %arg8: memref<2x8x128xf32, #tpu.memory_space<vmem>>, %arg9: memref<2x8x128xf32, #tpu.memory_space<vmem>>, %arg10: memref<96x128xf32, #tpu.memory_space<vmem>>, %arg11: memref<96x512xf32, #tpu.memory_space<vmem>>) attributes {dimension_semantics = [#tpu.dimension_semantics<arbitrary>], iteration_bounds = array<i64: 1>, scalar_prefetch = 0 : i64, scratch_operands = 2 : i64, tpu.core_type = #tpu.core_type<tc>, window_params = [{pipeline_mode = #tpu.pipeline_mode<synchronous>, transform_indices = @transform_0, window_bounds = array<i64: 96, 128>}, {pipeline_mode = #tpu.pipeline_mode<synchronous>, transform_indices = @transform_1, window_bounds = array<i64: 2, 128, 512>}, {pipeline_mode = #tpu.pipeline_mode<synchronous>, transform_indices = @transform_2, window_bounds = array<i64: 2, 128, 512>}, {pipeline_mode = #tpu.pipeline_mode<synchronous>, transform_indices = @transform_3, window_bounds = array<i64: 2, 1, 512>}, {pipeline_mode = #tpu.pipeline_mode<synchronous>, transform_indices = @transform_4, window_bounds = array<i64: 2, 8, 128>}, {pipeline_mode = #tpu.pipeline_mode<synchronous>, transform_indices = @transform_5, window_bounds = array<i64: 2, 8, 128>}, {pipeline_mode = #tpu.pipeline_mode<synchronous>, transform_indices = @transform_6, window_bounds = array<i64: 96, 128>}, {pipeline_mode = #tpu.pipeline_mode<synchronous>, transform_indices = @transform_7, window_bounds = array<i64: 2, 8, 128>}, {pipeline_mode = #tpu.pipeline_mode<synchronous>, transform_indices = @transform_8, window_bounds = array<i64: 2, 8, 128>}]} {
    %c0 = arith.constant 0 : index
    %c0_0 = arith.constant 0 : index
    %0 = vector.load %arg1[%c0, %c0_0] : memref<96x128xf32, #tpu.memory_space<vmem>>, vector<96x128xf32>
    %c0_1 = arith.constant 0 : index
    %c0_2 = arith.constant 0 : index
    %1 = vector.load %arg10[%c0_1, %c0_2] : memref<96x128xf32, #tpu.memory_space<vmem>>, vector<96x128xf32>
    tpu.vector_store %arg10[%c0_1, %c0_2], %0 {strides = array<i32>} : memref<96x128xf32, #tpu.memory_space<vmem>>, vector<96x128xf32>,
    %c0_3 = arith.constant 0 : index
    %c0_4 = arith.constant 0 : index
    %2 = vector.load %arg10[%c0_3, %c0_4] : memref<96x128xf32, #tpu.memory_space<vmem>>, vector<96x128xf32>
    %3 = arith.truncf %2 : vector<96x128xf32> to vector<96x128xbf16>
    %c0_5 = arith.constant 0 : index
    %c0_6 = arith.constant 0 : index
    %c0_7 = arith.constant 0 : index
    %4 = vector.load %arg2[%c0_5, %c0_6, %c0_7] : memref<2x128x512xbf16, #tpu.memory_space<vmem>>, vector<1x128x512xbf16>
    %5 = vector.shape_cast %4 : vector<1x128x512xbf16> to vector<128x512xbf16>
    %cst = arith.constant dense<0.000000e+00> : vector<96x512xf32>
    %6 = tpu.matmul %3, %5, %cst {dimension_numbers = #tpu.dot_dimension_numbers<[1], [0], [0], [1], [0, 0, 1, 1], [], []>} : vector<96x128xbf16>, vector<128x512xbf16>, vector<96x512xf32> -> vector<96x512xf32>
    %c0_8 = arith.constant 0 : index
    %c0_9 = arith.constant 0 : index
    %c0_10 = arith.constant 0 : index
    %7 = vector.load %arg4[%c0_8, %c0_9, %c0_10] : memref<2x1x512xf32, #tpu.memory_space<vmem>>, vector<1x1x512xf32>
    %8 = vector.shape_cast %7 : vector<1x1x512xf32> to vector<1x512xf32>
    %9 = vector.broadcast %8 : vector<1x512xf32> to vector<96x512xf32>
    %10 = arith.addf %6, %9 : vector<96x512xf32>
    %c0_11 = arith.constant 0 : index
    %c0_12 = arith.constant 0 : index
    %11 = vector.load %arg11[%c0_11, %c0_12] : memref<96x512xf32, #tpu.memory_space<vmem>>, vector<96x512xf32>
    tpu.vector_store %arg11[%c0_11, %c0_12], %10 {strides = array<i32>} : memref<96x512xf32, #tpu.memory_space<vmem>>, vector<96x512xf32>,
    %c0_13 = arith.constant 0 : index
    %c0_14 = arith.constant 0 : index
    %c0_15 = arith.constant 0 : index
    %12 = vector.load %arg5[%c0_13, %c0_14, %c0_15] : memref<2x8x128xf32, #tpu.memory_space<vmem>>, vector<1x8x128xf32>
    %13 = vector.shape_cast %12 : vector<1x8x128xf32> to vector<8x128xf32>
    %c0_16 = arith.constant 0 : index
    %c0_17 = arith.constant 0 : index
    %c0_18 = arith.constant 0 : index
    %14 = vector.load %arg6[%c0_16, %c0_17, %c0_18] : memref<2x8x128xf32, #tpu.memory_space<vmem>>, vector<1x8x128xf32>
    %15 = vector.shape_cast %14 : vector<1x8x128xf32> to vector<8x128xf32>
    %c0_19 = arith.constant 0 : index
    %c0_20 = arith.constant 0 : index
    %16 = vector.load %arg11[%c0_19, %c0_20] : memref<96x512xf32, #tpu.memory_space<vmem>>, vector<8x512xf32>
    %17 = arith.truncf %13 : vector<8x128xf32> to vector<8x128xbf16>
    %c0_21 = arith.constant 0 : index
    %c0_22 = arith.constant 0 : index
    %c0_23 = arith.constant 0 : index
    %18 = vector.load %arg3[%c0_21, %c0_22, %c0_23] : memref<2x128x512xbf16, #tpu.memory_space<vmem>>, vector<1x128x512xbf16>
    %19 = vector.shape_cast %18 : vector<1x128x512xbf16> to vector<128x512xbf16>
    %cst_24 = arith.constant dense<0.000000e+00> : vector<8x512xf32>
    %20 = tpu.matmul %17, %19, %cst_24 {dimension_numbers = #tpu.dot_dimension_numbers<[1], [0], [0], [1], [0, 0, 1, 1], [], []>} : vector<8x128xbf16>, vector<128x512xbf16>, vector<8x512xf32> -> vector<8x512xf32>
    %21 = arith.addf %16, %20 : vector<8x512xf32>
    %22 = vector.extract_strided_slice %21 {offsets = [0, 0], sizes = [8, 128], strides = [1, 1]} : vector<8x512xf32> to vector<8x128xf32>
    %23 = arith.negf %22 : vector<8x128xf32>
    %24 = math.exp %23 : vector<8x128xf32>
    %cst_25 = arith.constant 1.000000e+00 : f32
    %25 = vector.broadcast %cst_25 : f32 to vector<8x128xf32>
    %26 = arith.addf %25, %24 : vector<8x128xf32>
    %27 = arith.divf %25, %26 : vector<8x128xf32>
    %28 = vector.extract_strided_slice %21 {offsets = [0, 128], sizes = [8, 128], strides = [1, 1]} : vector<8x512xf32> to vector<8x128xf32>
    %29 = arith.negf %28 : vector<8x128xf32>
    %30 = math.exp %29 : vector<8x128xf32>
    %cst_26 = arith.constant 1.000000e+00 : f32
    %31 = vector.broadcast %cst_26 : f32 to vector<8x128xf32>
    %32 = arith.addf %31, %30 : vector<8x128xf32>
    %33 = arith.divf %31, %32 : vector<8x128xf32>
    %34 = vector.extract_strided_slice %21 {offsets = [0, 256], sizes = [8, 128], strides = [1, 1]} : vector<8x512xf32> to vector<8x128xf32>
    %35 = math.tanh %34 : vector<8x128xf32>
    %36 = vector.extract_strided_slice %21 {offsets = [0, 384], sizes = [8, 128], strides = [1, 1]} : vector<8x512xf32> to vector<8x128xf32>
    %37 = arith.negf %36 : vector<8x128xf32>
    %38 = math.exp %37 : vector<8x128xf32>
    %cst_27 = arith.constant 1.000000e+00 : f32
    %39 = vector.broadcast %cst_27 : f32 to vector<8x128xf32>
    %40 = arith.addf %39, %38 : vector<8x128xf32>
    %41 = arith.divf %39, %40 : vector<8x128xf32>
    %42 = arith.mulf %33, %15 : vector<8x128xf32>
    %43 = arith.mulf %27, %35 : vector<8x128xf32>
    %44 = arith.addf %42, %43 : vector<8x128xf32>
    %45 = math.tanh %44 : vector<8x128xf32>
    %46 = arith.mulf %41, %45 : vector<8x128xf32>
    %c0_28 = arith.constant 0 : index
    %c0_29 = arith.constant 0 : index
    %47 = vector.load %arg10[%c0_28, %c0_29] : memref<96x128xf32, #tpu.memory_space<vmem>>, vector<8x128xf32>
    tpu.vector_store %arg10[%c0_28, %c0_29], %46 {strides = array<i32>} : memref<96x128xf32, #tpu.memory_space<vmem>>, vector<8x128xf32>,
    %c8 = arith.constant 8 : index
    %c0_30 = arith.constant 0 : index
    %48 = vector.load %arg11[%c8, %c0_30] : memref<96x512xf32, #tpu.memory_space<vmem>>, vector<8x512xf32>
    %49 = arith.truncf %46 : vector<8x128xf32> to vector<8x128xbf16>
    %c0_31 = arith.constant 0 : index
    %c0_32 = arith.constant 0 : index
    %c0_33 = arith.constant 0 : index
    %50 = vector.load %arg3[%c0_31, %c0_32, %c0_33] : memref<2x128x512xbf16, #tpu.memory_space<vmem>>, vector<1x128x512xbf16>
    %51 = vector.shape_cast %50 : vector<1x128x512xbf16> to vector<128x512xbf16>
    %cst_34 = arith.constant dense<0.000000e+00> : vector<8x512xf32>
    %52 = tpu.matmul %49, %51, %cst_34 {dimension_numbers = #tpu.dot_dimension_numbers<[1], [0], [0], [1], [0, 0, 1, 1], [], []>} : vector<8x128xbf16>, vector<128x512xbf16>, vector<8x512xf32> -> vector<8x512xf32>
    %53 = arith.addf %48, %52 : vector<8x512xf32>
    %54 = vector.extract_strided_slice %53 {offsets = [0, 0], sizes = [8, 128], strides = [1, 1]} : vector<8x512xf32> to vector<8x128xf32>
    %55 = arith.negf %54 : vector<8x128xf32>
    %56 = math.exp %55 : vector<8x128xf32>
    %cst_35 = arith.constant 1.000000e+00 : f32
    %57 = vector.broadcast %cst_35 : f32 to vector<8x128xf32>
    %58 = arith.addf %57, %56 : vector<8x128xf32>
    %59 = arith.divf %57, %58 : vector<8x128xf32>
    %60 = vector.extract_strided_slice %53 {offsets = [0, 128], sizes = [8, 128], strides = [1, 1]} : vector<8x512xf32> to vector<8x128xf32>
    %61 = arith.negf %60 : vector<8x128xf32>
    %62 = math.exp %61 : vector<8x128xf32>
    %cst_36 = arith.constant 1.000000e+00 : f32
    %63 = vector.broadcast %cst_36 : f32 to vector<8x128xf32>
    %64 = arith.addf %63, %62 : vector<8x128xf32>
    %65 = arith.divf %63, %64 : vector<8x128xf32>
    %66 = vector.extract_strided_slice %53 {offsets = [0, 256], sizes = [8, 128], strides = [1, 1]} : vector<8x512xf32> to vector<8x128xf32>
    %67 = math.tanh %66 : vector<8x128xf32>
    %68 = vector.extract_strided_slice %53 {offsets = [0, 384], sizes = [8, 128], strides = [1, 1]} : vector<8x512xf32> to vector<8x128xf32>
    %69 = arith.negf %68 : vector<8x128xf32>
    %70 = math.exp %69 : vector<8x128xf32>
    %cst_37 = arith.constant 1.000000e+00 : f32
    %71 = vector.broadcast %cst_37 : f32 to vector<8x128xf32>
    %72 = arith.addf %71, %70 : vector<8x128xf32>
    %73 = arith.divf %71, %72 : vector<8x128xf32>
    %74 = arith.mulf %65, %44 : vector<8x128xf32>
    %75 = arith.mulf %59, %67 : vector<8x128xf32>
    %76 = arith.addf %74, %75 : vector<8x128xf32>
    %77 = math.tanh %76 : vector<8x128xf32>
    %78 = arith.mulf %73, %77 : vector<8x128xf32>
    %c8_38 = arith.constant 8 : index
    %c0_39 = arith.constant 0 : index
    %79 = vector.load %arg10[%c8_38, %c0_39] : memref<96x128xf32, #tpu.memory_space<vmem>>, vector<8x128xf32>
    tpu.vector_store %arg10[%c8_38, %c0_39], %78 {strides = array<i32>} : memref<96x128xf32, #tpu.memory_space<vmem>>, vector<8x128xf32>,
    %c16 = arith.constant 16 : index
    %c0_40 = arith.constant 0 : index
    %80 = vector.load %arg11[%c16, %c0_40] : memref<96x512xf32, #tpu.memory_space<vmem>>, vector<8x512xf32>
    %81 = arith.truncf %78 : vector<8x128xf32> to vector<8x128xbf16>
    %c0_41 = arith.constant 0 : index
    %c0_42 = arith.constant 0 : index
    %c0_43 = arith.constant 0 : index
    %82 = vector.load %arg3[%c0_41, %c0_42, %c0_43] : memref<2x128x512xbf16, #tpu.memory_space<vmem>>, vector<1x128x512xbf16>
    %83 = vector.shape_cast %82 : vector<1x128x512xbf16> to vector<128x512xbf16>
    %cst_44 = arith.constant dense<0.000000e+00> : vector<8x512xf32>
    %84 = tpu.matmul %81, %83, %cst_44 {dimension_numbers = #tpu.dot_dimension_numbers<[1], [0], [0], [1], [0, 0, 1, 1], [], []>} : vector<8x128xbf16>, vector<128x512xbf16>, vector<8x512xf32> -> vector<8x512xf32>
    %85 = arith.addf %80, %84 : vector<8x512xf32>
    %86 = vector.extract_strided_slice %85 {offsets = [0, 0], sizes = [8, 128], strides = [1, 1]} : vector<8x512xf32> to vector<8x128xf32>
    %87 = arith.negf %86 : vector<8x128xf32>
    %88 = math.exp %87 : vector<8x128xf32>
    %cst_45 = arith.constant 1.000000e+00 : f32
    %89 = vector.broadcast %cst_45 : f32 to vector<8x128xf32>
    %90 = arith.addf %89, %88 : vector<8x128xf32>
    %91 = arith.divf %89, %90 : vector<8x128xf32>
    %92 = vector.extract_strided_slice %85 {offsets = [0, 128], sizes = [8, 128], strides = [1, 1]} : vector<8x512xf32> to vector<8x128xf32>
    %93 = arith.negf %92 : vector<8x128xf32>
    %94 = math.exp %93 : vector<8x128xf32>
    %cst_46 = arith.constant 1.000000e+00 : f32
    %95 = vector.broadcast %cst_46 : f32 to vector<8x128xf32>
    %96 = arith.addf %95, %94 : vector<8x128xf32>
    %97 = arith.divf %95, %96 : vector<8x128xf32>
    %98 = vector.extract_strided_slice %85 {offsets = [0, 256], sizes = [8, 128], strides = [1, 1]} : vector<8x512xf32> to vector<8x128xf32>
    %99 = math.tanh %98 : vector<8x128xf32>
    %100 = vector.extract_strided_slice %85 {offsets = [0, 384], sizes = [8, 128], strides = [1, 1]} : vector<8x512xf32> to vector<8x128xf32>
    %101 = arith.negf %100 : vector<8x128xf32>
    %102 = math.exp %101 : vector<8x128xf32>
    %cst_47 = arith.constant 1.000000e+00 : f32
    %103 = vector.broadcast %cst_47 : f32 to vector<8x128xf32>
    %104 = arith.addf %103, %102 : vector<8x128xf32>
    %105 = arith.divf %103, %104 : vector<8x128xf32>
    %106 = arith.mulf %97, %76 : vector<8x128xf32>
    %107 = arith.mulf %91, %99 : vector<8x128xf32>
    %108 = arith.addf %106, %107 : vector<8x128xf32>
    %109 = math.tanh %108 : vector<8x128xf32>
    %110 = arith.mulf %105, %109 : vector<8x128xf32>
    %c16_48 = arith.constant 16 : index
    %c0_49 = arith.constant 0 : index
    %111 = vector.load %arg10[%c16_48, %c0_49] : memref<96x128xf32, #tpu.memory_space<vmem>>, vector<8x128xf32>
    tpu.vector_store %arg10[%c16_48, %c0_49], %110 {strides = array<i32>} : memref<96x128xf32, #tpu.memory_space<vmem>>, vector<8x128xf32>,
    %c24 = arith.constant 24 : index
    %c0_50 = arith.constant 0 : index
    %112 = vector.load %arg11[%c24, %c0_50] : memref<96x512xf32, #tpu.memory_space<vmem>>, vector<8x512xf32>
    %113 = arith.truncf %110 : vector<8x128xf32> to vector<8x128xbf16>
    %c0_51 = arith.constant 0 : index
    %c0_52 = arith.constant 0 : index
    %c0_53 = arith.constant 0 : index
    %114 = vector.load %arg3[%c0_51, %c0_52, %c0_53] : memref<2x128x512xbf16, #tpu.memory_space<vmem>>, vector<1x128x512xbf16>
    %115 = vector.shape_cast %114 : vector<1x128x512xbf16> to vector<128x512xbf16>
    %cst_54 = arith.constant dense<0.000000e+00> : vector<8x512xf32>
    %116 = tpu.matmul %113, %115, %cst_54 {dimension_numbers = #tpu.dot_dimension_numbers<[1], [0], [0], [1], [0, 0, 1, 1], [], []>} : vector<8x128xbf16>, vector<128x512xbf16>, vector<8x512xf32> -> vector<8x512xf32>
    %117 = arith.addf %112, %116 : vector<8x512xf32>
    %118 = vector.extract_strided_slice %117 {offsets = [0, 0], sizes = [8, 128], strides = [1, 1]} : vector<8x512xf32> to vector<8x128xf32>
    %119 = arith.negf %118 : vector<8x128xf32>
    %120 = math.exp %119 : vector<8x128xf32>
    %cst_55 = arith.constant 1.000000e+00 : f32
    %121 = vector.broadcast %cst_55 : f32 to vector<8x128xf32>
    %122 = arith.addf %121, %120 : vector<8x128xf32>
    %123 = arith.divf %121, %122 : vector<8x128xf32>
    %124 = vector.extract_strided_slice %117 {offsets = [0, 128], sizes = [8, 128], strides = [1, 1]} : vector<8x512xf32> to vector<8x128xf32>
    %125 = arith.negf %124 : vector<8x128xf32>
    %126 = math.exp %125 : vector<8x128xf32>
    %cst_56 = arith.constant 1.000000e+00 : f32
    %127 = vector.broadcast %cst_56 : f32 to vector<8x128xf32>
    %128 = arith.addf %127, %126 : vector<8x128xf32>
    %129 = arith.divf %127, %128 : vector<8x128xf32>
    %130 = vector.extract_strided_slice %117 {offsets = [0, 256], sizes = [8, 128], strides = [1, 1]} : vector<8x512xf32> to vector<8x128xf32>
    %131 = math.tanh %130 : vector<8x128xf32>
    %132 = vector.extract_strided_slice %117 {offsets = [0, 384], sizes = [8, 128], strides = [1, 1]} : vector<8x512xf32> to vector<8x128xf32>
    %133 = arith.negf %132 : vector<8x128xf32>
    %134 = math.exp %133 : vector<8x128xf32>
    %cst_57 = arith.constant 1.000000e+00 : f32
    %135 = vector.broadcast %cst_57 : f32 to vector<8x128xf32>
    %136 = arith.addf %135, %134 : vector<8x128xf32>
    %137 = arith.divf %135, %136 : vector<8x128xf32>
    %138 = arith.mulf %129, %108 : vector<8x128xf32>
    %139 = arith.mulf %123, %131 : vector<8x128xf32>
    %140 = arith.addf %138, %139 : vector<8x128xf32>
    %141 = math.tanh %140 : vector<8x128xf32>
    %142 = arith.mulf %137, %141 : vector<8x128xf32>
    %c24_58 = arith.constant 24 : index
    %c0_59 = arith.constant 0 : index
    %143 = vector.load %arg10[%c24_58, %c0_59] : memref<96x128xf32, #tpu.memory_space<vmem>>, vector<8x128xf32>
    tpu.vector_store %arg10[%c24_58, %c0_59], %142 {strides = array<i32>} : memref<96x128xf32, #tpu.memory_space<vmem>>, vector<8x128xf32>,
    %c32 = arith.constant 32 : index
    %c0_60 = arith.constant 0 : index
    %144 = vector.load %arg11[%c32, %c0_60] : memref<96x512xf32, #tpu.memory_space<vmem>>, vector<8x512xf32>
    %145 = arith.truncf %142 : vector<8x128xf32> to vector<8x128xbf16>
    %c0_61 = arith.constant 0 : index
    %c0_62 = arith.constant 0 : index
    %c0_63 = arith.constant 0 : index
    %146 = vector.load %arg3[%c0_61, %c0_62, %c0_63] : memref<2x128x512xbf16, #tpu.memory_space<vmem>>, vector<1x128x512xbf16>
    %147 = vector.shape_cast %146 : vector<1x128x512xbf16> to vector<128x512xbf16>
    %cst_64 = arith.constant dense<0.000000e+00> : vector<8x512xf32>
    %148 = tpu.matmul %145, %147, %cst_64 {dimension_numbers = #tpu.dot_dimension_numbers<[1], [0], [0], [1], [0, 0, 1, 1], [], []>} : vector<8x128xbf16>, vector<128x512xbf16>, vector<8x512xf32> -> vector<8x512xf32>
    %149 = arith.addf %144, %148 : vector<8x512xf32>
    %150 = vector.extract_strided_slice %149 {offsets = [0, 0], sizes = [8, 128], strides = [1, 1]} : vector<8x512xf32> to vector<8x128xf32>
    %151 = arith.negf %150 : vector<8x128xf32>
    %152 = math.exp %151 : vector<8x128xf32>
    %cst_65 = arith.constant 1.000000e+00 : f32
    %153 = vector.broadcast %cst_65 : f32 to vector<8x128xf32>
    %154 = arith.addf %153, %152 : vector<8x128xf32>
    %155 = arith.divf %153, %154 : vector<8x128xf32>
    %156 = vector.extract_strided_slice %149 {offsets = [0, 128], sizes = [8, 128], strides = [1, 1]} : vector<8x512xf32> to vector<8x128xf32>
    %157 = arith.negf %156 : vector<8x128xf32>
    %158 = math.exp %157 : vector<8x128xf32>
    %cst_66 = arith.constant 1.000000e+00 : f32
    %159 = vector.broadcast %cst_66 : f32 to vector<8x128xf32>
    %160 = arith.addf %159, %158 : vector<8x128xf32>
    %161 = arith.divf %159, %160 : vector<8x128xf32>
    %162 = vector.extract_strided_slice %149 {offsets = [0, 256], sizes = [8, 128], strides = [1, 1]} : vector<8x512xf32> to vector<8x128xf32>
    %163 = math.tanh %162 : vector<8x128xf32>
    %164 = vector.extract_strided_slice %149 {offsets = [0, 384], sizes = [8, 128], strides = [1, 1]} : vector<8x512xf32> to vector<8x128xf32>
    %165 = arith.negf %164 : vector<8x128xf32>
    %166 = math.exp %165 : vector<8x128xf32>
    %cst_67 = arith.constant 1.000000e+00 : f32
    %167 = vector.broadcast %cst_67 : f32 to vector<8x128xf32>
    %168 = arith.addf %167, %166 : vector<8x128xf32>
    %169 = arith.divf %167, %168 : vector<8x128xf32>
    %170 = arith.mulf %161, %140 : vector<8x128xf32>
    %171 = arith.mulf %155, %163 : vector<8x128xf32>
    %172 = arith.addf %170, %171 : vector<8x128xf32>
    %173 = math.tanh %172 : vector<8x128xf32>
    %174 = arith.mulf %169, %173 : vector<8x128xf32>
    %c32_68 = arith.constant 32 : index
    %c0_69 = arith.constant 0 : index
    %175 = vector.load %arg10[%c32_68, %c0_69] : memref<96x128xf32, #tpu.memory_space<vmem>>, vector<8x128xf32>
    tpu.vector_store %arg10[%c32_68, %c0_69], %174 {strides = array<i32>} : memref<96x128xf32, #tpu.memory_space<vmem>>, vector<8x128xf32>,
    %c40 = arith.constant 40 : index
    %c0_70 = arith.constant 0 : index
    %176 = vector.load %arg11[%c40, %c0_70] : memref<96x512xf32, #tpu.memory_space<vmem>>, vector<8x512xf32>
    %177 = arith.truncf %174 : vector<8x128xf32> to vector<8x128xbf16>
    %c0_71 = arith.constant 0 : index
    %c0_72 = arith.constant 0 : index
    %c0_73 = arith.constant 0 : index
    %178 = vector.load %arg3[%c0_71, %c0_72, %c0_73] : memref<2x128x512xbf16, #tpu.memory_space<vmem>>, vector<1x128x512xbf16>
    %179 = vector.shape_cast %178 : vector<1x128x512xbf16> to vector<128x512xbf16>
    %cst_74 = arith.constant dense<0.000000e+00> : vector<8x512xf32>
    %180 = tpu.matmul %177, %179, %cst_74 {dimension_numbers = #tpu.dot_dimension_numbers<[1], [0], [0], [1], [0, 0, 1, 1], [], []>} : vector<8x128xbf16>, vector<128x512xbf16>, vector<8x512xf32> -> vector<8x512xf32>
    %181 = arith.addf %176, %180 : vector<8x512xf32>
    %182 = vector.extract_strided_slice %181 {offsets = [0, 0], sizes = [8, 128], strides = [1, 1]} : vector<8x512xf32> to vector<8x128xf32>
    %183 = arith.negf %182 : vector<8x128xf32>
    %184 = math.exp %183 : vector<8x128xf32>
    %cst_75 = arith.constant 1.000000e+00 : f32
    %185 = vector.broadcast %cst_75 : f32 to vector<8x128xf32>
    %186 = arith.addf %185, %184 : vector<8x128xf32>
    %187 = arith.divf %185, %186 : vector<8x128xf32>
    %188 = vector.extract_strided_slice %181 {offsets = [0, 128], sizes = [8, 128], strides = [1, 1]} : vector<8x512xf32> to vector<8x128xf32>
    %189 = arith.negf %188 : vector<8x128xf32>
    %190 = math.exp %189 : vector<8x128xf32>
    %cst_76 = arith.constant 1.000000e+00 : f32
    %191 = vector.broadcast %cst_76 : f32 to vector<8x128xf32>
    %192 = arith.addf %191, %190 : vector<8x128xf32>
    %193 = arith.divf %191, %192 : vector<8x128xf32>
    %194 = vector.extract_strided_slice %181 {offsets = [0, 256], sizes = [8, 128], strides = [1, 1]} : vector<8x512xf32> to vector<8x128xf32>
    %195 = math.tanh %194 : vector<8x128xf32>
    %196 = vector.extract_strided_slice %181 {offsets = [0, 384], sizes = [8, 128], strides = [1, 1]} : vector<8x512xf32> to vector<8x128xf32>
    %197 = arith.negf %196 : vector<8x128xf32>
    %198 = math.exp %197 : vector<8x128xf32>
    %cst_77 = arith.constant 1.000000e+00 : f32
    %199 = vector.broadcast %cst_77 : f32 to vector<8x128xf32>
    %200 = arith.addf %199, %198 : vector<8x128xf32>
    %201 = arith.divf %199, %200 : vector<8x128xf32>
    %202 = arith.mulf %193, %172 : vector<8x128xf32>
    %203 = arith.mulf %187, %195 : vector<8x128xf32>
    %204 = arith.addf %202, %203 : vector<8x128xf32>
    %205 = math.tanh %204 : vector<8x128xf32>
    %206 = arith.mulf %201, %205 : vector<8x128xf32>
    %c40_78 = arith.constant 40 : index
    %c0_79 = arith.constant 0 : index
    %207 = vector.load %arg10[%c40_78, %c0_79] : memref<96x128xf32, #tpu.memory_space<vmem>>, vector<8x128xf32>
    tpu.vector_store %arg10[%c40_78, %c0_79], %206 {strides = array<i32>} : memref<96x128xf32, #tpu.memory_space<vmem>>, vector<8x128xf32>,
    %c48 = arith.constant 48 : index
    %c0_80 = arith.constant 0 : index
    %208 = vector.load %arg11[%c48, %c0_80] : memref<96x512xf32, #tpu.memory_space<vmem>>, vector<8x512xf32>
    %209 = arith.truncf %206 : vector<8x128xf32> to vector<8x128xbf16>
    %c0_81 = arith.constant 0 : index
    %c0_82 = arith.constant 0 : index
    %c0_83 = arith.constant 0 : index
    %210 = vector.load %arg3[%c0_81, %c0_82, %c0_83] : memref<2x128x512xbf16, #tpu.memory_space<vmem>>, vector<1x128x512xbf16>
    %211 = vector.shape_cast %210 : vector<1x128x512xbf16> to vector<128x512xbf16>
    %cst_84 = arith.constant dense<0.000000e+00> : vector<8x512xf32>
    %212 = tpu.matmul %209, %211, %cst_84 {dimension_numbers = #tpu.dot_dimension_numbers<[1], [0], [0], [1], [0, 0, 1, 1], [], []>} : vector<8x128xbf16>, vector<128x512xbf16>, vector<8x512xf32> -> vector<8x512xf32>
    %213 = arith.addf %208, %212 : vector<8x512xf32>
    %214 = vector.extract_strided_slice %213 {offsets = [0, 0], sizes = [8, 128], strides = [1, 1]} : vector<8x512xf32> to vector<8x128xf32>
    %215 = arith.negf %214 : vector<8x128xf32>
    %216 = math.exp %215 : vector<8x128xf32>
    %cst_85 = arith.constant 1.000000e+00 : f32
    %217 = vector.broadcast %cst_85 : f32 to vector<8x128xf32>
    %218 = arith.addf %217, %216 : vector<8x128xf32>
    %219 = arith.divf %217, %218 : vector<8x128xf32>
    %220 = vector.extract_strided_slice %213 {offsets = [0, 128], sizes = [8, 128], strides = [1, 1]} : vector<8x512xf32> to vector<8x128xf32>
    %221 = arith.negf %220 : vector<8x128xf32>
    %222 = math.exp %221 : vector<8x128xf32>
    %cst_86 = arith.constant 1.000000e+00 : f32
    %223 = vector.broadcast %cst_86 : f32 to vector<8x128xf32>
    %224 = arith.addf %223, %222 : vector<8x128xf32>
    %225 = arith.divf %223, %224 : vector<8x128xf32>
    %226 = vector.extract_strided_slice %213 {offsets = [0, 256], sizes = [8, 128], strides = [1, 1]} : vector<8x512xf32> to vector<8x128xf32>
    %227 = math.tanh %226 : vector<8x128xf32>
    %228 = vector.extract_strided_slice %213 {offsets = [0, 384], sizes = [8, 128], strides = [1, 1]} : vector<8x512xf32> to vector<8x128xf32>
    %229 = arith.negf %228 : vector<8x128xf32>
    %230 = math.exp %229 : vector<8x128xf32>
    %cst_87 = arith.constant 1.000000e+00 : f32
    %231 = vector.broadcast %cst_87 : f32 to vector<8x128xf32>
    %232 = arith.addf %231, %230 : vector<8x128xf32>
    %233 = arith.divf %231, %232 : vector<8x128xf32>
    %234 = arith.mulf %225, %204 : vector<8x128xf32>
    %235 = arith.mulf %219, %227 : vector<8x128xf32>
    %236 = arith.addf %234, %235 : vector<8x128xf32>
    %237 = math.tanh %236 : vector<8x128xf32>
    %238 = arith.mulf %233, %237 : vector<8x128xf32>
    %c48_88 = arith.constant 48 : index
    %c0_89 = arith.constant 0 : index
    %239 = vector.load %arg10[%c48_88, %c0_89] : memref<96x128xf32, #tpu.memory_space<vmem>>, vector<8x128xf32>
    tpu.vector_store %arg10[%c48_88, %c0_89], %238 {strides = array<i32>} : memref<96x128xf32, #tpu.memory_space<vmem>>, vector<8x128xf32>,
    %c56 = arith.constant 56 : index
    %c0_90 = arith.constant 0 : index
    %240 = vector.load %arg11[%c56, %c0_90] : memref<96x512xf32, #tpu.memory_space<vmem>>, vector<8x512xf32>
    %241 = arith.truncf %238 : vector<8x128xf32> to vector<8x128xbf16>
    %c0_91 = arith.constant 0 : index
    %c0_92 = arith.constant 0 : index
    %c0_93 = arith.constant 0 : index
    %242 = vector.load %arg3[%c0_91, %c0_92, %c0_93] : memref<2x128x512xbf16, #tpu.memory_space<vmem>>, vector<1x128x512xbf16>
    %243 = vector.shape_cast %242 : vector<1x128x512xbf16> to vector<128x512xbf16>
    %cst_94 = arith.constant dense<0.000000e+00> : vector<8x512xf32>
    %244 = tpu.matmul %241, %243, %cst_94 {dimension_numbers = #tpu.dot_dimension_numbers<[1], [0], [0], [1], [0, 0, 1, 1], [], []>} : vector<8x128xbf16>, vector<128x512xbf16>, vector<8x512xf32> -> vector<8x512xf32>
    %245 = arith.addf %240, %244 : vector<8x512xf32>
    %246 = vector.extract_strided_slice %245 {offsets = [0, 0], sizes = [8, 128], strides = [1, 1]} : vector<8x512xf32> to vector<8x128xf32>
    %247 = arith.negf %246 : vector<8x128xf32>
    %248 = math.exp %247 : vector<8x128xf32>
    %cst_95 = arith.constant 1.000000e+00 : f32
    %249 = vector.broadcast %cst_95 : f32 to vector<8x128xf32>
    %250 = arith.addf %249, %248 : vector<8x128xf32>
    %251 = arith.divf %249, %250 : vector<8x128xf32>
    %252 = vector.extract_strided_slice %245 {offsets = [0, 128], sizes = [8, 128], strides = [1, 1]} : vector<8x512xf32> to vector<8x128xf32>
    %253 = arith.negf %252 : vector<8x128xf32>
    %254 = math.exp %253 : vector<8x128xf32>
    %cst_96 = arith.constant 1.000000e+00 : f32
    %255 = vector.broadcast %cst_96 : f32 to vector<8x128xf32>
    %256 = arith.addf %255, %254 : vector<8x128xf32>
    %257 = arith.divf %255, %256 : vector<8x128xf32>
    %258 = vector.extract_strided_slice %245 {offsets = [0, 256], sizes = [8, 128], strides = [1, 1]} : vector<8x512xf32> to vector<8x128xf32>
    %259 = math.tanh %258 : vector<8x128xf32>
    %260 = vector.extract_strided_slice %245 {offsets = [0, 384], sizes = [8, 128], strides = [1, 1]} : vector<8x512xf32> to vector<8x128xf32>
    %261 = arith.negf %260 : vector<8x128xf32>
    %262 = math.exp %261 : vector<8x128xf32>
    %cst_97 = arith.constant 1.000000e+00 : f32
    %263 = vector.broadcast %cst_97 : f32 to vector<8x128xf32>
    %264 = arith.addf %263, %262 : vector<8x128xf32>
    %265 = arith.divf %263, %264 : vector<8x128xf32>
    %266 = arith.mulf %257, %236 : vector<8x128xf32>
    %267 = arith.mulf %251, %259 : vector<8x128xf32>
    %268 = arith.addf %266, %267 : vector<8x128xf32>
    %269 = math.tanh %268 : vector<8x128xf32>
    %270 = arith.mulf %265, %269 : vector<8x128xf32>
    %c56_98 = arith.constant 56 : index
    %c0_99 = arith.constant 0 : index
    %271 = vector.load %arg10[%c56_98, %c0_99] : memref<96x128xf32, #tpu.memory_space<vmem>>, vector<8x128xf32>
    tpu.vector_store %arg10[%c56_98, %c0_99], %270 {strides = array<i32>} : memref<96x128xf32, #tpu.memory_space<vmem>>, vector<8x128xf32>,
    %c64 = arith.constant 64 : index
    %c0_100 = arith.constant 0 : index
    %272 = vector.load %arg11[%c64, %c0_100] : memref<96x512xf32, #tpu.memory_space<vmem>>, vector<8x512xf32>
    %273 = arith.truncf %270 : vector<8x128xf32> to vector<8x128xbf16>
    %c0_101 = arith.constant 0 : index
    %c0_102 = arith.constant 0 : index
    %c0_103 = arith.constant 0 : index
    %274 = vector.load %arg3[%c0_101, %c0_102, %c0_103] : memref<2x128x512xbf16, #tpu.memory_space<vmem>>, vector<1x128x512xbf16>
    %275 = vector.shape_cast %274 : vector<1x128x512xbf16> to vector<128x512xbf16>
    %cst_104 = arith.constant dense<0.000000e+00> : vector<8x512xf32>
    %276 = tpu.matmul %273, %275, %cst_104 {dimension_numbers = #tpu.dot_dimension_numbers<[1], [0], [0], [1], [0, 0, 1, 1], [], []>} : vector<8x128xbf16>, vector<128x512xbf16>, vector<8x512xf32> -> vector<8x512xf32>
    %277 = arith.addf %272, %276 : vector<8x512xf32>
    %278 = vector.extract_strided_slice %277 {offsets = [0, 0], sizes = [8, 128], strides = [1, 1]} : vector<8x512xf32> to vector<8x128xf32>
    %279 = arith.negf %278 : vector<8x128xf32>
    %280 = math.exp %279 : vector<8x128xf32>
    %cst_105 = arith.constant 1.000000e+00 : f32
    %281 = vector.broadcast %cst_105 : f32 to vector<8x128xf32>
    %282 = arith.addf %281, %280 : vector<8x128xf32>
    %283 = arith.divf %281, %282 : vector<8x128xf32>
    %284 = vector.extract_strided_slice %277 {offsets = [0, 128], sizes = [8, 128], strides = [1, 1]} : vector<8x512xf32> to vector<8x128xf32>
    %285 = arith.negf %284 : vector<8x128xf32>
    %286 = math.exp %285 : vector<8x128xf32>
    %cst_106 = arith.constant 1.000000e+00 : f32
    %287 = vector.broadcast %cst_106 : f32 to vector<8x128xf32>
    %288 = arith.addf %287, %286 : vector<8x128xf32>
    %289 = arith.divf %287, %288 : vector<8x128xf32>
    %290 = vector.extract_strided_slice %277 {offsets = [0, 256], sizes = [8, 128], strides = [1, 1]} : vector<8x512xf32> to vector<8x128xf32>
    %291 = math.tanh %290 : vector<8x128xf32>
    %292 = vector.extract_strided_slice %277 {offsets = [0, 384], sizes = [8, 128], strides = [1, 1]} : vector<8x512xf32> to vector<8x128xf32>
    %293 = arith.negf %292 : vector<8x128xf32>
    %294 = math.exp %293 : vector<8x128xf32>
    %cst_107 = arith.constant 1.000000e+00 : f32
    %295 = vector.broadcast %cst_107 : f32 to vector<8x128xf32>
    %296 = arith.addf %295, %294 : vector<8x128xf32>
    %297 = arith.divf %295, %296 : vector<8x128xf32>
    %298 = arith.mulf %289, %268 : vector<8x128xf32>
    %299 = arith.mulf %283, %291 : vector<8x128xf32>
    %300 = arith.addf %298, %299 : vector<8x128xf32>
    %301 = math.tanh %300 : vector<8x128xf32>
    %302 = arith.mulf %297, %301 : vector<8x128xf32>
    %c64_108 = arith.constant 64 : index
    %c0_109 = arith.constant 0 : index
    %303 = vector.load %arg10[%c64_108, %c0_109] : memref<96x128xf32, #tpu.memory_space<vmem>>, vector<8x128xf32>
    tpu.vector_store %arg10[%c64_108, %c0_109], %302 {strides = array<i32>} : memref<96x128xf32, #tpu.memory_space<vmem>>, vector<8x128xf32>,
    %c72 = arith.constant 72 : index
    %c0_110 = arith.constant 0 : index
    %304 = vector.load %arg11[%c72, %c0_110] : memref<96x512xf32, #tpu.memory_space<vmem>>, vector<8x512xf32>
    %305 = arith.truncf %302 : vector<8x128xf32> to vector<8x128xbf16>
    %c0_111 = arith.constant 0 : index
    %c0_112 = arith.constant 0 : index
    %c0_113 = arith.constant 0 : index
    %306 = vector.load %arg3[%c0_111, %c0_112, %c0_113] : memref<2x128x512xbf16, #tpu.memory_space<vmem>>, vector<1x128x512xbf16>
    %307 = vector.shape_cast %306 : vector<1x128x512xbf16> to vector<128x512xbf16>
    %cst_114 = arith.constant dense<0.000000e+00> : vector<8x512xf32>
    %308 = tpu.matmul %305, %307, %cst_114 {dimension_numbers = #tpu.dot_dimension_numbers<[1], [0], [0], [1], [0, 0, 1, 1], [], []>} : vector<8x128xbf16>, vector<128x512xbf16>, vector<8x512xf32> -> vector<8x512xf32>
    %309 = arith.addf %304, %308 : vector<8x512xf32>
    %310 = vector.extract_strided_slice %309 {offsets = [0, 0], sizes = [8, 128], strides = [1, 1]} : vector<8x512xf32> to vector<8x128xf32>
    %311 = arith.negf %310 : vector<8x128xf32>
    %312 = math.exp %311 : vector<8x128xf32>
    %cst_115 = arith.constant 1.000000e+00 : f32
    %313 = vector.broadcast %cst_115 : f32 to vector<8x128xf32>
    %314 = arith.addf %313, %312 : vector<8x128xf32>
    %315 = arith.divf %313, %314 : vector<8x128xf32>
    %316 = vector.extract_strided_slice %309 {offsets = [0, 128], sizes = [8, 128], strides = [1, 1]} : vector<8x512xf32> to vector<8x128xf32>
    %317 = arith.negf %316 : vector<8x128xf32>
    %318 = math.exp %317 : vector<8x128xf32>
    %cst_116 = arith.constant 1.000000e+00 : f32
    %319 = vector.broadcast %cst_116 : f32 to vector<8x128xf32>
    %320 = arith.addf %319, %318 : vector<8x128xf32>
    %321 = arith.divf %319, %320 : vector<8x128xf32>
    %322 = vector.extract_strided_slice %309 {offsets = [0, 256], sizes = [8, 128], strides = [1, 1]} : vector<8x512xf32> to vector<8x128xf32>
    %323 = math.tanh %322 : vector<8x128xf32>
    %324 = vector.extract_strided_slice %309 {offsets = [0, 384], sizes = [8, 128], strides = [1, 1]} : vector<8x512xf32> to vector<8x128xf32>
    %325 = arith.negf %324 : vector<8x128xf32>
    %326 = math.exp %325 : vector<8x128xf32>
    %cst_117 = arith.constant 1.000000e+00 : f32
    %327 = vector.broadcast %cst_117 : f32 to vector<8x128xf32>
    %328 = arith.addf %327, %326 : vector<8x128xf32>
    %329 = arith.divf %327, %328 : vector<8x128xf32>
    %330 = arith.mulf %321, %300 : vector<8x128xf32>
    %331 = arith.mulf %315, %323 : vector<8x128xf32>
    %332 = arith.addf %330, %331 : vector<8x128xf32>
    %333 = math.tanh %332 : vector<8x128xf32>
    %334 = arith.mulf %329, %333 : vector<8x128xf32>
    %c72_118 = arith.constant 72 : index
    %c0_119 = arith.constant 0 : index
    %335 = vector.load %arg10[%c72_118, %c0_119] : memref<96x128xf32, #tpu.memory_space<vmem>>, vector<8x128xf32>
    tpu.vector_store %arg10[%c72_118, %c0_119], %334 {strides = array<i32>} : memref<96x128xf32, #tpu.memory_space<vmem>>, vector<8x128xf32>,
    %c80 = arith.constant 80 : index
    %c0_120 = arith.constant 0 : index
    %336 = vector.load %arg11[%c80, %c0_120] : memref<96x512xf32, #tpu.memory_space<vmem>>, vector<8x512xf32>
    %337 = arith.truncf %334 : vector<8x128xf32> to vector<8x128xbf16>
    %c0_121 = arith.constant 0 : index
    %c0_122 = arith.constant 0 : index
    %c0_123 = arith.constant 0 : index
    %338 = vector.load %arg3[%c0_121, %c0_122, %c0_123] : memref<2x128x512xbf16, #tpu.memory_space<vmem>>, vector<1x128x512xbf16>
    %339 = vector.shape_cast %338 : vector<1x128x512xbf16> to vector<128x512xbf16>
    %cst_124 = arith.constant dense<0.000000e+00> : vector<8x512xf32>
    %340 = tpu.matmul %337, %339, %cst_124 {dimension_numbers = #tpu.dot_dimension_numbers<[1], [0], [0], [1], [0, 0, 1, 1], [], []>} : vector<8x128xbf16>, vector<128x512xbf16>, vector<8x512xf32> -> vector<8x512xf32>
    %341 = arith.addf %336, %340 : vector<8x512xf32>
    %342 = vector.extract_strided_slice %341 {offsets = [0, 0], sizes = [8, 128], strides = [1, 1]} : vector<8x512xf32> to vector<8x128xf32>
    %343 = arith.negf %342 : vector<8x128xf32>
    %344 = math.exp %343 : vector<8x128xf32>
    %cst_125 = arith.constant 1.000000e+00 : f32
    %345 = vector.broadcast %cst_125 : f32 to vector<8x128xf32>
    %346 = arith.addf %345, %344 : vector<8x128xf32>
    %347 = arith.divf %345, %346 : vector<8x128xf32>
    %348 = vector.extract_strided_slice %341 {offsets = [0, 128], sizes = [8, 128], strides = [1, 1]} : vector<8x512xf32> to vector<8x128xf32>
    %349 = arith.negf %348 : vector<8x128xf32>
    %350 = math.exp %349 : vector<8x128xf32>
    %cst_126 = arith.constant 1.000000e+00 : f32
    %351 = vector.broadcast %cst_126 : f32 to vector<8x128xf32>
    %352 = arith.addf %351, %350 : vector<8x128xf32>
    %353 = arith.divf %351, %352 : vector<8x128xf32>
    %354 = vector.extract_strided_slice %341 {offsets = [0, 256], sizes = [8, 128], strides = [1, 1]} : vector<8x512xf32> to vector<8x128xf32>
    %355 = math.tanh %354 : vector<8x128xf32>
    %356 = vector.extract_strided_slice %341 {offsets = [0, 384], sizes = [8, 128], strides = [1, 1]} : vector<8x512xf32> to vector<8x128xf32>
    %357 = arith.negf %356 : vector<8x128xf32>
    %358 = math.exp %357 : vector<8x128xf32>
    %cst_127 = arith.constant 1.000000e+00 : f32
    %359 = vector.broadcast %cst_127 : f32 to vector<8x128xf32>
    %360 = arith.addf %359, %358 : vector<8x128xf32>
    %361 = arith.divf %359, %360 : vector<8x128xf32>
    %362 = arith.mulf %353, %332 : vector<8x128xf32>
    %363 = arith.mulf %347, %355 : vector<8x128xf32>
    %364 = arith.addf %362, %363 : vector<8x128xf32>
    %365 = math.tanh %364 : vector<8x128xf32>
    %366 = arith.mulf %361, %365 : vector<8x128xf32>
    %c80_128 = arith.constant 80 : index
    %c0_129 = arith.constant 0 : index
    %367 = vector.load %arg10[%c80_128, %c0_129] : memref<96x128xf32, #tpu.memory_space<vmem>>, vector<8x128xf32>
    tpu.vector_store %arg10[%c80_128, %c0_129], %366 {strides = array<i32>} : memref<96x128xf32, #tpu.memory_space<vmem>>, vector<8x128xf32>,
    %c88 = arith.constant 88 : index
    %c0_130 = arith.constant 0 : index
    %368 = vector.load %arg11[%c88, %c0_130] : memref<96x512xf32, #tpu.memory_space<vmem>>, vector<8x512xf32>
    %369 = arith.truncf %366 : vector<8x128xf32> to vector<8x128xbf16>
    %c0_131 = arith.constant 0 : index
    %c0_132 = arith.constant 0 : index
    %c0_133 = arith.constant 0 : index
    %370 = vector.load %arg3[%c0_131, %c0_132, %c0_133] : memref<2x128x512xbf16, #tpu.memory_space<vmem>>, vector<1x128x512xbf16>
    %371 = vector.shape_cast %370 : vector<1x128x512xbf16> to vector<128x512xbf16>
    %cst_134 = arith.constant dense<0.000000e+00> : vector<8x512xf32>
    %372 = tpu.matmul %369, %371, %cst_134 {dimension_numbers = #tpu.dot_dimension_numbers<[1], [0], [0], [1], [0, 0, 1, 1], [], []>} : vector<8x128xbf16>, vector<128x512xbf16>, vector<8x512xf32> -> vector<8x512xf32>
    %373 = arith.addf %368, %372 : vector<8x512xf32>
    %374 = vector.extract_strided_slice %373 {offsets = [0, 0], sizes = [8, 128], strides = [1, 1]} : vector<8x512xf32> to vector<8x128xf32>
    %375 = arith.negf %374 : vector<8x128xf32>
    %376 = math.exp %375 : vector<8x128xf32>
    %cst_135 = arith.constant 1.000000e+00 : f32
    %377 = vector.broadcast %cst_135 : f32 to vector<8x128xf32>
    %378 = arith.addf %377, %376 : vector<8x128xf32>
    %379 = arith.divf %377, %378 : vector<8x128xf32>
    %380 = vector.extract_strided_slice %373 {offsets = [0, 128], sizes = [8, 128], strides = [1, 1]} : vector<8x512xf32> to vector<8x128xf32>
    %381 = arith.negf %380 : vector<8x128xf32>
    %382 = math.exp %381 : vector<8x128xf32>
    %cst_136 = arith.constant 1.000000e+00 : f32
    %383 = vector.broadcast %cst_136 : f32 to vector<8x128xf32>
    %384 = arith.addf %383, %382 : vector<8x128xf32>
    %385 = arith.divf %383, %384 : vector<8x128xf32>
    %386 = vector.extract_strided_slice %373 {offsets = [0, 256], sizes = [8, 128], strides = [1, 1]} : vector<8x512xf32> to vector<8x128xf32>
    %387 = math.tanh %386 : vector<8x128xf32>
    %388 = vector.extract_strided_slice %373 {offsets = [0, 384], sizes = [8, 128], strides = [1, 1]} : vector<8x512xf32> to vector<8x128xf32>
    %389 = arith.negf %388 : vector<8x128xf32>
    %390 = math.exp %389 : vector<8x128xf32>
    %cst_137 = arith.constant 1.000000e+00 : f32
    %391 = vector.broadcast %cst_137 : f32 to vector<8x128xf32>
    %392 = arith.addf %391, %390 : vector<8x128xf32>
    %393 = arith.divf %391, %392 : vector<8x128xf32>
    %394 = arith.mulf %385, %364 : vector<8x128xf32>
    %395 = arith.mulf %379, %387 : vector<8x128xf32>
    %396 = arith.addf %394, %395 : vector<8x128xf32>
    %397 = math.tanh %396 : vector<8x128xf32>
    %398 = arith.mulf %393, %397 : vector<8x128xf32>
    %c88_138 = arith.constant 88 : index
    %c0_139 = arith.constant 0 : index
    %399 = vector.load %arg10[%c88_138, %c0_139] : memref<96x128xf32, #tpu.memory_space<vmem>>, vector<8x128xf32>
    tpu.vector_store %arg10[%c88_138, %c0_139], %398 {strides = array<i32>} : memref<96x128xf32, #tpu.memory_space<vmem>>, vector<8x128xf32>,
    %c0_140 = arith.constant 0 : index
    %c0_141 = arith.constant 0 : index
    %c0_142 = arith.constant 0 : index
    %400 = vector.load %arg8[%c0_140, %c0_141, %c0_142] : memref<2x8x128xf32, #tpu.memory_space<vmem>>, vector<1x8x128xf32>
    %401 = vector.shape_cast %400 : vector<1x8x128xf32> to vector<8x128xf32>
    %402 = vector.shape_cast %398 : vector<8x128xf32> to vector<1x8x128xf32>
    tpu.vector_store %arg8[%c0_140, %c0_141, %c0_142], %402 {strides = array<i32>} : memref<2x8x128xf32, #tpu.memory_space<vmem>>, vector<1x8x128xf32>,
    %c0_143 = arith.constant 0 : index
    %c0_144 = arith.constant 0 : index
    %c0_145 = arith.constant 0 : index
    %403 = vector.load %arg9[%c0_143, %c0_144, %c0_145] : memref<2x8x128xf32, #tpu.memory_space<vmem>>, vector<1x8x128xf32>
    %404 = vector.shape_cast %403 : vector<1x8x128xf32> to vector<8x128xf32>
    %405 = vector.shape_cast %396 : vector<8x128xf32> to vector<1x8x128xf32>
    tpu.vector_store %arg9[%c0_143, %c0_144, %c0_145], %405 {strides = array<i32>} : memref<2x8x128xf32, #tpu.memory_space<vmem>>, vector<1x8x128xf32>,
    %c0_146 = arith.constant 0 : index
    %c0_147 = arith.constant 0 : index
    %406 = vector.load %arg10[%c0_146, %c0_147] : memref<96x128xf32, #tpu.memory_space<vmem>>, vector<96x128xf32>
    %407 = arith.truncf %406 : vector<96x128xf32> to vector<96x128xbf16>
    %c1 = arith.constant 1 : index
    %c0_148 = arith.constant 0 : index
    %c0_149 = arith.constant 0 : index
    %408 = vector.load %arg2[%c1, %c0_148, %c0_149] : memref<2x128x512xbf16, #tpu.memory_space<vmem>>, vector<1x128x512xbf16>
    %409 = vector.shape_cast %408 : vector<1x128x512xbf16> to vector<128x512xbf16>
    %cst_150 = arith.constant dense<0.000000e+00> : vector<96x512xf32>
    %410 = tpu.matmul %407, %409, %cst_150 {dimension_numbers = #tpu.dot_dimension_numbers<[1], [0], [0], [1], [0, 0, 1, 1], [], []>} : vector<96x128xbf16>, vector<128x512xbf16>, vector<96x512xf32> -> vector<96x512xf32>
    %c1_151 = arith.constant 1 : index
    %c0_152 = arith.constant 0 : index
    %c0_153 = arith.constant 0 : index
    %411 = vector.load %arg4[%c1_151, %c0_152, %c0_153] : memref<2x1x512xf32, #tpu.memory_space<vmem>>, vector<1x1x512xf32>
    %412 = vector.shape_cast %411 : vector<1x1x512xf32> to vector<1x512xf32>
    %413 = vector.broadcast %412 : vector<1x512xf32> to vector<96x512xf32>
    %414 = arith.addf %410, %413 : vector<96x512xf32>
    %c0_154 = arith.constant 0 : index
    %c0_155 = arith.constant 0 : index
    %415 = vector.load %arg11[%c0_154, %c0_155] : memref<96x512xf32, #tpu.memory_space<vmem>>, vector<96x512xf32>
    tpu.vector_store %arg11[%c0_154, %c0_155], %414 {strides = array<i32>} : memref<96x512xf32, #tpu.memory_space<vmem>>, vector<96x512xf32>,
    %c1_156 = arith.constant 1 : index
    %c0_157 = arith.constant 0 : index
    %c0_158 = arith.constant 0 : index
    %416 = vector.load %arg5[%c1_156, %c0_157, %c0_158] : memref<2x8x128xf32, #tpu.memory_space<vmem>>, vector<1x8x128xf32>
    %417 = vector.shape_cast %416 : vector<1x8x128xf32> to vector<8x128xf32>
    %c1_159 = arith.constant 1 : index
    %c0_160 = arith.constant 0 : index
    %c0_161 = arith.constant 0 : index
    %418 = vector.load %arg6[%c1_159, %c0_160, %c0_161] : memref<2x8x128xf32, #tpu.memory_space<vmem>>, vector<1x8x128xf32>
    %419 = vector.shape_cast %418 : vector<1x8x128xf32> to vector<8x128xf32>
    %c0_162 = arith.constant 0 : index
    %c0_163 = arith.constant 0 : index
    %420 = vector.load %arg11[%c0_162, %c0_163] : memref<96x512xf32, #tpu.memory_space<vmem>>, vector<8x512xf32>
    %421 = arith.truncf %417 : vector<8x128xf32> to vector<8x128xbf16>
    %c1_164 = arith.constant 1 : index
    %c0_165 = arith.constant 0 : index
    %c0_166 = arith.constant 0 : index
    %422 = vector.load %arg3[%c1_164, %c0_165, %c0_166] : memref<2x128x512xbf16, #tpu.memory_space<vmem>>, vector<1x128x512xbf16>
    %423 = vector.shape_cast %422 : vector<1x128x512xbf16> to vector<128x512xbf16>
    %cst_167 = arith.constant dense<0.000000e+00> : vector<8x512xf32>
    %424 = tpu.matmul %421, %423, %cst_167 {dimension_numbers = #tpu.dot_dimension_numbers<[1], [0], [0], [1], [0, 0, 1, 1], [], []>} : vector<8x128xbf16>, vector<128x512xbf16>, vector<8x512xf32> -> vector<8x512xf32>
    %425 = arith.addf %420, %424 : vector<8x512xf32>
    %426 = vector.extract_strided_slice %425 {offsets = [0, 0], sizes = [8, 128], strides = [1, 1]} : vector<8x512xf32> to vector<8x128xf32>
    %427 = arith.negf %426 : vector<8x128xf32>
    %428 = math.exp %427 : vector<8x128xf32>
    %cst_168 = arith.constant 1.000000e+00 : f32
    %429 = vector.broadcast %cst_168 : f32 to vector<8x128xf32>
    %430 = arith.addf %429, %428 : vector<8x128xf32>
    %431 = arith.divf %429, %430 : vector<8x128xf32>
    %432 = vector.extract_strided_slice %425 {offsets = [0, 128], sizes = [8, 128], strides = [1, 1]} : vector<8x512xf32> to vector<8x128xf32>
    %433 = arith.negf %432 : vector<8x128xf32>
    %434 = math.exp %433 : vector<8x128xf32>
    %cst_169 = arith.constant 1.000000e+00 : f32
    %435 = vector.broadcast %cst_169 : f32 to vector<8x128xf32>
    %436 = arith.addf %435, %434 : vector<8x128xf32>
    %437 = arith.divf %435, %436 : vector<8x128xf32>
    %438 = vector.extract_strided_slice %425 {offsets = [0, 256], sizes = [8, 128], strides = [1, 1]} : vector<8x512xf32> to vector<8x128xf32>
    %439 = math.tanh %438 : vector<8x128xf32>
    %440 = vector.extract_strided_slice %425 {offsets = [0, 384], sizes = [8, 128], strides = [1, 1]} : vector<8x512xf32> to vector<8x128xf32>
    %441 = arith.negf %440 : vector<8x128xf32>
    %442 = math.exp %441 : vector<8x128xf32>
    %cst_170 = arith.constant 1.000000e+00 : f32
    %443 = vector.broadcast %cst_170 : f32 to vector<8x128xf32>
    %444 = arith.addf %443, %442 : vector<8x128xf32>
    %445 = arith.divf %443, %444 : vector<8x128xf32>
    %446 = arith.mulf %437, %419 : vector<8x128xf32>
    %447 = arith.mulf %431, %439 : vector<8x128xf32>
    %448 = arith.addf %446, %447 : vector<8x128xf32>
    %449 = math.tanh %448 : vector<8x128xf32>
    %450 = arith.mulf %445, %449 : vector<8x128xf32>
    %c0_171 = arith.constant 0 : index
    %c0_172 = arith.constant 0 : index
    %451 = vector.load %arg10[%c0_171, %c0_172] : memref<96x128xf32, #tpu.memory_space<vmem>>, vector<8x128xf32>
    tpu.vector_store %arg10[%c0_171, %c0_172], %450 {strides = array<i32>} : memref<96x128xf32, #tpu.memory_space<vmem>>, vector<8x128xf32>,
    %c8_173 = arith.constant 8 : index
    %c0_174 = arith.constant 0 : index
    %452 = vector.load %arg11[%c8_173, %c0_174] : memref<96x512xf32, #tpu.memory_space<vmem>>, vector<8x512xf32>
    %453 = arith.truncf %450 : vector<8x128xf32> to vector<8x128xbf16>
    %c1_175 = arith.constant 1 : index
    %c0_176 = arith.constant 0 : index
    %c0_177 = arith.constant 0 : index
    %454 = vector.load %arg3[%c1_175, %c0_176, %c0_177] : memref<2x128x512xbf16, #tpu.memory_space<vmem>>, vector<1x128x512xbf16>
    %455 = vector.shape_cast %454 : vector<1x128x512xbf16> to vector<128x512xbf16>
    %cst_178 = arith.constant dense<0.000000e+00> : vector<8x512xf32>
    %456 = tpu.matmul %453, %455, %cst_178 {dimension_numbers = #tpu.dot_dimension_numbers<[1], [0], [0], [1], [0, 0, 1, 1], [], []>} : vector<8x128xbf16>, vector<128x512xbf16>, vector<8x512xf32> -> vector<8x512xf32>
    %457 = arith.addf %452, %456 : vector<8x512xf32>
    %458 = vector.extract_strided_slice %457 {offsets = [0, 0], sizes = [8, 128], strides = [1, 1]} : vector<8x512xf32> to vector<8x128xf32>
    %459 = arith.negf %458 : vector<8x128xf32>
    %460 = math.exp %459 : vector<8x128xf32>
    %cst_179 = arith.constant 1.000000e+00 : f32
    %461 = vector.broadcast %cst_179 : f32 to vector<8x128xf32>
    %462 = arith.addf %461, %460 : vector<8x128xf32>
    %463 = arith.divf %461, %462 : vector<8x128xf32>
    %464 = vector.extract_strided_slice %457 {offsets = [0, 128], sizes = [8, 128], strides = [1, 1]} : vector<8x512xf32> to vector<8x128xf32>
    %465 = arith.negf %464 : vector<8x128xf32>
    %466 = math.exp %465 : vector<8x128xf32>
    %cst_180 = arith.constant 1.000000e+00 : f32
    %467 = vector.broadcast %cst_180 : f32 to vector<8x128xf32>
    %468 = arith.addf %467, %466 : vector<8x128xf32>
    %469 = arith.divf %467, %468 : vector<8x128xf32>
    %470 = vector.extract_strided_slice %457 {offsets = [0, 256], sizes = [8, 128], strides = [1, 1]} : vector<8x512xf32> to vector<8x128xf32>
    %471 = math.tanh %470 : vector<8x128xf32>
    %472 = vector.extract_strided_slice %457 {offsets = [0, 384], sizes = [8, 128], strides = [1, 1]} : vector<8x512xf32> to vector<8x128xf32>
    %473 = arith.negf %472 : vector<8x128xf32>
    %474 = math.exp %473 : vector<8x128xf32>
    %cst_181 = arith.constant 1.000000e+00 : f32
    %475 = vector.broadcast %cst_181 : f32 to vector<8x128xf32>
    %476 = arith.addf %475, %474 : vector<8x128xf32>
    %477 = arith.divf %475, %476 : vector<8x128xf32>
    %478 = arith.mulf %469, %448 : vector<8x128xf32>
    %479 = arith.mulf %463, %471 : vector<8x128xf32>
    %480 = arith.addf %478, %479 : vector<8x128xf32>
    %481 = math.tanh %480 : vector<8x128xf32>
    %482 = arith.mulf %477, %481 : vector<8x128xf32>
    %c8_182 = arith.constant 8 : index
    %c0_183 = arith.constant 0 : index
    %483 = vector.load %arg10[%c8_182, %c0_183] : memref<96x128xf32, #tpu.memory_space<vmem>>, vector<8x128xf32>
    tpu.vector_store %arg10[%c8_182, %c0_183], %482 {strides = array<i32>} : memref<96x128xf32, #tpu.memory_space<vmem>>, vector<8x128xf32>,
    %c16_184 = arith.constant 16 : index
    %c0_185 = arith.constant 0 : index
    %484 = vector.load %arg11[%c16_184, %c0_185] : memref<96x512xf32, #tpu.memory_space<vmem>>, vector<8x512xf32>
    %485 = arith.truncf %482 : vector<8x128xf32> to vector<8x128xbf16>
    %c1_186 = arith.constant 1 : index
    %c0_187 = arith.constant 0 : index
    %c0_188 = arith.constant 0 : index
    %486 = vector.load %arg3[%c1_186, %c0_187, %c0_188] : memref<2x128x512xbf16, #tpu.memory_space<vmem>>, vector<1x128x512xbf16>
    %487 = vector.shape_cast %486 : vector<1x128x512xbf16> to vector<128x512xbf16>
    %cst_189 = arith.constant dense<0.000000e+00> : vector<8x512xf32>
    %488 = tpu.matmul %485, %487, %cst_189 {dimension_numbers = #tpu.dot_dimension_numbers<[1], [0], [0], [1], [0, 0, 1, 1], [], []>} : vector<8x128xbf16>, vector<128x512xbf16>, vector<8x512xf32> -> vector<8x512xf32>
    %489 = arith.addf %484, %488 : vector<8x512xf32>
    %490 = vector.extract_strided_slice %489 {offsets = [0, 0], sizes = [8, 128], strides = [1, 1]} : vector<8x512xf32> to vector<8x128xf32>
    %491 = arith.negf %490 : vector<8x128xf32>
    %492 = math.exp %491 : vector<8x128xf32>
    %cst_190 = arith.constant 1.000000e+00 : f32
    %493 = vector.broadcast %cst_190 : f32 to vector<8x128xf32>
    %494 = arith.addf %493, %492 : vector<8x128xf32>
    %495 = arith.divf %493, %494 : vector<8x128xf32>
    %496 = vector.extract_strided_slice %489 {offsets = [0, 128], sizes = [8, 128], strides = [1, 1]} : vector<8x512xf32> to vector<8x128xf32>
    %497 = arith.negf %496 : vector<8x128xf32>
    %498 = math.exp %497 : vector<8x128xf32>
    %cst_191 = arith.constant 1.000000e+00 : f32
    %499 = vector.broadcast %cst_191 : f32 to vector<8x128xf32>
    %500 = arith.addf %499, %498 : vector<8x128xf32>
    %501 = arith.divf %499, %500 : vector<8x128xf32>
    %502 = vector.extract_strided_slice %489 {offsets = [0, 256], sizes = [8, 128], strides = [1, 1]} : vector<8x512xf32> to vector<8x128xf32>
    %503 = math.tanh %502 : vector<8x128xf32>
    %504 = vector.extract_strided_slice %489 {offsets = [0, 384], sizes = [8, 128], strides = [1, 1]} : vector<8x512xf32> to vector<8x128xf32>
    %505 = arith.negf %504 : vector<8x128xf32>
    %506 = math.exp %505 : vector<8x128xf32>
    %cst_192 = arith.constant 1.000000e+00 : f32
    %507 = vector.broadcast %cst_192 : f32 to vector<8x128xf32>
    %508 = arith.addf %507, %506 : vector<8x128xf32>
    %509 = arith.divf %507, %508 : vector<8x128xf32>
    %510 = arith.mulf %501, %480 : vector<8x128xf32>
    %511 = arith.mulf %495, %503 : vector<8x128xf32>
    %512 = arith.addf %510, %511 : vector<8x128xf32>
    %513 = math.tanh %512 : vector<8x128xf32>
    %514 = arith.mulf %509, %513 : vector<8x128xf32>
    %c16_193 = arith.constant 16 : index
    %c0_194 = arith.constant 0 : index
    %515 = vector.load %arg10[%c16_193, %c0_194] : memref<96x128xf32, #tpu.memory_space<vmem>>, vector<8x128xf32>
    tpu.vector_store %arg10[%c16_193, %c0_194], %514 {strides = array<i32>} : memref<96x128xf32, #tpu.memory_space<vmem>>, vector<8x128xf32>,
    %c24_195 = arith.constant 24 : index
    %c0_196 = arith.constant 0 : index
    %516 = vector.load %arg11[%c24_195, %c0_196] : memref<96x512xf32, #tpu.memory_space<vmem>>, vector<8x512xf32>
    %517 = arith.truncf %514 : vector<8x128xf32> to vector<8x128xbf16>
    %c1_197 = arith.constant 1 : index
    %c0_198 = arith.constant 0 : index
    %c0_199 = arith.constant 0 : index
    %518 = vector.load %arg3[%c1_197, %c0_198, %c0_199] : memref<2x128x512xbf16, #tpu.memory_space<vmem>>, vector<1x128x512xbf16>
    %519 = vector.shape_cast %518 : vector<1x128x512xbf16> to vector<128x512xbf16>
    %cst_200 = arith.constant dense<0.000000e+00> : vector<8x512xf32>
    %520 = tpu.matmul %517, %519, %cst_200 {dimension_numbers = #tpu.dot_dimension_numbers<[1], [0], [0], [1], [0, 0, 1, 1], [], []>} : vector<8x128xbf16>, vector<128x512xbf16>, vector<8x512xf32> -> vector<8x512xf32>
    %521 = arith.addf %516, %520 : vector<8x512xf32>
    %522 = vector.extract_strided_slice %521 {offsets = [0, 0], sizes = [8, 128], strides = [1, 1]} : vector<8x512xf32> to vector<8x128xf32>
    %523 = arith.negf %522 : vector<8x128xf32>
    %524 = math.exp %523 : vector<8x128xf32>
    %cst_201 = arith.constant 1.000000e+00 : f32
    %525 = vector.broadcast %cst_201 : f32 to vector<8x128xf32>
    %526 = arith.addf %525, %524 : vector<8x128xf32>
    %527 = arith.divf %525, %526 : vector<8x128xf32>
    %528 = vector.extract_strided_slice %521 {offsets = [0, 128], sizes = [8, 128], strides = [1, 1]} : vector<8x512xf32> to vector<8x128xf32>
    %529 = arith.negf %528 : vector<8x128xf32>
    %530 = math.exp %529 : vector<8x128xf32>
    %cst_202 = arith.constant 1.000000e+00 : f32
    %531 = vector.broadcast %cst_202 : f32 to vector<8x128xf32>
    %532 = arith.addf %531, %530 : vector<8x128xf32>
    %533 = arith.divf %531, %532 : vector<8x128xf32>
    %534 = vector.extract_strided_slice %521 {offsets = [0, 256], sizes = [8, 128], strides = [1, 1]} : vector<8x512xf32> to vector<8x128xf32>
    %535 = math.tanh %534 : vector<8x128xf32>
    %536 = vector.extract_strided_slice %521 {offsets = [0, 384], sizes = [8, 128], strides = [1, 1]} : vector<8x512xf32> to vector<8x128xf32>
    %537 = arith.negf %536 : vector<8x128xf32>
    %538 = math.exp %537 : vector<8x128xf32>
    %cst_203 = arith.constant 1.000000e+00 : f32
    %539 = vector.broadcast %cst_203 : f32 to vector<8x128xf32>
    %540 = arith.addf %539, %538 : vector<8x128xf32>
    %541 = arith.divf %539, %540 : vector<8x128xf32>
    %542 = arith.mulf %533, %512 : vector<8x128xf32>
    %543 = arith.mulf %527, %535 : vector<8x128xf32>
    %544 = arith.addf %542, %543 : vector<8x128xf32>
    %545 = math.tanh %544 : vector<8x128xf32>
    %546 = arith.mulf %541, %545 : vector<8x128xf32>
    %c24_204 = arith.constant 24 : index
    %c0_205 = arith.constant 0 : index
    %547 = vector.load %arg10[%c24_204, %c0_205] : memref<96x128xf32, #tpu.memory_space<vmem>>, vector<8x128xf32>
    tpu.vector_store %arg10[%c24_204, %c0_205], %546 {strides = array<i32>} : memref<96x128xf32, #tpu.memory_space<vmem>>, vector<8x128xf32>,
    %c32_206 = arith.constant 32 : index
    %c0_207 = arith.constant 0 : index
    %548 = vector.load %arg11[%c32_206, %c0_207] : memref<96x512xf32, #tpu.memory_space<vmem>>, vector<8x512xf32>
    %549 = arith.truncf %546 : vector<8x128xf32> to vector<8x128xbf16>
    %c1_208 = arith.constant 1 : index
    %c0_209 = arith.constant 0 : index
    %c0_210 = arith.constant 0 : index
    %550 = vector.load %arg3[%c1_208, %c0_209, %c0_210] : memref<2x128x512xbf16, #tpu.memory_space<vmem>>, vector<1x128x512xbf16>
    %551 = vector.shape_cast %550 : vector<1x128x512xbf16> to vector<128x512xbf16>
    %cst_211 = arith.constant dense<0.000000e+00> : vector<8x512xf32>
    %552 = tpu.matmul %549, %551, %cst_211 {dimension_numbers = #tpu.dot_dimension_numbers<[1], [0], [0], [1], [0, 0, 1, 1], [], []>} : vector<8x128xbf16>, vector<128x512xbf16>, vector<8x512xf32> -> vector<8x512xf32>
    %553 = arith.addf %548, %552 : vector<8x512xf32>
    %554 = vector.extract_strided_slice %553 {offsets = [0, 0], sizes = [8, 128], strides = [1, 1]} : vector<8x512xf32> to vector<8x128xf32>
    %555 = arith.negf %554 : vector<8x128xf32>
    %556 = math.exp %555 : vector<8x128xf32>
    %cst_212 = arith.constant 1.000000e+00 : f32
    %557 = vector.broadcast %cst_212 : f32 to vector<8x128xf32>
    %558 = arith.addf %557, %556 : vector<8x128xf32>
    %559 = arith.divf %557, %558 : vector<8x128xf32>
    %560 = vector.extract_strided_slice %553 {offsets = [0, 128], sizes = [8, 128], strides = [1, 1]} : vector<8x512xf32> to vector<8x128xf32>
    %561 = arith.negf %560 : vector<8x128xf32>
    %562 = math.exp %561 : vector<8x128xf32>
    %cst_213 = arith.constant 1.000000e+00 : f32
    %563 = vector.broadcast %cst_213 : f32 to vector<8x128xf32>
    %564 = arith.addf %563, %562 : vector<8x128xf32>
    %565 = arith.divf %563, %564 : vector<8x128xf32>
    %566 = vector.extract_strided_slice %553 {offsets = [0, 256], sizes = [8, 128], strides = [1, 1]} : vector<8x512xf32> to vector<8x128xf32>
    %567 = math.tanh %566 : vector<8x128xf32>
    %568 = vector.extract_strided_slice %553 {offsets = [0, 384], sizes = [8, 128], strides = [1, 1]} : vector<8x512xf32> to vector<8x128xf32>
    %569 = arith.negf %568 : vector<8x128xf32>
    %570 = math.exp %569 : vector<8x128xf32>
    %cst_214 = arith.constant 1.000000e+00 : f32
    %571 = vector.broadcast %cst_214 : f32 to vector<8x128xf32>
    %572 = arith.addf %571, %570 : vector<8x128xf32>
    %573 = arith.divf %571, %572 : vector<8x128xf32>
    %574 = arith.mulf %565, %544 : vector<8x128xf32>
    %575 = arith.mulf %559, %567 : vector<8x128xf32>
    %576 = arith.addf %574, %575 : vector<8x128xf32>
    %577 = math.tanh %576 : vector<8x128xf32>
    %578 = arith.mulf %573, %577 : vector<8x128xf32>
    %c32_215 = arith.constant 32 : index
    %c0_216 = arith.constant 0 : index
    %579 = vector.load %arg10[%c32_215, %c0_216] : memref<96x128xf32, #tpu.memory_space<vmem>>, vector<8x128xf32>
    tpu.vector_store %arg10[%c32_215, %c0_216], %578 {strides = array<i32>} : memref<96x128xf32, #tpu.memory_space<vmem>>, vector<8x128xf32>,
    %c40_217 = arith.constant 40 : index
    %c0_218 = arith.constant 0 : index
    %580 = vector.load %arg11[%c40_217, %c0_218] : memref<96x512xf32, #tpu.memory_space<vmem>>, vector<8x512xf32>
    %581 = arith.truncf %578 : vector<8x128xf32> to vector<8x128xbf16>
    %c1_219 = arith.constant 1 : index
    %c0_220 = arith.constant 0 : index
    %c0_221 = arith.constant 0 : index
    %582 = vector.load %arg3[%c1_219, %c0_220, %c0_221] : memref<2x128x512xbf16, #tpu.memory_space<vmem>>, vector<1x128x512xbf16>
    %583 = vector.shape_cast %582 : vector<1x128x512xbf16> to vector<128x512xbf16>
    %cst_222 = arith.constant dense<0.000000e+00> : vector<8x512xf32>
    %584 = tpu.matmul %581, %583, %cst_222 {dimension_numbers = #tpu.dot_dimension_numbers<[1], [0], [0], [1], [0, 0, 1, 1], [], []>} : vector<8x128xbf16>, vector<128x512xbf16>, vector<8x512xf32> -> vector<8x512xf32>
    %585 = arith.addf %580, %584 : vector<8x512xf32>
    %586 = vector.extract_strided_slice %585 {offsets = [0, 0], sizes = [8, 128], strides = [1, 1]} : vector<8x512xf32> to vector<8x128xf32>
    %587 = arith.negf %586 : vector<8x128xf32>
    %588 = math.exp %587 : vector<8x128xf32>
    %cst_223 = arith.constant 1.000000e+00 : f32
    %589 = vector.broadcast %cst_223 : f32 to vector<8x128xf32>
    %590 = arith.addf %589, %588 : vector<8x128xf32>
    %591 = arith.divf %589, %590 : vector<8x128xf32>
    %592 = vector.extract_strided_slice %585 {offsets = [0, 128], sizes = [8, 128], strides = [1, 1]} : vector<8x512xf32> to vector<8x128xf32>
    %593 = arith.negf %592 : vector<8x128xf32>
    %594 = math.exp %593 : vector<8x128xf32>
    %cst_224 = arith.constant 1.000000e+00 : f32
    %595 = vector.broadcast %cst_224 : f32 to vector<8x128xf32>
    %596 = arith.addf %595, %594 : vector<8x128xf32>
    %597 = arith.divf %595, %596 : vector<8x128xf32>
    %598 = vector.extract_strided_slice %585 {offsets = [0, 256], sizes = [8, 128], strides = [1, 1]} : vector<8x512xf32> to vector<8x128xf32>
    %599 = math.tanh %598 : vector<8x128xf32>
    %600 = vector.extract_strided_slice %585 {offsets = [0, 384], sizes = [8, 128], strides = [1, 1]} : vector<8x512xf32> to vector<8x128xf32>
    %601 = arith.negf %600 : vector<8x128xf32>
    %602 = math.exp %601 : vector<8x128xf32>
    %cst_225 = arith.constant 1.000000e+00 : f32
    %603 = vector.broadcast %cst_225 : f32 to vector<8x128xf32>
    %604 = arith.addf %603, %602 : vector<8x128xf32>
    %605 = arith.divf %603, %604 : vector<8x128xf32>
    %606 = arith.mulf %597, %576 : vector<8x128xf32>
    %607 = arith.mulf %591, %599 : vector<8x128xf32>
    %608 = arith.addf %606, %607 : vector<8x128xf32>
    %609 = math.tanh %608 : vector<8x128xf32>
    %610 = arith.mulf %605, %609 : vector<8x128xf32>
    %c40_226 = arith.constant 40 : index
    %c0_227 = arith.constant 0 : index
    %611 = vector.load %arg10[%c40_226, %c0_227] : memref<96x128xf32, #tpu.memory_space<vmem>>, vector<8x128xf32>
    tpu.vector_store %arg10[%c40_226, %c0_227], %610 {strides = array<i32>} : memref<96x128xf32, #tpu.memory_space<vmem>>, vector<8x128xf32>,
    %c48_228 = arith.constant 48 : index
    %c0_229 = arith.constant 0 : index
    %612 = vector.load %arg11[%c48_228, %c0_229] : memref<96x512xf32, #tpu.memory_space<vmem>>, vector<8x512xf32>
    %613 = arith.truncf %610 : vector<8x128xf32> to vector<8x128xbf16>
    %c1_230 = arith.constant 1 : index
    %c0_231 = arith.constant 0 : index
    %c0_232 = arith.constant 0 : index
    %614 = vector.load %arg3[%c1_230, %c0_231, %c0_232] : memref<2x128x512xbf16, #tpu.memory_space<vmem>>, vector<1x128x512xbf16>
    %615 = vector.shape_cast %614 : vector<1x128x512xbf16> to vector<128x512xbf16>
    %cst_233 = arith.constant dense<0.000000e+00> : vector<8x512xf32>
    %616 = tpu.matmul %613, %615, %cst_233 {dimension_numbers = #tpu.dot_dimension_numbers<[1], [0], [0], [1], [0, 0, 1, 1], [], []>} : vector<8x128xbf16>, vector<128x512xbf16>, vector<8x512xf32> -> vector<8x512xf32>
    %617 = arith.addf %612, %616 : vector<8x512xf32>
    %618 = vector.extract_strided_slice %617 {offsets = [0, 0], sizes = [8, 128], strides = [1, 1]} : vector<8x512xf32> to vector<8x128xf32>
    %619 = arith.negf %618 : vector<8x128xf32>
    %620 = math.exp %619 : vector<8x128xf32>
    %cst_234 = arith.constant 1.000000e+00 : f32
    %621 = vector.broadcast %cst_234 : f32 to vector<8x128xf32>
    %622 = arith.addf %621, %620 : vector<8x128xf32>
    %623 = arith.divf %621, %622 : vector<8x128xf32>
    %624 = vector.extract_strided_slice %617 {offsets = [0, 128], sizes = [8, 128], strides = [1, 1]} : vector<8x512xf32> to vector<8x128xf32>
    %625 = arith.negf %624 : vector<8x128xf32>
    %626 = math.exp %625 : vector<8x128xf32>
    %cst_235 = arith.constant 1.000000e+00 : f32
    %627 = vector.broadcast %cst_235 : f32 to vector<8x128xf32>
    %628 = arith.addf %627, %626 : vector<8x128xf32>
    %629 = arith.divf %627, %628 : vector<8x128xf32>
    %630 = vector.extract_strided_slice %617 {offsets = [0, 256], sizes = [8, 128], strides = [1, 1]} : vector<8x512xf32> to vector<8x128xf32>
    %631 = math.tanh %630 : vector<8x128xf32>
    %632 = vector.extract_strided_slice %617 {offsets = [0, 384], sizes = [8, 128], strides = [1, 1]} : vector<8x512xf32> to vector<8x128xf32>
    %633 = arith.negf %632 : vector<8x128xf32>
    %634 = math.exp %633 : vector<8x128xf32>
    %cst_236 = arith.constant 1.000000e+00 : f32
    %635 = vector.broadcast %cst_236 : f32 to vector<8x128xf32>
    %636 = arith.addf %635, %634 : vector<8x128xf32>
    %637 = arith.divf %635, %636 : vector<8x128xf32>
    %638 = arith.mulf %629, %608 : vector<8x128xf32>
    %639 = arith.mulf %623, %631 : vector<8x128xf32>
    %640 = arith.addf %638, %639 : vector<8x128xf32>
    %641 = math.tanh %640 : vector<8x128xf32>
    %642 = arith.mulf %637, %641 : vector<8x128xf32>
    %c48_237 = arith.constant 48 : index
    %c0_238 = arith.constant 0 : index
    %643 = vector.load %arg10[%c48_237, %c0_238] : memref<96x128xf32, #tpu.memory_space<vmem>>, vector<8x128xf32>
    tpu.vector_store %arg10[%c48_237, %c0_238], %642 {strides = array<i32>} : memref<96x128xf32, #tpu.memory_space<vmem>>, vector<8x128xf32>,
    %c56_239 = arith.constant 56 : index
    %c0_240 = arith.constant 0 : index
    %644 = vector.load %arg11[%c56_239, %c0_240] : memref<96x512xf32, #tpu.memory_space<vmem>>, vector<8x512xf32>
    %645 = arith.truncf %642 : vector<8x128xf32> to vector<8x128xbf16>
    %c1_241 = arith.constant 1 : index
    %c0_242 = arith.constant 0 : index
    %c0_243 = arith.constant 0 : index
    %646 = vector.load %arg3[%c1_241, %c0_242, %c0_243] : memref<2x128x512xbf16, #tpu.memory_space<vmem>>, vector<1x128x512xbf16>
    %647 = vector.shape_cast %646 : vector<1x128x512xbf16> to vector<128x512xbf16>
    %cst_244 = arith.constant dense<0.000000e+00> : vector<8x512xf32>
    %648 = tpu.matmul %645, %647, %cst_244 {dimension_numbers = #tpu.dot_dimension_numbers<[1], [0], [0], [1], [0, 0, 1, 1], [], []>} : vector<8x128xbf16>, vector<128x512xbf16>, vector<8x512xf32> -> vector<8x512xf32>
    %649 = arith.addf %644, %648 : vector<8x512xf32>
    %650 = vector.extract_strided_slice %649 {offsets = [0, 0], sizes = [8, 128], strides = [1, 1]} : vector<8x512xf32> to vector<8x128xf32>
    %651 = arith.negf %650 : vector<8x128xf32>
    %652 = math.exp %651 : vector<8x128xf32>
    %cst_245 = arith.constant 1.000000e+00 : f32
    %653 = vector.broadcast %cst_245 : f32 to vector<8x128xf32>
    %654 = arith.addf %653, %652 : vector<8x128xf32>
    %655 = arith.divf %653, %654 : vector<8x128xf32>
    %656 = vector.extract_strided_slice %649 {offsets = [0, 128], sizes = [8, 128], strides = [1, 1]} : vector<8x512xf32> to vector<8x128xf32>
    %657 = arith.negf %656 : vector<8x128xf32>
    %658 = math.exp %657 : vector<8x128xf32>
    %cst_246 = arith.constant 1.000000e+00 : f32
    %659 = vector.broadcast %cst_246 : f32 to vector<8x128xf32>
    %660 = arith.addf %659, %658 : vector<8x128xf32>
    %661 = arith.divf %659, %660 : vector<8x128xf32>
    %662 = vector.extract_strided_slice %649 {offsets = [0, 256], sizes = [8, 128], strides = [1, 1]} : vector<8x512xf32> to vector<8x128xf32>
    %663 = math.tanh %662 : vector<8x128xf32>
    %664 = vector.extract_strided_slice %649 {offsets = [0, 384], sizes = [8, 128], strides = [1, 1]} : vector<8x512xf32> to vector<8x128xf32>
    %665 = arith.negf %664 : vector<8x128xf32>
    %666 = math.exp %665 : vector<8x128xf32>
    %cst_247 = arith.constant 1.000000e+00 : f32
    %667 = vector.broadcast %cst_247 : f32 to vector<8x128xf32>
    %668 = arith.addf %667, %666 : vector<8x128xf32>
    %669 = arith.divf %667, %668 : vector<8x128xf32>
    %670 = arith.mulf %661, %640 : vector<8x128xf32>
    %671 = arith.mulf %655, %663 : vector<8x128xf32>
    %672 = arith.addf %670, %671 : vector<8x128xf32>
    %673 = math.tanh %672 : vector<8x128xf32>
    %674 = arith.mulf %669, %673 : vector<8x128xf32>
    %c56_248 = arith.constant 56 : index
    %c0_249 = arith.constant 0 : index
    %675 = vector.load %arg10[%c56_248, %c0_249] : memref<96x128xf32, #tpu.memory_space<vmem>>, vector<8x128xf32>
    tpu.vector_store %arg10[%c56_248, %c0_249], %674 {strides = array<i32>} : memref<96x128xf32, #tpu.memory_space<vmem>>, vector<8x128xf32>,
    %c64_250 = arith.constant 64 : index
    %c0_251 = arith.constant 0 : index
    %676 = vector.load %arg11[%c64_250, %c0_251] : memref<96x512xf32, #tpu.memory_space<vmem>>, vector<8x512xf32>
    %677 = arith.truncf %674 : vector<8x128xf32> to vector<8x128xbf16>
    %c1_252 = arith.constant 1 : index
    %c0_253 = arith.constant 0 : index
    %c0_254 = arith.constant 0 : index
    %678 = vector.load %arg3[%c1_252, %c0_253, %c0_254] : memref<2x128x512xbf16, #tpu.memory_space<vmem>>, vector<1x128x512xbf16>
    %679 = vector.shape_cast %678 : vector<1x128x512xbf16> to vector<128x512xbf16>
    %cst_255 = arith.constant dense<0.000000e+00> : vector<8x512xf32>
    %680 = tpu.matmul %677, %679, %cst_255 {dimension_numbers = #tpu.dot_dimension_numbers<[1], [0], [0], [1], [0, 0, 1, 1], [], []>} : vector<8x128xbf16>, vector<128x512xbf16>, vector<8x512xf32> -> vector<8x512xf32>
    %681 = arith.addf %676, %680 : vector<8x512xf32>
    %682 = vector.extract_strided_slice %681 {offsets = [0, 0], sizes = [8, 128], strides = [1, 1]} : vector<8x512xf32> to vector<8x128xf32>
    %683 = arith.negf %682 : vector<8x128xf32>
    %684 = math.exp %683 : vector<8x128xf32>
    %cst_256 = arith.constant 1.000000e+00 : f32
    %685 = vector.broadcast %cst_256 : f32 to vector<8x128xf32>
    %686 = arith.addf %685, %684 : vector<8x128xf32>
    %687 = arith.divf %685, %686 : vector<8x128xf32>
    %688 = vector.extract_strided_slice %681 {offsets = [0, 128], sizes = [8, 128], strides = [1, 1]} : vector<8x512xf32> to vector<8x128xf32>
    %689 = arith.negf %688 : vector<8x128xf32>
    %690 = math.exp %689 : vector<8x128xf32>
    %cst_257 = arith.constant 1.000000e+00 : f32
    %691 = vector.broadcast %cst_257 : f32 to vector<8x128xf32>
    %692 = arith.addf %691, %690 : vector<8x128xf32>
    %693 = arith.divf %691, %692 : vector<8x128xf32>
    %694 = vector.extract_strided_slice %681 {offsets = [0, 256], sizes = [8, 128], strides = [1, 1]} : vector<8x512xf32> to vector<8x128xf32>
    %695 = math.tanh %694 : vector<8x128xf32>
    %696 = vector.extract_strided_slice %681 {offsets = [0, 384], sizes = [8, 128], strides = [1, 1]} : vector<8x512xf32> to vector<8x128xf32>
    %697 = arith.negf %696 : vector<8x128xf32>
    %698 = math.exp %697 : vector<8x128xf32>
    %cst_258 = arith.constant 1.000000e+00 : f32
    %699 = vector.broadcast %cst_258 : f32 to vector<8x128xf32>
    %700 = arith.addf %699, %698 : vector<8x128xf32>
    %701 = arith.divf %699, %700 : vector<8x128xf32>
    %702 = arith.mulf %693, %672 : vector<8x128xf32>
    %703 = arith.mulf %687, %695 : vector<8x128xf32>
    %704 = arith.addf %702, %703 : vector<8x128xf32>
    %705 = math.tanh %704 : vector<8x128xf32>
    %706 = arith.mulf %701, %705 : vector<8x128xf32>
    %c64_259 = arith.constant 64 : index
    %c0_260 = arith.constant 0 : index
    %707 = vector.load %arg10[%c64_259, %c0_260] : memref<96x128xf32, #tpu.memory_space<vmem>>, vector<8x128xf32>
    tpu.vector_store %arg10[%c64_259, %c0_260], %706 {strides = array<i32>} : memref<96x128xf32, #tpu.memory_space<vmem>>, vector<8x128xf32>,
    %c72_261 = arith.constant 72 : index
    %c0_262 = arith.constant 0 : index
    %708 = vector.load %arg11[%c72_261, %c0_262] : memref<96x512xf32, #tpu.memory_space<vmem>>, vector<8x512xf32>
    %709 = arith.truncf %706 : vector<8x128xf32> to vector<8x128xbf16>
    %c1_263 = arith.constant 1 : index
    %c0_264 = arith.constant 0 : index
    %c0_265 = arith.constant 0 : index
    %710 = vector.load %arg3[%c1_263, %c0_264, %c0_265] : memref<2x128x512xbf16, #tpu.memory_space<vmem>>, vector<1x128x512xbf16>
    %711 = vector.shape_cast %710 : vector<1x128x512xbf16> to vector<128x512xbf16>
    %cst_266 = arith.constant dense<0.000000e+00> : vector<8x512xf32>
    %712 = tpu.matmul %709, %711, %cst_266 {dimension_numbers = #tpu.dot_dimension_numbers<[1], [0], [0], [1], [0, 0, 1, 1], [], []>} : vector<8x128xbf16>, vector<128x512xbf16>, vector<8x512xf32> -> vector<8x512xf32>
    %713 = arith.addf %708, %712 : vector<8x512xf32>
    %714 = vector.extract_strided_slice %713 {offsets = [0, 0], sizes = [8, 128], strides = [1, 1]} : vector<8x512xf32> to vector<8x128xf32>
    %715 = arith.negf %714 : vector<8x128xf32>
    %716 = math.exp %715 : vector<8x128xf32>
    %cst_267 = arith.constant 1.000000e+00 : f32
    %717 = vector.broadcast %cst_267 : f32 to vector<8x128xf32>
    %718 = arith.addf %717, %716 : vector<8x128xf32>
    %719 = arith.divf %717, %718 : vector<8x128xf32>
    %720 = vector.extract_strided_slice %713 {offsets = [0, 128], sizes = [8, 128], strides = [1, 1]} : vector<8x512xf32> to vector<8x128xf32>
    %721 = arith.negf %720 : vector<8x128xf32>
    %722 = math.exp %721 : vector<8x128xf32>
    %cst_268 = arith.constant 1.000000e+00 : f32
    %723 = vector.broadcast %cst_268 : f32 to vector<8x128xf32>
    %724 = arith.addf %723, %722 : vector<8x128xf32>
    %725 = arith.divf %723, %724 : vector<8x128xf32>
    %726 = vector.extract_strided_slice %713 {offsets = [0, 256], sizes = [8, 128], strides = [1, 1]} : vector<8x512xf32> to vector<8x128xf32>
    %727 = math.tanh %726 : vector<8x128xf32>
    %728 = vector.extract_strided_slice %713 {offsets = [0, 384], sizes = [8, 128], strides = [1, 1]} : vector<8x512xf32> to vector<8x128xf32>
    %729 = arith.negf %728 : vector<8x128xf32>
    %730 = math.exp %729 : vector<8x128xf32>
    %cst_269 = arith.constant 1.000000e+00 : f32
    %731 = vector.broadcast %cst_269 : f32 to vector<8x128xf32>
    %732 = arith.addf %731, %730 : vector<8x128xf32>
    %733 = arith.divf %731, %732 : vector<8x128xf32>
    %734 = arith.mulf %725, %704 : vector<8x128xf32>
    %735 = arith.mulf %719, %727 : vector<8x128xf32>
    %736 = arith.addf %734, %735 : vector<8x128xf32>
    %737 = math.tanh %736 : vector<8x128xf32>
    %738 = arith.mulf %733, %737 : vector<8x128xf32>
    %c72_270 = arith.constant 72 : index
    %c0_271 = arith.constant 0 : index
    %739 = vector.load %arg10[%c72_270, %c0_271] : memref<96x128xf32, #tpu.memory_space<vmem>>, vector<8x128xf32>
    tpu.vector_store %arg10[%c72_270, %c0_271], %738 {strides = array<i32>} : memref<96x128xf32, #tpu.memory_space<vmem>>, vector<8x128xf32>,
    %c80_272 = arith.constant 80 : index
    %c0_273 = arith.constant 0 : index
    %740 = vector.load %arg11[%c80_272, %c0_273] : memref<96x512xf32, #tpu.memory_space<vmem>>, vector<8x512xf32>
    %741 = arith.truncf %738 : vector<8x128xf32> to vector<8x128xbf16>
    %c1_274 = arith.constant 1 : index
    %c0_275 = arith.constant 0 : index
    %c0_276 = arith.constant 0 : index
    %742 = vector.load %arg3[%c1_274, %c0_275, %c0_276] : memref<2x128x512xbf16, #tpu.memory_space<vmem>>, vector<1x128x512xbf16>
    %743 = vector.shape_cast %742 : vector<1x128x512xbf16> to vector<128x512xbf16>
    %cst_277 = arith.constant dense<0.000000e+00> : vector<8x512xf32>
    %744 = tpu.matmul %741, %743, %cst_277 {dimension_numbers = #tpu.dot_dimension_numbers<[1], [0], [0], [1], [0, 0, 1, 1], [], []>} : vector<8x128xbf16>, vector<128x512xbf16>, vector<8x512xf32> -> vector<8x512xf32>
    %745 = arith.addf %740, %744 : vector<8x512xf32>
    %746 = vector.extract_strided_slice %745 {offsets = [0, 0], sizes = [8, 128], strides = [1, 1]} : vector<8x512xf32> to vector<8x128xf32>
    %747 = arith.negf %746 : vector<8x128xf32>
    %748 = math.exp %747 : vector<8x128xf32>
    %cst_278 = arith.constant 1.000000e+00 : f32
    %749 = vector.broadcast %cst_278 : f32 to vector<8x128xf32>
    %750 = arith.addf %749, %748 : vector<8x128xf32>
    %751 = arith.divf %749, %750 : vector<8x128xf32>
    %752 = vector.extract_strided_slice %745 {offsets = [0, 128], sizes = [8, 128], strides = [1, 1]} : vector<8x512xf32> to vector<8x128xf32>
    %753 = arith.negf %752 : vector<8x128xf32>
    %754 = math.exp %753 : vector<8x128xf32>
    %cst_279 = arith.constant 1.000000e+00 : f32
    %755 = vector.broadcast %cst_279 : f32 to vector<8x128xf32>
    %756 = arith.addf %755, %754 : vector<8x128xf32>
    %757 = arith.divf %755, %756 : vector<8x128xf32>
    %758 = vector.extract_strided_slice %745 {offsets = [0, 256], sizes = [8, 128], strides = [1, 1]} : vector<8x512xf32> to vector<8x128xf32>
    %759 = math.tanh %758 : vector<8x128xf32>
    %760 = vector.extract_strided_slice %745 {offsets = [0, 384], sizes = [8, 128], strides = [1, 1]} : vector<8x512xf32> to vector<8x128xf32>
    %761 = arith.negf %760 : vector<8x128xf32>
    %762 = math.exp %761 : vector<8x128xf32>
    %cst_280 = arith.constant 1.000000e+00 : f32
    %763 = vector.broadcast %cst_280 : f32 to vector<8x128xf32>
    %764 = arith.addf %763, %762 : vector<8x128xf32>
    %765 = arith.divf %763, %764 : vector<8x128xf32>
    %766 = arith.mulf %757, %736 : vector<8x128xf32>
    %767 = arith.mulf %751, %759 : vector<8x128xf32>
    %768 = arith.addf %766, %767 : vector<8x128xf32>
    %769 = math.tanh %768 : vector<8x128xf32>
    %770 = arith.mulf %765, %769 : vector<8x128xf32>
    %c80_281 = arith.constant 80 : index
    %c0_282 = arith.constant 0 : index
    %771 = vector.load %arg10[%c80_281, %c0_282] : memref<96x128xf32, #tpu.memory_space<vmem>>, vector<8x128xf32>
    tpu.vector_store %arg10[%c80_281, %c0_282], %770 {strides = array<i32>} : memref<96x128xf32, #tpu.memory_space<vmem>>, vector<8x128xf32>,
    %c88_283 = arith.constant 88 : index
    %c0_284 = arith.constant 0 : index
    %772 = vector.load %arg11[%c88_283, %c0_284] : memref<96x512xf32, #tpu.memory_space<vmem>>, vector<8x512xf32>
    %773 = arith.truncf %770 : vector<8x128xf32> to vector<8x128xbf16>
    %c1_285 = arith.constant 1 : index
    %c0_286 = arith.constant 0 : index
    %c0_287 = arith.constant 0 : index
    %774 = vector.load %arg3[%c1_285, %c0_286, %c0_287] : memref<2x128x512xbf16, #tpu.memory_space<vmem>>, vector<1x128x512xbf16>
    %775 = vector.shape_cast %774 : vector<1x128x512xbf16> to vector<128x512xbf16>
    %cst_288 = arith.constant dense<0.000000e+00> : vector<8x512xf32>
    %776 = tpu.matmul %773, %775, %cst_288 {dimension_numbers = #tpu.dot_dimension_numbers<[1], [0], [0], [1], [0, 0, 1, 1], [], []>} : vector<8x128xbf16>, vector<128x512xbf16>, vector<8x512xf32> -> vector<8x512xf32>
    %777 = arith.addf %772, %776 : vector<8x512xf32>
    %778 = vector.extract_strided_slice %777 {offsets = [0, 0], sizes = [8, 128], strides = [1, 1]} : vector<8x512xf32> to vector<8x128xf32>
    %779 = arith.negf %778 : vector<8x128xf32>
    %780 = math.exp %779 : vector<8x128xf32>
    %cst_289 = arith.constant 1.000000e+00 : f32
    %781 = vector.broadcast %cst_289 : f32 to vector<8x128xf32>
    %782 = arith.addf %781, %780 : vector<8x128xf32>
    %783 = arith.divf %781, %782 : vector<8x128xf32>
    %784 = vector.extract_strided_slice %777 {offsets = [0, 128], sizes = [8, 128], strides = [1, 1]} : vector<8x512xf32> to vector<8x128xf32>
    %785 = arith.negf %784 : vector<8x128xf32>
    %786 = math.exp %785 : vector<8x128xf32>
    %cst_290 = arith.constant 1.000000e+00 : f32
    %787 = vector.broadcast %cst_290 : f32 to vector<8x128xf32>
    %788 = arith.addf %787, %786 : vector<8x128xf32>
    %789 = arith.divf %787, %788 : vector<8x128xf32>
    %790 = vector.extract_strided_slice %777 {offsets = [0, 256], sizes = [8, 128], strides = [1, 1]} : vector<8x512xf32> to vector<8x128xf32>
    %791 = math.tanh %790 : vector<8x128xf32>
    %792 = vector.extract_strided_slice %777 {offsets = [0, 384], sizes = [8, 128], strides = [1, 1]} : vector<8x512xf32> to vector<8x128xf32>
    %793 = arith.negf %792 : vector<8x128xf32>
    %794 = math.exp %793 : vector<8x128xf32>
    %cst_291 = arith.constant 1.000000e+00 : f32
    %795 = vector.broadcast %cst_291 : f32 to vector<8x128xf32>
    %796 = arith.addf %795, %794 : vector<8x128xf32>
    %797 = arith.divf %795, %796 : vector<8x128xf32>
    %798 = arith.mulf %789, %768 : vector<8x128xf32>
    %799 = arith.mulf %783, %791 : vector<8x128xf32>
    %800 = arith.addf %798, %799 : vector<8x128xf32>
    %801 = math.tanh %800 : vector<8x128xf32>
    %802 = arith.mulf %797, %801 : vector<8x128xf32>
    %c88_292 = arith.constant 88 : index
    %c0_293 = arith.constant 0 : index
    %803 = vector.load %arg10[%c88_292, %c0_293] : memref<96x128xf32, #tpu.memory_space<vmem>>, vector<8x128xf32>
    tpu.vector_store %arg10[%c88_292, %c0_293], %802 {strides = array<i32>} : memref<96x128xf32, #tpu.memory_space<vmem>>, vector<8x128xf32>,
    %c1_294 = arith.constant 1 : index
    %c0_295 = arith.constant 0 : index
    %c0_296 = arith.constant 0 : index
    %804 = vector.load %arg8[%c1_294, %c0_295, %c0_296] : memref<2x8x128xf32, #tpu.memory_space<vmem>>, vector<1x8x128xf32>
    %805 = vector.shape_cast %804 : vector<1x8x128xf32> to vector<8x128xf32>
    %806 = vector.shape_cast %802 : vector<8x128xf32> to vector<1x8x128xf32>
    tpu.vector_store %arg8[%c1_294, %c0_295, %c0_296], %806 {strides = array<i32>} : memref<2x8x128xf32, #tpu.memory_space<vmem>>, vector<1x8x128xf32>,
    %c1_297 = arith.constant 1 : index
    %c0_298 = arith.constant 0 : index
    %c0_299 = arith.constant 0 : index
    %807 = vector.load %arg9[%c1_297, %c0_298, %c0_299] : memref<2x8x128xf32, #tpu.memory_space<vmem>>, vector<1x8x128xf32>
    %808 = vector.shape_cast %807 : vector<1x8x128xf32> to vector<8x128xf32>
    %809 = vector.shape_cast %800 : vector<8x128xf32> to vector<1x8x128xf32>
    tpu.vector_store %arg9[%c1_297, %c0_298, %c0_299], %809 {strides = array<i32>} : memref<2x8x128xf32, #tpu.memory_space<vmem>>, vector<1x8x128xf32>,
    %c0_300 = arith.constant 0 : index
    %c0_301 = arith.constant 0 : index
    %810 = vector.load %arg10[%c0_300, %c0_301] : memref<96x128xf32, #tpu.memory_space<vmem>>, vector<96x128xf32>
    %c0_302 = arith.constant 0 : index
    %c0_303 = arith.constant 0 : index
    %811 = vector.load %arg7[%c0_302, %c0_303] : memref<96x128xf32, #tpu.memory_space<vmem>>, vector<96x128xf32>
    tpu.vector_store %arg7[%c0_302, %c0_303], %810 {strides = array<i32>} : memref<96x128xf32, #tpu.memory_space<vmem>>, vector<96x128xf32>,
    return
  }
  func.func @transform_0(%arg0: i32) -> (i32, i32) {
    %c0_i32 = arith.constant 0 : i32
    %c0_i32_0 = arith.constant 0 : i32
    %c0_i32_1 = arith.constant 0 : i32
    return %c0_i32, %c0_i32_0 : i32, i32
  }
  func.func @transform_1(%arg0: i32) -> (i32, i32, i32) {
    %c0_i32 = arith.constant 0 : i32
    %c0_i32_0 = arith.constant 0 : i32
    %c0_i32_1 = arith.constant 0 : i32
    %c0_i32_2 = arith.constant 0 : i32
    return %c0_i32, %c0_i32_0, %c0_i32_1 : i32, i32, i32
  }
  func.func @transform_2(%arg0: i32) -> (i32, i32, i32) {
    %c0_i32 = arith.constant 0 : i32
    %c0_i32_0 = arith.constant 0 : i32
    %c0_i32_1 = arith.constant 0 : i32
    %c0_i32_2 = arith.constant 0 : i32
    return %c0_i32, %c0_i32_0, %c0_i32_1 : i32, i32, i32
  }
  func.func @transform_3(%arg0: i32) -> (i32, i32, i32) {
    %c0_i32 = arith.constant 0 : i32
    %c0_i32_0 = arith.constant 0 : i32
    %c0_i32_1 = arith.constant 0 : i32
    %c0_i32_2 = arith.constant 0 : i32
    return %c0_i32, %c0_i32_0, %c0_i32_1 : i32, i32, i32
  }
  func.func @transform_4(%arg0: i32) -> (i32, i32, i32) {
    %c0_i32 = arith.constant 0 : i32
    %c0_i32_0 = arith.constant 0 : i32
    %c0_i32_1 = arith.constant 0 : i32
    %c0_i32_2 = arith.constant 0 : i32
    return %c0_i32, %c0_i32_0, %c0_i32_1 : i32, i32, i32
  }
  func.func @transform_5(%arg0: i32) -> (i32, i32, i32) {
    %c0_i32 = arith.constant 0 : i32
    %c0_i32_0 = arith.constant 0 : i32
    %c0_i32_1 = arith.constant 0 : i32
    %c0_i32_2 = arith.constant 0 : i32
    return %c0_i32, %c0_i32_0, %c0_i32_1 : i32, i32, i32
  }
  func.func @transform_6(%arg0: i32) -> (i32, i32) {
    %c0_i32 = arith.constant 0 : i32
    %c0_i32_0 = arith.constant 0 : i32
    %c0_i32_1 = arith.constant 0 : i32
    return %c0_i32, %c0_i32_0 : i32, i32
  }
  func.func @transform_7(%arg0: i32) -> (i32, i32, i32) {
    %c0_i32 = arith.constant 0 : i32
    %c0_i32_0 = arith.constant 0 : i32
    %c0_i32_1 = arith.constant 0 : i32
    %c0_i32_2 = arith.constant 0 : i32
    return %c0_i32, %c0_i32_0, %c0_i32_1 : i32, i32, i32
  }
  func.func @transform_8(%arg0: i32) -> (i32, i32, i32) {
    %c0_i32 = arith.constant 0 : i32
    %c0_i32_0 = arith.constant 0 : i32
    %c0_i32_1 = arith.constant 0 : i32
    %c0_i32_2 = arith.constant 0 : i32
    return %c0_i32, %c0_i32_0, %c0_i32_1 : i32, i32, i32
  }
}

</mosaic_0001>

<llo_original>
// kernel: lstm_forward.3
$region0: #{lstm_forward.3}
  #allocation0 [shape = 'u32[]', space=smem, size = 0x4, offset = 0x4, fixed_abs, tag = 'smem constant byte address 0x4 - core index']
  #allocation1 [shape = 'u32[72,128]{1,0:T(1,128)}', space=vmem, size = 0x9000, scoped, tag = 'internal scratch']
  %s0 = inlined_call_operand.vmem [shape: f32[96,128], index: 0, kind: input, shape index: {}]
  %s1 = inlined_call_operand.hbm [shape: bf16[128,256], index: 1, kind: input, shape index: {}]
  %s2 = inlined_call_operand.vmem [shape: f32[1,256], index: 2, kind: input, shape index: {}]
  %s3 = inlined_call_operand.hbm [shape: f32[96,256], index: 3, kind: output, shape index: {}]
  %s4 = sld [smem:[#allocation0]]
  $region49: #{lstm_forward.3} parent=0
    _
  %s6 = ssub.s32 1, %s4
  %s7 = scalar_select 0, %s6, %s4
  $region1: #{lstm_forward.3} parent=0
    #allocation2 [shape = 'u8[65536]{0}', space=vmem, size = 0x10000, scoped, tag = 'input window, operand 1']
    #allocation3 [shape = 's32[2]{0}', space=sflag, size = 0x8, scoped, tag = 'scoped memory for lstm_forward.3']
    #allocation4 [shape = 's32[2]{0}', space=sflag, size = 0x8, scoped, tag = 'scoped memory for lstm_forward.3']
    #allocation5 [shape = 'u8[98304]{0}', space=vmem, size = 0x18000, scoped, tag = 'output window, operand 0']
    %8 = vsyncpa [#allocation3], 0
    %s9 = scalar_lea.sflag [#allocation3], 1
    %10 = vsyncpa %s9, 0
    %11 = vsyncpa [#allocation4], 0
    %s12 = scalar_lea.sflag [#allocation4], 1
    %13 = vsyncpa %s12, 0
    loop: start=0, step=1, limit=4
    $region2: #{lstm_forward.3} parent=1 // loop_pre_header
      _
    $region3: #{lstm_forward.3} parent=1 // loop_header
      %s15 = sphi 0, %s19
      %p16 = scmp.ge.s32.totalorder %s15, 4
      %s23 = sphi 0, %s23
      %s25 = sphi 0, %s23
      %s26 = sphi 0, %s25
      %s40 = sphi 0, %s26
      %s46 = sphi 0, %s48
      %s49 = sphi 0, %s46
      %s50 = sphi 0, %s49
      %s66 = sphi 0, %s50
      %s72 = sphi 0, %s74
      %s75 = sphi 0, %s72
      %s76 = sphi 0, %s75
      %s92 = sphi 0, %s76
      %s98 = sphi 0, %s100
      %s101 = sphi 0, %s98
      %s102 = sphi 0, %s101
      %s118 = sphi 0, %s102
    $region4: #{lstm_forward.3} parent=1 // loop_header_branch
      %18 = sbr.rel (%p16) target = $region8
    $region5: #{lstm_forward.3} parent=1 // loop_body
      %s20 = ssub.s32 %s15, 1
      %s21 = ssub.s32 %s15, 2
      %s22 = sadd.s32 %s15, 1
      %s24 = sadd.s32 %s23, 1
      %p27 = scmp.eq.s32.totalorder %s15, 1
      %p28 = scmp.ne.s32.totalorder %s23, %s25
      %p29 = scmp.eq.s32.totalorder %s15, 0
      %p30 = por %p28, %p29
      %p31 = scmp.ne.s32.totalorder %s23, %s25
      %p32 = scmp.eq.s32.totalorder %s20, 1
      %p33 = por %p31, %p32
      %p34 = scmp.ne.s32.totalorder %s25, %s26
      %p35 = scmp.eq.s32.totalorder %s20, 0
      %p36 = por %p34, %p35
      %p37 = scmp.ne.s32.totalorder %s25, %s26
      %p38 = scmp.eq.s32.totalorder %s21, 1
      %p39 = por %p37, %p38
      %p41 = scmp.ne.s32.totalorder %s26, %s40
      %p42 = scmp.eq.s32.totalorder %s21, 0
      %p43 = por %p41, %p42
      %s44 = ssub.s32 %s15, %s22
      %p45 = scmp.eq.s32.totalorder %s44, 0
      %s47 = sadd.s32 %s46, 1
      %s48 = scalar_select %p45, %s46, %s47
      %p51 = pneg %p45
      %p52 = scmp.eq.s32.totalorder %s15, 1
      %p53 = por %p51, %p52
      %p54 = scmp.ne.s32.totalorder %s46, %s49
      %p55 = scmp.eq.s32.totalorder %s15, 0
      %p56 = por %p54, %p55
      %p57 = scmp.ne.s32.totalorder %s46, %s49
      %p58 = scmp.eq.s32.totalorder %s20, 1
      %p59 = por %p57, %p58
      %p60 = scmp.ne.s32.totalorder %s49, %s50
      %p61 = scmp.eq.s32.totalorder %s20, 0
      %p62 = por %p60, %p61
      %p63 = scmp.ne.s32.totalorder %s49, %s50
      %p64 = scmp.eq.s32.totalorder %s21, 1
      %p65 = por %p63, %p64
      %p67 = scmp.ne.s32.totalorder %s50, %s66
      %p68 = scmp.eq.s32.totalorder %s21, 0
      %p69 = por %p67, %p68
      %s70 = ssub.s32 %s15, %s22
      %p71 = scmp.eq.s32.totalorder %s70, 0
      %s73 = sadd.s32 %s72, 1
      %s74 = scalar_select %p71, %s72, %s73
      %p77 = pneg %p71
      %p78 = scmp.eq.s32.totalorder %s15, 1
      %p79 = por %p77, %p78
      %p80 = scmp.ne.s32.totalorder %s72, %s75
      %p81 = scmp.eq.s32.totalorder %s15, 0
      %p82 = por %p80, %p81
      %p83 = scmp.ne.s32.totalorder %s72, %s75
      %p84 = scmp.eq.s32.totalorder %s20, 1
      %p85 = por %p83, %p84
      %p86 = scmp.ne.s32.totalorder %s75, %s76
      %p87 = scmp.eq.s32.totalorder %s20, 0
      %p88 = por %p86, %p87
      %p89 = scmp.ne.s32.totalorder %s75, %s76
      %p90 = scmp.eq.s32.totalorder %s21, 1
      %p91 = por %p89, %p90
      %p93 = scmp.ne.s32.totalorder %s76, %s92
      %p94 = scmp.eq.s32.totalorder %s21, 0
      %p95 = por %p93, %p94
      %s96 = ssub.s32 %s15, %s22
      %p97 = scmp.eq.s32.totalorder %s96, 0
      %s99 = sadd.s32 %s98, 1
      %s100 = scalar_select %p97, %s98, %s99
      %p103 = pneg %p97
      %p104 = scmp.eq.s32.totalorder %s15, 1
      %p105 = por %p103, %p104
      %p106 = scmp.ne.s32.totalorder %s98, %s101
      %p107 = scmp.eq.s32.totalorder %s15, 0
      %p108 = por %p106, %p107
      %p109 = scmp.ne.s32.totalorder %s98, %s101
      %p110 = scmp.eq.s32.totalorder %s20, 1
      %p111 = por %p109, %p110
      %p112 = scmp.ne.s32.totalorder %s101, %s102
      %p113 = scmp.eq.s32.totalorder %s20, 0
      %p114 = por %p112, %p113
      %p115 = scmp.ne.s32.totalorder %s101, %s102
      %p116 = scmp.eq.s32.totalorder %s21, 1
      %p117 = por %p115, %p116
      %p119 = scmp.ne.s32.totalorder %s102, %s118
      %p120 = scmp.eq.s32.totalorder %s21, 0
      %p121 = por %p119, %p120
      %p122 = scmp.le.s32.totalorder 1, %s15
      %p123 = scmp.lt.s32.totalorder %s15, 3
      %p124 = pnand %p122, %p123
      %p125 = pneg %p124
      // Predicated region
      $region9: #{lstm_forward.3} parent=5 // pred_check
        _
      $region10: #{lstm_forward.3} parent=5 // pred_check_branch
        %127 = sbr.rel (%p124) target = $region12
      $region11: #{lstm_forward.3} parent=5 // pred_region
        %s128 = ssub.s32 %s15, 1
        // Predicated region
        $region13: #{lstm_forward.3} parent=11 // pred_check
          %p129 = pneg %p36
        $region14: #{lstm_forward.3} parent=11 // pred_check_branch
          %131 = sbr.rel (%p129) target = $region16
        $region15: #{lstm_forward.3} parent=11 // pred_region
          _
        $region16: #{lstm_forward.3} parent=11 // pred_fallthru
          _
      $region12: #{lstm_forward.3} parent=5 // pred_fallthru
        _
      %p132 = scmp.lt.s32.totalorder %s15, 2
      // Predicated region
      $region17: #{lstm_forward.3} parent=5 // pred_check
        %p133 = pneg %p132
      $region18: #{lstm_forward.3} parent=5 // pred_check_branch
        %135 = sbr.rel (%p133) target = $region20
      $region19: #{lstm_forward.3} parent=5 // pred_region
        // Predicated region
        $region21: #{lstm_forward.3} parent=19 // pred_check
          %p136 = pneg %p56
        $region22: #{lstm_forward.3} parent=19 // pred_check_branch
          %138 = sbr.rel (%p136) target = $region24
        $region23: #{lstm_forward.3} parent=19 // pred_region
          %s139 = sand.u32 %s46, 1
          %s140 = scalar_lea.sflag [#allocation3], %s139
          %s141 = sand.u32 %s46, 1
          %s142 = smul.addr %s141, 64
          %s143 = scalar_lea.vmem [#allocation2], %s142
          %145 = vsyncadd %s140, 0
          %s146 = smul.addr %s15, 4
          %s147 = scalar_lea.hbm %s1, %s146
          %s148 = sshll.u32 %s147, 4
          %s149 = int_to_ptr.hbm [resolvable:$true] %s148
          %s150 = sshll.u32 %s143, 4
          %s151 = int_to_ptr.vmem [resolvable:$true] %s150
          %156 = dma.hbm_to_vmem [thread:$0]  %s149, 1024, %s151, %s140, 128, 64, 4
        $region24: #{lstm_forward.3} parent=19 // pred_fallthru
          _
        // Predicated region
        $region25: #{lstm_forward.3} parent=19 // pred_check
          %p157 = pneg %p82
        $region26: #{lstm_forward.3} parent=19 // pred_check_branch
          %159 = sbr.rel (%p157) target = $region28
        $region27: #{lstm_forward.3} parent=19 // pred_region
          %p160 = scmp.lt.s32.totalorder %s15, 1
          %s161 = scalar_select %p160, %s15, 1
          %s162 = scalar_lea.vmem %s2, %s161
        $region28: #{lstm_forward.3} parent=19 // pred_fallthru
          _
      $region20: #{lstm_forward.3} parent=5 // pred_fallthru
        _
      %p163 = scmp.le.s32.totalorder 1, %s15
      %p164 = scmp.lt.s32.totalorder %s15, 3
      %p165 = pnand %p163, %p164
      %p166 = pneg %p165
      // Predicated region
      $region29: #{lstm_forward.3} parent=5 // pred_check
        _
      $region30: #{lstm_forward.3} parent=5 // pred_check_branch
        %168 = sbr.rel (%p165) target = $region32
      $region31: #{lstm_forward.3} parent=5 // pred_region
        %s169 = ssub.s32 %s15, 1
        %s170 = sand.u32 %s49, 1
        %s171 = scalar_lea.sflag [#allocation3], %s170
        %s172 = sand.u32 %s49, 1
        %s173 = smul.addr %s172, 64
        %s174 = scalar_lea.vmem [#allocation2], %s173
        // Predicated region
        $region33: #{lstm_forward.3} parent=31 // pred_check
          %p175 = pneg %p62
        $region34: #{lstm_forward.3} parent=31 // pred_check_branch
          %177 = sbr.rel (%p175) target = $region36
        $region35: #{lstm_forward.3} parent=31 // pred_region
          %179 = dma.done %s171, 1024
        $region36: #{lstm_forward.3} parent=31 // pred_fallthru
          _
        %p180 = pneg %p36
        %p181 = pneg %p33
        %s182 = sand.u32 %s49, 1
        %s183 = scalar_lea.sflag [#allocation3], %s182
        %s184 = sand.u32 %s49, 1
        %s185 = smul.addr %s184, 64
        %s186 = scalar_lea.vmem [#allocation2], %s185
        %p187 = pneg %p62
        %p188 = pneg %p59
        %p189 = scmp.lt.s32.totalorder %s20, 1
        %s190 = scalar_select %p189, %s20, 1
        %s191 = scalar_lea.vmem %s2, %s190
        %p192 = pneg %p88
        %p193 = pneg %p85
        %p194 = pneg %p114
        %p195 = pneg %p111
        %s196 = sand.u32 %s101, 1
        %s197 = scalar_lea.sflag [#allocation4], %s196
        %s198 = sand.u32 %s101, 1
        %s199 = smul.addr %s198, 96
        %s200 = scalar_lea.vmem [#allocation5], %s199
        %p201 = scmp.lt.s32.totalorder %s20, 1
        %s202 = scalar_select %p201, %s20, 1
        %s203 = scalar_lea.vmem %s2, %s202
        %v204 = vld [vmem:[%s0] sm:$0xff]
        %v205 = vld [vmem:[%s0 + $0x8] sm:$0xff]
        %v206 = vld [vmem:[%s0 + $0x10] sm:$0xff]
        %v207 = vld [vmem:[%s0 + $0x18] sm:$0xff]
        %v208 = vld [vmem:[%s0 + $0x20] sm:$0xff]
        %v209 = vld [vmem:[%s0 + $0x28] sm:$0xff]
        %v210 = vld [vmem:[%s0 + $0x30] sm:$0xff]
        %v211 = vld [vmem:[%s0 + $0x38] sm:$0xff]
        %v212 = vld [vmem:[%s0 + $0x40] sm:$0xff]
        %v213 = vld [vmem:[%s0 + $0x48] sm:$0xff]
        %v214 = vld [vmem:[%s0 + $0x50] sm:$0xff]
        %v215 = vld [vmem:[%s0 + $0x58] sm:$0xff]
        %v216 = vpack.c.bf16 %v205, %v204
        %v217 = vpack.c.bf16 %v207, %v206
        %v218 = vpack.c.bf16 %v209, %v208
        %v219 = vpack.c.bf16 %v211, %v210
        %v220 = vpack.c.bf16 %v213, %v212
        %v221 = vpack.c.bf16 %v215, %v214
        %v222 = vld [vmem:[%s174] sm:$0xf]
        %v223 = vld [vmem:[%s174 + $0x4] sm:$0xf]
        %v224 = vld [vmem:[%s174 + $0x8] sm:$0xf]
        %v225 = vld [vmem:[%s174 + $0xc] sm:$0xf]
        %v226 = vld [vmem:[%s174 + $0x10] sm:$0xf]
        %v227 = vld [vmem:[%s174 + $0x14] sm:$0xf]
        %v228 = vld [vmem:[%s174 + $0x18] sm:$0xf]
        %v229 = vld [vmem:[%s174 + $0x1c] sm:$0xf]
        %v230 = vld [vmem:[%s174 + $0x20] sm:$0xf]
        %v231 = vld [vmem:[%s174 + $0x24] sm:$0xf]
        %v232 = vld [vmem:[%s174 + $0x28] sm:$0xf]
        %v233 = vld [vmem:[%s174 + $0x2c] sm:$0xf]
        %v234 = vld [vmem:[%s174 + $0x30] sm:$0xf]
        %v235 = vld [vmem:[%s174 + $0x34] sm:$0xf]
        %v236 = vld [vmem:[%s174 + $0x38] sm:$0xf]
        %v237 = vld [vmem:[%s174 + $0x3c] sm:$0xf]
        %v238 = vld [vmem:[%s203] sm:$0x1]
        %v240 = vperm.slane %v238, 0
        %v258 = vunpack.c.l.b16 %v222
        %v259 = vunpack.c.l.b16 %v223
        %v260 = vunpack.c.l.b16 %v224
        %v261 = vunpack.c.l.b16 %v225
        %v262 = vunpack.c.l.b16 %v226
        %v263 = vunpack.c.l.b16 %v227
        %v264 = vunpack.c.l.b16 %v228
        %v265 = vunpack.c.l.b16 %v229
        %v266 = vunpack.c.l.b16 %v230
        %v267 = vunpack.c.l.b16 %v231
        %v268 = vunpack.c.l.b16 %v232
        %v269 = vunpack.c.l.b16 %v233
        %v270 = vunpack.c.l.b16 %v234
        %v271 = vunpack.c.l.b16 %v235
        %v272 = vunpack.c.l.b16 %v236
        %v273 = vunpack.c.l.b16 %v237
        %v274 = vpack.c.b16 %v259, %v258
        %v275 = vpack.c.b16 %v261, %v260
        %v276 = vpack.c.b16 %v263, %v262
        %v277 = vpack.c.b16 %v265, %v264
        %v278 = vpack.c.b16 %v267, %v266
        %v279 = vpack.c.b16 %v269, %v268
        %v280 = vpack.c.b16 %v271, %v270
        %v281 = vpack.c.b16 %v273, %v272
        %290 = vmatpush.bf16.msra.mxu0 %v281
        %291 = vmatpush.bf16.msra.mxu0 %v280
        %292 = vmatpush.bf16.msra.mxu0 %v279
        %293 = vmatpush.bf16.msra.mxu0 %v278
        %294 = vmatpush.bf16.msra.mxu0 %v277
        %295 = vmatpush.bf16.msra.mxu0 %v276
        %296 = vmatpush.bf16.msra.mxu0 %v275
        %297 = vmatpush.bf16.msra.mxu0 %v274
        %298 = vmatmul.bf16.gmra.mxu0 %v216
        %v299 = vpop.f32.mrf.mxu0
        %v300 = vadd.f32 %v240, %v299
        %v301 = vpop.f32.mrf.mxu0
        %v302 = vadd.f32 %v240, %v301
        %303 = vmatmul.bf16.gmra.mxu0 %v217
        %v304 = vpop.f32.mrf.mxu0
        %v305 = vadd.f32 %v240, %v304
        %v306 = vpop.f32.mrf.mxu0
        %v307 = vadd.f32 %v240, %v306
        %308 = vmatmul.bf16.gmra.mxu0 %v218
        %v309 = vpop.f32.mrf.mxu0
        %v310 = vadd.f32 %v240, %v309
        %v311 = vpop.f32.mrf.mxu0
        %v312 = vadd.f32 %v240, %v311
        %313 = vmatmul.bf16.gmra.mxu0 %v219
        %v314 = vpop.f32.mrf.mxu0
        %v315 = vadd.f32 %v240, %v314
        %v316 = vpop.f32.mrf.mxu0
        %v317 = vadd.f32 %v240, %v316
        %318 = vmatmul.bf16.gmra.mxu0 %v220
        %v319 = vpop.f32.mrf.mxu0
        %v320 = vadd.f32 %v240, %v319
        %v321 = vpop.f32.mrf.mxu0
        %v322 = vadd.f32 %v240, %v321
        %323 = vmatmul.bf16.gmra.mxu0 %v221
        %v324 = vpop.f32.mrf.mxu0
        %v325 = vadd.f32 %v240, %v324
        %v326 = vpop.f32.mrf.mxu0
        %v327 = vadd.f32 %v240, %v326
        %328 = vdwg.mxu0
        %329 = vst [vmem:[%s200] sm:$0xff] %v300
        %330 = vst [vmem:[%s200 + $0x8] sm:$0xff] %v302
        %331 = vst [vmem:[%s200 + $0x10] sm:$0xff] %v305
        %332 = vst [vmem:[%s200 + $0x18] sm:$0xff] %v307
        %333 = vst [vmem:[%s200 + $0x20] sm:$0xff] %v310
        %334 = vst [vmem:[%s200 + $0x28] sm:$0xff] %v312
        %335 = vst [vmem:[%s200 + $0x30] sm:$0xff] %v315
        %336 = vst [vmem:[%s200 + $0x38] sm:$0xff] %v317
        %337 = vst [vmem:[%s200 + $0x40] sm:$0xff] %v320
        %338 = vst [vmem:[%s200 + $0x48] sm:$0xff] %v322
        %339 = vst [vmem:[%s200 + $0x50] sm:$0xff] %v325
        %340 = vst [vmem:[%s200 + $0x58] sm:$0xff] %v327
        %s341 = sand.u32 %s101, 1
        %s342 = scalar_lea.sflag [#allocation4], %s341
        %s343 = sand.u32 %s101, 1
        %s344 = smul.addr %s343, 96
        %s345 = scalar_lea.vmem [#allocation5], %s344
        // Predicated region
        $region37: #{lstm_forward.3} parent=31 // pred_check
          %p346 = pneg %p111
        $region38: #{lstm_forward.3} parent=31 // pred_check_branch
          %348 = sbr.rel (%p346) target = $region40
        $region39: #{lstm_forward.3} parent=31 // pred_region
          %350 = vsyncadd %s342, 0
          %s351 = smul.addr %s20, 8
          %s352 = scalar_lea.hbm %s3, %s351
          %s353 = sshll.u32 %s345, 4
          %s354 = int_to_ptr.vmem [resolvable:$true] %s353
          %s355 = sshll.u32 %s352, 4
          %s356 = int_to_ptr.hbm [resolvable:$true] %s355
          %361 = dma.vmem_to_hbm [thread:$0]  %s354, 1536, %s356, %s342, 128, 256, 8
        $region40: #{lstm_forward.3} parent=31 // pred_fallthru
          _
      $region32: #{lstm_forward.3} parent=5 // pred_fallthru
        _
      %p362 = scmp.le.s32.totalorder 2, %s15
      // Predicated region
      $region41: #{lstm_forward.3} parent=5 // pred_check
        %p363 = pneg %p362
      $region42: #{lstm_forward.3} parent=5 // pred_check_branch
        %365 = sbr.rel (%p363) target = $region44
      $region43: #{lstm_forward.3} parent=5 // pred_region
        %s366 = ssub.s32 %s15, 2
        // Predicated region
        $region45: #{lstm_forward.3} parent=43 // pred_check
          %p367 = pneg %p117
        $region46: #{lstm_forward.3} parent=43 // pred_check_branch
          %369 = sbr.rel (%p367) target = $region48
        $region47: #{lstm_forward.3} parent=43 // pred_region
          %s370 = sand.u32 %s102, 1
          %s371 = scalar_lea.sflag [#allocation4], %s370
          %s372 = sand.u32 %s102, 1
          %s373 = smul.addr %s372, 96
          %s374 = scalar_lea.vmem [#allocation5], %s373
          %376 = dma.done %s371, 1536
        $region48: #{lstm_forward.3} parent=43 // pred_fallthru
          _
      $region44: #{lstm_forward.3} parent=5 // pred_fallthru
        _
    $region6: #{lstm_forward.3} parent=1 // loop_footer
      %s19 = sadd.s32 1, %s15
    $region7: #{lstm_forward.3} parent=1 // loop_footer_branch
      %14 = sbr.rel target = $region3
    $region8: #{lstm_forward.3} parent=1 // loop_exit
      _
    %377 = vsyncpa [#allocation3], 1
    %s378 = scalar_lea.sflag [#allocation3], 1
    %379 = vsyncpa %s378, 1
    %380 = vsyncpa [#allocation4], 1
    %s381 = scalar_lea.sflag [#allocation4], 1
    %382 = vsyncpa %s381, 1

// kernel: lstm_forward.2
$region0: #{lstm_forward.2}
  #allocation0 [shape = 'u32[]', space=smem, size = 0x4, offset = 0x4, fixed_abs, tag = 'smem constant byte address 0x4 - core index']
  #allocation1 [shape = 'u32[72,128]{1,0:T(1,128)}', space=vmem, size = 0x9000, scoped, tag = 'internal scratch']
  #allocation2 [shape = 'f32[96,128]{1,0:T(8,128)}', space=vmem, size = 0xc000, scoped, tag = 'scratch operand']
  #allocation3 [shape = 'f32[96,512]{1,0:T(8,128)}', space=vmem, size = 0x30000, scoped, tag = 'scratch operand']
  %s0 = inlined_call_operand.vmem [shape: f32[96,128], index: 0, kind: input, shape index: {}]
  %s1 = inlined_call_operand.vmem [shape: bf16[2,128,512], index: 1, kind: input, shape index: {}]
  %s2 = inlined_call_operand.vmem [shape: bf16[2,128,512], index: 2, kind: input, shape index: {}]
  %s3 = inlined_call_operand.vmem [shape: f32[2,1,512], index: 3, kind: input, shape index: {}]
  %s4 = inlined_call_operand.vmem [shape: f32[2,8,128], index: 4, kind: input, shape index: {}]
  %s5 = inlined_call_operand.vmem [shape: f32[2,8,128], index: 5, kind: input, shape index: {}]
  %s6 = inlined_call_operand.vmem [shape: f32[96,128], index: 6, kind: output, shape index: {0}]
  %s7 = inlined_call_operand.hbm [shape: f32[2,8,128], index: 7, kind: output, shape index: {1}]
  %s8 = inlined_call_operand.hbm [shape: f32[2,8,128], index: 8, kind: output, shape index: {2}]
  %9 = xla_tuple %s6, %s7, %s8
  %s10 = sld [smem:[#allocation0]]
  $region50: #{lstm_forward.2} parent=0
    _
  %s12 = ssub.s32 1, %s10
  %s13 = scalar_select 0, %s12, %s10
  $region1: #{lstm_forward.2} parent=0
    #allocation4 [shape = 'u8[8192]{0}', space=vmem, size = 0x2000, scoped, tag = 'output window, operand 1, single buffered']
    #allocation5 [shape = 's32[1]{0}', space=sflag, size = 0x4, scoped, tag = 'scoped memory for lstm_forward.2']
    #allocation6 [shape = 'u8[8192]{0}', space=vmem, size = 0x2000, scoped, tag = 'output window, operand 2, single buffered']
    #allocation7 [shape = 's32[1]{0}', space=sflag, size = 0x4, scoped, tag = 'scoped memory for lstm_forward.2']
    %14 = vsyncpa [#allocation5], 0
    %15 = vsyncpa [#allocation7], 0
    // Predicated region
    $region2: #{lstm_forward.2} parent=1 // pred_check
      _
    $region3: #{lstm_forward.2} parent=1 // pred_check_branch
      %17 = sbr.rel (0) target = $region5
    $region4: #{lstm_forward.2} parent=1 // pred_region
      _
    $region5: #{lstm_forward.2} parent=1 // pred_fallthru
      _
    // Predicated region
    $region6: #{lstm_forward.2} parent=1 // pred_check
      _
    $region7: #{lstm_forward.2} parent=1 // pred_check_branch
      %19 = sbr.rel (0) target = $region9
    $region8: #{lstm_forward.2} parent=1 // pred_region
      _
    $region9: #{lstm_forward.2} parent=1 // pred_fallthru
      _
    // Predicated region
    $region10: #{lstm_forward.2} parent=1 // pred_check
      _
    $region11: #{lstm_forward.2} parent=1 // pred_check_branch
      %21 = sbr.rel (0) target = $region13
    $region12: #{lstm_forward.2} parent=1 // pred_region
      _
    $region13: #{lstm_forward.2} parent=1 // pred_fallthru
      _
    // Predicated region
    $region14: #{lstm_forward.2} parent=1 // pred_check
      _
    $region15: #{lstm_forward.2} parent=1 // pred_check_branch
      %23 = sbr.rel (0) target = $region17
    $region16: #{lstm_forward.2} parent=1 // pred_region
      _
    $region17: #{lstm_forward.2} parent=1 // pred_fallthru
      _
    // Predicated region
    $region18: #{lstm_forward.2} parent=1 // pred_check
      _
    $region19: #{lstm_forward.2} parent=1 // pred_check_branch
      %25 = sbr.rel (0) target = $region21
    $region20: #{lstm_forward.2} parent=1 // pred_region
      _
    $region21: #{lstm_forward.2} parent=1 // pred_fallthru
      _
    // Predicated region
    $region22: #{lstm_forward.2} parent=1 // pred_check
      _
    $region23: #{lstm_forward.2} parent=1 // pred_check_branch
      %27 = sbr.rel (0) target = $region25
    $region24: #{lstm_forward.2} parent=1 // pred_region
      _
    $region25: #{lstm_forward.2} parent=1 // pred_fallthru
      _
    %v28 = vld [vmem:[%s0] sm:$0xff]
    %v29 = vld [vmem:[%s0 + $0x8] sm:$0xff]
    %v30 = vld [vmem:[%s0 + $0x10] sm:$0xff]
    %v31 = vld [vmem:[%s0 + $0x18] sm:$0xff]
    %v32 = vld [vmem:[%s0 + $0x20] sm:$0xff]
    %v33 = vld [vmem:[%s0 + $0x28] sm:$0xff]
    %v34 = vld [vmem:[%s0 + $0x30] sm:$0xff]
    %v35 = vld [vmem:[%s0 + $0x38] sm:$0xff]
    %v36 = vld [vmem:[%s0 + $0x40] sm:$0xff]
    %v37 = vld [vmem:[%s0 + $0x48] sm:$0xff]
    %v38 = vld [vmem:[%s0 + $0x50] sm:$0xff]
    %v39 = vld [vmem:[%s0 + $0x58] sm:$0xff]
    %40 = vst [vmem:[#allocation2] sm:$0xff] %v28
    %41 = vst [vmem:[#allocation2 + $0x8] sm:$0xff] %v29
    %42 = vst [vmem:[#allocation2 + $0x10] sm:$0xff] %v30
    %43 = vst [vmem:[#allocation2 + $0x18] sm:$0xff] %v31
    %44 = vst [vmem:[#allocation2 + $0x20] sm:$0xff] %v32
    %45 = vst [vmem:[#allocation2 + $0x28] sm:$0xff] %v33
    %46 = vst [vmem:[#allocation2 + $0x30] sm:$0xff] %v34
    %47 = vst [vmem:[#allocation2 + $0x38] sm:$0xff] %v35
    %48 = vst [vmem:[#allocation2 + $0x40] sm:$0xff] %v36
    %49 = vst [vmem:[#allocation2 + $0x48] sm:$0xff] %v37
    %50 = vst [vmem:[#allocation2 + $0x50] sm:$0xff] %v38
    %51 = vst [vmem:[#allocation2 + $0x58] sm:$0xff] %v39
    %v52 = vld [vmem:[#allocation2] sm:$0xff]
    %v53 = vld [vmem:[#allocation2 + $0x8] sm:$0xff]
    %v54 = vld [vmem:[#allocation2 + $0x10] sm:$0xff]
    %v55 = vld [vmem:[#allocation2 + $0x18] sm:$0xff]
    %v56 = vld [vmem:[#allocation2 + $0x20] sm:$0xff]
    %v57 = vld [vmem:[#allocation2 + $0x28] sm:$0xff]
    %v58 = vld [vmem:[#allocation2 + $0x30] sm:$0xff]
    %v59 = vld [vmem:[#allocation2 + $0x38] sm:$0xff]
    %v60 = vld [vmem:[#allocation2 + $0x40] sm:$0xff]
    %v61 = vld [vmem:[#allocation2 + $0x48] sm:$0xff]
    %v62 = vld [vmem:[#allocation2 + $0x50] sm:$0xff]
    %v63 = vld [vmem:[#allocation2 + $0x58] sm:$0xff]
    %v64 = vpack.c.bf16 %v53, %v52
    %v65 = vpack.c.bf16 %v55, %v54
    %v66 = vpack.c.bf16 %v57, %v56
    %v67 = vpack.c.bf16 %v59, %v58
    %v68 = vpack.c.bf16 %v61, %v60
    %v69 = vpack.c.bf16 %v63, %v62
    %v70 = vld [vmem:[%s1] sm:$0xff]
    %v71 = vld [vmem:[%s1 + $0x8] sm:$0xff]
    %v72 = vld [vmem:[%s1 + $0x10] sm:$0xff]
    %v73 = vld [vmem:[%s1 + $0x18] sm:$0xff]
    %v74 = vld [vmem:[%s1 + $0x20] sm:$0xff]
    %v75 = vld [vmem:[%s1 + $0x28] sm:$0xff]
    %v76 = vld [vmem:[%s1 + $0x30] sm:$0xff]
    %v77 = vld [vmem:[%s1 + $0x38] sm:$0xff]
    %v78 = vld [vmem:[%s1 + $0x40] sm:$0xff]
    %v79 = vld [vmem:[%s1 + $0x48] sm:$0xff]
    %v80 = vld [vmem:[%s1 + $0x50] sm:$0xff]
    %v81 = vld [vmem:[%s1 + $0x58] sm:$0xff]
    %v82 = vld [vmem:[%s1 + $0x60] sm:$0xff]
    %v83 = vld [vmem:[%s1 + $0x68] sm:$0xff]
    %v84 = vld [vmem:[%s1 + $0x70] sm:$0xff]
    %v85 = vld [vmem:[%s1 + $0x78] sm:$0xff]
    %v86 = vld [vmem:[%s1 + $0x80] sm:$0xff]
    %v87 = vld [vmem:[%s1 + $0x88] sm:$0xff]
    %v88 = vld [vmem:[%s1 + $0x90] sm:$0xff]
    %v89 = vld [vmem:[%s1 + $0x98] sm:$0xff]
    %v90 = vld [vmem:[%s1 + $0xa0] sm:$0xff]
    %v91 = vld [vmem:[%s1 + $0xa8] sm:$0xff]
    %v92 = vld [vmem:[%s1 + $0xb0] sm:$0xff]
    %v93 = vld [vmem:[%s1 + $0xb8] sm:$0xff]
    %v94 = vld [vmem:[%s1 + $0xc0] sm:$0xff]
    %v95 = vld [vmem:[%s1 + $0xc8] sm:$0xff]
    %v96 = vld [vmem:[%s1 + $0xd0] sm:$0xff]
    %v97 = vld [vmem:[%s1 + $0xd8] sm:$0xff]
    %v98 = vld [vmem:[%s1 + $0xe0] sm:$0xff]
    %v99 = vld [vmem:[%s1 + $0xe8] sm:$0xff]
    %v100 = vld [vmem:[%s1 + $0xf0] sm:$0xff]
    %v101 = vld [vmem:[%s1 + $0xf8] sm:$0xff]
    %v102 = vld [vmem:[%s3] sm:$0xf]
    %v104 = vperm.slane %v102, 0
    %v105 = vperm.slane %v102, 1
    %v106 = vperm.slane %v102, 2
    %v107 = vperm.slane %v102, 3
    %v144 = vunpack.c.l.b16 %v70
    %v145 = vunpack.c.h.b16 %v70
    %v146 = vunpack.c.l.b16 %v71
    %v147 = vunpack.c.h.b16 %v71
    %v148 = vunpack.c.l.b16 %v72
    %v149 = vunpack.c.h.b16 %v72
    %v150 = vunpack.c.l.b16 %v73
    %v151 = vunpack.c.h.b16 %v73
    %v152 = vunpack.c.l.b16 %v74
    %v153 = vunpack.c.h.b16 %v74
    %v154 = vunpack.c.l.b16 %v75
    %v155 = vunpack.c.h.b16 %v75
    %v156 = vunpack.c.l.b16 %v76
    %v157 = vunpack.c.h.b16 %v76
    %v158 = vunpack.c.l.b16 %v77
    %v159 = vunpack.c.h.b16 %v77
    %v160 = vunpack.c.l.b16 %v78
    %v161 = vunpack.c.h.b16 %v78
    %v162 = vunpack.c.l.b16 %v79
    %v163 = vunpack.c.h.b16 %v79
    %v164 = vunpack.c.l.b16 %v80
    %v165 = vunpack.c.h.b16 %v80
    %v166 = vunpack.c.l.b16 %v81
    %v167 = vunpack.c.h.b16 %v81
    %v168 = vunpack.c.l.b16 %v82
    %v169 = vunpack.c.h.b16 %v82
    %v170 = vunpack.c.l.b16 %v83
    %v171 = vunpack.c.h.b16 %v83
    %v172 = vunpack.c.l.b16 %v84
    %v173 = vunpack.c.h.b16 %v84
    %v174 = vunpack.c.l.b16 %v85
    %v175 = vunpack.c.h.b16 %v85
    %v176 = vunpack.c.l.b16 %v86
    %v177 = vunpack.c.h.b16 %v86
    %v178 = vunpack.c.l.b16 %v87
    %v179 = vunpack.c.h.b16 %v87
    %v180 = vunpack.c.l.b16 %v88
    %v181 = vunpack.c.h.b16 %v88
    %v182 = vunpack.c.l.b16 %v89
    %v183 = vunpack.c.h.b16 %v89
    %v184 = vunpack.c.l.b16 %v90
    %v185 = vunpack.c.h.b16 %v90
    %v186 = vunpack.c.l.b16 %v91
    %v187 = vunpack.c.h.b16 %v91
    %v188 = vunpack.c.l.b16 %v92
    %v189 = vunpack.c.h.b16 %v92
    %v190 = vunpack.c.l.b16 %v93
    %v191 = vunpack.c.h.b16 %v93
    %v192 = vunpack.c.l.b16 %v94
    %v193 = vunpack.c.h.b16 %v94
    %v194 = vunpack.c.l.b16 %v95
    %v195 = vunpack.c.h.b16 %v95
    %v196 = vunpack.c.l.b16 %v96
    %v197 = vunpack.c.h.b16 %v96
    %v198 = vunpack.c.l.b16 %v97
    %v199 = vunpack.c.h.b16 %v97
    %v200 = vunpack.c.l.b16 %v98
    %v201 = vunpack.c.h.b16 %v98
    %v202 = vunpack.c.l.b16 %v99
    %v203 = vunpack.c.h.b16 %v99
    %v204 = vunpack.c.l.b16 %v100
    %v205 = vunpack.c.h.b16 %v100
    %v206 = vunpack.c.l.b16 %v101
    %v207 = vunpack.c.h.b16 %v101
    %v208 = vpack.c.b16 %v148, %v144
    %v209 = vpack.c.b16 %v149, %v145
    %v210 = vpack.c.b16 %v150, %v146
    %v211 = vpack.c.b16 %v151, %v147
    %v212 = vpack.c.b16 %v156, %v152
    %v213 = vpack.c.b16 %v157, %v153
    %v214 = vpack.c.b16 %v158, %v154
    %v215 = vpack.c.b16 %v159, %v155
    %v216 = vpack.c.b16 %v164, %v160
    %v217 = vpack.c.b16 %v165, %v161
    %v218 = vpack.c.b16 %v166, %v162
    %v219 = vpack.c.b16 %v167, %v163
    %v220 = vpack.c.b16 %v172, %v168
    %v221 = vpack.c.b16 %v173, %v169
    %v222 = vpack.c.b16 %v174, %v170
    %v223 = vpack.c.b16 %v175, %v171
    %v224 = vpack.c.b16 %v180, %v176
    %v225 = vpack.c.b16 %v181, %v177
    %v226 = vpack.c.b16 %v182, %v178
    %v227 = vpack.c.b16 %v183, %v179
    %v228 = vpack.c.b16 %v188, %v184
    %v229 = vpack.c.b16 %v189, %v185
    %v230 = vpack.c.b16 %v190, %v186
    %v231 = vpack.c.b16 %v191, %v187
    %v232 = vpack.c.b16 %v196, %v192
    %v233 = vpack.c.b16 %v197, %v193
    %v234 = vpack.c.b16 %v198, %v194
    %v235 = vpack.c.b16 %v199, %v195
    %v236 = vpack.c.b16 %v204, %v200
    %v237 = vpack.c.b16 %v205, %v201
    %v238 = vpack.c.b16 %v206, %v202
    %v239 = vpack.c.b16 %v207, %v203
    %272 = vmatpush.bf16.msra.mxu0 %v236
    %273 = vmatpush.bf16.msra.mxu0 %v232
    %274 = vmatpush.bf16.msra.mxu0 %v228
    %275 = vmatpush.bf16.msra.mxu0 %v224
    %276 = vmatpush.bf16.msra.mxu0 %v220
    %277 = vmatpush.bf16.msra.mxu0 %v216
    %278 = vmatpush.bf16.msra.mxu0 %v212
    %279 = vmatpush.bf16.msra.mxu0 %v208
    %280 = vmatmul.bf16.gmra.mxu0 %v64
    %v281 = vpop.f32.mrf.mxu0
    %v282 = vadd.f32 %v104, %v281
    %v283 = vpop.f32.mrf.mxu0
    %v284 = vadd.f32 %v104, %v283
    %285 = vmatmul.bf16.gmra.mxu0 %v65
    %v286 = vpop.f32.mrf.mxu0
    %v287 = vadd.f32 %v104, %v286
    %v288 = vpop.f32.mrf.mxu0
    %v289 = vadd.f32 %v104, %v288
    %290 = vmatmul.bf16.gmra.mxu0 %v66
    %v291 = vpop.f32.mrf.mxu0
    %v292 = vadd.f32 %v104, %v291
    %v293 = vpop.f32.mrf.mxu0
    %v294 = vadd.f32 %v104, %v293
    %295 = vmatmul.bf16.gmra.mxu0 %v67
    %v296 = vpop.f32.mrf.mxu0
    %v297 = vadd.f32 %v104, %v296
    %v298 = vpop.f32.mrf.mxu0
    %v299 = vadd.f32 %v104, %v298
    %300 = vmatmul.bf16.gmra.mxu0 %v68
    %v301 = vpop.f32.mrf.mxu0
    %v302 = vadd.f32 %v104, %v301
    %v303 = vpop.f32.mrf.mxu0
    %v304 = vadd.f32 %v104, %v303
    %305 = vmatmul.bf16.gmra.mxu0 %v69
    %v306 = vpop.f32.mrf.mxu0
    %v307 = vadd.f32 %v104, %v306
    %v308 = vpop.f32.mrf.mxu0
    %v309 = vadd.f32 %v104, %v308
    %310 = vdwg.mxu0
    %311 = vmatpush.bf16.msra.mxu0 %v237
    %312 = vmatpush.bf16.msra.mxu0 %v233
    %313 = vmatpush.bf16.msra.mxu0 %v229
    %314 = vmatpush.bf16.msra.mxu0 %v225
    %315 = vmatpush.bf16.msra.mxu0 %v221
    %316 = vmatpush.bf16.msra.mxu0 %v217
    %317 = vmatpush.bf16.msra.mxu0 %v213
    %318 = vmatpush.bf16.msra.mxu0 %v209
    %319 = vmatmul.bf16.gmra.mxu0 %v64
    %v320 = vpop.f32.mrf.mxu0
    %v321 = vadd.f32 %v105, %v320
    %v322 = vpop.f32.mrf.mxu0
    %v323 = vadd.f32 %v105, %v322
    %324 = vmatmul.bf16.gmra.mxu0 %v65
    %v325 = vpop.f32.mrf.mxu0
    %v326 = vadd.f32 %v105, %v325
    %v327 = vpop.f32.mrf.mxu0
    %v328 = vadd.f32 %v105, %v327
    %329 = vmatmul.bf16.gmra.mxu0 %v66
    %v330 = vpop.f32.mrf.mxu0
    %v331 = vadd.f32 %v105, %v330
    %v332 = vpop.f32.mrf.mxu0
    %v333 = vadd.f32 %v105, %v332
    %334 = vmatmul.bf16.gmra.mxu0 %v67
    %v335 = vpop.f32.mrf.mxu0
    %v336 = vadd.f32 %v105, %v335
    %v337 = vpop.f32.mrf.mxu0
    %v338 = vadd.f32 %v105, %v337
    %339 = vmatmul.bf16.gmra.mxu0 %v68
    %v340 = vpop.f32.mrf.mxu0
    %v341 = vadd.f32 %v105, %v340
    %v342 = vpop.f32.mrf.mxu0
    %v343 = vadd.f32 %v105, %v342
    %344 = vmatmul.bf16.gmra.mxu0 %v69
    %v345 = vpop.f32.mrf.mxu0
    %v346 = vadd.f32 %v105, %v345
    %v347 = vpop.f32.mrf.mxu0
    %v348 = vadd.f32 %v105, %v347
    %349 = vdwg.mxu0
    %350 = vmatpush.bf16.msra.mxu0 %v238
    %351 = vmatpush.bf16.msra.mxu0 %v234
    %352 = vmatpush.bf16.msra.mxu0 %v230
    %353 = vmatpush.bf16.msra.mxu0 %v226
    %354 = vmatpush.bf16.msra.mxu0 %v222
    %355 = vmatpush.bf16.msra.mxu0 %v218
    %356 = vmatpush.bf16.msra.mxu0 %v214
    %357 = vmatpush.bf16.msra.mxu0 %v210
    %358 = vmatmul.bf16.gmra.mxu0 %v64
    %v359 = vpop.f32.mrf.mxu0
    %v360 = vadd.f32 %v106, %v359
    %v361 = vpop.f32.mrf.mxu0
    %v362 = vadd.f32 %v106, %v361
    %363 = vmatmul.bf16.gmra.mxu0 %v65
    %v364 = vpop.f32.mrf.mxu0
    %v365 = vadd.f32 %v106, %v364
    %v366 = vpop.f32.mrf.mxu0
    %v367 = vadd.f32 %v106, %v366
    %368 = vmatmul.bf16.gmra.mxu0 %v66
    %v369 = vpop.f32.mrf.mxu0
    %v370 = vadd.f32 %v106, %v369
    %v371 = vpop.f32.mrf.mxu0
    %v372 = vadd.f32 %v106, %v371
    %373 = vmatmul.bf16.gmra.mxu0 %v67
    %v374 = vpop.f32.mrf.mxu0
    %v375 = vadd.f32 %v106, %v374
    %v376 = vpop.f32.mrf.mxu0
    %v377 = vadd.f32 %v106, %v376
    %378 = vmatmul.bf16.gmra.mxu0 %v68
    %v379 = vpop.f32.mrf.mxu0
    %v380 = vadd.f32 %v106, %v379
    %v381 = vpop.f32.mrf.mxu0
    %v382 = vadd.f32 %v106, %v381
    %383 = vmatmul.bf16.gmra.mxu0 %v69
    %v384 = vpop.f32.mrf.mxu0
    %v385 = vadd.f32 %v106, %v384
    %v386 = vpop.f32.mrf.mxu0
    %v387 = vadd.f32 %v106, %v386
    %388 = vdwg.mxu0
    %389 = vmatpush.bf16.msra.mxu0 %v239
    %390 = vmatpush.bf16.msra.mxu0 %v235
    %391 = vmatpush.bf16.msra.mxu0 %v231
    %392 = vmatpush.bf16.msra.mxu0 %v227
    %393 = vmatpush.bf16.msra.mxu0 %v223
    %394 = vmatpush.bf16.msra.mxu0 %v219
    %395 = vmatpush.bf16.msra.mxu0 %v215
    %396 = vmatpush.bf16.msra.mxu0 %v211
    %397 = vmatmul.bf16.gmra.mxu0 %v64
    %v398 = vpop.f32.mrf.mxu0
    %v399 = vadd.f32 %v107, %v398
    %v400 = vpop.f32.mrf.mxu0
    %v401 = vadd.f32 %v107, %v400
    %402 = vmatmul.bf16.gmra.mxu0 %v65
    %v403 = vpop.f32.mrf.mxu0
    %v404 = vadd.f32 %v107, %v403
    %v405 = vpop.f32.mrf.mxu0
    %v406 = vadd.f32 %v107, %v405
    %407 = vmatmul.bf16.gmra.mxu0 %v66
    %v408 = vpop.f32.mrf.mxu0
    %v409 = vadd.f32 %v107, %v408
    %v410 = vpop.f32.mrf.mxu0
    %v411 = vadd.f32 %v107, %v410
    %412 = vmatmul.bf16.gmra.mxu0 %v67
    %v413 = vpop.f32.mrf.mxu0
    %v414 = vadd.f32 %v107, %v413
    %v415 = vpop.f32.mrf.mxu0
    %v416 = vadd.f32 %v107, %v415
    %417 = vmatmul.bf16.gmra.mxu0 %v68
    %v418 = vpop.f32.mrf.mxu0
    %v419 = vadd.f32 %v107, %v418
    %v420 = vpop.f32.mrf.mxu0
    %v421 = vadd.f32 %v107, %v420
    %422 = vmatmul.bf16.gmra.mxu0 %v69
    %v423 = vpop.f32.mrf.mxu0
    %v424 = vadd.f32 %v107, %v423
    %v425 = vpop.f32.mrf.mxu0
    %v426 = vadd.f32 %v107, %v425
    %427 = vdwg.mxu0
    %428 = vst [vmem:[#allocation3] sm:$0xff] %v282
    %429 = vst [vmem:[#allocation3 + $0x8] sm:$0xff] %v321
    %430 = vst [vmem:[#allocation3 + $0x10] sm:$0xff] %v360
    %431 = vst [vmem:[#allocation3 + $0x18] sm:$0xff] %v399
    %432 = vst [vmem:[#allocation3 + $0x20] sm:$0xff] %v284
    %433 = vst [vmem:[#allocation3 + $0x28] sm:$0xff] %v323
    %434 = vst [vmem:[#allocation3 + $0x30] sm:$0xff] %v362
    %435 = vst [vmem:[#allocation3 + $0x38] sm:$0xff] %v401
    %436 = vst [vmem:[#allocation3 + $0x40] sm:$0xff] %v287
    %437 = vst [vmem:[#allocation3 + $0x48] sm:$0xff] %v326
    %438 = vst [vmem:[#allocation3 + $0x50] sm:$0xff] %v365
    %439 = vst [vmem:[#allocation3 + $0x58] sm:$0xff] %v404
    %440 = vst [vmem:[#allocation3 + $0x60] sm:$0xff] %v289
    %441 = vst [vmem:[#allocation3 + $0x68] sm:$0xff] %v328
    %442 = vst [vmem:[#allocation3 + $0x70] sm:$0xff] %v367
    %443 = vst [vmem:[#allocation3 + $0x78] sm:$0xff] %v406
    %444 = vst [vmem:[#allocation3 + $0x80] sm:$0xff] %v292
    %445 = vst [vmem:[#allocation3 + $0x88] sm:$0xff] %v331
    %446 = vst [vmem:[#allocation3 + $0x90] sm:$0xff] %v370
    %447 = vst [vmem:[#allocation3 + $0x98] sm:$0xff] %v409
    %448 = vst [vmem:[#allocation3 + $0xa0] sm:$0xff] %v294
    %449 = vst [vmem:[#allocation3 + $0xa8] sm:$0xff] %v333
    %450 = vst [vmem:[#allocation3 + $0xb0] sm:$0xff] %v372
    %451 = vst [vmem:[#allocation3 + $0xb8] sm:$0xff] %v411
    %452 = vst [vmem:[#allocation3 + $0xc0] sm:$0xff] %v297
    %453 = vst [vmem:[#allocation3 + $0xc8] sm:$0xff] %v336
    %454 = vst [vmem:[#allocation3 + $0xd0] sm:$0xff] %v375
    %455 = vst [vmem:[#allocation3 + $0xd8] sm:$0xff] %v414
    %456 = vst [vmem:[#allocation3 + $0xe0] sm:$0xff] %v299
    %457 = vst [vmem:[#allocation3 + $0xe8] sm:$0xff] %v338
    %458 = vst [vmem:[#allocation3 + $0xf0] sm:$0xff] %v377
    %459 = vst [vmem:[#allocation3 + $0xf8] sm:$0xff] %v416
    %460 = vst [vmem:[#allocation3 + $0x100] sm:$0xff] %v302
    %461 = vst [vmem:[#allocation3 + $0x108] sm:$0xff] %v341
    %462 = vst [vmem:[#allocation3 + $0x110] sm:$0xff] %v380
    %463 = vst [vmem:[#allocation3 + $0x118] sm:$0xff] %v419
    %464 = vst [vmem:[#allocation3 + $0x120] sm:$0xff] %v304
    %465 = vst [vmem:[#allocation3 + $0x128] sm:$0xff] %v343
    %466 = vst [vmem:[#allocation3 + $0x130] sm:$0xff] %v382
    %467 = vst [vmem:[#allocation3 + $0x138] sm:$0xff] %v421
    %468 = vst [vmem:[#allocation3 + $0x140] sm:$0xff] %v307
    %469 = vst [vmem:[#allocation3 + $0x148] sm:$0xff] %v346
    %470 = vst [vmem:[#allocation3 + $0x150] sm:$0xff] %v385
    %471 = vst [vmem:[#allocation3 + $0x158] sm:$0xff] %v424
    %472 = vst [vmem:[#allocation3 + $0x160] sm:$0xff] %v309
    %473 = vst [vmem:[#allocation3 + $0x168] sm:$0xff] %v348
    %474 = vst [vmem:[#allocation3 + $0x170] sm:$0xff] %v387
    %475 = vst [vmem:[#allocation3 + $0x178] sm:$0xff] %v426
    %v476 = vld [vmem:[%s4] sm:$0xff]
    %v477 = vld [vmem:[%s5] sm:$0xff]
    %v478 = vld [vmem:[#allocation3] sm:$0xff]
    %v479 = vld [vmem:[#allocation3 + $0x8] sm:$0xff]
    %v480 = vld [vmem:[#allocation3 + $0x10] sm:$0xff]
    %v481 = vld [vmem:[#allocation3 + $0x18] sm:$0xff]
    %v482 = vpack.c.bf16 %v476, %v476
    %v483 = vld [vmem:[%s2] sm:$0xff]
    %v484 = vld [vmem:[%s2 + $0x8] sm:$0xff]
    %v485 = vld [vmem:[%s2 + $0x10] sm:$0xff]
    %v486 = vld [vmem:[%s2 + $0x18] sm:$0xff]
    %v487 = vld [vmem:[%s2 + $0x20] sm:$0xff]
    %v488 = vld [vmem:[%s2 + $0x28] sm:$0xff]
    %v489 = vld [vmem:[%s2 + $0x30] sm:$0xff]
    %v490 = vld [vmem:[%s2 + $0x38] sm:$0xff]
    %v491 = vld [vmem:[%s2 + $0x40] sm:$0xff]
    %v492 = vld [vmem:[%s2 + $0x48] sm:$0xff]
    %v493 = vld [vmem:[%s2 + $0x50] sm:$0xff]
    %v494 = vld [vmem:[%s2 + $0x58] sm:$0xff]
    %v495 = vld [vmem:[%s2 + $0x60] sm:$0xff]
    %v496 = vld [vmem:[%s2 + $0x68] sm:$0xff]
    %v497 = vld [vmem:[%s2 + $0x70] sm:$0xff]
    %v498 = vld [vmem:[%s2 + $0x78] sm:$0xff]
    %v499 = vld [vmem:[%s2 + $0x80] sm:$0xff]
    %v500 = vld [vmem:[%s2 + $0x88] sm:$0xff]
    %v501 = vld [vmem:[%s2 + $0x90] sm:$0xff]
    %v502 = vld [vmem:[%s2 + $0x98] sm:$0xff]
    %v503 = vld [vmem:[%s2 + $0xa0] sm:$0xff]
    %v504 = vld [vmem:[%s2 + $0xa8] sm:$0xff]
    %v505 = vld [vmem:[%s2 + $0xb0] sm:$0xff]
    %v506 = vld [vmem:[%s2 + $0xb8] sm:$0xff]
    %v507 = vld [vmem:[%s2 + $0xc0] sm:$0xff]
    %v508 = vld [vmem:[%s2 + $0xc8] sm:$0xff]
    %v509 = vld [vmem:[%s2 + $0xd0] sm:$0xff]
    %v510 = vld [vmem:[%s2 + $0xd8] sm:$0xff]
    %v511 = vld [vmem:[%s2 + $0xe0] sm:$0xff]
    %v512 = vld [vmem:[%s2 + $0xe8] sm:$0xff]
    %v513 = vld [vmem:[%s2 + $0xf0] sm:$0xff]
    %v514 = vld [vmem:[%s2 + $0xf8] sm:$0xff]
    %v547 = vunpack.c.l.b16 %v483
    %v548 = vunpack.c.h.b16 %v483
    %v549 = vunpack.c.l.b16 %v484
    %v550 = vunpack.c.h.b16 %v484
    %v551 = vunpack.c.l.b16 %v485
    %v552 = vunpack.c.h.b16 %v485
    %v553 = vunpack.c.l.b16 %v486
    %v554 = vunpack.c.h.b16 %v486
    %v555 = vunpack.c.l.b16 %v487
    %v556 = vunpack.c.h.b16 %v487
    %v557 = vunpack.c.l.b16 %v488
    %v558 = vunpack.c.h.b16 %v488
    %v559 = vunpack.c.l.b16 %v489
    %v560 = vunpack.c.h.b16 %v489
    %v561 = vunpack.c.l.b16 %v490
    %v562 = vunpack.c.h.b16 %v490
    %v563 = vunpack.c.l.b16 %v491
    %v564 = vunpack.c.h.b16 %v491
    %v565 = vunpack.c.l.b16 %v492
    %v566 = vunpack.c.h.b16 %v492
    %v567 = vunpack.c.l.b16 %v493
    %v568 = vunpack.c.h.b16 %v493
    %v569 = vunpack.c.l.b16 %v494
    %v570 = vunpack.c.h.b16 %v494
    %v571 = vunpack.c.l.b16 %v495
    %v572 = vunpack.c.h.b16 %v495
    %v573 = vunpack.c.l.b16 %v496
    %v574 = vunpack.c.h.b16 %v496
    %v575 = vunpack.c.l.b16 %v497
    %v576 = vunpack.c.h.b16 %v497
    %v577 = vunpack.c.l.b16 %v498
    %v578 = vunpack.c.h.b16 %v498
    %v579 = vunpack.c.l.b16 %v499
    %v580 = vunpack.c.h.b16 %v499
    %v581 = vunpack.c.l.b16 %v500
    %v582 = vunpack.c.h.b16 %v500
    %v583 = vunpack.c.l.b16 %v501
    %v584 = vunpack.c.h.b16 %v501
    %v585 = vunpack.c.l.b16 %v502
    %v586 = vunpack.c.h.b16 %v502
    %v587 = vunpack.c.l.b16 %v503
    %v588 = vunpack.c.h.b16 %v503
    %v589 = vunpack.c.l.b16 %v504
    %v590 = vunpack.c.h.b16 %v504
    %v591 = vunpack.c.l.b16 %v505
    %v592 = vunpack.c.h.b16 %v505
    %v593 = vunpack.c.l.b16 %v506
    %v594 = vunpack.c.h.b16 %v506
    %v595 = vunpack.c.l.b16 %v507
    %v596 = vunpack.c.h.b16 %v507
    %v597 = vunpack.c.l.b16 %v508
    %v598 = vunpack.c.h.b16 %v508
    %v599 = vunpack.c.l.b16 %v509
    %v600 = vunpack.c.h.b16 %v509
    %v601 = vunpack.c.l.b16 %v510
    %v602 = vunpack.c.h.b16 %v510
    %v603 = vunpack.c.l.b16 %v511
    %v604 = vunpack.c.h.b16 %v511
    %v605 = vunpack.c.l.b16 %v512
    %v606 = vunpack.c.h.b16 %v512
    %v607 = vunpack.c.l.b16 %v513
    %v608 = vunpack.c.h.b16 %v513
    %v609 = vunpack.c.l.b16 %v514
    %v610 = vunpack.c.h.b16 %v514
    %v611 = vpack.c.b16 %v551, %v547
    %v612 = vpack.c.b16 %v552, %v548
    %v613 = vpack.c.b16 %v553, %v549
    %v614 = vpack.c.b16 %v554, %v550
    %v615 = vpack.c.b16 %v559, %v555
    %v616 = vpack.c.b16 %v560, %v556
    %v617 = vpack.c.b16 %v561, %v557
    %v618 = vpack.c.b16 %v562, %v558
    %v619 = vpack.c.b16 %v567, %v563
    %v620 = vpack.c.b16 %v568, %v564
    %v621 = vpack.c.b16 %v569, %v565
    %v622 = vpack.c.b16 %v570, %v566
    %v623 = vpack.c.b16 %v575, %v571
    %v624 = vpack.c.b16 %v576, %v572
    %v625 = vpack.c.b16 %v577, %v573
    %v626 = vpack.c.b16 %v578, %v574
    %v627 = vpack.c.b16 %v583, %v579
    %v628 = vpack.c.b16 %v584, %v580
    %v629 = vpack.c.b16 %v585, %v581
    %v630 = vpack.c.b16 %v586, %v582
    %v631 = vpack.c.b16 %v591, %v587
    %v632 = vpack.c.b16 %v592, %v588
    %v633 = vpack.c.b16 %v593, %v589
    %v634 = vpack.c.b16 %v594, %v590
    %v635 = vpack.c.b16 %v599, %v595
    %v636 = vpack.c.b16 %v600, %v596
    %v637 = vpack.c.b16 %v601, %v597
    %v638 = vpack.c.b16 %v602, %v598
    %v639 = vpack.c.b16 %v607, %v603
    %v640 = vpack.c.b16 %v608, %v604
    %v641 = vpack.c.b16 %v609, %v605
    %v642 = vpack.c.b16 %v610, %v606
    %675 = vmatpush.bf16.msra.mxu0 %v639
    %676 = vmatpush.bf16.msra.mxu0 %v635
    %677 = vmatpush.bf16.msra.mxu0 %v631
    %678 = vmatpush.bf16.msra.mxu0 %v627
    %679 = vmatpush.bf16.msra.mxu0 %v623
    %680 = vmatpush.bf16.msra.mxu0 %v619
    %681 = vmatpush.bf16.msra.mxu0 %v615
    %682 = vmatpush.bf16.msra.mxu0 %v611
    %683 = vmatmul.bf16.gmra.mxu0 %v482
    %v684 = vpop.f32.mrf.mxu0
    %v685 = vadd.f32 0.0, %v684
    %v686 = vpop.f32.mrf.mxu0
    %687 = vdwg.mxu0
    %688 = vmatpush.bf16.msra.mxu0 %v640
    %689 = vmatpush.bf16.msra.mxu0 %v636
    %690 = vmatpush.bf16.msra.mxu0 %v632
    %691 = vmatpush.bf16.msra.mxu0 %v628
    %692 = vmatpush.bf16.msra.mxu0 %v624
    %693 = vmatpush.bf16.msra.mxu0 %v620
    %694 = vmatpush.bf16.msra.mxu0 %v616
    %695 = vmatpush.bf16.msra.mxu0 %v612
    %696 = vmatmul.bf16.gmra.mxu0 %v482
    %v697 = vpop.f32.mrf.mxu0
    %v698 = vadd.f32 0.0, %v697
    %v699 = vpop.f32.mrf.mxu0
    %700 = vdwg.mxu0
    %701 = vmatpush.bf16.msra.mxu0 %v641
    %702 = vmatpush.bf16.msra.mxu0 %v637
    %703 = vmatpush.bf16.msra.mxu0 %v633
    %704 = vmatpush.bf16.msra.mxu0 %v629
    %705 = vmatpush.bf16.msra.mxu0 %v625
    %706 = vmatpush.bf16.msra.mxu0 %v621
    %707 = vmatpush.bf16.msra.mxu0 %v617
    %708 = vmatpush.bf16.msra.mxu0 %v613
    %709 = vmatmul.bf16.gmra.mxu0 %v482
    %v710 = vpop.f32.mrf.mxu0
    %v711 = vadd.f32 0.0, %v710
    %v712 = vpop.f32.mrf.mxu0
    %713 = vdwg.mxu0
    %714 = vmatpush.bf16.msra.mxu0 %v642
    %715 = vmatpush.bf16.msra.mxu0 %v638
    %716 = vmatpush.bf16.msra.mxu0 %v634
    %717 = vmatpush.bf16.msra.mxu0 %v630
    %718 = vmatpush.bf16.msra.mxu0 %v626
    %719 = vmatpush.bf16.msra.mxu0 %v622
    %720 = vmatpush.bf16.msra.mxu0 %v618
    %721 = vmatpush.bf16.msra.mxu0 %v614
    %722 = vmatmul.bf16.gmra.mxu0 %v482
    %v723 = vpop.f32.mrf.mxu0
    %v724 = vadd.f32 0.0, %v723
    %v725 = vpop.f32.mrf.mxu0
    %726 = vdwg.mxu0
    %v727 = vadd.f32 %v478, %v685
    %v728 = vadd.f32 %v479, %v698
    %v729 = vadd.f32 %v480, %v711
    %v730 = vadd.f32 %v481, %v724
    %v731 = vxor.u32 %v727, 2147483648
    %v732 = vmul.f32 %v731, 1.442695
    %v733 = vpow.pop %v732
    %v734 = vadd.f32 %v733, 1.0
    %v735 = vrcp.pop %v734
    %v736 = vmul.f32 %v734, %v735
    %v737 = vsub.f32 1.0, %v736
    %v738 = vmul.f32 %v735, %v737
    %v739 = vadd.f32 %v735, %v738
    %vm740 = vweird.f32 %v734
    %vm741 = vweird.f32 %v735
    %vm742 = vmor %vm740, %vm741
    %v743 = vsel %vm742, %v735, %v739
    %v744 = vand.u32 2147483647, %v734
    %vm745 = vcmp.eq.f32.partialorder %v744, 8.507059e+37
    %v746 = vand.u32 %v734, 2147483648
    %v747 = vor.u32 1.1754944e-38, %v746
    %v748 = vsel %vm745, %v747, %v743
    %v749 = vmul.f32 1.0, %v748
    %v750 = vxor.u32 %v728, 2147483648
    %v751 = vmul.f32 %v750, 1.442695
    %v752 = vpow.pop %v751
    %v753 = vadd.f32 %v752, 1.0
    %v754 = vrcp.pop %v753
    %v755 = vmul.f32 %v753, %v754
    %v756 = vsub.f32 1.0, %v755
    %v757 = vmul.f32 %v754, %v756
    %v758 = vadd.f32 %v754, %v757
    %vm759 = vweird.f32 %v753
    %vm760 = vweird.f32 %v754
    %vm761 = vmor %vm759, %vm760
    %v762 = vsel %vm761, %v754, %v758
    %v763 = vand.u32 2147483647, %v753
    %vm764 = vcmp.eq.f32.partialorder %v763, 8.507059e+37
    %v765 = vand.u32 %v753, 2147483648
    %v766 = vor.u32 1.1754944e-38, %v765
    %v767 = vsel %vm764, %v766, %v762
    %v768 = vmul.f32 1.0, %v767
    %v769 = vtanh.pop %v729
    %v770 = vxor.u32 %v730, 2147483648
    %v771 = vmul.f32 %v770, 1.442695
    %v772 = vpow.pop %v771
    %v773 = vadd.f32 %v772, 1.0
    %v774 = vrcp.pop %v773
    %v775 = vmul.f32 %v773, %v774
    %v776 = vsub.f32 1.0, %v775
    %v777 = vmul.f32 %v774, %v776
    %v778 = vadd.f32 %v774, %v777
    %vm779 = vweird.f32 %v773
    %vm780 = vweird.f32 %v774
    %vm781 = vmor %vm779, %vm780
    %v782 = vsel %vm781, %v774, %v778
    %v783 = vand.u32 2147483647, %v773
    %vm784 = vcmp.eq.f32.partialorder %v783, 8.507059e+37
    %v785 = vand.u32 %v773, 2147483648
    %v786 = vor.u32 1.1754944e-38, %v785
    %v787 = vsel %vm784, %v786, %v782
    %v788 = vmul.f32 1.0, %v787
    %v789 = vmul.f32 %v768, %v477
    %v790 = vmul.f32 %v749, %v769
    %v791 = vadd.f32 %v789, %v790
    %v792 = vtanh.pop %v791
    %v793 = vmul.f32 %v788, %v792
    %794 = vst [vmem:[#allocation2] sm:$0xff] %v793
    %v795 = vld [vmem:[#allocation3 + $0x20] sm:$0xff]
    %v796 = vld [vmem:[#allocation3 + $0x28] sm:$0xff]
    %v797 = vld [vmem:[#allocation3 + $0x30] sm:$0xff]
    %v798 = vld [vmem:[#allocation3 + $0x38] sm:$0xff]
    %v799 = vpack.c.bf16 %v793, %v793
    %v800 = vld [vmem:[%s2] sm:$0xff]
    %v801 = vld [vmem:[%s2 + $0x8] sm:$0xff]
    %v802 = vld [vmem:[%s2 + $0x10] sm:$0xff]
    %v803 = vld [vmem:[%s2 + $0x18] sm:$0xff]
    %v804 = vld [vmem:[%s2 + $0x20] sm:$0xff]
    %v805 = vld [vmem:[%s2 + $0x28] sm:$0xff]
    %v806 = vld [vmem:[%s2 + $0x30] sm:$0xff]
    %v807 = vld [vmem:[%s2 + $0x38] sm:$0xff]
    %v808 = vld [vmem:[%s2 + $0x40] sm:$0xff]
    %v809 = vld [vmem:[%s2 + $0x48] sm:$0xff]
    %v810 = vld [vmem:[%s2 + $0x50] sm:$0xff]
    %v811 = vld [vmem:[%s2 + $0x58] sm:$0xff]
    %v812 = vld [vmem:[%s2 + $0x60] sm:$0xff]
    %v813 = vld [vmem:[%s2 + $0x68] sm:$0xff]
    %v814 = vld [vmem:[%s2 + $0x70] sm:$0xff]
    %v815 = vld [vmem:[%s2 + $0x78] sm:$0xff]
    %v816 = vld [vmem:[%s2 + $0x80] sm:$0xff]
    %v817 = vld [vmem:[%s2 + $0x88] sm:$0xff]
    %v818 = vld [vmem:[%s2 + $0x90] sm:$0xff]
    %v819 = vld [vmem:[%s2 + $0x98] sm:$0xff]
    %v820 = vld [vmem:[%s2 + $0xa0] sm:$0xff]
    %v821 = vld [vmem:[%s2 + $0xa8] sm:$0xff]
    %v822 = vld [vmem:[%s2 + $0xb0] sm:$0xff]
    %v823 = vld [vmem:[%s2 + $0xb8] sm:$0xff]
    %v824 = vld [vmem:[%s2 + $0xc0] sm:$0xff]
    %v825 = vld [vmem:[%s2 + $0xc8] sm:$0xff]
    %v826 = vld [vmem:[%s2 + $0xd0] sm:$0xff]
    %v827 = vld [vmem:[%s2 + $0xd8] sm:$0xff]
    %v828 = vld [vmem:[%s2 + $0xe0] sm:$0xff]
    %v829 = vld [vmem:[%s2 + $0xe8] sm:$0xff]
    %v830 = vld [vmem:[%s2 + $0xf0] sm:$0xff]
    %v831 = vld [vmem:[%s2 + $0xf8] sm:$0xff]
    %v864 = vunpack.c.l.b16 %v800
    %v865 = vunpack.c.h.b16 %v800
    %v866 = vunpack.c.l.b16 %v801
    %v867 = vunpack.c.h.b16 %v801
    %v868 = vunpack.c.l.b16 %v802
    %v869 = vunpack.c.h.b16 %v802
    %v870 = vunpack.c.l.b16 %v803
    %v871 = vunpack.c.h.b16 %v803
    %v872 = vunpack.c.l.b16 %v804
    %v873 = vunpack.c.h.b16 %v804
    %v874 = vunpack.c.l.b16 %v805
    %v875 = vunpack.c.h.b16 %v805
    %v876 = vunpack.c.l.b16 %v806
    %v877 = vunpack.c.h.b16 %v806
    %v878 = vunpack.c.l.b16 %v807
    %v879 = vunpack.c.h.b16 %v807
    %v880 = vunpack.c.l.b16 %v808
    %v881 = vunpack.c.h.b16 %v808
    %v882 = vunpack.c.l.b16 %v809
    %v883 = vunpack.c.h.b16 %v809
    %v884 = vunpack.c.l.b16 %v810
    %v885 = vunpack.c.h.b16 %v810
    %v886 = vunpack.c.l.b16 %v811
    %v887 = vunpack.c.h.b16 %v811
    %v888 = vunpack.c.l.b16 %v812
    %v889 = vunpack.c.h.b16 %v812
    %v890 = vunpack.c.l.b16 %v813
    %v891 = vunpack.c.h.b16 %v813
    %v892 = vunpack.c.l.b16 %v814
    %v893 = vunpack.c.h.b16 %v814
    %v894 = vunpack.c.l.b16 %v815
    %v895 = vunpack.c.h.b16 %v815
    %v896 = vunpack.c.l.b16 %v816
    %v897 = vunpack.c.h.b16 %v816
    %v898 = vunpack.c.l.b16 %v817
    %v899 = vunpack.c.h.b16 %v817
    %v900 = vunpack.c.l.b16 %v818
    %v901 = vunpack.c.h.b16 %v818
    %v902 = vunpack.c.l.b16 %v819
    %v903 = vunpack.c.h.b16 %v819
    %v904 = vunpack.c.l.b16 %v820
    %v905 = vunpack.c.h.b16 %v820
    %v906 = vunpack.c.l.b16 %v821
    %v907 = vunpack.c.h.b16 %v821
    %v908 = vunpack.c.l.b16 %v822
    %v909 = vunpack.c.h.b16 %v822
    %v910 = vunpack.c.l.b16 %v823
    %v911 = vunpack.c.h.b16 %v823
    %v912 = vunpack.c.l.b16 %v824
    %v913 = vunpack.c.h.b16 %v824
    %v914 = vunpack.c.l.b16 %v825
    %v915 = vunpack.c.h.b16 %v825
    %v916 = vunpack.c.l.b16 %v826
    %v917 = vunpack.c.h.b16 %v826
    %v918 = vunpack.c.l.b16 %v827
    %v919 = vunpack.c.h.b16 %v827
    %v920 = vunpack.c.l.b16 %v828
    %v921 = vunpack.c.h.b16 %v828
    %v922 = vunpack.c.l.b16 %v829
    %v923 = vunpack.c.h.b16 %v829
    %v924 = vunpack.c.l.b16 %v830
    %v925 = vunpack.c.h.b16 %v830
    %v926 = vunpack.c.l.b16 %v831
    %v927 = vunpack.c.h.b16 %v831
    %v928 = vpack.c.b16 %v868, %v864
    %v929 = vpack.c.b16 %v869, %v865
    %v930 = vpack.c.b16 %v870, %v866
    %v931 = vpack.c.b16 %v871, %v867
    %v932 = vpack.c.b16 %v876, %v872
    %v933 = vpack.c.b16 %v877, %v873
    %v934 = vpack.c.b16 %v878, %v874
    %v935 = vpack.c.b16 %v879, %v875
    %v936 = vpack.c.b16 %v884, %v880
    %v937 = vpack.c.b16 %v885, %v881
    %v938 = vpack.c.b16 %v886, %v882
    %v939 = vpack.c.b16 %v887, %v883
    %v940 = vpack.c.b16 %v892, %v888
    %v941 = vpack.c.b16 %v893, %v889
    %v942 = vpack.c.b16 %v894, %v890
    %v943 = vpack.c.b16 %v895, %v891
    %v944 = vpack.c.b16 %v900, %v896
    %v945 = vpack.c.b16 %v901, %v897
    %v946 = vpack.c.b16 %v902, %v898
    %v947 = vpack.c.b16 %v903, %v899
    %v948 = vpack.c.b16 %v908, %v904
    %v949 = vpack.c.b16 %v909, %v905
    %v950 = vpack.c.b16 %v910, %v906
    %v951 = vpack.c.b16 %v911, %v907
    %v952 = vpack.c.b16 %v916, %v912
    %v953 = vpack.c.b16 %v917, %v913
    %v954 = vpack.c.b16 %v918, %v914
    %v955 = vpack.c.b16 %v919, %v915
    %v956 = vpack.c.b16 %v924, %v920
    %v957 = vpack.c.b16 %v925, %v921
    %v958 = vpack.c.b16 %v926, %v922
    %v959 = vpack.c.b16 %v927, %v923
    %992 = vmatpush.bf16.msra.mxu0 %v956
    %993 = vmatpush.bf16.msra.mxu0 %v952
    %994 = vmatpush.bf16.msra.mxu0 %v948
    %995 = vmatpush.bf16.msra.mxu0 %v944
    %996 = vmatpush.bf16.msra.mxu0 %v940
    %997 = vmatpush.bf16.msra.mxu0 %v936
    %998 = vmatpush.bf16.msra.mxu0 %v932
    %999 = vmatpush.bf16.msra.mxu0 %v928
    %1000 = vmatmul.bf16.gmra.mxu0 %v799
    %v1001 = vpop.f32.mrf.mxu0
    %v1002 = vadd.f32 0.0, %v1001
    %v1003 = vpop.f32.mrf.mxu0
    %1004 = vdwg.mxu0
    %1005 = vmatpush.bf16.msra.mxu0 %v957
    %1006 = vmatpush.bf16.msra.mxu0 %v953
    %1007 = vmatpush.bf16.msra.mxu0 %v949
    %1008 = vmatpush.bf16.msra.mxu0 %v945
    %1009 = vmatpush.bf16.msra.mxu0 %v941
    %1010 = vmatpush.bf16.msra.mxu0 %v937
    %1011 = vmatpush.bf16.msra.mxu0 %v933
    %1012 = vmatpush.bf16.msra.mxu0 %v929
    %1013 = vmatmul.bf16.gmra.mxu0 %v799
    %v1014 = vpop.f32.mrf.mxu0
    %v1015 = vadd.f32 0.0, %v1014
    %v1016 = vpop.f32.mrf.mxu0
    %1017 = vdwg.mxu0
    %1018 = vmatpush.bf16.msra.mxu0 %v958
    %1019 = vmatpush.bf16.msra.mxu0 %v954
    %1020 = vmatpush.bf16.msra.mxu0 %v950
    %1021 = vmatpush.bf16.msra.mxu0 %v946
    %1022 = vmatpush.bf16.msra.mxu0 %v942
    %1023 = vmatpush.bf16.msra.mxu0 %v938
    %1024 = vmatpush.bf16.msra.mxu0 %v934
    %1025 = vmatpush.bf16.msra.mxu0 %v930
    %1026 = vmatmul.bf16.gmra.mxu0 %v799
    %v1027 = vpop.f32.mrf.mxu0
    %v1028 = vadd.f32 0.0, %v1027
    %v1029 = vpop.f32.mrf.mxu0
    %1030 = vdwg.mxu0
    %1031 = vmatpush.bf16.msra.mxu0 %v959
    %1032 = vmatpush.bf16.msra.mxu0 %v955
    %1033 = vmatpush.bf16.msra.mxu0 %v951
    %1034 = vmatpush.bf16.msra.mxu0 %v947
    %1035 = vmatpush.bf16.msra.mxu0 %v943
    %1036 = vmatpush.bf16.msra.mxu0 %v939
    %1037 = vmatpush.bf16.msra.mxu0 %v935
    %1038 = vmatpush.bf16.msra.mxu0 %v931
    %1039 = vmatmul.bf16.gmra.mxu0 %v799
    %v1040 = vpop.f32.mrf.mxu0
    %v1041 = vadd.f32 0.0, %v1040
    %v1042 = vpop.f32.mrf.mxu0
    %1043 = vdwg.mxu0
    %v1044 = vadd.f32 %v795, %v1002
    %v1045 = vadd.f32 %v796, %v1015
    %v1046 = vadd.f32 %v797, %v1028
    %v1047 = vadd.f32 %v798, %v1041
    %v1048 = vxor.u32 %v1044, 2147483648
    %v1049 = vmul.f32 %v1048, 1.442695
    %v1050 = vpow.pop %v1049
    %v1051 = vadd.f32 %v1050, 1.0
    %v1052 = vrcp.pop %v1051
    %v1053 = vmul.f32 %v1051, %v1052
    %v1054 = vsub.f32 1.0, %v1053
    %v1055 = vmul.f32 %v1052, %v1054
    %v1056 = vadd.f32 %v1052, %v1055
    %vm1057 = vweird.f32 %v1051
    %vm1058 = vweird.f32 %v1052
    %vm1059 = vmor %vm1057, %vm1058
    %v1060 = vsel %vm1059, %v1052, %v1056
    %v1061 = vand.u32 2147483647, %v1051
    %vm1062 = vcmp.eq.f32.partialorder %v1061, 8.507059e+37
    %v1063 = vand.u32 %v1051, 2147483648
    %v1064 = vor.u32 1.1754944e-38, %v1063
    %v1065 = vsel %vm1062, %v1064, %v1060
    %v1066 = vmul.f32 1.0, %v1065
    %v1067 = vxor.u32 %v1045, 2147483648
    %v1068 = vmul.f32 %v1067, 1.442695
    %v1069 = vpow.pop %v1068
    %v1070 = vadd.f32 %v1069, 1.0
    %v1071 = vrcp.pop %v1070
    %v1072 = vmul.f32 %v1070, %v1071
    %v1073 = vsub.f32 1.0, %v1072
    %v1074 = vmul.f32 %v1071, %v1073
    %v1075 = vadd.f32 %v1071, %v1074
    %vm1076 = vweird.f32 %v1070
    %vm1077 = vweird.f32 %v1071
    %vm1078 = vmor %vm1076, %vm1077
    %v1079 = vsel %vm1078, %v1071, %v1075
    %v1080 = vand.u32 2147483647, %v1070
    %vm1081 = vcmp.eq.f32.partialorder %v1080, 8.507059e+37
    %v1082 = vand.u32 %v1070, 2147483648
    %v1083 = vor.u32 1.1754944e-38, %v1082
    %v1084 = vsel %vm1081, %v1083, %v1079
    %v1085 = vmul.f32 1.0, %v1084
    %v1086 = vtanh.pop %v1046
    %v1087 = vxor.u32 %v1047, 2147483648
    %v1088 = vmul.f32 %v1087, 1.442695
    %v1089 = vpow.pop %v1088
    %v1090 = vadd.f32 %v1089, 1.0
    %v1091 = vrcp.pop %v1090
    %v1092 = vmul.f32 %v1090, %v1091
    %v1093 = vsub.f32 1.0, %v1092
    %v1094 = vmul.f32 %v1091, %v1093
    %v1095 = vadd.f32 %v1091, %v1094
    %vm1096 = vweird.f32 %v1090
    %vm1097 = vweird.f32 %v1091
    %vm1098 = vmor %vm1096, %vm1097
    %v1099 = vsel %vm1098, %v1091, %v1095
    %v1100 = vand.u32 2147483647, %v1090
    %vm1101 = vcmp.eq.f32.partialorder %v1100, 8.507059e+37
    %v1102 = vand.u32 %v1090, 2147483648
    %v1103 = vor.u32 1.1754944e-38, %v1102
    %v1104 = vsel %vm1101, %v1103, %v1099
    %v1105 = vmul.f32 1.0, %v1104
    %v1106 = vmul.f32 %v1085, %v791
    %v1107 = vmul.f32 %v1066, %v1086
    %v1108 = vadd.f32 %v1106, %v1107
    %v1109 = vtanh.pop %v1108
    %v1110 = vmul.f32 %v1105, %v1109
    %1111 = vst [vmem:[#allocation2 + $0x8] sm:$0xff] %v1110
    %v1112 = vld [vmem:[#allocation3 + $0x40] sm:$0xff]
    %v1113 = vld [vmem:[#allocation3 + $0x48] sm:$0xff]
    %v1114 = vld [vmem:[#allocation3 + $0x50] sm:$0xff]
    %v1115 = vld [vmem:[#allocation3 + $0x58] sm:$0xff]
    %v1116 = vpack.c.bf16 %v1110, %v1110
    %v1117 = vld [vmem:[%s2] sm:$0xff]
    %v1118 = vld [vmem:[%s2 + $0x8] sm:$0xff]
    %v1119 = vld [vmem:[%s2 + $0x10] sm:$0xff]
    %v1120 = vld [vmem:[%s2 + $0x18] sm:$0xff]
    %v1121 = vld [vmem:[%s2 + $0x20] sm:$0xff]
    %v1122 = vld [vmem:[%s2 + $0x28] sm:$0xff]
    %v1123 = vld [vmem:[%s2 + $0x30] sm:$0xff]
    %v1124 = vld [vmem:[%s2 + $0x38] sm:$0xff]
    %v1125 = vld [vmem:[%s2 + $0x40] sm:$0xff]
    %v1126 = vld [vmem:[%s2 + $0x48] sm:$0xff]
    %v1127 = vld [vmem:[%s2 + $0x50] sm:$0xff]
    %v1128 = vld [vmem:[%s2 + $0x58] sm:$0xff]
    %v1129 = vld [vmem:[%s2 + $0x60] sm:$0xff]
    %v1130 = vld [vmem:[%s2 + $0x68] sm:$0xff]
    %v1131 = vld [vmem:[%s2 + $0x70] sm:$0xff]
    %v1132 = vld [vmem:[%s2 + $0x78] sm:$0xff]
    %v1133 = vld [vmem:[%s2 + $0x80] sm:$0xff]
    %v1134 = vld [vmem:[%s2 + $0x88] sm:$0xff]
    %v1135 = vld [vmem:[%s2 + $0x90] sm:$0xff]
    %v1136 = vld [vmem:[%s2 + $0x98] sm:$0xff]
    %v1137 = vld [vmem:[%s2 + $0xa0] sm:$0xff]
    %v1138 = vld [vmem:[%s2 + $0xa8] sm:$0xff]
    %v1139 = vld [vmem:[%s2 + $0xb0] sm:$0xff]
    %v1140 = vld [vmem:[%s2 + $0xb8] sm:$0xff]
    %v1141 = vld [vmem:[%s2 + $0xc0] sm:$0xff]
    %v1142 = vld [vmem:[%s2 + $0xc8] sm:$0xff]
    %v1143 = vld [vmem:[%s2 + $0xd0] sm:$0xff]
    %v1144 = vld [vmem:[%s2 + $0xd8] sm:$0xff]
    %v1145 = vld [vmem:[%s2 + $0xe0] sm:$0xff]
    %v1146 = vld [vmem:[%s2 + $0xe8] sm:$0xff]
    %v1147 = vld [vmem:[%s2 + $0xf0] sm:$0xff]
    %v1148 = vld [vmem:[%s2 + $0xf8] sm:$0xff]
    %v1181 = vunpack.c.l.b16 %v1117
    %v1182 = vunpack.c.h.b16 %v1117
    %v1183 = vunpack.c.l.b16 %v1118
    %v1184 = vunpack.c.h.b16 %v1118
    %v1185 = vunpack.c.l.b16 %v1119
    %v1186 = vunpack.c.h.b16 %v1119
    %v1187 = vunpack.c.l.b16 %v1120
    %v1188 = vunpack.c.h.b16 %v1120
    %v1189 = vunpack.c.l.b16 %v1121
    %v1190 = vunpack.c.h.b16 %v1121
    %v1191 = vunpack.c.l.b16 %v1122
    %v1192 = vunpack.c.h.b16 %v1122
    %v1193 = vunpack.c.l.b16 %v1123
    %v1194 = vunpack.c.h.b16 %v1123
    %v1195 = vunpack.c.l.b16 %v1124
    %v1196 = vunpack.c.h.b16 %v1124
    %v1197 = vunpack.c.l.b16 %v1125
    %v1198 = vunpack.c.h.b16 %v1125
    %v1199 = vunpack.c.l.b16 %v1126
    %v1200 = vunpack.c.h.b16 %v1126
    %v1201 = vunpack.c.l.b16 %v1127
    %v1202 = vunpack.c.h.b16 %v1127
    %v1203 = vunpack.c.l.b16 %v1128
    %v1204 = vunpack.c.h.b16 %v1128
    %v1205 = vunpack.c.l.b16 %v1129
    %v1206 = vunpack.c.h.b16 %v1129
    %v1207 = vunpack.c.l.b16 %v1130
    %v1208 = vunpack.c.h.b16 %v1130
    %v1209 = vunpack.c.l.b16 %v1131
    %v1210 = vunpack.c.h.b16 %v1131
    %v1211 = vunpack.c.l.b16 %v1132
    %v1212 = vunpack.c.h.b16 %v1132
    %v1213 = vunpack.c.l.b16 %v1133
    %v1214 = vunpack.c.h.b16 %v1133
    %v1215 = vunpack.c.l.b16 %v1134
    %v1216 = vunpack.c.h.b16 %v1134
    %v1217 = vunpack.c.l.b16 %v1135
    %v1218 = vunpack.c.h.b16 %v1135
    %v1219 = vunpack.c.l.b16 %v1136
    %v1220 = vunpack.c.h.b16 %v1136
    %v1221 = vunpack.c.l.b16 %v1137
    %v1222 = vunpack.c.h.b16 %v1137
    %v1223 = vunpack.c.l.b16 %v1138
    %v1224 = vunpack.c.h.b16 %v1138
    %v1225 = vunpack.c.l.b16 %v1139
    %v1226 = vunpack.c.h.b16 %v1139
    %v1227 = vunpack.c.l.b16 %v1140
    %v1228 = vunpack.c.h.b16 %v1140
    %v1229 = vunpack.c.l.b16 %v1141
    %v1230 = vunpack.c.h.b16 %v1141
    %v1231 = vunpack.c.l.b16 %v1142
    %v1232 = vunpack.c.h.b16 %v1142
    %v1233 = vunpack.c.l.b16 %v1143
    %v1234 = vunpack.c.h.b16 %v1143
    %v1235 = vunpack.c.l.b16 %v1144
    %v1236 = vunpack.c.h.b16 %v1144
    %v1237 = vunpack.c.l.b16 %v1145
    %v1238 = vunpack.c.h.b16 %v1145
    %v1239 = vunpack.c.l.b16 %v1146
    %v1240 = vunpack.c.h.b16 %v1146
    %v1241 = vunpack.c.l.b16 %v1147
    %v1242 = vunpack.c.h.b16 %v1147
    %v1243 = vunpack.c.l.b16 %v1148
    %v1244 = vunpack.c.h.b16 %v1148
    %v1245 = vpack.c.b16 %v1185, %v1181
    %v1246 = vpack.c.b16 %v1186, %v1182
    %v1247 = vpack.c.b16 %v1187, %v1183
    %v1248 = vpack.c.b16 %v1188, %v1184
    %v1249 = vpack.c.b16 %v1193, %v1189
    %v1250 = vpack.c.b16 %v1194, %v1190
    %v1251 = vpack.c.b16 %v1195, %v1191
    %v1252 = vpack.c.b16 %v1196, %v1192
    %v1253 = vpack.c.b16 %v1201, %v1197
    %v1254 = vpack.c.b16 %v1202, %v1198
    %v1255 = vpack.c.b16 %v1203, %v1199
    %v1256 = vpack.c.b16 %v1204, %v1200
    %v1257 = vpack.c.b16 %v1209, %v1205
    %v1258 = vpack.c.b16 %v1210, %v1206
    %v1259 = vpack.c.b16 %v1211, %v1207
    %v1260 = vpack.c.b16 %v1212, %v1208
    %v1261 = vpack.c.b16 %v1217, %v1213
    %v1262 = vpack.c.b16 %v1218, %v1214
    %v1263 = vpack.c.b16 %v1219, %v1215
    %v1264 = vpack.c.b16 %v1220, %v1216
    %v1265 = vpack.c.b16 %v1225, %v1221
    %v1266 = vpack.c.b16 %v1226, %v1222
    %v1267 = vpack.c.b16 %v1227, %v1223
    %v1268 = vpack.c.b16 %v1228, %v1224
    %v1269 = vpack.c.b16 %v1233, %v1229
    %v1270 = vpack.c.b16 %v1234, %v1230
    %v1271 = vpack.c.b16 %v1235, %v1231
    %v1272 = vpack.c.b16 %v1236, %v1232
    %v1273 = vpack.c.b16 %v1241, %v1237
    %v1274 = vpack.c.b16 %v1242, %v1238
    %v1275 = vpack.c.b16 %v1243, %v1239
    %v1276 = vpack.c.b16 %v1244, %v1240
    %1309 = vmatpush.bf16.msra.mxu0 %v1273
    %1310 = vmatpush.bf16.msra.mxu0 %v1269
    %1311 = vmatpush.bf16.msra.mxu0 %v1265
    %1312 = vmatpush.bf16.msra.mxu0 %v1261
    %1313 = vmatpush.bf16.msra.mxu0 %v1257
    %1314 = vmatpush.bf16.msra.mxu0 %v1253
    %1315 = vmatpush.bf16.msra.mxu0 %v1249
    %1316 = vmatpush.bf16.msra.mxu0 %v1245
    %1317 = vmatmul.bf16.gmra.mxu0 %v1116
    %v1318 = vpop.f32.mrf.mxu0
    %v1319 = vadd.f32 0.0, %v1318
    %v1320 = vpop.f32.mrf.mxu0
    %1321 = vdwg.mxu0
    %1322 = vmatpush.bf16.msra.mxu0 %v1274
    %1323 = vmatpush.bf16.msra.mxu0 %v1270
    %1324 = vmatpush.bf16.msra.mxu0 %v1266
    %1325 = vmatpush.bf16.msra.mxu0 %v1262
    %1326 = vmatpush.bf16.msra.mxu0 %v1258
    %1327 = vmatpush.bf16.msra.mxu0 %v1254
    %1328 = vmatpush.bf16.msra.mxu0 %v1250
    %1329 = vmatpush.bf16.msra.mxu0 %v1246
    %1330 = vmatmul.bf16.gmra.mxu0 %v1116
    %v1331 = vpop.f32.mrf.mxu0
    %v1332 = vadd.f32 0.0, %v1331
    %v1333 = vpop.f32.mrf.mxu0
    %1334 = vdwg.mxu0
    %1335 = vmatpush.bf16.msra.mxu0 %v1275
    %1336 = vmatpush.bf16.msra.mxu0 %v1271
    %1337 = vmatpush.bf16.msra.mxu0 %v1267
    %1338 = vmatpush.bf16.msra.mxu0 %v1263
    %1339 = vmatpush.bf16.msra.mxu0 %v1259
    %1340 = vmatpush.bf16.msra.mxu0 %v1255
    %1341 = vmatpush.bf16.msra.mxu0 %v1251
    %1342 = vmatpush.bf16.msra.mxu0 %v1247
    %1343 = vmatmul.bf16.gmra.mxu0 %v1116
    %v1344 = vpop.f32.mrf.mxu0
    %v1345 = vadd.f32 0.0, %v1344
    %v1346 = vpop.f32.mrf.mxu0
    %1347 = vdwg.mxu0
    %1348 = vmatpush.bf16.msra.mxu0 %v1276
    %1349 = vmatpush.bf16.msra.mxu0 %v1272
    %1350 = vmatpush.bf16.msra.mxu0 %v1268
    %1351 = vmatpush.bf16.msra.mxu0 %v1264
    %1352 = vmatpush.bf16.msra.mxu0 %v1260
    %1353 = vmatpush.bf16.msra.mxu0 %v1256
    %1354 = vmatpush.bf16.msra.mxu0 %v1252
    %1355 = vmatpush.bf16.msra.mxu0 %v1248
    %1356 = vmatmul.bf16.gmra.mxu0 %v1116
    %v1357 = vpop.f32.mrf.mxu0
    %v1358 = vadd.f32 0.0, %v1357
    %v1359 = vpop.f32.mrf.mxu0
    %1360 = vdwg.mxu0
    %v1361 = vadd.f32 %v1112, %v1319
    %v1362 = vadd.f32 %v1113, %v1332
    %v1363 = vadd.f32 %v1114, %v1345
    %v1364 = vadd.f32 %v1115, %v1358
    %v1365 = vxor.u32 %v1361, 2147483648
    %v1366 = vmul.f32 %v1365, 1.442695
    %v1367 = vpow.pop %v1366
    %v1368 = vadd.f32 %v1367, 1.0
    %v1369 = vrcp.pop %v1368
    %v1370 = vmul.f32 %v1368, %v1369
    %v1371 = vsub.f32 1.0, %v1370
    %v1372 = vmul.f32 %v1369, %v1371
    %v1373 = vadd.f32 %v1369, %v1372
    %vm1374 = vweird.f32 %v1368
    %vm1375 = vweird.f32 %v1369
    %vm1376 = vmor %vm1374, %vm1375
    %v1377 = vsel %vm1376, %v1369, %v1373
    %v1378 = vand.u32 2147483647, %v1368
    %vm1379 = vcmp.eq.f32.partialorder %v1378, 8.507059e+37
    %v1380 = vand.u32 %v1368, 2147483648
    %v1381 = vor.u32 1.1754944e-38, %v1380
    %v1382 = vsel %vm1379, %v1381, %v1377
    %v1383 = vmul.f32 1.0, %v1382
    %v1384 = vxor.u32 %v1362, 2147483648
    %v1385 = vmul.f32 %v1384, 1.442695
    %v1386 = vpow.pop %v1385
    %v1387 = vadd.f32 %v1386, 1.0
    %v1388 = vrcp.pop %v1387
    %v1389 = vmul.f32 %v1387, %v1388
    %v1390 = vsub.f32 1.0, %v1389
    %v1391 = vmul.f32 %v1388, %v1390
    %v1392 = vadd.f32 %v1388, %v1391
    %vm1393 = vweird.f32 %v1387
    %vm1394 = vweird.f32 %v1388
    %vm1395 = vmor %vm1393, %vm1394
    %v1396 = vsel %vm1395, %v1388, %v1392
    %v1397 = vand.u32 2147483647, %v1387
    %vm1398 = vcmp.eq.f32.partialorder %v1397, 8.507059e+37
    %v1399 = vand.u32 %v1387, 2147483648
    %v1400 = vor.u32 1.1754944e-38, %v1399
    %v1401 = vsel %vm1398, %v1400, %v1396
    %v1402 = vmul.f32 1.0, %v1401
    %v1403 = vtanh.pop %v1363
    %v1404 = vxor.u32 %v1364, 2147483648
    %v1405 = vmul.f32 %v1404, 1.442695
    %v1406 = vpow.pop %v1405
    %v1407 = vadd.f32 %v1406, 1.0
    %v1408 = vrcp.pop %v1407
    %v1409 = vmul.f32 %v1407, %v1408
    %v1410 = vsub.f32 1.0, %v1409
    %v1411 = vmul.f32 %v1408, %v1410
    %v1412 = vadd.f32 %v1408, %v1411
    %vm1413 = vweird.f32 %v1407
    %vm1414 = vweird.f32 %v1408
    %vm1415 = vmor %vm1413, %vm1414
    %v1416 = vsel %vm1415, %v1408, %v1412
    %v1417 = vand.u32 2147483647, %v1407
    %vm1418 = vcmp.eq.f32.partialorder %v1417, 8.507059e+37
    %v1419 = vand.u32 %v1407, 2147483648
    %v1420 = vor.u32 1.1754944e-38, %v1419
    %v1421 = vsel %vm1418, %v1420, %v1416
    %v1422 = vmul.f32 1.0, %v1421
    %v1423 = vmul.f32 %v1402, %v1108
    %v1424 = vmul.f32 %v1383, %v1403
    %v1425 = vadd.f32 %v1423, %v1424
    %v1426 = vtanh.pop %v1425
    %v1427 = vmul.f32 %v1422, %v1426
    %1428 = vst [vmem:[#allocation2 + $0x10] sm:$0xff] %v1427
    %v1429 = vld [vmem:[#allocation3 + $0x60] sm:$0xff]
    %v1430 = vld [vmem:[#allocation3 + $0x68] sm:$0xff]
    %v1431 = vld [vmem:[#allocation3 + $0x70] sm:$0xff]
    %v1432 = vld [vmem:[#allocation3 + $0x78] sm:$0xff]
    %v1433 = vpack.c.bf16 %v1427, %v1427
    %v1434 = vld [vmem:[%s2] sm:$0xff]
    %v1435 = vld [vmem:[%s2 + $0x8] sm:$0xff]
    %v1436 = vld [vmem:[%s2 + $0x10] sm:$0xff]
    %v1437 = vld [vmem:[%s2 + $0x18] sm:$0xff]
    %v1438 = vld [vmem:[%s2 + $0x20] sm:$0xff]
    %v1439 = vld [vmem:[%s2 + $0x28] sm:$0xff]
    %v1440 = vld [vmem:[%s2 + $0x30] sm:$0xff]
    %v1441 = vld [vmem:[%s2 + $0x38] sm:$0xff]
    %v1442 = vld [vmem:[%s2 + $0x40] sm:$0xff]
    %v1443 = vld [vmem:[%s2 + $0x48] sm:$0xff]
    %v1444 = vld [vmem:[%s2 + $0x50] sm:$0xff]
    %v1445 = vld [vmem:[%s2 + $0x58] sm:$0xff]
    %v1446 = vld [vmem:[%s2 + $0x60] sm:$0xff]
    %v1447 = vld [vmem:[%s2 + $0x68] sm:$0xff]
    %v1448 = vld [vmem:[%s2 + $0x70] sm:$0xff]
    %v1449 = vld [vmem:[%s2 + $0x78] sm:$0xff]
    %v1450 = vld [vmem:[%s2 + $0x80] sm:$0xff]
    %v1451 = vld [vmem:[%s2 + $0x88] sm:$0xff]
    %v1452 = vld [vmem:[%s2 + $0x90] sm:$0xff]
    %v1453 = vld [vmem:[%s2 + $0x98] sm:$0xff]
    %v1454 = vld [vmem:[%s2 + $0xa0] sm:$0xff]
    %v1455 = vld [vmem:[%s2 + $0xa8] sm:$0xff]
    %v1456 = vld [vmem:[%s2 + $0xb0] sm:$0xff]
    %v1457 = vld [vmem:[%s2 + $0xb8] sm:$0xff]
    %v1458 = vld [vmem:[%s2 + $0xc0] sm:$0xff]
    %v1459 = vld [vmem:[%s2 + $0xc8] sm:$0xff]
    %v1460 = vld [vmem:[%s2 + $0xd0] sm:$0xff]
    %v1461 = vld [vmem:[%s2 + $0xd8] sm:$0xff]
    %v1462 = vld [vmem:[%s2 + $0xe0] sm:$0xff]
    %v1463 = vld [vmem:[%s2 + $0xe8] sm:$0xff]
    %v1464 = vld [vmem:[%s2 + $0xf0] sm:$0xff]
    %v1465 = vld [vmem:[%s2 + $0xf8] sm:$0xff]
    %v1498 = vunpack.c.l.b16 %v1434
    %v1499 = vunpack.c.h.b16 %v1434
    %v1500 = vunpack.c.l.b16 %v1435
    %v1501 = vunpack.c.h.b16 %v1435
    %v1502 = vunpack.c.l.b16 %v1436
    %v1503 = vunpack.c.h.b16 %v1436
    %v1504 = vunpack.c.l.b16 %v1437
    %v1505 = vunpack.c.h.b16 %v1437
    %v1506 = vunpack.c.l.b16 %v1438
    %v1507 = vunpack.c.h.b16 %v1438
    %v1508 = vunpack.c.l.b16 %v1439
    %v1509 = vunpack.c.h.b16 %v1439
    %v1510 = vunpack.c.l.b16 %v1440
    %v1511 = vunpack.c.h.b16 %v1440
    %v1512 = vunpack.c.l.b16 %v1441
    %v1513 = vunpack.c.h.b16 %v1441
    %v1514 = vunpack.c.l.b16 %v1442
    %v1515 = vunpack.c.h.b16 %v1442
    %v1516 = vunpack.c.l.b16 %v1443
    %v1517 = vunpack.c.h.b16 %v1443
    %v1518 = vunpack.c.l.b16 %v1444
    %v1519 = vunpack.c.h.b16 %v1444
    %v1520 = vunpack.c.l.b16 %v1445
    %v1521 = vunpack.c.h.b16 %v1445
    %v1522 = vunpack.c.l.b16 %v1446
    %v1523 = vunpack.c.h.b16 %v1446
    %v1524 = vunpack.c.l.b16 %v1447
    %v1525 = vunpack.c.h.b16 %v1447
    %v1526 = vunpack.c.l.b16 %v1448
    %v1527 = vunpack.c.h.b16 %v1448
    %v1528 = vunpack.c.l.b16 %v1449
    %v1529 = vunpack.c.h.b16 %v1449
    %v1530 = vunpack.c.l.b16 %v1450
    %v1531 = vunpack.c.h.b16 %v1450
    %v1532 = vunpack.c.l.b16 %v1451
    %v1533 = vunpack.c.h.b16 %v1451
    %v1534 = vunpack.c.l.b16 %v1452
    %v1535 = vunpack.c.h.b16 %v1452
    %v1536 = vunpack.c.l.b16 %v1453
    %v1537 = vunpack.c.h.b16 %v1453
    %v1538 = vunpack.c.l.b16 %v1454
    %v1539 = vunpack.c.h.b16 %v1454
    %v1540 = vunpack.c.l.b16 %v1455
    %v1541 = vunpack.c.h.b16 %v1455
    %v1542 = vunpack.c.l.b16 %v1456
    %v1543 = vunpack.c.h.b16 %v1456
    %v1544 = vunpack.c.l.b16 %v1457
    %v1545 = vunpack.c.h.b16 %v1457
    %v1546 = vunpack.c.l.b16 %v1458
    %v1547 = vunpack.c.h.b16 %v1458
    %v1548 = vunpack.c.l.b16 %v1459
    %v1549 = vunpack.c.h.b16 %v1459
    %v1550 = vunpack.c.l.b16 %v1460
    %v1551 = vunpack.c.h.b16 %v1460
    %v1552 = vunpack.c.l.b16 %v1461
    %v1553 = vunpack.c.h.b16 %v1461
    %v1554 = vunpack.c.l.b16 %v1462
    %v1555 = vunpack.c.h.b16 %v1462
    %v1556 = vunpack.c.l.b16 %v1463
    %v1557 = vunpack.c.h.b16 %v1463
    %v1558 = vunpack.c.l.b16 %v1464
    %v1559 = vunpack.c.h.b16 %v1464
    %v1560 = vunpack.c.l.b16 %v1465
    %v1561 = vunpack.c.h.b16 %v1465
    %v1562 = vpack.c.b16 %v1502, %v1498
    %v1563 = vpack.c.b16 %v1503, %v1499
    %v1564 = vpack.c.b16 %v1504, %v1500
    %v1565 = vpack.c.b16 %v1505, %v1501
    %v1566 = vpack.c.b16 %v1510, %v1506
    %v1567 = vpack.c.b16 %v1511, %v1507
    %v1568 = vpack.c.b16 %v1512, %v1508
    %v1569 = vpack.c.b16 %v1513, %v1509
    %v1570 = vpack.c.b16 %v1518, %v1514
    %v1571 = vpack.c.b16 %v1519, %v1515
    %v1572 = vpack.c.b16 %v1520, %v1516
    %v1573 = vpack.c.b16 %v1521, %v1517
    %v1574 = vpack.c.b16 %v1526, %v1522
    %v1575 = vpack.c.b16 %v1527, %v1523
    %v1576 = vpack.c.b16 %v1528, %v1524
    %v1577 = vpack.c.b16 %v1529, %v1525
    %v1578 = vpack.c.b16 %v1534, %v1530
    %v1579 = vpack.c.b16 %v1535, %v1531
    %v1580 = vpack.c.b16 %v1536, %v1532
    %v1581 = vpack.c.b16 %v1537, %v1533
    %v1582 = vpack.c.b16 %v1542, %v1538
    %v1583 = vpack.c.b16 %v1543, %v1539
    %v1584 = vpack.c.b16 %v1544, %v1540
    %v1585 = vpack.c.b16 %v1545, %v1541
    %v1586 = vpack.c.b16 %v1550, %v1546
    %v1587 = vpack.c.b16 %v1551, %v1547
    %v1588 = vpack.c.b16 %v1552, %v1548
    %v1589 = vpack.c.b16 %v1553, %v1549
    %v1590 = vpack.c.b16 %v1558, %v1554
    %v1591 = vpack.c.b16 %v1559, %v1555
    %v1592 = vpack.c.b16 %v1560, %v1556
    %v1593 = vpack.c.b16 %v1561, %v1557
    %1626 = vmatpush.bf16.msra.mxu0 %v1590
    %1627 = vmatpush.bf16.msra.mxu0 %v1586
    %1628 = vmatpush.bf16.msra.mxu0 %v1582
    %1629 = vmatpush.bf16.msra.mxu0 %v1578
    %1630 = vmatpush.bf16.msra.mxu0 %v1574
    %1631 = vmatpush.bf16.msra.mxu0 %v1570
    %1632 = vmatpush.bf16.msra.mxu0 %v1566
    %1633 = vmatpush.bf16.msra.mxu0 %v1562
    %1634 = vmatmul.bf16.gmra.mxu0 %v1433
    %v1635 = vpop.f32.mrf.mxu0
    %v1636 = vadd.f32 0.0, %v1635
    %v1637 = vpop.f32.mrf.mxu0
    %1638 = vdwg.mxu0
    %1639 = vmatpush.bf16.msra.mxu0 %v1591
    %1640 = vmatpush.bf16.msra.mxu0 %v1587
    %1641 = vmatpush.bf16.msra.mxu0 %v1583
    %1642 = vmatpush.bf16.msra.mxu0 %v1579
    %1643 = vmatpush.bf16.msra.mxu0 %v1575
    %1644 = vmatpush.bf16.msra.mxu0 %v1571
    %1645 = vmatpush.bf16.msra.mxu0 %v1567
    %1646 = vmatpush.bf16.msra.mxu0 %v1563
    %1647 = vmatmul.bf16.gmra.mxu0 %v1433
    %v1648 = vpop.f32.mrf.mxu0
    %v1649 = vadd.f32 0.0, %v1648
    %v1650 = vpop.f32.mrf.mxu0
    %1651 = vdwg.mxu0
    %1652 = vmatpush.bf16.msra.mxu0 %v1592
    %1653 = vmatpush.bf16.msra.mxu0 %v1588
    %1654 = vmatpush.bf16.msra.mxu0 %v1584
    %1655 = vmatpush.bf16.msra.mxu0 %v1580
    %1656 = vmatpush.bf16.msra.mxu0 %v1576
    %1657 = vmatpush.bf16.msra.mxu0 %v1572
    %1658 = vmatpush.bf16.msra.mxu0 %v1568
    %1659 = vmatpush.bf16.msra.mxu0 %v1564
    %1660 = vmatmul.bf16.gmra.mxu0 %v1433
    %v1661 = vpop.f32.mrf.mxu0
    %v1662 = vadd.f32 0.0, %v1661
    %v1663 = vpop.f32.mrf.mxu0
    %1664 = vdwg.mxu0
    %1665 = vmatpush.bf16.msra.mxu0 %v1593
    %1666 = vmatpush.bf16.msra.mxu0 %v1589
    %1667 = vmatpush.bf16.msra.mxu0 %v1585
    %1668 = vmatpush.bf16.msra.mxu0 %v1581
    %1669 = vmatpush.bf16.msra.mxu0 %v1577
    %1670 = vmatpush.bf16.msra.mxu0 %v1573
    %1671 = vmatpush.bf16.msra.mxu0 %v1569
    %1672 = vmatpush.bf16.msra.mxu0 %v1565
    %1673 = vmatmul.bf16.gmra.mxu0 %v1433
    %v1674 = vpop.f32.mrf.mxu0
    %v1675 = vadd.f32 0.0, %v1674
    %v1676 = vpop.f32.mrf.mxu0
    %1677 = vdwg.mxu0
    %v1678 = vadd.f32 %v1429, %v1636
    %v1679 = vadd.f32 %v1430, %v1649
    %v1680 = vadd.f32 %v1431, %v1662
    %v1681 = vadd.f32 %v1432, %v1675
    %v1682 = vxor.u32 %v1678, 2147483648
    %v1683 = vmul.f32 %v1682, 1.442695
    %v1684 = vpow.pop %v1683
    %v1685 = vadd.f32 %v1684, 1.0
    %v1686 = vrcp.pop %v1685
    %v1687 = vmul.f32 %v1685, %v1686
    %v1688 = vsub.f32 1.0, %v1687
    %v1689 = vmul.f32 %v1686, %v1688
    %v1690 = vadd.f32 %v1686, %v1689
    %vm1691 = vweird.f32 %v1685
    %vm1692 = vweird.f32 %v1686
    %vm1693 = vmor %vm1691, %vm1692
    %v1694 = vsel %vm1693, %v1686, %v1690
    %v1695 = vand.u32 2147483647, %v1685
    %vm1696 = vcmp.eq.f32.partialorder %v1695, 8.507059e+37
    %v1697 = vand.u32 %v1685, 2147483648
    %v1698 = vor.u32 1.1754944e-38, %v1697
    %v1699 = vsel %vm1696, %v1698, %v1694
    %v1700 = vmul.f32 1.0, %v1699
    %v1701 = vxor.u32 %v1679, 2147483648
    %v1702 = vmul.f32 %v1701, 1.442695
    %v1703 = vpow.pop %v1702
    %v1704 = vadd.f32 %v1703, 1.0
    %v1705 = vrcp.pop %v1704
    %v1706 = vmul.f32 %v1704, %v1705
    %v1707 = vsub.f32 1.0, %v1706
    %v1708 = vmul.f32 %v1705, %v1707
    %v1709 = vadd.f32 %v1705, %v1708
    %vm1710 = vweird.f32 %v1704
    %vm1711 = vweird.f32 %v1705
    %vm1712 = vmor %vm1710, %vm1711
    %v1713 = vsel %vm1712, %v1705, %v1709
    %v1714 = vand.u32 2147483647, %v1704
    %vm1715 = vcmp.eq.f32.partialorder %v1714, 8.507059e+37
    %v1716 = vand.u32 %v1704, 2147483648
    %v1717 = vor.u32 1.1754944e-38, %v1716
    %v1718 = vsel %vm1715, %v1717, %v1713
    %v1719 = vmul.f32 1.0, %v1718
    %v1720 = vtanh.pop %v1680
    %v1721 = vxor.u32 %v1681, 2147483648
    %v1722 = vmul.f32 %v1721, 1.442695
    %v1723 = vpow.pop %v1722
    %v1724 = vadd.f32 %v1723, 1.0
    %v1725 = vrcp.pop %v1724
    %v1726 = vmul.f32 %v1724, %v1725
    %v1727 = vsub.f32 1.0, %v1726
    %v1728 = vmul.f32 %v1725, %v1727
    %v1729 = vadd.f32 %v1725, %v1728
    %vm1730 = vweird.f32 %v1724
    %vm1731 = vweird.f32 %v1725
    %vm1732 = vmor %vm1730, %vm1731
    %v1733 = vsel %vm1732, %v1725, %v1729
    %v1734 = vand.u32 2147483647, %v1724
    %vm1735 = vcmp.eq.f32.partialorder %v1734, 8.507059e+37
    %v1736 = vand.u32 %v1724, 2147483648
    %v1737 = vor.u32 1.1754944e-38, %v1736
    %v1738 = vsel %vm1735, %v1737, %v1733
    %v1739 = vmul.f32 1.0, %v1738
    %v1740 = vmul.f32 %v1719, %v1425
    %v1741 = vmul.f32 %v1700, %v1720
    %v1742 = vadd.f32 %v1740, %v1741
    %v1743 = vtanh.pop %v1742
    %v1744 = vmul.f32 %v1739, %v1743
    %1745 = vst [vmem:[#allocation2 + $0x18] sm:$0xff] %v1744
    %v1746 = vld [vmem:[#allocation3 + $0x80] sm:$0xff]
    %v1747 = vld [vmem:[#allocation3 + $0x88] sm:$0xff]
    %v1748 = vld [vmem:[#allocation3 + $0x90] sm:$0xff]
    %v1749 = vld [vmem:[#allocation3 + $0x98] sm:$0xff]
    %v1750 = vpack.c.bf16 %v1744, %v1744
    %v1751 = vld [vmem:[%s2] sm:$0xff]
    %v1752 = vld [vmem:[%s2 + $0x8] sm:$0xff]
    %v1753 = vld [vmem:[%s2 + $0x10] sm:$0xff]
    %v1754 = vld [vmem:[%s2 + $0x18] sm:$0xff]
    %v1755 = vld [vmem:[%s2 + $0x20] sm:$0xff]
    %v1756 = vld [vmem:[%s2 + $0x28] sm:$0xff]
    %v1757 = vld [vmem:[%s2 + $0x30] sm:$0xff]
    %v1758 = vld [vmem:[%s2 + $0x38] sm:$0xff]
    %v1759 = vld [vmem:[%s2 + $0x40] sm:$0xff]
    %v1760 = vld [vmem:[%s2 + $0x48] sm:$0xff]
    %v1761 = vld [vmem:[%s2 + $0x50] sm:$0xff]
    %v1762 = vld [vmem:[%s2 + $0x58] sm:$0xff]
    %v1763 = vld [vmem:[%s2 + $0x60] sm:$0xff]
    %v1764 = vld [vmem:[%s2 + $0x68] sm:$0xff]
    %v1765 = vld [vmem:[%s2 + $0x70] sm:$0xff]
    %v1766 = vld [vmem:[%s2 + $0x78] sm:$0xff]
    %v1767 = vld [vmem:[%s2 + $0x80] sm:$0xff]
    %v1768 = vld [vmem:[%s2 + $0x88] sm:$0xff]
    %v1769 = vld [vmem:[%s2 + $0x90] sm:$0xff]
    %v1770 = vld [vmem:[%s2 + $0x98] sm:$0xff]
    %v1771 = vld [vmem:[%s2 + $0xa0] sm:$0xff]
    %v1772 = vld [vmem:[%s2 + $0xa8] sm:$0xff]
    %v1773 = vld [vmem:[%s2 + $0xb0] sm:$0xff]
    %v1774 = vld [vmem:[%s2 + $0xb8] sm:$0xff]
    %v1775 = vld [vmem:[%s2 + $0xc0] sm:$0xff]
    %v1776 = vld [vmem:[%s2 + $0xc8] sm:$0xff]
    %v1777 = vld [vmem:[%s2 + $0xd0] sm:$0xff]
    %v1778 = vld [vmem:[%s2 + $0xd8] sm:$0xff]
    %v1779 = vld [vmem:[%s2 + $0xe0] sm:$0xff]
    %v1780 = vld [vmem:[%s2 + $0xe8] sm:$0xff]
    %v1781 = vld [vmem:[%s2 + $0xf0] sm:$0xff]
    %v1782 = vld [vmem:[%s2 + $0xf8] sm:$0xff]
    %v1815 = vunpack.c.l.b16 %v1751
    %v1816 = vunpack.c.h.b16 %v1751
    %v1817 = vunpack.c.l.b16 %v1752
    %v1818 = vunpack.c.h.b16 %v1752
    %v1819 = vunpack.c.l.b16 %v1753
    %v1820 = vunpack.c.h.b16 %v1753
    %v1821 = vunpack.c.l.b16 %v1754
    %v1822 = vunpack.c.h.b16 %v1754
    %v1823 = vunpack.c.l.b16 %v1755
    %v1824 = vunpack.c.h.b16 %v1755
    %v1825 = vunpack.c.l.b16 %v1756
    %v1826 = vunpack.c.h.b16 %v1756
    %v1827 = vunpack.c.l.b16 %v1757
    %v1828 = vunpack.c.h.b16 %v1757
    %v1829 = vunpack.c.l.b16 %v1758
    %v1830 = vunpack.c.h.b16 %v1758
    %v1831 = vunpack.c.l.b16 %v1759
    %v1832 = vunpack.c.h.b16 %v1759
    %v1833 = vunpack.c.l.b16 %v1760
    %v1834 = vunpack.c.h.b16 %v1760
    %v1835 = vunpack.c.l.b16 %v1761
    %v1836 = vunpack.c.h.b16 %v1761
    %v1837 = vunpack.c.l.b16 %v1762
    %v1838 = vunpack.c.h.b16 %v1762
    %v1839 = vunpack.c.l.b16 %v1763
    %v1840 = vunpack.c.h.b16 %v1763
    %v1841 = vunpack.c.l.b16 %v1764
    %v1842 = vunpack.c.h.b16 %v1764
    %v1843 = vunpack.c.l.b16 %v1765
    %v1844 = vunpack.c.h.b16 %v1765
    %v1845 = vunpack.c.l.b16 %v1766
    %v1846 = vunpack.c.h.b16 %v1766
    %v1847 = vunpack.c.l.b16 %v1767
    %v1848 = vunpack.c.h.b16 %v1767
    %v1849 = vunpack.c.l.b16 %v1768
    %v1850 = vunpack.c.h.b16 %v1768
    %v1851 = vunpack.c.l.b16 %v1769
    %v1852 = vunpack.c.h.b16 %v1769
    %v1853 = vunpack.c.l.b16 %v1770
    %v1854 = vunpack.c.h.b16 %v1770
    %v1855 = vunpack.c.l.b16 %v1771
    %v1856 = vunpack.c.h.b16 %v1771
    %v1857 = vunpack.c.l.b16 %v1772
    %v1858 = vunpack.c.h.b16 %v1772
    %v1859 = vunpack.c.l.b16 %v1773
    %v1860 = vunpack.c.h.b16 %v1773
    %v1861 = vunpack.c.l.b16 %v1774
    %v1862 = vunpack.c.h.b16 %v1774
    %v1863 = vunpack.c.l.b16 %v1775
    %v1864 = vunpack.c.h.b16 %v1775
    %v1865 = vunpack.c.l.b16 %v1776
    %v1866 = vunpack.c.h.b16 %v1776
    %v1867 = vunpack.c.l.b16 %v1777
    %v1868 = vunpack.c.h.b16 %v1777
    %v1869 = vunpack.c.l.b16 %v1778
    %v1870 = vunpack.c.h.b16 %v1778
    %v1871 = vunpack.c.l.b16 %v1779
    %v1872 = vunpack.c.h.b16 %v1779
    %v1873 = vunpack.c.l.b16 %v1780
    %v1874 = vunpack.c.h.b16 %v1780
    %v1875 = vunpack.c.l.b16 %v1781
    %v1876 = vunpack.c.h.b16 %v1781
    %v1877 = vunpack.c.l.b16 %v1782
    %v1878 = vunpack.c.h.b16 %v1782
    %v1879 = vpack.c.b16 %v1819, %v1815
    %v1880 = vpack.c.b16 %v1820, %v1816
    %v1881 = vpack.c.b16 %v1821, %v1817
    %v1882 = vpack.c.b16 %v1822, %v1818
    %v1883 = vpack.c.b16 %v1827, %v1823
    %v1884 = vpack.c.b16 %v1828, %v1824
    %v1885 = vpack.c.b16 %v1829, %v1825
    %v1886 = vpack.c.b16 %v1830, %v1826
    %v1887 = vpack.c.b16 %v1835, %v1831
    %v1888 = vpack.c.b16 %v1836, %v1832
    %v1889 = vpack.c.b16 %v1837, %v1833
    %v1890 = vpack.c.b16 %v1838, %v1834
    %v1891 = vpack.c.b16 %v1843, %v1839
    %v1892 = vpack.c.b16 %v1844, %v1840
    %v1893 = vpack.c.b16 %v1845, %v1841
    %v1894 = vpack.c.b16 %v1846, %v1842
    %v1895 = vpack.c.b16 %v1851, %v1847
    %v1896 = vpack.c.b16 %v1852, %v1848
    %v1897 = vpack.c.b16 %v1853, %v1849
    %v1898 = vpack.c.b16 %v1854, %v1850
    %v1899 = vpack.c.b16 %v1859, %v1855
    %v1900 = vpack.c.b16 %v1860, %v1856
    %v1901 = vpack.c.b16 %v1861, %v1857
    %v1902 = vpack.c.b16 %v1862, %v1858
    %v1903 = vpack.c.b16 %v1867, %v1863
    %v1904 = vpack.c.b16 %v1868, %v1864
    %v1905 = vpack.c.b16 %v1869, %v1865
    %v1906 = vpack.c.b16 %v1870, %v1866
    %v1907 = vpack.c.b16 %v1875, %v1871
    %v1908 = vpack.c.b16 %v1876, %v1872
    %v1909 = vpack.c.b16 %v1877, %v1873
    %v1910 = vpack.c.b16 %v1878, %v1874
    %1943 = vmatpush.bf16.msra.mxu0 %v1907
    %1944 = vmatpush.bf16.msra.mxu0 %v1903
    %1945 = vmatpush.bf16.msra.mxu0 %v1899
    %1946 = vmatpush.bf16.msra.mxu0 %v1895
    %1947 = vmatpush.bf16.msra.mxu0 %v1891
    %1948 = vmatpush.bf16.msra.mxu0 %v1887
    %1949 = vmatpush.bf16.msra.mxu0 %v1883
    %1950 = vmatpush.bf16.msra.mxu0 %v1879
    %1951 = vmatmul.bf16.gmra.mxu0 %v1750
    %v1952 = vpop.f32.mrf.mxu0
    %v1953 = vadd.f32 0.0, %v1952
    %v1954 = vpop.f32.mrf.mxu0
    %1955 = vdwg.mxu0
    %1956 = vmatpush.bf16.msra.mxu0 %v1908
    %1957 = vmatpush.bf16.msra.mxu0 %v1904
    %1958 = vmatpush.bf16.msra.mxu0 %v1900
    %1959 = vmatpush.bf16.msra.mxu0 %v1896
    %1960 = vmatpush.bf16.msra.mxu0 %v1892
    %1961 = vmatpush.bf16.msra.mxu0 %v1888
    %1962 = vmatpush.bf16.msra.mxu0 %v1884
    %1963 = vmatpush.bf16.msra.mxu0 %v1880
    %1964 = vmatmul.bf16.gmra.mxu0 %v1750
    %v1965 = vpop.f32.mrf.mxu0
    %v1966 = vadd.f32 0.0, %v1965
    %v1967 = vpop.f32.mrf.mxu0
    %1968 = vdwg.mxu0
    %1969 = vmatpush.bf16.msra.mxu0 %v1909
    %1970 = vmatpush.bf16.msra.mxu0 %v1905
    %1971 = vmatpush.bf16.msra.mxu0 %v1901
    %1972 = vmatpush.bf16.msra.mxu0 %v1897
    %1973 = vmatpush.bf16.msra.mxu0 %v1893
    %1974 = vmatpush.bf16.msra.mxu0 %v1889
    %1975 = vmatpush.bf16.msra.mxu0 %v1885
    %1976 = vmatpush.bf16.msra.mxu0 %v1881
    %1977 = vmatmul.bf16.gmra.mxu0 %v1750
    %v1978 = vpop.f32.mrf.mxu0
    %v1979 = vadd.f32 0.0, %v1978
    %v1980 = vpop.f32.mrf.mxu0
    %1981 = vdwg.mxu0
    %1982 = vmatpush.bf16.msra.mxu0 %v1910
    %1983 = vmatpush.bf16.msra.mxu0 %v1906
    %1984 = vmatpush.bf16.msra.mxu0 %v1902
    %1985 = vmatpush.bf16.msra.mxu0 %v1898
    %1986 = vmatpush.bf16.msra.mxu0 %v1894
    %1987 = vmatpush.bf16.msra.mxu0 %v1890
    %1988 = vmatpush.bf16.msra.mxu0 %v1886
    %1989 = vmatpush.bf16.msra.mxu0 %v1882
    %1990 = vmatmul.bf16.gmra.mxu0 %v1750
    %v1991 = vpop.f32.mrf.mxu0
    %v1992 = vadd.f32 0.0, %v1991
    %v1993 = vpop.f32.mrf.mxu0
    %1994 = vdwg.mxu0
    %v1995 = vadd.f32 %v1746, %v1953
    %v1996 = vadd.f32 %v1747, %v1966
    %v1997 = vadd.f32 %v1748, %v1979
    %v1998 = vadd.f32 %v1749, %v1992
    %v1999 = vxor.u32 %v1995, 2147483648
    %v2000 = vmul.f32 %v1999, 1.442695
    %v2001 = vpow.pop %v2000
    %v2002 = vadd.f32 %v2001, 1.0
    %v2003 = vrcp.pop %v2002
    %v2004 = vmul.f32 %v2002, %v2003
    %v2005 = vsub.f32 1.0, %v2004
    %v2006 = vmul.f32 %v2003, %v2005
    %v2007 = vadd.f32 %v2003, %v2006
    %vm2008 = vweird.f32 %v2002
    %vm2009 = vweird.f32 %v2003
    %vm2010 = vmor %vm2008, %vm2009
    %v2011 = vsel %vm2010, %v2003, %v2007
    %v2012 = vand.u32 2147483647, %v2002
    %vm2013 = vcmp.eq.f32.partialorder %v2012, 8.507059e+37
    %v2014 = vand.u32 %v2002, 2147483648
    %v2015 = vor.u32 1.1754944e-38, %v2014
    %v2016 = vsel %vm2013, %v2015, %v2011
    %v2017 = vmul.f32 1.0, %v2016
    %v2018 = vxor.u32 %v1996, 2147483648
    %v2019 = vmul.f32 %v2018, 1.442695
    %v2020 = vpow.pop %v2019
    %v2021 = vadd.f32 %v2020, 1.0
    %v2022 = vrcp.pop %v2021
    %v2023 = vmul.f32 %v2021, %v2022
    %v2024 = vsub.f32 1.0, %v2023
    %v2025 = vmul.f32 %v2022, %v2024
    %v2026 = vadd.f32 %v2022, %v2025
    %vm2027 = vweird.f32 %v2021
    %vm2028 = vweird.f32 %v2022
    %vm2029 = vmor %vm2027, %vm2028
    %v2030 = vsel %vm2029, %v2022, %v2026
    %v2031 = vand.u32 2147483647, %v2021
    %vm2032 = vcmp.eq.f32.partialorder %v2031, 8.507059e+37
    %v2033 = vand.u32 %v2021, 2147483648
    %v2034 = vor.u32 1.1754944e-38, %v2033
    %v2035 = vsel %vm2032, %v2034, %v2030
    %v2036 = vmul.f32 1.0, %v2035
    %v2037 = vtanh.pop %v1997
    %v2038 = vxor.u32 %v1998, 2147483648
    %v2039 = vmul.f32 %v2038, 1.442695
    %v2040 = vpow.pop %v2039
    %v2041 = vadd.f32 %v2040, 1.0
    %v2042 = vrcp.pop %v2041
    %v2043 = vmul.f32 %v2041, %v2042
    %v2044 = vsub.f32 1.0, %v2043
    %v2045 = vmul.f32 %v2042, %v2044
    %v2046 = vadd.f32 %v2042, %v2045
    %vm2047 = vweird.f32 %v2041
    %vm2048 = vweird.f32 %v2042
    %vm2049 = vmor %vm2047, %vm2048
    %v2050 = vsel %vm2049, %v2042, %v2046
    %v2051 = vand.u32 2147483647, %v2041
    %vm2052 = vcmp.eq.f32.partialorder %v2051, 8.507059e+37
    %v2053 = vand.u32 %v2041, 2147483648
    %v2054 = vor.u32 1.1754944e-38, %v2053
    %v2055 = vsel %vm2052, %v2054, %v2050
    %v2056 = vmul.f32 1.0, %v2055
    %v2057 = vmul.f32 %v2036, %v1742
    %v2058 = vmul.f32 %v2017, %v2037
    %v2059 = vadd.f32 %v2057, %v2058
    %v2060 = vtanh.pop %v2059
    %v2061 = vmul.f32 %v2056, %v2060
    %2062 = vst [vmem:[#allocation2 + $0x20] sm:$0xff] %v2061
    %v2063 = vld [vmem:[#allocation3 + $0xa0] sm:$0xff]
    %v2064 = vld [vmem:[#allocation3 + $0xa8] sm:$0xff]
    %v2065 = vld [vmem:[#allocation3 + $0xb0] sm:$0xff]
    %v2066 = vld [vmem:[#allocation3 + $0xb8] sm:$0xff]
    %v2067 = vpack.c.bf16 %v2061, %v2061
    %v2068 = vld [vmem:[%s2] sm:$0xff]
    %v2069 = vld [vmem:[%s2 + $0x8] sm:$0xff]
    %v2070 = vld [vmem:[%s2 + $0x10] sm:$0xff]
    %v2071 = vld [vmem:[%s2 + $0x18] sm:$0xff]
    %v2072 = vld [vmem:[%s2 + $0x20] sm:$0xff]
    %v2073 = vld [vmem:[%s2 + $0x28] sm:$0xff]
    %v2074 = vld [vmem:[%s2 + $0x30] sm:$0xff]
    %v2075 = vld [vmem:[%s2 + $0x38] sm:$0xff]
    %v2076 = vld [vmem:[%s2 + $0x40] sm:$0xff]
    %v2077 = vld [vmem:[%s2 + $0x48] sm:$0xff]
    %v2078 = vld [vmem:[%s2 + $0x50] sm:$0xff]
    %v2079 = vld [vmem:[%s2 + $0x58] sm:$0xff]
    %v2080 = vld [vmem:[%s2 + $0x60] sm:$0xff]
    %v2081 = vld [vmem:[%s2 + $0x68] sm:$0xff]
    %v2082 = vld [vmem:[%s2 + $0x70] sm:$0xff]
    %v2083 = vld [vmem:[%s2 + $0x78] sm:$0xff]
    %v2084 = vld [vmem:[%s2 + $0x80] sm:$0xff]
    %v2085 = vld [vmem:[%s2 + $0x88] sm:$0xff]
    %v2086 = vld [vmem:[%s2 + $0x90] sm:$0xff]
    %v2087 = vld [vmem:[%s2 + $0x98] sm:$0xff]
    %v2088 = vld [vmem:[%s2 + $0xa0] sm:$0xff]
    %v2089 = vld [vmem:[%s2 + $0xa8] sm:$0xff]
    %v2090 = vld [vmem:[%s2 + $0xb0] sm:$0xff]
    %v2091 = vld [vmem:[%s2 + $0xb8] sm:$0xff]
    %v2092 = vld [vmem:[%s2 + $0xc0] sm:$0xff]
    %v2093 = vld [vmem:[%s2 + $0xc8] sm:$0xff]
    %v2094 = vld [vmem:[%s2 + $0xd0] sm:$0xff]
    %v2095 = vld [vmem:[%s2 + $0xd8] sm:$0xff]
    %v2096 = vld [vmem:[%s2 + $0xe0] sm:$0xff]
    %v2097 = vld [vmem:[%s2 + $0xe8] sm:$0xff]
    %v2098 = vld [vmem:[%s2 + $0xf0] sm:$0xff]
    %v2099 = vld [vmem:[%s2 + $0xf8] sm:$0xff]
    %v2132 = vunpack.c.l.b16 %v2068
    %v2133 = vunpack.c.h.b16 %v2068
    %v2134 = vunpack.c.l.b16 %v2069
    %v2135 = vunpack.c.h.b16 %v2069
    %v2136 = vunpack.c.l.b16 %v2070
    %v2137 = vunpack.c.h.b16 %v2070
    %v2138 = vunpack.c.l.b16 %v2071
    %v2139 = vunpack.c.h.b16 %v2071
    %v2140 = vunpack.c.l.b16 %v2072
    %v2141 = vunpack.c.h.b16 %v2072
    %v2142 = vunpack.c.l.b16 %v2073
    %v2143 = vunpack.c.h.b16 %v2073
    %v2144 = vunpack.c.l.b16 %v2074
    %v2145 = vunpack.c.h.b16 %v2074
    %v2146 = vunpack.c.l.b16 %v2075
    %v2147 = vunpack.c.h.b16 %v2075
    %v2148 = vunpack.c.l.b16 %v2076
    %v2149 = vunpack.c.h.b16 %v2076
    %v2150 = vunpack.c.l.b16 %v2077
    %v2151 = vunpack.c.h.b16 %v2077
    %v2152 = vunpack.c.l.b16 %v2078
    %v2153 = vunpack.c.h.b16 %v2078
    %v2154 = vunpack.c.l.b16 %v2079
    %v2155 = vunpack.c.h.b16 %v2079
    %v2156 = vunpack.c.l.b16 %v2080
    %v2157 = vunpack.c.h.b16 %v2080
    %v2158 = vunpack.c.l.b16 %v2081
    %v2159 = vunpack.c.h.b16 %v2081
    %v2160 = vunpack.c.l.b16 %v2082
    %v2161 = vunpack.c.h.b16 %v2082
    %v2162 = vunpack.c.l.b16 %v2083
    %v2163 = vunpack.c.h.b16 %v2083
    %v2164 = vunpack.c.l.b16 %v2084
    %v2165 = vunpack.c.h.b16 %v2084
    %v2166 = vunpack.c.l.b16 %v2085
    %v2167 = vunpack.c.h.b16 %v2085
    %v2168 = vunpack.c.l.b16 %v2086
    %v2169 = vunpack.c.h.b16 %v2086
    %v2170 = vunpack.c.l.b16 %v2087
    %v2171 = vunpack.c.h.b16 %v2087
    %v2172 = vunpack.c.l.b16 %v2088
    %v2173 = vunpack.c.h.b16 %v2088
    %v2174 = vunpack.c.l.b16 %v2089
    %v2175 = vunpack.c.h.b16 %v2089
    %v2176 = vunpack.c.l.b16 %v2090
    %v2177 = vunpack.c.h.b16 %v2090
    %v2178 = vunpack.c.l.b16 %v2091
    %v2179 = vunpack.c.h.b16 %v2091
    %v2180 = vunpack.c.l.b16 %v2092
    %v2181 = vunpack.c.h.b16 %v2092
    %v2182 = vunpack.c.l.b16 %v2093
    %v2183 = vunpack.c.h.b16 %v2093
    %v2184 = vunpack.c.l.b16 %v2094
    %v2185 = vunpack.c.h.b16 %v2094
    %v2186 = vunpack.c.l.b16 %v2095
    %v2187 = vunpack.c.h.b16 %v2095
    %v2188 = vunpack.c.l.b16 %v2096
    %v2189 = vunpack.c.h.b16 %v2096
    %v2190 = vunpack.c.l.b16 %v2097
    %v2191 = vunpack.c.h.b16 %v2097
    %v2192 = vunpack.c.l.b16 %v2098
    %v2193 = vunpack.c.h.b16 %v2098
    %v2194 = vunpack.c.l.b16 %v2099
    %v2195 = vunpack.c.h.b16 %v2099
    %v2196 = vpack.c.b16 %v2136, %v2132
    %v2197 = vpack.c.b16 %v2137, %v2133
    %v2198 = vpack.c.b16 %v2138, %v2134
    %v2199 = vpack.c.b16 %v2139, %v2135
    %v2200 = vpack.c.b16 %v2144, %v2140
    %v2201 = vpack.c.b16 %v2145, %v2141
    %v2202 = vpack.c.b16 %v2146, %v2142
    %v2203 = vpack.c.b16 %v2147, %v2143
    %v2204 = vpack.c.b16 %v2152, %v2148
    %v2205 = vpack.c.b16 %v2153, %v2149
    %v2206 = vpack.c.b16 %v2154, %v2150
    %v2207 = vpack.c.b16 %v2155, %v2151
    %v2208 = vpack.c.b16 %v2160, %v2156
    %v2209 = vpack.c.b16 %v2161, %v2157
    %v2210 = vpack.c.b16 %v2162, %v2158
    %v2211 = vpack.c.b16 %v2163, %v2159
    %v2212 = vpack.c.b16 %v2168, %v2164
    %v2213 = vpack.c.b16 %v2169, %v2165
    %v2214 = vpack.c.b16 %v2170, %v2166
    %v2215 = vpack.c.b16 %v2171, %v2167
    %v2216 = vpack.c.b16 %v2176, %v2172
    %v2217 = vpack.c.b16 %v2177, %v2173
    %v2218 = vpack.c.b16 %v2178, %v2174
    %v2219 = vpack.c.b16 %v2179, %v2175
    %v2220 = vpack.c.b16 %v2184, %v2180
    %v2221 = vpack.c.b16 %v2185, %v2181
    %v2222 = vpack.c.b16 %v2186, %v2182
    %v2223 = vpack.c.b16 %v2187, %v2183
    %v2224 = vpack.c.b16 %v2192, %v2188
    %v2225 = vpack.c.b16 %v2193, %v2189
    %v2226 = vpack.c.b16 %v2194, %v2190
    %v2227 = vpack.c.b16 %v2195, %v2191
    %2260 = vmatpush.bf16.msra.mxu0 %v2224
    %2261 = vmatpush.bf16.msra.mxu0 %v2220
    %2262 = vmatpush.bf16.msra.mxu0 %v2216
    %2263 = vmatpush.bf16.msra.mxu0 %v2212
    %2264 = vmatpush.bf16.msra.mxu0 %v2208
    %2265 = vmatpush.bf16.msra.mxu0 %v2204
    %2266 = vmatpush.bf16.msra.mxu0 %v2200
    %2267 = vmatpush.bf16.msra.mxu0 %v2196
    %2268 = vmatmul.bf16.gmra.mxu0 %v2067
    %v2269 = vpop.f32.mrf.mxu0
    %v2270 = vadd.f32 0.0, %v2269
    %v2271 = vpop.f32.mrf.mxu0
    %2272 = vdwg.mxu0
    %2273 = vmatpush.bf16.msra.mxu0 %v2225
    %2274 = vmatpush.bf16.msra.mxu0 %v2221
    %2275 = vmatpush.bf16.msra.mxu0 %v2217
    %2276 = vmatpush.bf16.msra.mxu0 %v2213
    %2277 = vmatpush.bf16.msra.mxu0 %v2209
    %2278 = vmatpush.bf16.msra.mxu0 %v2205
    %2279 = vmatpush.bf16.msra.mxu0 %v2201
    %2280 = vmatpush.bf16.msra.mxu0 %v2197
    %2281 = vmatmul.bf16.gmra.mxu0 %v2067
    %v2282 = vpop.f32.mrf.mxu0
    %v2283 = vadd.f32 0.0, %v2282
    %v2284 = vpop.f32.mrf.mxu0
    %2285 = vdwg.mxu0
    %2286 = vmatpush.bf16.msra.mxu0 %v2226
    %2287 = vmatpush.bf16.msra.mxu0 %v2222
    %2288 = vmatpush.bf16.msra.mxu0 %v2218
    %2289 = vmatpush.bf16.msra.mxu0 %v2214
    %2290 = vmatpush.bf16.msra.mxu0 %v2210
    %2291 = vmatpush.bf16.msra.mxu0 %v2206
    %2292 = vmatpush.bf16.msra.mxu0 %v2202
    %2293 = vmatpush.bf16.msra.mxu0 %v2198
    %2294 = vmatmul.bf16.gmra.mxu0 %v2067
    %v2295 = vpop.f32.mrf.mxu0
    %v2296 = vadd.f32 0.0, %v2295
    %v2297 = vpop.f32.mrf.mxu0
    %2298 = vdwg.mxu0
    %2299 = vmatpush.bf16.msra.mxu0 %v2227
    %2300 = vmatpush.bf16.msra.mxu0 %v2223
    %2301 = vmatpush.bf16.msra.mxu0 %v2219
    %2302 = vmatpush.bf16.msra.mxu0 %v2215
    %2303 = vmatpush.bf16.msra.mxu0 %v2211
    %2304 = vmatpush.bf16.msra.mxu0 %v2207
    %2305 = vmatpush.bf16.msra.mxu0 %v2203
    %2306 = vmatpush.bf16.msra.mxu0 %v2199
    %2307 = vmatmul.bf16.gmra.mxu0 %v2067
    %v2308 = vpop.f32.mrf.mxu0
    %v2309 = vadd.f32 0.0, %v2308
    %v2310 = vpop.f32.mrf.mxu0
    %2311 = vdwg.mxu0
    %v2312 = vadd.f32 %v2063, %v2270
    %v2313 = vadd.f32 %v2064, %v2283
    %v2314 = vadd.f32 %v2065, %v2296
    %v2315 = vadd.f32 %v2066, %v2309
    %v2316 = vxor.u32 %v2312, 2147483648
    %v2317 = vmul.f32 %v2316, 1.442695
    %v2318 = vpow.pop %v2317
    %v2319 = vadd.f32 %v2318, 1.0
    %v2320 = vrcp.pop %v2319
    %v2321 = vmul.f32 %v2319, %v2320
    %v2322 = vsub.f32 1.0, %v2321
    %v2323 = vmul.f32 %v2320, %v2322
    %v2324 = vadd.f32 %v2320, %v2323
    %vm2325 = vweird.f32 %v2319
    %vm2326 = vweird.f32 %v2320
    %vm2327 = vmor %vm2325, %vm2326
    %v2328 = vsel %vm2327, %v2320, %v2324
    %v2329 = vand.u32 2147483647, %v2319
    %vm2330 = vcmp.eq.f32.partialorder %v2329, 8.507059e+37
    %v2331 = vand.u32 %v2319, 2147483648
    %v2332 = vor.u32 1.1754944e-38, %v2331
    %v2333 = vsel %vm2330, %v2332, %v2328
    %v2334 = vmul.f32 1.0, %v2333
    %v2335 = vxor.u32 %v2313, 2147483648
    %v2336 = vmul.f32 %v2335, 1.442695
    %v2337 = vpow.pop %v2336
    %v2338 = vadd.f32 %v2337, 1.0
    %v2339 = vrcp.pop %v2338
    %v2340 = vmul.f32 %v2338, %v2339
    %v2341 = vsub.f32 1.0, %v2340
    %v2342 = vmul.f32 %v2339, %v2341
    %v2343 = vadd.f32 %v2339, %v2342
    %vm2344 = vweird.f32 %v2338
    %vm2345 = vweird.f32 %v2339
    %vm2346 = vmor %vm2344, %vm2345
    %v2347 = vsel %vm2346, %v2339, %v2343
    %v2348 = vand.u32 2147483647, %v2338
    %vm2349 = vcmp.eq.f32.partialorder %v2348, 8.507059e+37
    %v2350 = vand.u32 %v2338, 2147483648
    %v2351 = vor.u32 1.1754944e-38, %v2350
    %v2352 = vsel %vm2349, %v2351, %v2347
    %v2353 = vmul.f32 1.0, %v2352
    %v2354 = vtanh.pop %v2314
    %v2355 = vxor.u32 %v2315, 2147483648
    %v2356 = vmul.f32 %v2355, 1.442695
    %v2357 = vpow.pop %v2356
    %v2358 = vadd.f32 %v2357, 1.0
    %v2359 = vrcp.pop %v2358
    %v2360 = vmul.f32 %v2358, %v2359
    %v2361 = vsub.f32 1.0, %v2360
    %v2362 = vmul.f32 %v2359, %v2361
    %v2363 = vadd.f32 %v2359, %v2362
    %vm2364 = vweird.f32 %v2358
    %vm2365 = vweird.f32 %v2359
    %vm2366 = vmor %vm2364, %vm2365
    %v2367 = vsel %vm2366, %v2359, %v2363
    %v2368 = vand.u32 2147483647, %v2358
    %vm2369 = vcmp.eq.f32.partialorder %v2368, 8.507059e+37
    %v2370 = vand.u32 %v2358, 2147483648
    %v2371 = vor.u32 1.1754944e-38, %v2370
    %v2372 = vsel %vm2369, %v2371, %v2367
    %v2373 = vmul.f32 1.0, %v2372
    %v2374 = vmul.f32 %v2353, %v2059
    %v2375 = vmul.f32 %v2334, %v2354
    %v2376 = vadd.f32 %v2374, %v2375
    %v2377 = vtanh.pop %v2376
    %v2378 = vmul.f32 %v2373, %v2377
    %2379 = vst [vmem:[#allocation2 + $0x28] sm:$0xff] %v2378
    %v2380 = vld [vmem:[#allocation3 + $0xc0] sm:$0xff]
    %v2381 = vld [vmem:[#allocation3 + $0xc8] sm:$0xff]
    %v2382 = vld [vmem:[#allocation3 + $0xd0] sm:$0xff]
    %v2383 = vld [vmem:[#allocation3 + $0xd8] sm:$0xff]
    %v2384 = vpack.c.bf16 %v2378, %v2378
    %v2385 = vld [vmem:[%s2] sm:$0xff]
    %v2386 = vld [vmem:[%s2 + $0x8] sm:$0xff]
    %v2387 = vld [vmem:[%s2 + $0x10] sm:$0xff]
    %v2388 = vld [vmem:[%s2 + $0x18] sm:$0xff]
    %v2389 = vld [vmem:[%s2 + $0x20] sm:$0xff]
    %v2390 = vld [vmem:[%s2 + $0x28] sm:$0xff]
    %v2391 = vld [vmem:[%s2 + $0x30] sm:$0xff]
    %v2392 = vld [vmem:[%s2 + $0x38] sm:$0xff]
    %v2393 = vld [vmem:[%s2 + $0x40] sm:$0xff]
    %v2394 = vld [vmem:[%s2 + $0x48] sm:$0xff]
    %v2395 = vld [vmem:[%s2 + $0x50] sm:$0xff]
    %v2396 = vld [vmem:[%s2 + $0x58] sm:$0xff]
    %v2397 = vld [vmem:[%s2 + $0x60] sm:$0xff]
    %v2398 = vld [vmem:[%s2 + $0x68] sm:$0xff]
    %v2399 = vld [vmem:[%s2 + $0x70] sm:$0xff]
    %v2400 = vld [vmem:[%s2 + $0x78] sm:$0xff]
    %v2401 = vld [vmem:[%s2 + $0x80] sm:$0xff]
    %v2402 = vld [vmem:[%s2 + $0x88] sm:$0xff]
    %v2403 = vld [vmem:[%s2 + $0x90] sm:$0xff]
    %v2404 = vld [vmem:[%s2 + $0x98] sm:$0xff]
    %v2405 = vld [vmem:[%s2 + $0xa0] sm:$0xff]
    %v2406 = vld [vmem:[%s2 + $0xa8] sm:$0xff]
    %v2407 = vld [vmem:[%s2 + $0xb0] sm:$0xff]
    %v2408 = vld [vmem:[%s2 + $0xb8] sm:$0xff]
    %v2409 = vld [vmem:[%s2 + $0xc0] sm:$0xff]
    %v2410 = vld [vmem:[%s2 + $0xc8] sm:$0xff]
    %v2411 = vld [vmem:[%s2 + $0xd0] sm:$0xff]
    %v2412 = vld [vmem:[%s2 + $0xd8] sm:$0xff]
    %v2413 = vld [vmem:[%s2 + $0xe0] sm:$0xff]
    %v2414 = vld [vmem:[%s2 + $0xe8] sm:$0xff]
    %v2415 = vld [vmem:[%s2 + $0xf0] sm:$0xff]
    %v2416 = vld [vmem:[%s2 + $0xf8] sm:$0xff]
    %v2449 = vunpack.c.l.b16 %v2385
    %v2450 = vunpack.c.h.b16 %v2385
    %v2451 = vunpack.c.l.b16 %v2386
    %v2452 = vunpack.c.h.b16 %v2386
    %v2453 = vunpack.c.l.b16 %v2387
    %v2454 = vunpack.c.h.b16 %v2387
    %v2455 = vunpack.c.l.b16 %v2388
    %v2456 = vunpack.c.h.b16 %v2388
    %v2457 = vunpack.c.l.b16 %v2389
    %v2458 = vunpack.c.h.b16 %v2389
    %v2459 = vunpack.c.l.b16 %v2390
    %v2460 = vunpack.c.h.b16 %v2390
    %v2461 = vunpack.c.l.b16 %v2391
    %v2462 = vunpack.c.h.b16 %v2391
    %v2463 = vunpack.c.l.b16 %v2392
    %v2464 = vunpack.c.h.b16 %v2392
    %v2465 = vunpack.c.l.b16 %v2393
    %v2466 = vunpack.c.h.b16 %v2393
    %v2467 = vunpack.c.l.b16 %v2394
    %v2468 = vunpack.c.h.b16 %v2394
    %v2469 = vunpack.c.l.b16 %v2395
    %v2470 = vunpack.c.h.b16 %v2395
    %v2471 = vunpack.c.l.b16 %v2396
    %v2472 = vunpack.c.h.b16 %v2396
    %v2473 = vunpack.c.l.b16 %v2397
    %v2474 = vunpack.c.h.b16 %v2397
    %v2475 = vunpack.c.l.b16 %v2398
    %v2476 = vunpack.c.h.b16 %v2398
    %v2477 = vunpack.c.l.b16 %v2399
    %v2478 = vunpack.c.h.b16 %v2399
    %v2479 = vunpack.c.l.b16 %v2400
    %v2480 = vunpack.c.h.b16 %v2400
    %v2481 = vunpack.c.l.b16 %v2401
    %v2482 = vunpack.c.h.b16 %v2401
    %v2483 = vunpack.c.l.b16 %v2402
    %v2484 = vunpack.c.h.b16 %v2402
    %v2485 = vunpack.c.l.b16 %v2403
    %v2486 = vunpack.c.h.b16 %v2403
    %v2487 = vunpack.c.l.b16 %v2404
    %v2488 = vunpack.c.h.b16 %v2404
    %v2489 = vunpack.c.l.b16 %v2405
    %v2490 = vunpack.c.h.b16 %v2405
    %v2491 = vunpack.c.l.b16 %v2406
    %v2492 = vunpack.c.h.b16 %v2406
    %v2493 = vunpack.c.l.b16 %v2407
    %v2494 = vunpack.c.h.b16 %v2407
    %v2495 = vunpack.c.l.b16 %v2408
    %v2496 = vunpack.c.h.b16 %v2408
    %v2497 = vunpack.c.l.b16 %v2409
    %v2498 = vunpack.c.h.b16 %v2409
    %v2499 = vunpack.c.l.b16 %v2410
    %v2500 = vunpack.c.h.b16 %v2410
    %v2501 = vunpack.c.l.b16 %v2411
    %v2502 = vunpack.c.h.b16 %v2411
    %v2503 = vunpack.c.l.b16 %v2412
    %v2504 = vunpack.c.h.b16 %v2412
    %v2505 = vunpack.c.l.b16 %v2413
    %v2506 = vunpack.c.h.b16 %v2413
    %v2507 = vunpack.c.l.b16 %v2414
    %v2508 = vunpack.c.h.b16 %v2414
    %v2509 = vunpack.c.l.b16 %v2415
    %v2510 = vunpack.c.h.b16 %v2415
    %v2511 = vunpack.c.l.b16 %v2416
    %v2512 = vunpack.c.h.b16 %v2416
    %v2513 = vpack.c.b16 %v2453, %v2449
    %v2514 = vpack.c.b16 %v2454, %v2450
    %v2515 = vpack.c.b16 %v2455, %v2451
    %v2516 = vpack.c.b16 %v2456, %v2452
    %v2517 = vpack.c.b16 %v2461, %v2457
    %v2518 = vpack.c.b16 %v2462, %v2458
    %v2519 = vpack.c.b16 %v2463, %v2459
    %v2520 = vpack.c.b16 %v2464, %v2460
    %v2521 = vpack.c.b16 %v2469, %v2465
    %v2522 = vpack.c.b16 %v2470, %v2466
    %v2523 = vpack.c.b16 %v2471, %v2467
    %v2524 = vpack.c.b16 %v2472, %v2468
    %v2525 = vpack.c.b16 %v2477, %v2473
    %v2526 = vpack.c.b16 %v2478, %v2474
    %v2527 = vpack.c.b16 %v2479, %v2475
    %v2528 = vpack.c.b16 %v2480, %v2476
    %v2529 = vpack.c.b16 %v2485, %v2481
    %v2530 = vpack.c.b16 %v2486, %v2482
    %v2531 = vpack.c.b16 %v2487, %v2483
    %v2532 = vpack.c.b16 %v2488, %v2484
    %v2533 = vpack.c.b16 %v2493, %v2489
    %v2534 = vpack.c.b16 %v2494, %v2490
    %v2535 = vpack.c.b16 %v2495, %v2491
    %v2536 = vpack.c.b16 %v2496, %v2492
    %v2537 = vpack.c.b16 %v2501, %v2497
    %v2538 = vpack.c.b16 %v2502, %v2498
    %v2539 = vpack.c.b16 %v2503, %v2499
    %v2540 = vpack.c.b16 %v2504, %v2500
    %v2541 = vpack.c.b16 %v2509, %v2505
    %v2542 = vpack.c.b16 %v2510, %v2506
    %v2543 = vpack.c.b16 %v2511, %v2507
    %v2544 = vpack.c.b16 %v2512, %v2508
    %2577 = vmatpush.bf16.msra.mxu0 %v2541
    %2578 = vmatpush.bf16.msra.mxu0 %v2537
    %2579 = vmatpush.bf16.msra.mxu0 %v2533
    %2580 = vmatpush.bf16.msra.mxu0 %v2529
    %2581 = vmatpush.bf16.msra.mxu0 %v2525
    %2582 = vmatpush.bf16.msra.mxu0 %v2521
    %2583 = vmatpush.bf16.msra.mxu0 %v2517
    %2584 = vmatpush.bf16.msra.mxu0 %v2513
    %2585 = vmatmul.bf16.gmra.mxu0 %v2384
    %v2586 = vpop.f32.mrf.mxu0
    %v2587 = vadd.f32 0.0, %v2586
    %v2588 = vpop.f32.mrf.mxu0
    %2589 = vdwg.mxu0
    %2590 = vmatpush.bf16.msra.mxu0 %v2542
    %2591 = vmatpush.bf16.msra.mxu0 %v2538
    %2592 = vmatpush.bf16.msra.mxu0 %v2534
    %2593 = vmatpush.bf16.msra.mxu0 %v2530
    %2594 = vmatpush.bf16.msra.mxu0 %v2526
    %2595 = vmatpush.bf16.msra.mxu0 %v2522
    %2596 = vmatpush.bf16.msra.mxu0 %v2518
    %2597 = vmatpush.bf16.msra.mxu0 %v2514
    %2598 = vmatmul.bf16.gmra.mxu0 %v2384
    %v2599 = vpop.f32.mrf.mxu0
    %v2600 = vadd.f32 0.0, %v2599
    %v2601 = vpop.f32.mrf.mxu0
    %2602 = vdwg.mxu0
    %2603 = vmatpush.bf16.msra.mxu0 %v2543
    %2604 = vmatpush.bf16.msra.mxu0 %v2539
    %2605 = vmatpush.bf16.msra.mxu0 %v2535
    %2606 = vmatpush.bf16.msra.mxu0 %v2531
    %2607 = vmatpush.bf16.msra.mxu0 %v2527
    %2608 = vmatpush.bf16.msra.mxu0 %v2523
    %2609 = vmatpush.bf16.msra.mxu0 %v2519
    %2610 = vmatpush.bf16.msra.mxu0 %v2515
    %2611 = vmatmul.bf16.gmra.mxu0 %v2384
    %v2612 = vpop.f32.mrf.mxu0
    %v2613 = vadd.f32 0.0, %v2612
    %v2614 = vpop.f32.mrf.mxu0
    %2615 = vdwg.mxu0
    %2616 = vmatpush.bf16.msra.mxu0 %v2544
    %2617 = vmatpush.bf16.msra.mxu0 %v2540
    %2618 = vmatpush.bf16.msra.mxu0 %v2536
    %2619 = vmatpush.bf16.msra.mxu0 %v2532
    %2620 = vmatpush.bf16.msra.mxu0 %v2528
    %2621 = vmatpush.bf16.msra.mxu0 %v2524
    %2622 = vmatpush.bf16.msra.mxu0 %v2520
    %2623 = vmatpush.bf16.msra.mxu0 %v2516
    %2624 = vmatmul.bf16.gmra.mxu0 %v2384
    %v2625 = vpop.f32.mrf.mxu0
    %v2626 = vadd.f32 0.0, %v2625
    %v2627 = vpop.f32.mrf.mxu0
    %2628 = vdwg.mxu0
    %v2629 = vadd.f32 %v2380, %v2587
    %v2630 = vadd.f32 %v2381, %v2600
    %v2631 = vadd.f32 %v2382, %v2613
    %v2632 = vadd.f32 %v2383, %v2626
    %v2633 = vxor.u32 %v2629, 2147483648
    %v2634 = vmul.f32 %v2633, 1.442695
    %v2635 = vpow.pop %v2634
    %v2636 = vadd.f32 %v2635, 1.0
    %v2637 = vrcp.pop %v2636
    %v2638 = vmul.f32 %v2636, %v2637
    %v2639 = vsub.f32 1.0, %v2638
    %v2640 = vmul.f32 %v2637, %v2639
    %v2641 = vadd.f32 %v2637, %v2640
    %vm2642 = vweird.f32 %v2636
    %vm2643 = vweird.f32 %v2637
    %vm2644 = vmor %vm2642, %vm2643
    %v2645 = vsel %vm2644, %v2637, %v2641
    %v2646 = vand.u32 2147483647, %v2636
    %vm2647 = vcmp.eq.f32.partialorder %v2646, 8.507059e+37
    %v2648 = vand.u32 %v2636, 2147483648
    %v2649 = vor.u32 1.1754944e-38, %v2648
    %v2650 = vsel %vm2647, %v2649, %v2645
    %v2651 = vmul.f32 1.0, %v2650
    %v2652 = vxor.u32 %v2630, 2147483648
    %v2653 = vmul.f32 %v2652, 1.442695
    %v2654 = vpow.pop %v2653
    %v2655 = vadd.f32 %v2654, 1.0
    %v2656 = vrcp.pop %v2655
    %v2657 = vmul.f32 %v2655, %v2656
    %v2658 = vsub.f32 1.0, %v2657
    %v2659 = vmul.f32 %v2656, %v2658
    %v2660 = vadd.f32 %v2656, %v2659
    %vm2661 = vweird.f32 %v2655
    %vm2662 = vweird.f32 %v2656
    %vm2663 = vmor %vm2661, %vm2662
    %v2664 = vsel %vm2663, %v2656, %v2660
    %v2665 = vand.u32 2147483647, %v2655
    %vm2666 = vcmp.eq.f32.partialorder %v2665, 8.507059e+37
    %v2667 = vand.u32 %v2655, 2147483648
    %v2668 = vor.u32 1.1754944e-38, %v2667
    %v2669 = vsel %vm2666, %v2668, %v2664
    %v2670 = vmul.f32 1.0, %v2669
    %v2671 = vtanh.pop %v2631
    %v2672 = vxor.u32 %v2632, 2147483648
    %v2673 = vmul.f32 %v2672, 1.442695
    %v2674 = vpow.pop %v2673
    %v2675 = vadd.f32 %v2674, 1.0
    %v2676 = vrcp.pop %v2675
    %v2677 = vmul.f32 %v2675, %v2676
    %v2678 = vsub.f32 1.0, %v2677
    %v2679 = vmul.f32 %v2676, %v2678
    %v2680 = vadd.f32 %v2676, %v2679
    %vm2681 = vweird.f32 %v2675
    %vm2682 = vweird.f32 %v2676
    %vm2683 = vmor %vm2681, %vm2682
    %v2684 = vsel %vm2683, %v2676, %v2680
    %v2685 = vand.u32 2147483647, %v2675
    %vm2686 = vcmp.eq.f32.partialorder %v2685, 8.507059e+37
    %v2687 = vand.u32 %v2675, 2147483648
    %v2688 = vor.u32 1.1754944e-38, %v2687
    %v2689 = vsel %vm2686, %v2688, %v2684
    %v2690 = vmul.f32 1.0, %v2689
    %v2691 = vmul.f32 %v2670, %v2376
    %v2692 = vmul.f32 %v2651, %v2671
    %v2693 = vadd.f32 %v2691, %v2692
    %v2694 = vtanh.pop %v2693
    %v2695 = vmul.f32 %v2690, %v2694
    %2696 = vst [vmem:[#allocation2 + $0x30] sm:$0xff] %v2695
    %v2697 = vld [vmem:[#allocation3 + $0xe0] sm:$0xff]
    %v2698 = vld [vmem:[#allocation3 + $0xe8] sm:$0xff]
    %v2699 = vld [vmem:[#allocation3 + $0xf0] sm:$0xff]
    %v2700 = vld [vmem:[#allocation3 + $0xf8] sm:$0xff]
    %v2701 = vpack.c.bf16 %v2695, %v2695
    %v2702 = vld [vmem:[%s2] sm:$0xff]
    %v2703 = vld [vmem:[%s2 + $0x8] sm:$0xff]
    %v2704 = vld [vmem:[%s2 + $0x10] sm:$0xff]
    %v2705 = vld [vmem:[%s2 + $0x18] sm:$0xff]
    %v2706 = vld [vmem:[%s2 + $0x20] sm:$0xff]
    %v2707 = vld [vmem:[%s2 + $0x28] sm:$0xff]
    %v2708 = vld [vmem:[%s2 + $0x30] sm:$0xff]
    %v2709 = vld [vmem:[%s2 + $0x38] sm:$0xff]
    %v2710 = vld [vmem:[%s2 + $0x40] sm:$0xff]
    %v2711 = vld [vmem:[%s2 + $0x48] sm:$0xff]
    %v2712 = vld [vmem:[%s2 + $0x50] sm:$0xff]
    %v2713 = vld [vmem:[%s2 + $0x58] sm:$0xff]
    %v2714 = vld [vmem:[%s2 + $0x60] sm:$0xff]
    %v2715 = vld [vmem:[%s2 + $0x68] sm:$0xff]
    %v2716 = vld [vmem:[%s2 + $0x70] sm:$0xff]
    %v2717 = vld [vmem:[%s2 + $0x78] sm:$0xff]
    %v2718 = vld [vmem:[%s2 + $0x80] sm:$0xff]
    %v2719 = vld [vmem:[%s2 + $0x88] sm:$0xff]
    %v2720 = vld [vmem:[%s2 + $0x90] sm:$0xff]
    %v2721 = vld [vmem:[%s2 + $0x98] sm:$0xff]
    %v2722 = vld [vmem:[%s2 + $0xa0] sm:$0xff]
    %v2723 = vld [vmem:[%s2 + $0xa8] sm:$0xff]
    %v2724 = vld [vmem:[%s2 + $0xb0] sm:$0xff]
    %v2725 = vld [vmem:[%s2 + $0xb8] sm:$0xff]
    %v2726 = vld [vmem:[%s2 + $0xc0] sm:$0xff]
    %v2727 = vld [vmem:[%s2 + $0xc8] sm:$0xff]
    %v2728 = vld [vmem:[%s2 + $0xd0] sm:$0xff]
    %v2729 = vld [vmem:[%s2 + $0xd8] sm:$0xff]
    %v2730 = vld [vmem:[%s2 + $0xe0] sm:$0xff]
    %v2731 = vld [vmem:[%s2 + $0xe8] sm:$0xff]
    %v2732 = vld [vmem:[%s2 + $0xf0] sm:$0xff]
    %v2733 = vld [vmem:[%s2 + $0xf8] sm:$0xff]
    %v2766 = vunpack.c.l.b16 %v2702
    %v2767 = vunpack.c.h.b16 %v2702
    %v2768 = vunpack.c.l.b16 %v2703
    %v2769 = vunpack.c.h.b16 %v2703
    %v2770 = vunpack.c.l.b16 %v2704
    %v2771 = vunpack.c.h.b16 %v2704
    %v2772 = vunpack.c.l.b16 %v2705
    %v2773 = vunpack.c.h.b16 %v2705
    %v2774 = vunpack.c.l.b16 %v2706
    %v2775 = vunpack.c.h.b16 %v2706
    %v2776 = vunpack.c.l.b16 %v2707
    %v2777 = vunpack.c.h.b16 %v2707
    %v2778 = vunpack.c.l.b16 %v2708
    %v2779 = vunpack.c.h.b16 %v2708
    %v2780 = vunpack.c.l.b16 %v2709
    %v2781 = vunpack.c.h.b16 %v2709
    %v2782 = vunpack.c.l.b16 %v2710
    %v2783 = vunpack.c.h.b16 %v2710
    %v2784 = vunpack.c.l.b16 %v2711
    %v2785 = vunpack.c.h.b16 %v2711
    %v2786 = vunpack.c.l.b16 %v2712
    %v2787 = vunpack.c.h.b16 %v2712
    %v2788 = vunpack.c.l.b16 %v2713
    %v2789 = vunpack.c.h.b16 %v2713
    %v2790 = vunpack.c.l.b16 %v2714
    %v2791 = vunpack.c.h.b16 %v2714
    %v2792 = vunpack.c.l.b16 %v2715
    %v2793 = vunpack.c.h.b16 %v2715
    %v2794 = vunpack.c.l.b16 %v2716
    %v2795 = vunpack.c.h.b16 %v2716
    %v2796 = vunpack.c.l.b16 %v2717
    %v2797 = vunpack.c.h.b16 %v2717
    %v2798 = vunpack.c.l.b16 %v2718
    %v2799 = vunpack.c.h.b16 %v2718
    %v2800 = vunpack.c.l.b16 %v2719
    %v2801 = vunpack.c.h.b16 %v2719
    %v2802 = vunpack.c.l.b16 %v2720
    %v2803 = vunpack.c.h.b16 %v2720
    %v2804 = vunpack.c.l.b16 %v2721
    %v2805 = vunpack.c.h.b16 %v2721
    %v2806 = vunpack.c.l.b16 %v2722
    %v2807 = vunpack.c.h.b16 %v2722
    %v2808 = vunpack.c.l.b16 %v2723
    %v2809 = vunpack.c.h.b16 %v2723
    %v2810 = vunpack.c.l.b16 %v2724
    %v2811 = vunpack.c.h.b16 %v2724
    %v2812 = vunpack.c.l.b16 %v2725
    %v2813 = vunpack.c.h.b16 %v2725
    %v2814 = vunpack.c.l.b16 %v2726
    %v2815 = vunpack.c.h.b16 %v2726
    %v2816 = vunpack.c.l.b16 %v2727
    %v2817 = vunpack.c.h.b16 %v2727
    %v2818 = vunpack.c.l.b16 %v2728
    %v2819 = vunpack.c.h.b16 %v2728
    %v2820 = vunpack.c.l.b16 %v2729
    %v2821 = vunpack.c.h.b16 %v2729
    %v2822 = vunpack.c.l.b16 %v2730
    %v2823 = vunpack.c.h.b16 %v2730
    %v2824 = vunpack.c.l.b16 %v2731
    %v2825 = vunpack.c.h.b16 %v2731
    %v2826 = vunpack.c.l.b16 %v2732
    %v2827 = vunpack.c.h.b16 %v2732
    %v2828 = vunpack.c.l.b16 %v2733
    %v2829 = vunpack.c.h.b16 %v2733
    %v2830 = vpack.c.b16 %v2770, %v2766
    %v2831 = vpack.c.b16 %v2771, %v2767
    %v2832 = vpack.c.b16 %v2772, %v2768
    %v2833 = vpack.c.b16 %v2773, %v2769
    %v2834 = vpack.c.b16 %v2778, %v2774
    %v2835 = vpack.c.b16 %v2779, %v2775
    %v2836 = vpack.c.b16 %v2780, %v2776
    %v2837 = vpack.c.b16 %v2781, %v2777
    %v2838 = vpack.c.b16 %v2786, %v2782
    %v2839 = vpack.c.b16 %v2787, %v2783
    %v2840 = vpack.c.b16 %v2788, %v2784
    %v2841 = vpack.c.b16 %v2789, %v2785
    %v2842 = vpack.c.b16 %v2794, %v2790
    %v2843 = vpack.c.b16 %v2795, %v2791
    %v2844 = vpack.c.b16 %v2796, %v2792
    %v2845 = vpack.c.b16 %v2797, %v2793
    %v2846 = vpack.c.b16 %v2802, %v2798
    %v2847 = vpack.c.b16 %v2803, %v2799
    %v2848 = vpack.c.b16 %v2804, %v2800
    %v2849 = vpack.c.b16 %v2805, %v2801
    %v2850 = vpack.c.b16 %v2810, %v2806
    %v2851 = vpack.c.b16 %v2811, %v2807
    %v2852 = vpack.c.b16 %v2812, %v2808
    %v2853 = vpack.c.b16 %v2813, %v2809
    %v2854 = vpack.c.b16 %v2818, %v2814
    %v2855 = vpack.c.b16 %v2819, %v2815
    %v2856 = vpack.c.b16 %v2820, %v2816
    %v2857 = vpack.c.b16 %v2821, %v2817
    %v2858 = vpack.c.b16 %v2826, %v2822
    %v2859 = vpack.c.b16 %v2827, %v2823
    %v2860 = vpack.c.b16 %v2828, %v2824
    %v2861 = vpack.c.b16 %v2829, %v2825
    %2894 = vmatpush.bf16.msra.mxu0 %v2858
    %2895 = vmatpush.bf16.msra.mxu0 %v2854
    %2896 = vmatpush.bf16.msra.mxu0 %v2850
    %2897 = vmatpush.bf16.msra.mxu0 %v2846
    %2898 = vmatpush.bf16.msra.mxu0 %v2842
    %2899 = vmatpush.bf16.msra.mxu0 %v2838
    %2900 = vmatpush.bf16.msra.mxu0 %v2834
    %2901 = vmatpush.bf16.msra.mxu0 %v2830
    %2902 = vmatmul.bf16.gmra.mxu0 %v2701
    %v2903 = vpop.f32.mrf.mxu0
    %v2904 = vadd.f32 0.0, %v2903
    %v2905 = vpop.f32.mrf.mxu0
    %2906 = vdwg.mxu0
    %2907 = vmatpush.bf16.msra.mxu0 %v2859
    %2908 = vmatpush.bf16.msra.mxu0 %v2855
    %2909 = vmatpush.bf16.msra.mxu0 %v2851
    %2910 = vmatpush.bf16.msra.mxu0 %v2847
    %2911 = vmatpush.bf16.msra.mxu0 %v2843
    %2912 = vmatpush.bf16.msra.mxu0 %v2839
    %2913 = vmatpush.bf16.msra.mxu0 %v2835
    %2914 = vmatpush.bf16.msra.mxu0 %v2831
    %2915 = vmatmul.bf16.gmra.mxu0 %v2701
    %v2916 = vpop.f32.mrf.mxu0
    %v2917 = vadd.f32 0.0, %v2916
    %v2918 = vpop.f32.mrf.mxu0
    %2919 = vdwg.mxu0
    %2920 = vmatpush.bf16.msra.mxu0 %v2860
    %2921 = vmatpush.bf16.msra.mxu0 %v2856
    %2922 = vmatpush.bf16.msra.mxu0 %v2852
    %2923 = vmatpush.bf16.msra.mxu0 %v2848
    %2924 = vmatpush.bf16.msra.mxu0 %v2844
    %2925 = vmatpush.bf16.msra.mxu0 %v2840
    %2926 = vmatpush.bf16.msra.mxu0 %v2836
    %2927 = vmatpush.bf16.msra.mxu0 %v2832
    %2928 = vmatmul.bf16.gmra.mxu0 %v2701
    %v2929 = vpop.f32.mrf.mxu0
    %v2930 = vadd.f32 0.0, %v2929
    %v2931 = vpop.f32.mrf.mxu0
    %2932 = vdwg.mxu0
    %2933 = vmatpush.bf16.msra.mxu0 %v2861
    %2934 = vmatpush.bf16.msra.mxu0 %v2857
    %2935 = vmatpush.bf16.msra.mxu0 %v2853
    %2936 = vmatpush.bf16.msra.mxu0 %v2849
    %2937 = vmatpush.bf16.msra.mxu0 %v2845
    %2938 = vmatpush.bf16.msra.mxu0 %v2841
    %2939 = vmatpush.bf16.msra.mxu0 %v2837
    %2940 = vmatpush.bf16.msra.mxu0 %v2833
    %2941 = vmatmul.bf16.gmra.mxu0 %v2701
    %v2942 = vpop.f32.mrf.mxu0
    %v2943 = vadd.f32 0.0, %v2942
    %v2944 = vpop.f32.mrf.mxu0
    %2945 = vdwg.mxu0
    %v2946 = vadd.f32 %v2697, %v2904
    %v2947 = vadd.f32 %v2698, %v2917
    %v2948 = vadd.f32 %v2699, %v2930
    %v2949 = vadd.f32 %v2700, %v2943
    %v2950 = vxor.u32 %v2946, 2147483648
    %v2951 = vmul.f32 %v2950, 1.442695
    %v2952 = vpow.pop %v2951
    %v2953 = vadd.f32 %v2952, 1.0
    %v2954 = vrcp.pop %v2953
    %v2955 = vmul.f32 %v2953, %v2954
    %v2956 = vsub.f32 1.0, %v2955
    %v2957 = vmul.f32 %v2954, %v2956
    %v2958 = vadd.f32 %v2954, %v2957
    %vm2959 = vweird.f32 %v2953
    %vm2960 = vweird.f32 %v2954
    %vm2961 = vmor %vm2959, %vm2960
    %v2962 = vsel %vm2961, %v2954, %v2958
    %v2963 = vand.u32 2147483647, %v2953
    %vm2964 = vcmp.eq.f32.partialorder %v2963, 8.507059e+37
    %v2965 = vand.u32 %v2953, 2147483648
    %v2966 = vor.u32 1.1754944e-38, %v2965
    %v2967 = vsel %vm2964, %v2966, %v2962
    %v2968 = vmul.f32 1.0, %v2967
    %v2969 = vxor.u32 %v2947, 2147483648
    %v2970 = vmul.f32 %v2969, 1.442695
    %v2971 = vpow.pop %v2970
    %v2972 = vadd.f32 %v2971, 1.0
    %v2973 = vrcp.pop %v2972
    %v2974 = vmul.f32 %v2972, %v2973
    %v2975 = vsub.f32 1.0, %v2974
    %v2976 = vmul.f32 %v2973, %v2975
    %v2977 = vadd.f32 %v2973, %v2976
    %vm2978 = vweird.f32 %v2972
    %vm2979 = vweird.f32 %v2973
    %vm2980 = vmor %vm2978, %vm2979
    %v2981 = vsel %vm2980, %v2973, %v2977
    %v2982 = vand.u32 2147483647, %v2972
    %vm2983 = vcmp.eq.f32.partialorder %v2982, 8.507059e+37
    %v2984 = vand.u32 %v2972, 2147483648
    %v2985 = vor.u32 1.1754944e-38, %v2984
    %v2986 = vsel %vm2983, %v2985, %v2981
    %v2987 = vmul.f32 1.0, %v2986
    %v2988 = vtanh.pop %v2948
    %v2989 = vxor.u32 %v2949, 2147483648
    %v2990 = vmul.f32 %v2989, 1.442695
    %v2991 = vpow.pop %v2990
    %v2992 = vadd.f32 %v2991, 1.0
    %v2993 = vrcp.pop %v2992
    %v2994 = vmul.f32 %v2992, %v2993
    %v2995 = vsub.f32 1.0, %v2994
    %v2996 = vmul.f32 %v2993, %v2995
    %v2997 = vadd.f32 %v2993, %v2996
    %vm2998 = vweird.f32 %v2992
    %vm2999 = vweird.f32 %v2993
    %vm3000 = vmor %vm2998, %vm2999
    %v3001 = vsel %vm3000, %v2993, %v2997
    %v3002 = vand.u32 2147483647, %v2992
    %vm3003 = vcmp.eq.f32.partialorder %v3002, 8.507059e+37
    %v3004 = vand.u32 %v2992, 2147483648
    %v3005 = vor.u32 1.1754944e-38, %v3004
    %v3006 = vsel %vm3003, %v3005, %v3001
    %v3007 = vmul.f32 1.0, %v3006
    %v3008 = vmul.f32 %v2987, %v2693
    %v3009 = vmul.f32 %v2968, %v2988
    %v3010 = vadd.f32 %v3008, %v3009
    %v3011 = vtanh.pop %v3010
    %v3012 = vmul.f32 %v3007, %v3011
    %3013 = vst [vmem:[#allocation2 + $0x38] sm:$0xff] %v3012
    %v3014 = vld [vmem:[#allocation3 + $0x100] sm:$0xff]
    %v3015 = vld [vmem:[#allocation3 + $0x108] sm:$0xff]
    %v3016 = vld [vmem:[#allocation3 + $0x110] sm:$0xff]
    %v3017 = vld [vmem:[#allocation3 + $0x118] sm:$0xff]
    %v3018 = vpack.c.bf16 %v3012, %v3012
    %v3019 = vld [vmem:[%s2] sm:$0xff]
    %v3020 = vld [vmem:[%s2 + $0x8] sm:$0xff]
    %v3021 = vld [vmem:[%s2 + $0x10] sm:$0xff]
    %v3022 = vld [vmem:[%s2 + $0x18] sm:$0xff]
    %v3023 = vld [vmem:[%s2 + $0x20] sm:$0xff]
    %v3024 = vld [vmem:[%s2 + $0x28] sm:$0xff]
    %v3025 = vld [vmem:[%s2 + $0x30] sm:$0xff]
    %v3026 = vld [vmem:[%s2 + $0x38] sm:$0xff]
    %v3027 = vld [vmem:[%s2 + $0x40] sm:$0xff]
    %v3028 = vld [vmem:[%s2 + $0x48] sm:$0xff]
    %v3029 = vld [vmem:[%s2 + $0x50] sm:$0xff]
    %v3030 = vld [vmem:[%s2 + $0x58] sm:$0xff]
    %v3031 = vld [vmem:[%s2 + $0x60] sm:$0xff]
    %v3032 = vld [vmem:[%s2 + $0x68] sm:$0xff]
    %v3033 = vld [vmem:[%s2 + $0x70] sm:$0xff]
    %v3034 = vld [vmem:[%s2 + $0x78] sm:$0xff]
    %v3035 = vld [vmem:[%s2 + $0x80] sm:$0xff]
    %v3036 = vld [vmem:[%s2 + $0x88] sm:$0xff]
    %v3037 = vld [vmem:[%s2 + $0x90] sm:$0xff]
    %v3038 = vld [vmem:[%s2 + $0x98] sm:$0xff]
    %v3039 = vld [vmem:[%s2 + $0xa0] sm:$0xff]
    %v3040 = vld [vmem:[%s2 + $0xa8] sm:$0xff]
    %v3041 = vld [vmem:[%s2 + $0xb0] sm:$0xff]
    %v3042 = vld [vmem:[%s2 + $0xb8] sm:$0xff]
    %v3043 = vld [vmem:[%s2 + $0xc0] sm:$0xff]
    %v3044 = vld [vmem:[%s2 + $0xc8] sm:$0xff]
    %v3045 = vld [vmem:[%s2 + $0xd0] sm:$0xff]
    %v3046 = vld [vmem:[%s2 + $0xd8] sm:$0xff]
    %v3047 = vld [vmem:[%s2 + $0xe0] sm:$0xff]
    %v3048 = vld [vmem:[%s2 + $0xe8] sm:$0xff]
    %v3049 = vld [vmem:[%s2 + $0xf0] sm:$0xff]
    %v3050 = vld [vmem:[%s2 + $0xf8] sm:$0xff]
    %v3083 = vunpack.c.l.b16 %v3019
    %v3084 = vunpack.c.h.b16 %v3019
    %v3085 = vunpack.c.l.b16 %v3020
    %v3086 = vunpack.c.h.b16 %v3020
    %v3087 = vunpack.c.l.b16 %v3021
    %v3088 = vunpack.c.h.b16 %v3021
    %v3089 = vunpack.c.l.b16 %v3022
    %v3090 = vunpack.c.h.b16 %v3022
    %v3091 = vunpack.c.l.b16 %v3023
    %v3092 = vunpack.c.h.b16 %v3023
    %v3093 = vunpack.c.l.b16 %v3024
    %v3094 = vunpack.c.h.b16 %v3024
    %v3095 = vunpack.c.l.b16 %v3025
    %v3096 = vunpack.c.h.b16 %v3025
    %v3097 = vunpack.c.l.b16 %v3026
    %v3098 = vunpack.c.h.b16 %v3026
    %v3099 = vunpack.c.l.b16 %v3027
    %v3100 = vunpack.c.h.b16 %v3027
    %v3101 = vunpack.c.l.b16 %v3028
    %v3102 = vunpack.c.h.b16 %v3028
    %v3103 = vunpack.c.l.b16 %v3029
    %v3104 = vunpack.c.h.b16 %v3029
    %v3105 = vunpack.c.l.b16 %v3030
    %v3106 = vunpack.c.h.b16 %v3030
    %v3107 = vunpack.c.l.b16 %v3031
    %v3108 = vunpack.c.h.b16 %v3031
    %v3109 = vunpack.c.l.b16 %v3032
    %v3110 = vunpack.c.h.b16 %v3032
    %v3111 = vunpack.c.l.b16 %v3033
    %v3112 = vunpack.c.h.b16 %v3033
    %v3113 = vunpack.c.l.b16 %v3034
    %v3114 = vunpack.c.h.b16 %v3034
    %v3115 = vunpack.c.l.b16 %v3035
    %v3116 = vunpack.c.h.b16 %v3035
    %v3117 = vunpack.c.l.b16 %v3036
    %v3118 = vunpack.c.h.b16 %v3036
    %v3119 = vunpack.c.l.b16 %v3037
    %v3120 = vunpack.c.h.b16 %v3037
    %v3121 = vunpack.c.l.b16 %v3038
    %v3122 = vunpack.c.h.b16 %v3038
    %v3123 = vunpack.c.l.b16 %v3039
    %v3124 = vunpack.c.h.b16 %v3039
    %v3125 = vunpack.c.l.b16 %v3040
    %v3126 = vunpack.c.h.b16 %v3040
    %v3127 = vunpack.c.l.b16 %v3041
    %v3128 = vunpack.c.h.b16 %v3041
    %v3129 = vunpack.c.l.b16 %v3042
    %v3130 = vunpack.c.h.b16 %v3042
    %v3131 = vunpack.c.l.b16 %v3043
    %v3132 = vunpack.c.h.b16 %v3043
    %v3133 = vunpack.c.l.b16 %v3044
    %v3134 = vunpack.c.h.b16 %v3044
    %v3135 = vunpack.c.l.b16 %v3045
    %v3136 = vunpack.c.h.b16 %v3045
    %v3137 = vunpack.c.l.b16 %v3046
    %v3138 = vunpack.c.h.b16 %v3046
    %v3139 = vunpack.c.l.b16 %v3047
    %v3140 = vunpack.c.h.b16 %v3047
    %v3141 = vunpack.c.l.b16 %v3048
    %v3142 = vunpack.c.h.b16 %v3048
    %v3143 = vunpack.c.l.b16 %v3049
    %v3144 = vunpack.c.h.b16 %v3049
    %v3145 = vunpack.c.l.b16 %v3050
    %v3146 = vunpack.c.h.b16 %v3050
    %v3147 = vpack.c.b16 %v3087, %v3083
    %v3148 = vpack.c.b16 %v3088, %v3084
    %v3149 = vpack.c.b16 %v3089, %v3085
    %v3150 = vpack.c.b16 %v3090, %v3086
    %v3151 = vpack.c.b16 %v3095, %v3091
    %v3152 = vpack.c.b16 %v3096, %v3092
    %v3153 = vpack.c.b16 %v3097, %v3093
    %v3154 = vpack.c.b16 %v3098, %v3094
    %v3155 = vpack.c.b16 %v3103, %v3099
    %v3156 = vpack.c.b16 %v3104, %v3100
    %v3157 = vpack.c.b16 %v3105, %v3101
    %v3158 = vpack.c.b16 %v3106, %v3102
    %v3159 = vpack.c.b16 %v3111, %v3107
    %v3160 = vpack.c.b16 %v3112, %v3108
    %v3161 = vpack.c.b16 %v3113, %v3109
    %v3162 = vpack.c.b16 %v3114, %v3110
    %v3163 = vpack.c.b16 %v3119, %v3115
    %v3164 = vpack.c.b16 %v3120, %v3116
    %v3165 = vpack.c.b16 %v3121, %v3117
    %v3166 = vpack.c.b16 %v3122, %v3118
    %v3167 = vpack.c.b16 %v3127, %v3123
    %v3168 = vpack.c.b16 %v3128, %v3124
    %v3169 = vpack.c.b16 %v3129, %v3125
    %v3170 = vpack.c.b16 %v3130, %v3126
    %v3171 = vpack.c.b16 %v3135, %v3131
    %v3172 = vpack.c.b16 %v3136, %v3132
    %v3173 = vpack.c.b16 %v3137, %v3133
    %v3174 = vpack.c.b16 %v3138, %v3134
    %v3175 = vpack.c.b16 %v3143, %v3139
    %v3176 = vpack.c.b16 %v3144, %v3140
    %v3177 = vpack.c.b16 %v3145, %v3141
    %v3178 = vpack.c.b16 %v3146, %v3142
    %3211 = vmatpush.bf16.msra.mxu0 %v3175
    %3212 = vmatpush.bf16.msra.mxu0 %v3171
    %3213 = vmatpush.bf16.msra.mxu0 %v3167
    %3214 = vmatpush.bf16.msra.mxu0 %v3163
    %3215 = vmatpush.bf16.msra.mxu0 %v3159
    %3216 = vmatpush.bf16.msra.mxu0 %v3155
    %3217 = vmatpush.bf16.msra.mxu0 %v3151
    %3218 = vmatpush.bf16.msra.mxu0 %v3147
    %3219 = vmatmul.bf16.gmra.mxu0 %v3018
    %v3220 = vpop.f32.mrf.mxu0
    %v3221 = vadd.f32 0.0, %v3220
    %v3222 = vpop.f32.mrf.mxu0
    %3223 = vdwg.mxu0
    %3224 = vmatpush.bf16.msra.mxu0 %v3176
    %3225 = vmatpush.bf16.msra.mxu0 %v3172
    %3226 = vmatpush.bf16.msra.mxu0 %v3168
    %3227 = vmatpush.bf16.msra.mxu0 %v3164
    %3228 = vmatpush.bf16.msra.mxu0 %v3160
    %3229 = vmatpush.bf16.msra.mxu0 %v3156
    %3230 = vmatpush.bf16.msra.mxu0 %v3152
    %3231 = vmatpush.bf16.msra.mxu0 %v3148
    %3232 = vmatmul.bf16.gmra.mxu0 %v3018
    %v3233 = vpop.f32.mrf.mxu0
    %v3234 = vadd.f32 0.0, %v3233
    %v3235 = vpop.f32.mrf.mxu0
    %3236 = vdwg.mxu0
    %3237 = vmatpush.bf16.msra.mxu0 %v3177
    %3238 = vmatpush.bf16.msra.mxu0 %v3173
    %3239 = vmatpush.bf16.msra.mxu0 %v3169
    %3240 = vmatpush.bf16.msra.mxu0 %v3165
    %3241 = vmatpush.bf16.msra.mxu0 %v3161
    %3242 = vmatpush.bf16.msra.mxu0 %v3157
    %3243 = vmatpush.bf16.msra.mxu0 %v3153
    %3244 = vmatpush.bf16.msra.mxu0 %v3149
    %3245 = vmatmul.bf16.gmra.mxu0 %v3018
    %v3246 = vpop.f32.mrf.mxu0
    %v3247 = vadd.f32 0.0, %v3246
    %v3248 = vpop.f32.mrf.mxu0
    %3249 = vdwg.mxu0
    %3250 = vmatpush.bf16.msra.mxu0 %v3178
    %3251 = vmatpush.bf16.msra.mxu0 %v3174
    %3252 = vmatpush.bf16.msra.mxu0 %v3170
    %3253 = vmatpush.bf16.msra.mxu0 %v3166
    %3254 = vmatpush.bf16.msra.mxu0 %v3162
    %3255 = vmatpush.bf16.msra.mxu0 %v3158
    %3256 = vmatpush.bf16.msra.mxu0 %v3154
    %3257 = vmatpush.bf16.msra.mxu0 %v3150
    %3258 = vmatmul.bf16.gmra.mxu0 %v3018
    %v3259 = vpop.f32.mrf.mxu0
    %v3260 = vadd.f32 0.0, %v3259
    %v3261 = vpop.f32.mrf.mxu0
    %3262 = vdwg.mxu0
    %v3263 = vadd.f32 %v3014, %v3221
    %v3264 = vadd.f32 %v3015, %v3234
    %v3265 = vadd.f32 %v3016, %v3247
    %v3266 = vadd.f32 %v3017, %v3260
    %v3267 = vxor.u32 %v3263, 2147483648
    %v3268 = vmul.f32 %v3267, 1.442695
    %v3269 = vpow.pop %v3268
    %v3270 = vadd.f32 %v3269, 1.0
    %v3271 = vrcp.pop %v3270
    %v3272 = vmul.f32 %v3270, %v3271
    %v3273 = vsub.f32 1.0, %v3272
    %v3274 = vmul.f32 %v3271, %v3273
    %v3275 = vadd.f32 %v3271, %v3274
    %vm3276 = vweird.f32 %v3270
    %vm3277 = vweird.f32 %v3271
    %vm3278 = vmor %vm3276, %vm3277
    %v3279 = vsel %vm3278, %v3271, %v3275
    %v3280 = vand.u32 2147483647, %v3270
    %vm3281 = vcmp.eq.f32.partialorder %v3280, 8.507059e+37
    %v3282 = vand.u32 %v3270, 2147483648
    %v3283 = vor.u32 1.1754944e-38, %v3282
    %v3284 = vsel %vm3281, %v3283, %v3279
    %v3285 = vmul.f32 1.0, %v3284
    %v3286 = vxor.u32 %v3264, 2147483648
    %v3287 = vmul.f32 %v3286, 1.442695
    %v3288 = vpow.pop %v3287
    %v3289 = vadd.f32 %v3288, 1.0
    %v3290 = vrcp.pop %v3289
    %v3291 = vmul.f32 %v3289, %v3290
    %v3292 = vsub.f32 1.0, %v3291
    %v3293 = vmul.f32 %v3290, %v3292
    %v3294 = vadd.f32 %v3290, %v3293
    %vm3295 = vweird.f32 %v3289
    %vm3296 = vweird.f32 %v3290
    %vm3297 = vmor %vm3295, %vm3296
    %v3298 = vsel %vm3297, %v3290, %v3294
    %v3299 = vand.u32 2147483647, %v3289
    %vm3300 = vcmp.eq.f32.partialorder %v3299, 8.507059e+37
    %v3301 = vand.u32 %v3289, 2147483648
    %v3302 = vor.u32 1.1754944e-38, %v3301
    %v3303 = vsel %vm3300, %v3302, %v3298
    %v3304 = vmul.f32 1.0, %v3303
    %v3305 = vtanh.pop %v3265
    %v3306 = vxor.u32 %v3266, 2147483648
    %v3307 = vmul.f32 %v3306, 1.442695
    %v3308 = vpow.pop %v3307
    %v3309 = vadd.f32 %v3308, 1.0
    %v3310 = vrcp.pop %v3309
    %v3311 = vmul.f32 %v3309, %v3310
    %v3312 = vsub.f32 1.0, %v3311
    %v3313 = vmul.f32 %v3310, %v3312
    %v3314 = vadd.f32 %v3310, %v3313
    %vm3315 = vweird.f32 %v3309
    %vm3316 = vweird.f32 %v3310
    %vm3317 = vmor %vm3315, %vm3316
    %v3318 = vsel %vm3317, %v3310, %v3314
    %v3319 = vand.u32 2147483647, %v3309
    %vm3320 = vcmp.eq.f32.partialorder %v3319, 8.507059e+37
    %v3321 = vand.u32 %v3309, 2147483648
    %v3322 = vor.u32 1.1754944e-38, %v3321
    %v3323 = vsel %vm3320, %v3322, %v3318
    %v3324 = vmul.f32 1.0, %v3323
    %v3325 = vmul.f32 %v3304, %v3010
    %v3326 = vmul.f32 %v3285, %v3305
    %v3327 = vadd.f32 %v3325, %v3326
    %v3328 = vtanh.pop %v3327
    %v3329 = vmul.f32 %v3324, %v3328
    %3330 = vst [vmem:[#allocation2 + $0x40] sm:$0xff] %v3329
    %v3331 = vld [vmem:[#allocation3 + $0x120] sm:$0xff]
    %v3332 = vld [vmem:[#allocation3 + $0x128] sm:$0xff]
    %v3333 = vld [vmem:[#allocation3 + $0x130] sm:$0xff]
    %v3334 = vld [vmem:[#allocation3 + $0x138] sm:$0xff]
    %v3335 = vpack.c.bf16 %v3329, %v3329
    %v3336 = vld [vmem:[%s2] sm:$0xff]
    %v3337 = vld [vmem:[%s2 + $0x8] sm:$0xff]
    %v3338 = vld [vmem:[%s2 + $0x10] sm:$0xff]
    %v3339 = vld [vmem:[%s2 + $0x18] sm:$0xff]
    %v3340 = vld [vmem:[%s2 + $0x20] sm:$0xff]
    %v3341 = vld [vmem:[%s2 + $0x28] sm:$0xff]
    %v3342 = vld [vmem:[%s2 + $0x30] sm:$0xff]
    %v3343 = vld [vmem:[%s2 + $0x38] sm:$0xff]
    %v3344 = vld [vmem:[%s2 + $0x40] sm:$0xff]
    %v3345 = vld [vmem:[%s2 + $0x48] sm:$0xff]
    %v3346 = vld [vmem:[%s2 + $0x50] sm:$0xff]
    %v3347 = vld [vmem:[%s2 + $0x58] sm:$0xff]
    %v3348 = vld [vmem:[%s2 + $0x60] sm:$0xff]
    %v3349 = vld [vmem:[%s2 + $0x68] sm:$0xff]
    %v3350 = vld [vmem:[%s2 + $0x70] sm:$0xff]
    %v3351 = vld [vmem:[%s2 + $0x78] sm:$0xff]
    %v3352 = vld [vmem:[%s2 + $0x80] sm:$0xff]
    %v3353 = vld [vmem:[%s2 + $0x88] sm:$0xff]
    %v3354 = vld [vmem:[%s2 + $0x90] sm:$0xff]
    %v3355 = vld [vmem:[%s2 + $0x98] sm:$0xff]
    %v3356 = vld [vmem:[%s2 + $0xa0] sm:$0xff]
    %v3357 = vld [vmem:[%s2 + $0xa8] sm:$0xff]
    %v3358 = vld [vmem:[%s2 + $0xb0] sm:$0xff]
    %v3359 = vld [vmem:[%s2 + $0xb8] sm:$0xff]
    %v3360 = vld [vmem:[%s2 + $0xc0] sm:$0xff]
    %v3361 = vld [vmem:[%s2 + $0xc8] sm:$0xff]
    %v3362 = vld [vmem:[%s2 + $0xd0] sm:$0xff]
    %v3363 = vld [vmem:[%s2 + $0xd8] sm:$0xff]
    %v3364 = vld [vmem:[%s2 + $0xe0] sm:$0xff]
    %v3365 = vld [vmem:[%s2 + $0xe8] sm:$0xff]
    %v3366 = vld [vmem:[%s2 + $0xf0] sm:$0xff]
    %v3367 = vld [vmem:[%s2 + $0xf8] sm:$0xff]
    %v3400 = vunpack.c.l.b16 %v3336
    %v3401 = vunpack.c.h.b16 %v3336
    %v3402 = vunpack.c.l.b16 %v3337
    %v3403 = vunpack.c.h.b16 %v3337
    %v3404 = vunpack.c.l.b16 %v3338
    %v3405 = vunpack.c.h.b16 %v3338
    %v3406 = vunpack.c.l.b16 %v3339
    %v3407 = vunpack.c.h.b16 %v3339
    %v3408 = vunpack.c.l.b16 %v3340
    %v3409 = vunpack.c.h.b16 %v3340
    %v3410 = vunpack.c.l.b16 %v3341
    %v3411 = vunpack.c.h.b16 %v3341
    %v3412 = vunpack.c.l.b16 %v3342
    %v3413 = vunpack.c.h.b16 %v3342
    %v3414 = vunpack.c.l.b16 %v3343
    %v3415 = vunpack.c.h.b16 %v3343
    %v3416 = vunpack.c.l.b16 %v3344
    %v3417 = vunpack.c.h.b16 %v3344
    %v3418 = vunpack.c.l.b16 %v3345
    %v3419 = vunpack.c.h.b16 %v3345
    %v3420 = vunpack.c.l.b16 %v3346
    %v3421 = vunpack.c.h.b16 %v3346
    %v3422 = vunpack.c.l.b16 %v3347
    %v3423 = vunpack.c.h.b16 %v3347
    %v3424 = vunpack.c.l.b16 %v3348
    %v3425 = vunpack.c.h.b16 %v3348
    %v3426 = vunpack.c.l.b16 %v3349
    %v3427 = vunpack.c.h.b16 %v3349
    %v3428 = vunpack.c.l.b16 %v3350
    %v3429 = vunpack.c.h.b16 %v3350
    %v3430 = vunpack.c.l.b16 %v3351
    %v3431 = vunpack.c.h.b16 %v3351
    %v3432 = vunpack.c.l.b16 %v3352
    %v3433 = vunpack.c.h.b16 %v3352
    %v3434 = vunpack.c.l.b16 %v3353
    %v3435 = vunpack.c.h.b16 %v3353
    %v3436 = vunpack.c.l.b16 %v3354
    %v3437 = vunpack.c.h.b16 %v3354
    %v3438 = vunpack.c.l.b16 %v3355
    %v3439 = vunpack.c.h.b16 %v3355
    %v3440 = vunpack.c.l.b16 %v3356
    %v3441 = vunpack.c.h.b16 %v3356
    %v3442 = vunpack.c.l.b16 %v3357
    %v3443 = vunpack.c.h.b16 %v3357
    %v3444 = vunpack.c.l.b16 %v3358
    %v3445 = vunpack.c.h.b16 %v3358
    %v3446 = vunpack.c.l.b16 %v3359
    %v3447 = vunpack.c.h.b16 %v3359
    %v3448 = vunpack.c.l.b16 %v3360
    %v3449 = vunpack.c.h.b16 %v3360
    %v3450 = vunpack.c.l.b16 %v3361
    %v3451 = vunpack.c.h.b16 %v3361
    %v3452 = vunpack.c.l.b16 %v3362
    %v3453 = vunpack.c.h.b16 %v3362
    %v3454 = vunpack.c.l.b16 %v3363
    %v3455 = vunpack.c.h.b16 %v3363
    %v3456 = vunpack.c.l.b16 %v3364
    %v3457 = vunpack.c.h.b16 %v3364
    %v3458 = vunpack.c.l.b16 %v3365
    %v3459 = vunpack.c.h.b16 %v3365
    %v3460 = vunpack.c.l.b16 %v3366
    %v3461 = vunpack.c.h.b16 %v3366
    %v3462 = vunpack.c.l.b16 %v3367
    %v3463 = vunpack.c.h.b16 %v3367
    %v3464 = vpack.c.b16 %v3404, %v3400
    %v3465 = vpack.c.b16 %v3405, %v3401
    %v3466 = vpack.c.b16 %v3406, %v3402
    %v3467 = vpack.c.b16 %v3407, %v3403
    %v3468 = vpack.c.b16 %v3412, %v3408
    %v3469 = vpack.c.b16 %v3413, %v3409
    %v3470 = vpack.c.b16 %v3414, %v3410
    %v3471 = vpack.c.b16 %v3415, %v3411
    %v3472 = vpack.c.b16 %v3420, %v3416
    %v3473 = vpack.c.b16 %v3421, %v3417
    %v3474 = vpack.c.b16 %v3422, %v3418
    %v3475 = vpack.c.b16 %v3423, %v3419
    %v3476 = vpack.c.b16 %v3428, %v3424
    %v3477 = vpack.c.b16 %v3429, %v3425
    %v3478 = vpack.c.b16 %v3430, %v3426
    %v3479 = vpack.c.b16 %v3431, %v3427
    %v3480 = vpack.c.b16 %v3436, %v3432
    %v3481 = vpack.c.b16 %v3437, %v3433
    %v3482 = vpack.c.b16 %v3438, %v3434
    %v3483 = vpack.c.b16 %v3439, %v3435
    %v3484 = vpack.c.b16 %v3444, %v3440
    %v3485 = vpack.c.b16 %v3445, %v3441
    %v3486 = vpack.c.b16 %v3446, %v3442
    %v3487 = vpack.c.b16 %v3447, %v3443
    %v3488 = vpack.c.b16 %v3452, %v3448
    %v3489 = vpack.c.b16 %v3453, %v3449
    %v3490 = vpack.c.b16 %v3454, %v3450
    %v3491 = vpack.c.b16 %v3455, %v3451
    %v3492 = vpack.c.b16 %v3460, %v3456
    %v3493 = vpack.c.b16 %v3461, %v3457
    %v3494 = vpack.c.b16 %v3462, %v3458
    %v3495 = vpack.c.b16 %v3463, %v3459
    %3528 = vmatpush.bf16.msra.mxu0 %v3492
    %3529 = vmatpush.bf16.msra.mxu0 %v3488
    %3530 = vmatpush.bf16.msra.mxu0 %v3484
    %3531 = vmatpush.bf16.msra.mxu0 %v3480
    %3532 = vmatpush.bf16.msra.mxu0 %v3476
    %3533 = vmatpush.bf16.msra.mxu0 %v3472
    %3534 = vmatpush.bf16.msra.mxu0 %v3468
    %3535 = vmatpush.bf16.msra.mxu0 %v3464
    %3536 = vmatmul.bf16.gmra.mxu0 %v3335
    %v3537 = vpop.f32.mrf.mxu0
    %v3538 = vadd.f32 0.0, %v3537
    %v3539 = vpop.f32.mrf.mxu0
    %3540 = vdwg.mxu0
    %3541 = vmatpush.bf16.msra.mxu0 %v3493
    %3542 = vmatpush.bf16.msra.mxu0 %v3489
    %3543 = vmatpush.bf16.msra.mxu0 %v3485
    %3544 = vmatpush.bf16.msra.mxu0 %v3481
    %3545 = vmatpush.bf16.msra.mxu0 %v3477
    %3546 = vmatpush.bf16.msra.mxu0 %v3473
    %3547 = vmatpush.bf16.msra.mxu0 %v3469
    %3548 = vmatpush.bf16.msra.mxu0 %v3465
    %3549 = vmatmul.bf16.gmra.mxu0 %v3335
    %v3550 = vpop.f32.mrf.mxu0
    %v3551 = vadd.f32 0.0, %v3550
    %v3552 = vpop.f32.mrf.mxu0
    %3553 = vdwg.mxu0
    %3554 = vmatpush.bf16.msra.mxu0 %v3494
    %3555 = vmatpush.bf16.msra.mxu0 %v3490
    %3556 = vmatpush.bf16.msra.mxu0 %v3486
    %3557 = vmatpush.bf16.msra.mxu0 %v3482
    %3558 = vmatpush.bf16.msra.mxu0 %v3478
    %3559 = vmatpush.bf16.msra.mxu0 %v3474
    %3560 = vmatpush.bf16.msra.mxu0 %v3470
    %3561 = vmatpush.bf16.msra.mxu0 %v3466
    %3562 = vmatmul.bf16.gmra.mxu0 %v3335
    %v3563 = vpop.f32.mrf.mxu0
    %v3564 = vadd.f32 0.0, %v3563
    %v3565 = vpop.f32.mrf.mxu0
    %3566 = vdwg.mxu0
    %3567 = vmatpush.bf16.msra.mxu0 %v3495
    %3568 = vmatpush.bf16.msra.mxu0 %v3491
    %3569 = vmatpush.bf16.msra.mxu0 %v3487
    %3570 = vmatpush.bf16.msra.mxu0 %v3483
    %3571 = vmatpush.bf16.msra.mxu0 %v3479
    %3572 = vmatpush.bf16.msra.mxu0 %v3475
    %3573 = vmatpush.bf16.msra.mxu0 %v3471
    %3574 = vmatpush.bf16.msra.mxu0 %v3467
    %3575 = vmatmul.bf16.gmra.mxu0 %v3335
    %v3576 = vpop.f32.mrf.mxu0
    %v3577 = vadd.f32 0.0, %v3576
    %v3578 = vpop.f32.mrf.mxu0
    %3579 = vdwg.mxu0
    %v3580 = vadd.f32 %v3331, %v3538
    %v3581 = vadd.f32 %v3332, %v3551
    %v3582 = vadd.f32 %v3333, %v3564
    %v3583 = vadd.f32 %v3334, %v3577
    %v3584 = vxor.u32 %v3580, 2147483648
    %v3585 = vmul.f32 %v3584, 1.442695
    %v3586 = vpow.pop %v3585
    %v3587 = vadd.f32 %v3586, 1.0
    %v3588 = vrcp.pop %v3587
    %v3589 = vmul.f32 %v3587, %v3588
    %v3590 = vsub.f32 1.0, %v3589
    %v3591 = vmul.f32 %v3588, %v3590
    %v3592 = vadd.f32 %v3588, %v3591
    %vm3593 = vweird.f32 %v3587
    %vm3594 = vweird.f32 %v3588
    %vm3595 = vmor %vm3593, %vm3594
    %v3596 = vsel %vm3595, %v3588, %v3592
    %v3597 = vand.u32 2147483647, %v3587
    %vm3598 = vcmp.eq.f32.partialorder %v3597, 8.507059e+37
    %v3599 = vand.u32 %v3587, 2147483648
    %v3600 = vor.u32 1.1754944e-38, %v3599
    %v3601 = vsel %vm3598, %v3600, %v3596
    %v3602 = vmul.f32 1.0, %v3601
    %v3603 = vxor.u32 %v3581, 2147483648
    %v3604 = vmul.f32 %v3603, 1.442695
    %v3605 = vpow.pop %v3604
    %v3606 = vadd.f32 %v3605, 1.0
    %v3607 = vrcp.pop %v3606
    %v3608 = vmul.f32 %v3606, %v3607
    %v3609 = vsub.f32 1.0, %v3608
    %v3610 = vmul.f32 %v3607, %v3609
    %v3611 = vadd.f32 %v3607, %v3610
    %vm3612 = vweird.f32 %v3606
    %vm3613 = vweird.f32 %v3607
    %vm3614 = vmor %vm3612, %vm3613
    %v3615 = vsel %vm3614, %v3607, %v3611
    %v3616 = vand.u32 2147483647, %v3606
    %vm3617 = vcmp.eq.f32.partialorder %v3616, 8.507059e+37
    %v3618 = vand.u32 %v3606, 2147483648
    %v3619 = vor.u32 1.1754944e-38, %v3618
    %v3620 = vsel %vm3617, %v3619, %v3615
    %v3621 = vmul.f32 1.0, %v3620
    %v3622 = vtanh.pop %v3582
    %v3623 = vxor.u32 %v3583, 2147483648
    %v3624 = vmul.f32 %v3623, 1.442695
    %v3625 = vpow.pop %v3624
    %v3626 = vadd.f32 %v3625, 1.0
    %v3627 = vrcp.pop %v3626
    %v3628 = vmul.f32 %v3626, %v3627
    %v3629 = vsub.f32 1.0, %v3628
    %v3630 = vmul.f32 %v3627, %v3629
    %v3631 = vadd.f32 %v3627, %v3630
    %vm3632 = vweird.f32 %v3626
    %vm3633 = vweird.f32 %v3627
    %vm3634 = vmor %vm3632, %vm3633
    %v3635 = vsel %vm3634, %v3627, %v3631
    %v3636 = vand.u32 2147483647, %v3626
    %vm3637 = vcmp.eq.f32.partialorder %v3636, 8.507059e+37
    %v3638 = vand.u32 %v3626, 2147483648
    %v3639 = vor.u32 1.1754944e-38, %v3638
    %v3640 = vsel %vm3637, %v3639, %v3635
    %v3641 = vmul.f32 1.0, %v3640
    %v3642 = vmul.f32 %v3621, %v3327
    %v3643 = vmul.f32 %v3602, %v3622
    %v3644 = vadd.f32 %v3642, %v3643
    %v3645 = vtanh.pop %v3644
    %v3646 = vmul.f32 %v3641, %v3645
    %3647 = vst [vmem:[#allocation2 + $0x48] sm:$0xff] %v3646
    %v3648 = vld [vmem:[#allocation3 + $0x140] sm:$0xff]
    %v3649 = vld [vmem:[#allocation3 + $0x148] sm:$0xff]
    %v3650 = vld [vmem:[#allocation3 + $0x150] sm:$0xff]
    %v3651 = vld [vmem:[#allocation3 + $0x158] sm:$0xff]
    %v3652 = vpack.c.bf16 %v3646, %v3646
    %v3653 = vld [vmem:[%s2] sm:$0xff]
    %v3654 = vld [vmem:[%s2 + $0x8] sm:$0xff]
    %v3655 = vld [vmem:[%s2 + $0x10] sm:$0xff]
    %v3656 = vld [vmem:[%s2 + $0x18] sm:$0xff]
    %v3657 = vld [vmem:[%s2 + $0x20] sm:$0xff]
    %v3658 = vld [vmem:[%s2 + $0x28] sm:$0xff]
    %v3659 = vld [vmem:[%s2 + $0x30] sm:$0xff]
    %v3660 = vld [vmem:[%s2 + $0x38] sm:$0xff]
    %v3661 = vld [vmem:[%s2 + $0x40] sm:$0xff]
    %v3662 = vld [vmem:[%s2 + $0x48] sm:$0xff]
    %v3663 = vld [vmem:[%s2 + $0x50] sm:$0xff]
    %v3664 = vld [vmem:[%s2 + $0x58] sm:$0xff]
    %v3665 = vld [vmem:[%s2 + $0x60] sm:$0xff]
    %v3666 = vld [vmem:[%s2 + $0x68] sm:$0xff]
    %v3667 = vld [vmem:[%s2 + $0x70] sm:$0xff]
    %v3668 = vld [vmem:[%s2 + $0x78] sm:$0xff]
    %v3669 = vld [vmem:[%s2 + $0x80] sm:$0xff]
    %v3670 = vld [vmem:[%s2 + $0x88] sm:$0xff]
    %v3671 = vld [vmem:[%s2 + $0x90] sm:$0xff]
    %v3672 = vld [vmem:[%s2 + $0x98] sm:$0xff]
    %v3673 = vld [vmem:[%s2 + $0xa0] sm:$0xff]
    %v3674 = vld [vmem:[%s2 + $0xa8] sm:$0xff]
    %v3675 = vld [vmem:[%s2 + $0xb0] sm:$0xff]
    %v3676 = vld [vmem:[%s2 + $0xb8] sm:$0xff]
    %v3677 = vld [vmem:[%s2 + $0xc0] sm:$0xff]
    %v3678 = vld [vmem:[%s2 + $0xc8] sm:$0xff]
    %v3679 = vld [vmem:[%s2 + $0xd0] sm:$0xff]
    %v3680 = vld [vmem:[%s2 + $0xd8] sm:$0xff]
    %v3681 = vld [vmem:[%s2 + $0xe0] sm:$0xff]
    %v3682 = vld [vmem:[%s2 + $0xe8] sm:$0xff]
    %v3683 = vld [vmem:[%s2 + $0xf0] sm:$0xff]
    %v3684 = vld [vmem:[%s2 + $0xf8] sm:$0xff]
    %v3717 = vunpack.c.l.b16 %v3653
    %v3718 = vunpack.c.h.b16 %v3653
    %v3719 = vunpack.c.l.b16 %v3654
    %v3720 = vunpack.c.h.b16 %v3654
    %v3721 = vunpack.c.l.b16 %v3655
    %v3722 = vunpack.c.h.b16 %v3655
    %v3723 = vunpack.c.l.b16 %v3656
    %v3724 = vunpack.c.h.b16 %v3656
    %v3725 = vunpack.c.l.b16 %v3657
    %v3726 = vunpack.c.h.b16 %v3657
    %v3727 = vunpack.c.l.b16 %v3658
    %v3728 = vunpack.c.h.b16 %v3658
    %v3729 = vunpack.c.l.b16 %v3659
    %v3730 = vunpack.c.h.b16 %v3659
    %v3731 = vunpack.c.l.b16 %v3660
    %v3732 = vunpack.c.h.b16 %v3660
    %v3733 = vunpack.c.l.b16 %v3661
    %v3734 = vunpack.c.h.b16 %v3661
    %v3735 = vunpack.c.l.b16 %v3662
    %v3736 = vunpack.c.h.b16 %v3662
    %v3737 = vunpack.c.l.b16 %v3663
    %v3738 = vunpack.c.h.b16 %v3663
    %v3739 = vunpack.c.l.b16 %v3664
    %v3740 = vunpack.c.h.b16 %v3664
    %v3741 = vunpack.c.l.b16 %v3665
    %v3742 = vunpack.c.h.b16 %v3665
    %v3743 = vunpack.c.l.b16 %v3666
    %v3744 = vunpack.c.h.b16 %v3666
    %v3745 = vunpack.c.l.b16 %v3667
    %v3746 = vunpack.c.h.b16 %v3667
    %v3747 = vunpack.c.l.b16 %v3668
    %v3748 = vunpack.c.h.b16 %v3668
    %v3749 = vunpack.c.l.b16 %v3669
    %v3750 = vunpack.c.h.b16 %v3669
    %v3751 = vunpack.c.l.b16 %v3670
    %v3752 = vunpack.c.h.b16 %v3670
    %v3753 = vunpack.c.l.b16 %v3671
    %v3754 = vunpack.c.h.b16 %v3671
    %v3755 = vunpack.c.l.b16 %v3672
    %v3756 = vunpack.c.h.b16 %v3672
    %v3757 = vunpack.c.l.b16 %v3673
    %v3758 = vunpack.c.h.b16 %v3673
    %v3759 = vunpack.c.l.b16 %v3674
    %v3760 = vunpack.c.h.b16 %v3674
    %v3761 = vunpack.c.l.b16 %v3675
    %v3762 = vunpack.c.h.b16 %v3675
    %v3763 = vunpack.c.l.b16 %v3676
    %v3764 = vunpack.c.h.b16 %v3676
    %v3765 = vunpack.c.l.b16 %v3677
    %v3766 = vunpack.c.h.b16 %v3677
    %v3767 = vunpack.c.l.b16 %v3678
    %v3768 = vunpack.c.h.b16 %v3678
    %v3769 = vunpack.c.l.b16 %v3679
    %v3770 = vunpack.c.h.b16 %v3679
    %v3771 = vunpack.c.l.b16 %v3680
    %v3772 = vunpack.c.h.b16 %v3680
    %v3773 = vunpack.c.l.b16 %v3681
    %v3774 = vunpack.c.h.b16 %v3681
    %v3775 = vunpack.c.l.b16 %v3682
    %v3776 = vunpack.c.h.b16 %v3682
    %v3777 = vunpack.c.l.b16 %v3683
    %v3778 = vunpack.c.h.b16 %v3683
    %v3779 = vunpack.c.l.b16 %v3684
    %v3780 = vunpack.c.h.b16 %v3684
    %v3781 = vpack.c.b16 %v3721, %v3717
    %v3782 = vpack.c.b16 %v3722, %v3718
    %v3783 = vpack.c.b16 %v3723, %v3719
    %v3784 = vpack.c.b16 %v3724, %v3720
    %v3785 = vpack.c.b16 %v3729, %v3725
    %v3786 = vpack.c.b16 %v3730, %v3726
    %v3787 = vpack.c.b16 %v3731, %v3727
    %v3788 = vpack.c.b16 %v3732, %v3728
    %v3789 = vpack.c.b16 %v3737, %v3733
    %v3790 = vpack.c.b16 %v3738, %v3734
    %v3791 = vpack.c.b16 %v3739, %v3735
    %v3792 = vpack.c.b16 %v3740, %v3736
    %v3793 = vpack.c.b16 %v3745, %v3741
    %v3794 = vpack.c.b16 %v3746, %v3742
    %v3795 = vpack.c.b16 %v3747, %v3743
    %v3796 = vpack.c.b16 %v3748, %v3744
    %v3797 = vpack.c.b16 %v3753, %v3749
    %v3798 = vpack.c.b16 %v3754, %v3750
    %v3799 = vpack.c.b16 %v3755, %v3751
    %v3800 = vpack.c.b16 %v3756, %v3752
    %v3801 = vpack.c.b16 %v3761, %v3757
    %v3802 = vpack.c.b16 %v3762, %v3758
    %v3803 = vpack.c.b16 %v3763, %v3759
    %v3804 = vpack.c.b16 %v3764, %v3760
    %v3805 = vpack.c.b16 %v3769, %v3765
    %v3806 = vpack.c.b16 %v3770, %v3766
    %v3807 = vpack.c.b16 %v3771, %v3767
    %v3808 = vpack.c.b16 %v3772, %v3768
    %v3809 = vpack.c.b16 %v3777, %v3773
    %v3810 = vpack.c.b16 %v3778, %v3774
    %v3811 = vpack.c.b16 %v3779, %v3775
    %v3812 = vpack.c.b16 %v3780, %v3776
    %3845 = vmatpush.bf16.msra.mxu0 %v3809
    %3846 = vmatpush.bf16.msra.mxu0 %v3805
    %3847 = vmatpush.bf16.msra.mxu0 %v3801
    %3848 = vmatpush.bf16.msra.mxu0 %v3797
    %3849 = vmatpush.bf16.msra.mxu0 %v3793
    %3850 = vmatpush.bf16.msra.mxu0 %v3789
    %3851 = vmatpush.bf16.msra.mxu0 %v3785
    %3852 = vmatpush.bf16.msra.mxu0 %v3781
    %3853 = vmatmul.bf16.gmra.mxu0 %v3652
    %v3854 = vpop.f32.mrf.mxu0
    %v3855 = vadd.f32 0.0, %v3854
    %v3856 = vpop.f32.mrf.mxu0
    %3857 = vdwg.mxu0
    %3858 = vmatpush.bf16.msra.mxu0 %v3810
    %3859 = vmatpush.bf16.msra.mxu0 %v3806
    %3860 = vmatpush.bf16.msra.mxu0 %v3802
    %3861 = vmatpush.bf16.msra.mxu0 %v3798
    %3862 = vmatpush.bf16.msra.mxu0 %v3794
    %3863 = vmatpush.bf16.msra.mxu0 %v3790
    %3864 = vmatpush.bf16.msra.mxu0 %v3786
    %3865 = vmatpush.bf16.msra.mxu0 %v3782
    %3866 = vmatmul.bf16.gmra.mxu0 %v3652
    %v3867 = vpop.f32.mrf.mxu0
    %v3868 = vadd.f32 0.0, %v3867
    %v3869 = vpop.f32.mrf.mxu0
    %3870 = vdwg.mxu0
    %3871 = vmatpush.bf16.msra.mxu0 %v3811
    %3872 = vmatpush.bf16.msra.mxu0 %v3807
    %3873 = vmatpush.bf16.msra.mxu0 %v3803
    %3874 = vmatpush.bf16.msra.mxu0 %v3799
    %3875 = vmatpush.bf16.msra.mxu0 %v3795
    %3876 = vmatpush.bf16.msra.mxu0 %v3791
    %3877 = vmatpush.bf16.msra.mxu0 %v3787
    %3878 = vmatpush.bf16.msra.mxu0 %v3783
    %3879 = vmatmul.bf16.gmra.mxu0 %v3652
    %v3880 = vpop.f32.mrf.mxu0
    %v3881 = vadd.f32 0.0, %v3880
    %v3882 = vpop.f32.mrf.mxu0
    %3883 = vdwg.mxu0
    %3884 = vmatpush.bf16.msra.mxu0 %v3812
    %3885 = vmatpush.bf16.msra.mxu0 %v3808
    %3886 = vmatpush.bf16.msra.mxu0 %v3804
    %3887 = vmatpush.bf16.msra.mxu0 %v3800
    %3888 = vmatpush.bf16.msra.mxu0 %v3796
    %3889 = vmatpush.bf16.msra.mxu0 %v3792
    %3890 = vmatpush.bf16.msra.mxu0 %v3788
    %3891 = vmatpush.bf16.msra.mxu0 %v3784
    %3892 = vmatmul.bf16.gmra.mxu0 %v3652
    %v3893 = vpop.f32.mrf.mxu0
    %v3894 = vadd.f32 0.0, %v3893
    %v3895 = vpop.f32.mrf.mxu0
    %3896 = vdwg.mxu0
    %v3897 = vadd.f32 %v3648, %v3855
    %v3898 = vadd.f32 %v3649, %v3868
    %v3899 = vadd.f32 %v3650, %v3881
    %v3900 = vadd.f32 %v3651, %v3894
    %v3901 = vxor.u32 %v3897, 2147483648
    %v3902 = vmul.f32 %v3901, 1.442695
    %v3903 = vpow.pop %v3902
    %v3904 = vadd.f32 %v3903, 1.0
    %v3905 = vrcp.pop %v3904
    %v3906 = vmul.f32 %v3904, %v3905
    %v3907 = vsub.f32 1.0, %v3906
    %v3908 = vmul.f32 %v3905, %v3907
    %v3909 = vadd.f32 %v3905, %v3908
    %vm3910 = vweird.f32 %v3904
    %vm3911 = vweird.f32 %v3905
    %vm3912 = vmor %vm3910, %vm3911
    %v3913 = vsel %vm3912, %v3905, %v3909
    %v3914 = vand.u32 2147483647, %v3904
    %vm3915 = vcmp.eq.f32.partialorder %v3914, 8.507059e+37
    %v3916 = vand.u32 %v3904, 2147483648
    %v3917 = vor.u32 1.1754944e-38, %v3916
    %v3918 = vsel %vm3915, %v3917, %v3913
    %v3919 = vmul.f32 1.0, %v3918
    %v3920 = vxor.u32 %v3898, 2147483648
    %v3921 = vmul.f32 %v3920, 1.442695
    %v3922 = vpow.pop %v3921
    %v3923 = vadd.f32 %v3922, 1.0
    %v3924 = vrcp.pop %v3923
    %v3925 = vmul.f32 %v3923, %v3924
    %v3926 = vsub.f32 1.0, %v3925
    %v3927 = vmul.f32 %v3924, %v3926
    %v3928 = vadd.f32 %v3924, %v3927
    %vm3929 = vweird.f32 %v3923
    %vm3930 = vweird.f32 %v3924
    %vm3931 = vmor %vm3929, %vm3930
    %v3932 = vsel %vm3931, %v3924, %v3928
    %v3933 = vand.u32 2147483647, %v3923
    %vm3934 = vcmp.eq.f32.partialorder %v3933, 8.507059e+37
    %v3935 = vand.u32 %v3923, 2147483648
    %v3936 = vor.u32 1.1754944e-38, %v3935
    %v3937 = vsel %vm3934, %v3936, %v3932
    %v3938 = vmul.f32 1.0, %v3937
    %v3939 = vtanh.pop %v3899
    %v3940 = vxor.u32 %v3900, 2147483648
    %v3941 = vmul.f32 %v3940, 1.442695
    %v3942 = vpow.pop %v3941
    %v3943 = vadd.f32 %v3942, 1.0
    %v3944 = vrcp.pop %v3943
    %v3945 = vmul.f32 %v3943, %v3944
    %v3946 = vsub.f32 1.0, %v3945
    %v3947 = vmul.f32 %v3944, %v3946
    %v3948 = vadd.f32 %v3944, %v3947
    %vm3949 = vweird.f32 %v3943
    %vm3950 = vweird.f32 %v3944
    %vm3951 = vmor %vm3949, %vm3950
    %v3952 = vsel %vm3951, %v3944, %v3948
    %v3953 = vand.u32 2147483647, %v3943
    %vm3954 = vcmp.eq.f32.partialorder %v3953, 8.507059e+37
    %v3955 = vand.u32 %v3943, 2147483648
    %v3956 = vor.u32 1.1754944e-38, %v3955
    %v3957 = vsel %vm3954, %v3956, %v3952
    %v3958 = vmul.f32 1.0, %v3957
    %v3959 = vmul.f32 %v3938, %v3644
    %v3960 = vmul.f32 %v3919, %v3939
    %v3961 = vadd.f32 %v3959, %v3960
    %v3962 = vtanh.pop %v3961
    %v3963 = vmul.f32 %v3958, %v3962
    %3964 = vst [vmem:[#allocation2 + $0x50] sm:$0xff] %v3963
    %v3965 = vld [vmem:[#allocation3 + $0x160] sm:$0xff]
    %v3966 = vld [vmem:[#allocation3 + $0x168] sm:$0xff]
    %v3967 = vld [vmem:[#allocation3 + $0x170] sm:$0xff]
    %v3968 = vld [vmem:[#allocation3 + $0x178] sm:$0xff]
    %v3969 = vpack.c.bf16 %v3963, %v3963
    %v3970 = vld [vmem:[%s2] sm:$0xff]
    %v3971 = vld [vmem:[%s2 + $0x8] sm:$0xff]
    %v3972 = vld [vmem:[%s2 + $0x10] sm:$0xff]
    %v3973 = vld [vmem:[%s2 + $0x18] sm:$0xff]
    %v3974 = vld [vmem:[%s2 + $0x20] sm:$0xff]
    %v3975 = vld [vmem:[%s2 + $0x28] sm:$0xff]
    %v3976 = vld [vmem:[%s2 + $0x30] sm:$0xff]
    %v3977 = vld [vmem:[%s2 + $0x38] sm:$0xff]
    %v3978 = vld [vmem:[%s2 + $0x40] sm:$0xff]
    %v3979 = vld [vmem:[%s2 + $0x48] sm:$0xff]
    %v3980 = vld [vmem:[%s2 + $0x50] sm:$0xff]
    %v3981 = vld [vmem:[%s2 + $0x58] sm:$0xff]
    %v3982 = vld [vmem:[%s2 + $0x60] sm:$0xff]
    %v3983 = vld [vmem:[%s2 + $0x68] sm:$0xff]
    %v3984 = vld [vmem:[%s2 + $0x70] sm:$0xff]
    %v3985 = vld [vmem:[%s2 + $0x78] sm:$0xff]
    %v3986 = vld [vmem:[%s2 + $0x80] sm:$0xff]
    %v3987 = vld [vmem:[%s2 + $0x88] sm:$0xff]
    %v3988 = vld [vmem:[%s2 + $0x90] sm:$0xff]
    %v3989 = vld [vmem:[%s2 + $0x98] sm:$0xff]
    %v3990 = vld [vmem:[%s2 + $0xa0] sm:$0xff]
    %v3991 = vld [vmem:[%s2 + $0xa8] sm:$0xff]
    %v3992 = vld [vmem:[%s2 + $0xb0] sm:$0xff]
    %v3993 = vld [vmem:[%s2 + $0xb8] sm:$0xff]
    %v3994 = vld [vmem:[%s2 + $0xc0] sm:$0xff]
    %v3995 = vld [vmem:[%s2 + $0xc8] sm:$0xff]
    %v3996 = vld [vmem:[%s2 + $0xd0] sm:$0xff]
    %v3997 = vld [vmem:[%s2 + $0xd8] sm:$0xff]
    %v3998 = vld [vmem:[%s2 + $0xe0] sm:$0xff]
    %v3999 = vld [vmem:[%s2 + $0xe8] sm:$0xff]
    %v4000 = vld [vmem:[%s2 + $0xf0] sm:$0xff]
    %v4001 = vld [vmem:[%s2 + $0xf8] sm:$0xff]
    %v4034 = vunpack.c.l.b16 %v3970
    %v4035 = vunpack.c.h.b16 %v3970
    %v4036 = vunpack.c.l.b16 %v3971
    %v4037 = vunpack.c.h.b16 %v3971
    %v4038 = vunpack.c.l.b16 %v3972
    %v4039 = vunpack.c.h.b16 %v3972
    %v4040 = vunpack.c.l.b16 %v3973
    %v4041 = vunpack.c.h.b16 %v3973
    %v4042 = vunpack.c.l.b16 %v3974
    %v4043 = vunpack.c.h.b16 %v3974
    %v4044 = vunpack.c.l.b16 %v3975
    %v4045 = vunpack.c.h.b16 %v3975
    %v4046 = vunpack.c.l.b16 %v3976
    %v4047 = vunpack.c.h.b16 %v3976
    %v4048 = vunpack.c.l.b16 %v3977
    %v4049 = vunpack.c.h.b16 %v3977
    %v4050 = vunpack.c.l.b16 %v3978
    %v4051 = vunpack.c.h.b16 %v3978
    %v4052 = vunpack.c.l.b16 %v3979
    %v4053 = vunpack.c.h.b16 %v3979
    %v4054 = vunpack.c.l.b16 %v3980
    %v4055 = vunpack.c.h.b16 %v3980
    %v4056 = vunpack.c.l.b16 %v3981
    %v4057 = vunpack.c.h.b16 %v3981
    %v4058 = vunpack.c.l.b16 %v3982
    %v4059 = vunpack.c.h.b16 %v3982
    %v4060 = vunpack.c.l.b16 %v3983
    %v4061 = vunpack.c.h.b16 %v3983
    %v4062 = vunpack.c.l.b16 %v3984
    %v4063 = vunpack.c.h.b16 %v3984
    %v4064 = vunpack.c.l.b16 %v3985
    %v4065 = vunpack.c.h.b16 %v3985
    %v4066 = vunpack.c.l.b16 %v3986
    %v4067 = vunpack.c.h.b16 %v3986
    %v4068 = vunpack.c.l.b16 %v3987
    %v4069 = vunpack.c.h.b16 %v3987
    %v4070 = vunpack.c.l.b16 %v3988
    %v4071 = vunpack.c.h.b16 %v3988
    %v4072 = vunpack.c.l.b16 %v3989
    %v4073 = vunpack.c.h.b16 %v3989
    %v4074 = vunpack.c.l.b16 %v3990
    %v4075 = vunpack.c.h.b16 %v3990
    %v4076 = vunpack.c.l.b16 %v3991
    %v4077 = vunpack.c.h.b16 %v3991
    %v4078 = vunpack.c.l.b16 %v3992
    %v4079 = vunpack.c.h.b16 %v3992
    %v4080 = vunpack.c.l.b16 %v3993
    %v4081 = vunpack.c.h.b16 %v3993
    %v4082 = vunpack.c.l.b16 %v3994
    %v4083 = vunpack.c.h.b16 %v3994
    %v4084 = vunpack.c.l.b16 %v3995
    %v4085 = vunpack.c.h.b16 %v3995
    %v4086 = vunpack.c.l.b16 %v3996
    %v4087 = vunpack.c.h.b16 %v3996
    %v4088 = vunpack.c.l.b16 %v3997
    %v4089 = vunpack.c.h.b16 %v3997
    %v4090 = vunpack.c.l.b16 %v3998
    %v4091 = vunpack.c.h.b16 %v3998
    %v4092 = vunpack.c.l.b16 %v3999
    %v4093 = vunpack.c.h.b16 %v3999
    %v4094 = vunpack.c.l.b16 %v4000
    %v4095 = vunpack.c.h.b16 %v4000
    %v4096 = vunpack.c.l.b16 %v4001
    %v4097 = vunpack.c.h.b16 %v4001
    %v4098 = vpack.c.b16 %v4038, %v4034
    %v4099 = vpack.c.b16 %v4039, %v4035
    %v4100 = vpack.c.b16 %v4040, %v4036
    %v4101 = vpack.c.b16 %v4041, %v4037
    %v4102 = vpack.c.b16 %v4046, %v4042
    %v4103 = vpack.c.b16 %v4047, %v4043
    %v4104 = vpack.c.b16 %v4048, %v4044
    %v4105 = vpack.c.b16 %v4049, %v4045
    %v4106 = vpack.c.b16 %v4054, %v4050
    %v4107 = vpack.c.b16 %v4055, %v4051
    %v4108 = vpack.c.b16 %v4056, %v4052
    %v4109 = vpack.c.b16 %v4057, %v4053
    %v4110 = vpack.c.b16 %v4062, %v4058
    %v4111 = vpack.c.b16 %v4063, %v4059
    %v4112 = vpack.c.b16 %v4064, %v4060
    %v4113 = vpack.c.b16 %v4065, %v4061
    %v4114 = vpack.c.b16 %v4070, %v4066
    %v4115 = vpack.c.b16 %v4071, %v4067
    %v4116 = vpack.c.b16 %v4072, %v4068
    %v4117 = vpack.c.b16 %v4073, %v4069
    %v4118 = vpack.c.b16 %v4078, %v4074
    %v4119 = vpack.c.b16 %v4079, %v4075
    %v4120 = vpack.c.b16 %v4080, %v4076
    %v4121 = vpack.c.b16 %v4081, %v4077
    %v4122 = vpack.c.b16 %v4086, %v4082
    %v4123 = vpack.c.b16 %v4087, %v4083
    %v4124 = vpack.c.b16 %v4088, %v4084
    %v4125 = vpack.c.b16 %v4089, %v4085
    %v4126 = vpack.c.b16 %v4094, %v4090
    %v4127 = vpack.c.b16 %v4095, %v4091
    %v4128 = vpack.c.b16 %v4096, %v4092
    %v4129 = vpack.c.b16 %v4097, %v4093
    %4162 = vmatpush.bf16.msra.mxu0 %v4126
    %4163 = vmatpush.bf16.msra.mxu0 %v4122
    %4164 = vmatpush.bf16.msra.mxu0 %v4118
    %4165 = vmatpush.bf16.msra.mxu0 %v4114
    %4166 = vmatpush.bf16.msra.mxu0 %v4110
    %4167 = vmatpush.bf16.msra.mxu0 %v4106
    %4168 = vmatpush.bf16.msra.mxu0 %v4102
    %4169 = vmatpush.bf16.msra.mxu0 %v4098
    %4170 = vmatmul.bf16.gmra.mxu0 %v3969
    %v4171 = vpop.f32.mrf.mxu0
    %v4172 = vadd.f32 0.0, %v4171
    %v4173 = vpop.f32.mrf.mxu0
    %4174 = vdwg.mxu0
    %4175 = vmatpush.bf16.msra.mxu0 %v4127
    %4176 = vmatpush.bf16.msra.mxu0 %v4123
    %4177 = vmatpush.bf16.msra.mxu0 %v4119
    %4178 = vmatpush.bf16.msra.mxu0 %v4115
    %4179 = vmatpush.bf16.msra.mxu0 %v4111
    %4180 = vmatpush.bf16.msra.mxu0 %v4107
    %4181 = vmatpush.bf16.msra.mxu0 %v4103
    %4182 = vmatpush.bf16.msra.mxu0 %v4099
    %4183 = vmatmul.bf16.gmra.mxu0 %v3969
    %v4184 = vpop.f32.mrf.mxu0
    %v4185 = vadd.f32 0.0, %v4184
    %v4186 = vpop.f32.mrf.mxu0
    %4187 = vdwg.mxu0
    %4188 = vmatpush.bf16.msra.mxu0 %v4128
    %4189 = vmatpush.bf16.msra.mxu0 %v4124
    %4190 = vmatpush.bf16.msra.mxu0 %v4120
    %4191 = vmatpush.bf16.msra.mxu0 %v4116
    %4192 = vmatpush.bf16.msra.mxu0 %v4112
    %4193 = vmatpush.bf16.msra.mxu0 %v4108
    %4194 = vmatpush.bf16.msra.mxu0 %v4104
    %4195 = vmatpush.bf16.msra.mxu0 %v4100
    %4196 = vmatmul.bf16.gmra.mxu0 %v3969
    %v4197 = vpop.f32.mrf.mxu0
    %v4198 = vadd.f32 0.0, %v4197
    %v4199 = vpop.f32.mrf.mxu0
    %4200 = vdwg.mxu0
    %4201 = vmatpush.bf16.msra.mxu0 %v4129
    %4202 = vmatpush.bf16.msra.mxu0 %v4125
    %4203 = vmatpush.bf16.msra.mxu0 %v4121
    %4204 = vmatpush.bf16.msra.mxu0 %v4117
    %4205 = vmatpush.bf16.msra.mxu0 %v4113
    %4206 = vmatpush.bf16.msra.mxu0 %v4109
    %4207 = vmatpush.bf16.msra.mxu0 %v4105
    %4208 = vmatpush.bf16.msra.mxu0 %v4101
    %4209 = vmatmul.bf16.gmra.mxu0 %v3969
    %v4210 = vpop.f32.mrf.mxu0
    %v4211 = vadd.f32 0.0, %v4210
    %v4212 = vpop.f32.mrf.mxu0
    %4213 = vdwg.mxu0
    %v4214 = vadd.f32 %v3965, %v4172
    %v4215 = vadd.f32 %v3966, %v4185
    %v4216 = vadd.f32 %v3967, %v4198
    %v4217 = vadd.f32 %v3968, %v4211
    %v4218 = vxor.u32 %v4214, 2147483648
    %v4219 = vmul.f32 %v4218, 1.442695
    %v4220 = vpow.pop %v4219
    %v4221 = vadd.f32 %v4220, 1.0
    %v4222 = vrcp.pop %v4221
    %v4223 = vmul.f32 %v4221, %v4222
    %v4224 = vsub.f32 1.0, %v4223
    %v4225 = vmul.f32 %v4222, %v4224
    %v4226 = vadd.f32 %v4222, %v4225
    %vm4227 = vweird.f32 %v4221
    %vm4228 = vweird.f32 %v4222
    %vm4229 = vmor %vm4227, %vm4228
    %v4230 = vsel %vm4229, %v4222, %v4226
    %v4231 = vand.u32 2147483647, %v4221
    %vm4232 = vcmp.eq.f32.partialorder %v4231, 8.507059e+37
    %v4233 = vand.u32 %v4221, 2147483648
    %v4234 = vor.u32 1.1754944e-38, %v4233
    %v4235 = vsel %vm4232, %v4234, %v4230
    %v4236 = vmul.f32 1.0, %v4235
    %v4237 = vxor.u32 %v4215, 2147483648
    %v4238 = vmul.f32 %v4237, 1.442695
    %v4239 = vpow.pop %v4238
    %v4240 = vadd.f32 %v4239, 1.0
    %v4241 = vrcp.pop %v4240
    %v4242 = vmul.f32 %v4240, %v4241
    %v4243 = vsub.f32 1.0, %v4242
    %v4244 = vmul.f32 %v4241, %v4243
    %v4245 = vadd.f32 %v4241, %v4244
    %vm4246 = vweird.f32 %v4240
    %vm4247 = vweird.f32 %v4241
    %vm4248 = vmor %vm4246, %vm4247
    %v4249 = vsel %vm4248, %v4241, %v4245
    %v4250 = vand.u32 2147483647, %v4240
    %vm4251 = vcmp.eq.f32.partialorder %v4250, 8.507059e+37
    %v4252 = vand.u32 %v4240, 2147483648
    %v4253 = vor.u32 1.1754944e-38, %v4252
    %v4254 = vsel %vm4251, %v4253, %v4249
    %v4255 = vmul.f32 1.0, %v4254
    %v4256 = vtanh.pop %v4216
    %v4257 = vxor.u32 %v4217, 2147483648
    %v4258 = vmul.f32 %v4257, 1.442695
    %v4259 = vpow.pop %v4258
    %v4260 = vadd.f32 %v4259, 1.0
    %v4261 = vrcp.pop %v4260
    %v4262 = vmul.f32 %v4260, %v4261
    %v4263 = vsub.f32 1.0, %v4262
    %v4264 = vmul.f32 %v4261, %v4263
    %v4265 = vadd.f32 %v4261, %v4264
    %vm4266 = vweird.f32 %v4260
    %vm4267 = vweird.f32 %v4261
    %vm4268 = vmor %vm4266, %vm4267
    %v4269 = vsel %vm4268, %v4261, %v4265
    %v4270 = vand.u32 2147483647, %v4260
    %vm4271 = vcmp.eq.f32.partialorder %v4270, 8.507059e+37
    %v4272 = vand.u32 %v4260, 2147483648
    %v4273 = vor.u32 1.1754944e-38, %v4272
    %v4274 = vsel %vm4271, %v4273, %v4269
    %v4275 = vmul.f32 1.0, %v4274
    %v4276 = vmul.f32 %v4255, %v3961
    %v4277 = vmul.f32 %v4236, %v4256
    %v4278 = vadd.f32 %v4276, %v4277
    %v4279 = vtanh.pop %v4278
    %v4280 = vmul.f32 %v4275, %v4279
    %4281 = vst [vmem:[#allocation2 + $0x58] sm:$0xff] %v4280
    %4282 = vst [vmem:[#allocation4] sm:$0xff] %v4280
    %4283 = vst [vmem:[#allocation6] sm:$0xff] %v4278
    %v4284 = vld [vmem:[#allocation2] sm:$0xff]
    %v4285 = vld [vmem:[#allocation2 + $0x8] sm:$0xff]
    %v4286 = vld [vmem:[#allocation2 + $0x10] sm:$0xff]
    %v4287 = vld [vmem:[#allocation2 + $0x18] sm:$0xff]
    %v4288 = vld [vmem:[#allocation2 + $0x20] sm:$0xff]
    %v4289 = vld [vmem:[#allocation2 + $0x28] sm:$0xff]
    %v4290 = vld [vmem:[#allocation2 + $0x30] sm:$0xff]
    %v4291 = vld [vmem:[#allocation2 + $0x38] sm:$0xff]
    %v4292 = vld [vmem:[#allocation2 + $0x40] sm:$0xff]
    %v4293 = vld [vmem:[#allocation2 + $0x48] sm:$0xff]
    %v4294 = vld [vmem:[#allocation2 + $0x50] sm:$0xff]
    %v4295 = vld [vmem:[#allocation2 + $0x58] sm:$0xff]
    %v4296 = vpack.c.bf16 %v4285, %v4284
    %v4297 = vpack.c.bf16 %v4287, %v4286
    %v4298 = vpack.c.bf16 %v4289, %v4288
    %v4299 = vpack.c.bf16 %v4291, %v4290
    %v4300 = vpack.c.bf16 %v4293, %v4292
    %v4301 = vpack.c.bf16 %v4295, %v4294
    %s4302 = scalar_lea.vmem %s1, 256
    %v4303 = vld [vmem:[%s4302] sm:$0xff]
    %v4304 = vld [vmem:[%s4302 + $0x8] sm:$0xff]
    %v4305 = vld [vmem:[%s4302 + $0x10] sm:$0xff]
    %v4306 = vld [vmem:[%s4302 + $0x18] sm:$0xff]
    %v4307 = vld [vmem:[%s4302 + $0x20] sm:$0xff]
    %v4308 = vld [vmem:[%s4302 + $0x28] sm:$0xff]
    %v4309 = vld [vmem:[%s4302 + $0x30] sm:$0xff]
    %v4310 = vld [vmem:[%s4302 + $0x38] sm:$0xff]
    %v4311 = vld [vmem:[%s4302 + $0x40] sm:$0xff]
    %v4312 = vld [vmem:[%s4302 + $0x48] sm:$0xff]
    %v4313 = vld [vmem:[%s4302 + $0x50] sm:$0xff]
    %v4314 = vld [vmem:[%s4302 + $0x58] sm:$0xff]
    %v4315 = vld [vmem:[%s4302 + $0x60] sm:$0xff]
    %v4316 = vld [vmem:[%s4302 + $0x68] sm:$0xff]
    %v4317 = vld [vmem:[%s4302 + $0x70] sm:$0xff]
    %v4318 = vld [vmem:[%s4302 + $0x78] sm:$0xff]
    %v4319 = vld [vmem:[%s4302 + $0x80] sm:$0xff]
    %v4320 = vld [vmem:[%s4302 + $0x88] sm:$0xff]
    %v4321 = vld [vmem:[%s4302 + $0x90] sm:$0xff]
    %v4322 = vld [vmem:[%s4302 + $0x98] sm:$0xff]
    %v4323 = vld [vmem:[%s4302 + $0xa0] sm:$0xff]
    %v4324 = vld [vmem:[%s4302 + $0xa8] sm:$0xff]
    %v4325 = vld [vmem:[%s4302 + $0xb0] sm:$0xff]
    %v4326 = vld [vmem:[%s4302 + $0xb8] sm:$0xff]
    %v4327 = vld [vmem:[%s4302 + $0xc0] sm:$0xff]
    %v4328 = vld [vmem:[%s4302 + $0xc8] sm:$0xff]
    %v4329 = vld [vmem:[%s4302 + $0xd0] sm:$0xff]
    %v4330 = vld [vmem:[%s4302 + $0xd8] sm:$0xff]
    %v4331 = vld [vmem:[%s4302 + $0xe0] sm:$0xff]
    %v4332 = vld [vmem:[%s4302 + $0xe8] sm:$0xff]
    %v4333 = vld [vmem:[%s4302 + $0xf0] sm:$0xff]
    %v4334 = vld [vmem:[%s4302 + $0xf8] sm:$0xff]
    %s4335 = scalar_lea.vmem %s3, 4
    %v4336 = vld [vmem:[%s4335] sm:$0xf]
    %v4338 = vperm.slane %v4336, 0
    %v4339 = vperm.slane %v4336, 1
    %v4340 = vperm.slane %v4336, 2
    %v4341 = vperm.slane %v4336, 3
    %v4378 = vunpack.c.l.b16 %v4303
    %v4379 = vunpack.c.h.b16 %v4303
    %v4380 = vunpack.c.l.b16 %v4304
    %v4381 = vunpack.c.h.b16 %v4304
    %v4382 = vunpack.c.l.b16 %v4305
    %v4383 = vunpack.c.h.b16 %v4305
    %v4384 = vunpack.c.l.b16 %v4306
    %v4385 = vunpack.c.h.b16 %v4306
    %v4386 = vunpack.c.l.b16 %v4307
    %v4387 = vunpack.c.h.b16 %v4307
    %v4388 = vunpack.c.l.b16 %v4308
    %v4389 = vunpack.c.h.b16 %v4308
    %v4390 = vunpack.c.l.b16 %v4309
    %v4391 = vunpack.c.h.b16 %v4309
    %v4392 = vunpack.c.l.b16 %v4310
    %v4393 = vunpack.c.h.b16 %v4310
    %v4394 = vunpack.c.l.b16 %v4311
    %v4395 = vunpack.c.h.b16 %v4311
    %v4396 = vunpack.c.l.b16 %v4312
    %v4397 = vunpack.c.h.b16 %v4312
    %v4398 = vunpack.c.l.b16 %v4313
    %v4399 = vunpack.c.h.b16 %v4313
    %v4400 = vunpack.c.l.b16 %v4314
    %v4401 = vunpack.c.h.b16 %v4314
    %v4402 = vunpack.c.l.b16 %v4315
    %v4403 = vunpack.c.h.b16 %v4315
    %v4404 = vunpack.c.l.b16 %v4316
    %v4405 = vunpack.c.h.b16 %v4316
    %v4406 = vunpack.c.l.b16 %v4317
    %v4407 = vunpack.c.h.b16 %v4317
    %v4408 = vunpack.c.l.b16 %v4318
    %v4409 = vunpack.c.h.b16 %v4318
    %v4410 = vunpack.c.l.b16 %v4319
    %v4411 = vunpack.c.h.b16 %v4319
    %v4412 = vunpack.c.l.b16 %v4320
    %v4413 = vunpack.c.h.b16 %v4320
    %v4414 = vunpack.c.l.b16 %v4321
    %v4415 = vunpack.c.h.b16 %v4321
    %v4416 = vunpack.c.l.b16 %v4322
    %v4417 = vunpack.c.h.b16 %v4322
    %v4418 = vunpack.c.l.b16 %v4323
    %v4419 = vunpack.c.h.b16 %v4323
    %v4420 = vunpack.c.l.b16 %v4324
    %v4421 = vunpack.c.h.b16 %v4324
    %v4422 = vunpack.c.l.b16 %v4325
    %v4423 = vunpack.c.h.b16 %v4325
    %v4424 = vunpack.c.l.b16 %v4326
    %v4425 = vunpack.c.h.b16 %v4326
    %v4426 = vunpack.c.l.b16 %v4327
    %v4427 = vunpack.c.h.b16 %v4327
    %v4428 = vunpack.c.l.b16 %v4328
    %v4429 = vunpack.c.h.b16 %v4328
    %v4430 = vunpack.c.l.b16 %v4329
    %v4431 = vunpack.c.h.b16 %v4329
    %v4432 = vunpack.c.l.b16 %v4330
    %v4433 = vunpack.c.h.b16 %v4330
    %v4434 = vunpack.c.l.b16 %v4331
    %v4435 = vunpack.c.h.b16 %v4331
    %v4436 = vunpack.c.l.b16 %v4332
    %v4437 = vunpack.c.h.b16 %v4332
    %v4438 = vunpack.c.l.b16 %v4333
    %v4439 = vunpack.c.h.b16 %v4333
    %v4440 = vunpack.c.l.b16 %v4334
    %v4441 = vunpack.c.h.b16 %v4334
    %v4442 = vpack.c.b16 %v4382, %v4378
    %v4443 = vpack.c.b16 %v4383, %v4379
    %v4444 = vpack.c.b16 %v4384, %v4380
    %v4445 = vpack.c.b16 %v4385, %v4381
    %v4446 = vpack.c.b16 %v4390, %v4386
    %v4447 = vpack.c.b16 %v4391, %v4387
    %v4448 = vpack.c.b16 %v4392, %v4388
    %v4449 = vpack.c.b16 %v4393, %v4389
    %v4450 = vpack.c.b16 %v4398, %v4394
    %v4451 = vpack.c.b16 %v4399, %v4395
    %v4452 = vpack.c.b16 %v4400, %v4396
    %v4453 = vpack.c.b16 %v4401, %v4397
    %v4454 = vpack.c.b16 %v4406, %v4402
    %v4455 = vpack.c.b16 %v4407, %v4403
    %v4456 = vpack.c.b16 %v4408, %v4404
    %v4457 = vpack.c.b16 %v4409, %v4405
    %v4458 = vpack.c.b16 %v4414, %v4410
    %v4459 = vpack.c.b16 %v4415, %v4411
    %v4460 = vpack.c.b16 %v4416, %v4412
    %v4461 = vpack.c.b16 %v4417, %v4413
    %v4462 = vpack.c.b16 %v4422, %v4418
    %v4463 = vpack.c.b16 %v4423, %v4419
    %v4464 = vpack.c.b16 %v4424, %v4420
    %v4465 = vpack.c.b16 %v4425, %v4421
    %v4466 = vpack.c.b16 %v4430, %v4426
    %v4467 = vpack.c.b16 %v4431, %v4427
    %v4468 = vpack.c.b16 %v4432, %v4428
    %v4469 = vpack.c.b16 %v4433, %v4429
    %v4470 = vpack.c.b16 %v4438, %v4434
    %v4471 = vpack.c.b16 %v4439, %v4435
    %v4472 = vpack.c.b16 %v4440, %v4436
    %v4473 = vpack.c.b16 %v4441, %v4437
    %4506 = vmatpush.bf16.msra.mxu0 %v4470
    %4507 = vmatpush.bf16.msra.mxu0 %v4466
    %4508 = vmatpush.bf16.msra.mxu0 %v4462
    %4509 = vmatpush.bf16.msra.mxu0 %v4458
    %4510 = vmatpush.bf16.msra.mxu0 %v4454
    %4511 = vmatpush.bf16.msra.mxu0 %v4450
    %4512 = vmatpush.bf16.msra.mxu0 %v4446
    %4513 = vmatpush.bf16.msra.mxu0 %v4442
    %4514 = vmatmul.bf16.gmra.mxu0 %v4296
    %v4515 = vpop.f32.mrf.mxu0
    %v4516 = vadd.f32 %v4338, %v4515
    %v4517 = vpop.f32.mrf.mxu0
    %v4518 = vadd.f32 %v4338, %v4517
    %4519 = vmatmul.bf16.gmra.mxu0 %v4297
    %v4520 = vpop.f32.mrf.mxu0
    %v4521 = vadd.f32 %v4338, %v4520
    %v4522 = vpop.f32.mrf.mxu0
    %v4523 = vadd.f32 %v4338, %v4522
    %4524 = vmatmul.bf16.gmra.mxu0 %v4298
    %v4525 = vpop.f32.mrf.mxu0
    %v4526 = vadd.f32 %v4338, %v4525
    %v4527 = vpop.f32.mrf.mxu0
    %v4528 = vadd.f32 %v4338, %v4527
    %4529 = vmatmul.bf16.gmra.mxu0 %v4299
    %v4530 = vpop.f32.mrf.mxu0
    %v4531 = vadd.f32 %v4338, %v4530
    %v4532 = vpop.f32.mrf.mxu0
    %v4533 = vadd.f32 %v4338, %v4532
    %4534 = vmatmul.bf16.gmra.mxu0 %v4300
    %v4535 = vpop.f32.mrf.mxu0
    %v4536 = vadd.f32 %v4338, %v4535
    %v4537 = vpop.f32.mrf.mxu0
    %v4538 = vadd.f32 %v4338, %v4537
    %4539 = vmatmul.bf16.gmra.mxu0 %v4301
    %v4540 = vpop.f32.mrf.mxu0
    %v4541 = vadd.f32 %v4338, %v4540
    %v4542 = vpop.f32.mrf.mxu0
    %v4543 = vadd.f32 %v4338, %v4542
    %4544 = vdwg.mxu0
    %4545 = vmatpush.bf16.msra.mxu0 %v4471
    %4546 = vmatpush.bf16.msra.mxu0 %v4467
    %4547 = vmatpush.bf16.msra.mxu0 %v4463
    %4548 = vmatpush.bf16.msra.mxu0 %v4459
    %4549 = vmatpush.bf16.msra.mxu0 %v4455
    %4550 = vmatpush.bf16.msra.mxu0 %v4451
    %4551 = vmatpush.bf16.msra.mxu0 %v4447
    %4552 = vmatpush.bf16.msra.mxu0 %v4443
    %4553 = vmatmul.bf16.gmra.mxu0 %v4296
    %v4554 = vpop.f32.mrf.mxu0
    %v4555 = vadd.f32 %v4339, %v4554
    %v4556 = vpop.f32.mrf.mxu0
    %v4557 = vadd.f32 %v4339, %v4556
    %4558 = vmatmul.bf16.gmra.mxu0 %v4297
    %v4559 = vpop.f32.mrf.mxu0
    %v4560 = vadd.f32 %v4339, %v4559
    %v4561 = vpop.f32.mrf.mxu0
    %v4562 = vadd.f32 %v4339, %v4561
    %4563 = vmatmul.bf16.gmra.mxu0 %v4298
    %v4564 = vpop.f32.mrf.mxu0
    %v4565 = vadd.f32 %v4339, %v4564
    %v4566 = vpop.f32.mrf.mxu0
    %v4567 = vadd.f32 %v4339, %v4566
    %4568 = vmatmul.bf16.gmra.mxu0 %v4299
    %v4569 = vpop.f32.mrf.mxu0
    %v4570 = vadd.f32 %v4339, %v4569
    %v4571 = vpop.f32.mrf.mxu0
    %v4572 = vadd.f32 %v4339, %v4571
    %4573 = vmatmul.bf16.gmra.mxu0 %v4300
    %v4574 = vpop.f32.mrf.mxu0
    %v4575 = vadd.f32 %v4339, %v4574
    %v4576 = vpop.f32.mrf.mxu0
    %v4577 = vadd.f32 %v4339, %v4576
    %4578 = vmatmul.bf16.gmra.mxu0 %v4301
    %v4579 = vpop.f32.mrf.mxu0
    %v4580 = vadd.f32 %v4339, %v4579
    %v4581 = vpop.f32.mrf.mxu0
    %v4582 = vadd.f32 %v4339, %v4581
    %4583 = vdwg.mxu0
    %4584 = vmatpush.bf16.msra.mxu0 %v4472
    %4585 = vmatpush.bf16.msra.mxu0 %v4468
    %4586 = vmatpush.bf16.msra.mxu0 %v4464
    %4587 = vmatpush.bf16.msra.mxu0 %v4460
    %4588 = vmatpush.bf16.msra.mxu0 %v4456
    %4589 = vmatpush.bf16.msra.mxu0 %v4452
    %4590 = vmatpush.bf16.msra.mxu0 %v4448
    %4591 = vmatpush.bf16.msra.mxu0 %v4444
    %4592 = vmatmul.bf16.gmra.mxu0 %v4296
    %v4593 = vpop.f32.mrf.mxu0
    %v4594 = vadd.f32 %v4340, %v4593
    %v4595 = vpop.f32.mrf.mxu0
    %v4596 = vadd.f32 %v4340, %v4595
    %4597 = vmatmul.bf16.gmra.mxu0 %v4297
    %v4598 = vpop.f32.mrf.mxu0
    %v4599 = vadd.f32 %v4340, %v4598
    %v4600 = vpop.f32.mrf.mxu0
    %v4601 = vadd.f32 %v4340, %v4600
    %4602 = vmatmul.bf16.gmra.mxu0 %v4298
    %v4603 = vpop.f32.mrf.mxu0
    %v4604 = vadd.f32 %v4340, %v4603
    %v4605 = vpop.f32.mrf.mxu0
    %v4606 = vadd.f32 %v4340, %v4605
    %4607 = vmatmul.bf16.gmra.mxu0 %v4299
    %v4608 = vpop.f32.mrf.mxu0
    %v4609 = vadd.f32 %v4340, %v4608
    %v4610 = vpop.f32.mrf.mxu0
    %v4611 = vadd.f32 %v4340, %v4610
    %4612 = vmatmul.bf16.gmra.mxu0 %v4300
    %v4613 = vpop.f32.mrf.mxu0
    %v4614 = vadd.f32 %v4340, %v4613
    %v4615 = vpop.f32.mrf.mxu0
    %v4616 = vadd.f32 %v4340, %v4615
    %4617 = vmatmul.bf16.gmra.mxu0 %v4301
    %v4618 = vpop.f32.mrf.mxu0
    %v4619 = vadd.f32 %v4340, %v4618
    %v4620 = vpop.f32.mrf.mxu0
    %v4621 = vadd.f32 %v4340, %v4620
    %4622 = vdwg.mxu0
    %4623 = vmatpush.bf16.msra.mxu0 %v4473
    %4624 = vmatpush.bf16.msra.mxu0 %v4469
    %4625 = vmatpush.bf16.msra.mxu0 %v4465
    %4626 = vmatpush.bf16.msra.mxu0 %v4461
    %4627 = vmatpush.bf16.msra.mxu0 %v4457
    %4628 = vmatpush.bf16.msra.mxu0 %v4453
    %4629 = vmatpush.bf16.msra.mxu0 %v4449
    %4630 = vmatpush.bf16.msra.mxu0 %v4445
    %4631 = vmatmul.bf16.gmra.mxu0 %v4296
    %v4632 = vpop.f32.mrf.mxu0
    %v4633 = vadd.f32 %v4341, %v4632
    %v4634 = vpop.f32.mrf.mxu0
    %v4635 = vadd.f32 %v4341, %v4634
    %4636 = vmatmul.bf16.gmra.mxu0 %v4297
    %v4637 = vpop.f32.mrf.mxu0
    %v4638 = vadd.f32 %v4341, %v4637
    %v4639 = vpop.f32.mrf.mxu0
    %v4640 = vadd.f32 %v4341, %v4639
    %4641 = vmatmul.bf16.gmra.mxu0 %v4298
    %v4642 = vpop.f32.mrf.mxu0
    %v4643 = vadd.f32 %v4341, %v4642
    %v4644 = vpop.f32.mrf.mxu0
    %v4645 = vadd.f32 %v4341, %v4644
    %4646 = vmatmul.bf16.gmra.mxu0 %v4299
    %v4647 = vpop.f32.mrf.mxu0
    %v4648 = vadd.f32 %v4341, %v4647
    %v4649 = vpop.f32.mrf.mxu0
    %v4650 = vadd.f32 %v4341, %v4649
    %4651 = vmatmul.bf16.gmra.mxu0 %v4300
    %v4652 = vpop.f32.mrf.mxu0
    %v4653 = vadd.f32 %v4341, %v4652
    %v4654 = vpop.f32.mrf.mxu0
    %v4655 = vadd.f32 %v4341, %v4654
    %4656 = vmatmul.bf16.gmra.mxu0 %v4301
    %v4657 = vpop.f32.mrf.mxu0
    %v4658 = vadd.f32 %v4341, %v4657
    %v4659 = vpop.f32.mrf.mxu0
    %v4660 = vadd.f32 %v4341, %v4659
    %4661 = vdwg.mxu0
    %4662 = vst [vmem:[#allocation3] sm:$0xff] %v4516
    %4663 = vst [vmem:[#allocation3 + $0x8] sm:$0xff] %v4555
    %4664 = vst [vmem:[#allocation3 + $0x10] sm:$0xff] %v4594
    %4665 = vst [vmem:[#allocation3 + $0x18] sm:$0xff] %v4633
    %4666 = vst [vmem:[#allocation3 + $0x20] sm:$0xff] %v4518
    %4667 = vst [vmem:[#allocation3 + $0x28] sm:$0xff] %v4557
    %4668 = vst [vmem:[#allocation3 + $0x30] sm:$0xff] %v4596
    %4669 = vst [vmem:[#allocation3 + $0x38] sm:$0xff] %v4635
    %4670 = vst [vmem:[#allocation3 + $0x40] sm:$0xff] %v4521
    %4671 = vst [vmem:[#allocation3 + $0x48] sm:$0xff] %v4560
    %4672 = vst [vmem:[#allocation3 + $0x50] sm:$0xff] %v4599
    %4673 = vst [vmem:[#allocation3 + $0x58] sm:$0xff] %v4638
    %4674 = vst [vmem:[#allocation3 + $0x60] sm:$0xff] %v4523
    %4675 = vst [vmem:[#allocation3 + $0x68] sm:$0xff] %v4562
    %4676 = vst [vmem:[#allocation3 + $0x70] sm:$0xff] %v4601
    %4677 = vst [vmem:[#allocation3 + $0x78] sm:$0xff] %v4640
    %4678 = vst [vmem:[#allocation3 + $0x80] sm:$0xff] %v4526
    %4679 = vst [vmem:[#allocation3 + $0x88] sm:$0xff] %v4565
    %4680 = vst [vmem:[#allocation3 + $0x90] sm:$0xff] %v4604
    %4681 = vst [vmem:[#allocation3 + $0x98] sm:$0xff] %v4643
    %4682 = vst [vmem:[#allocation3 + $0xa0] sm:$0xff] %v4528
    %4683 = vst [vmem:[#allocation3 + $0xa8] sm:$0xff] %v4567
    %4684 = vst [vmem:[#allocation3 + $0xb0] sm:$0xff] %v4606
    %4685 = vst [vmem:[#allocation3 + $0xb8] sm:$0xff] %v4645
    %4686 = vst [vmem:[#allocation3 + $0xc0] sm:$0xff] %v4531
    %4687 = vst [vmem:[#allocation3 + $0xc8] sm:$0xff] %v4570
    %4688 = vst [vmem:[#allocation3 + $0xd0] sm:$0xff] %v4609
    %4689 = vst [vmem:[#allocation3 + $0xd8] sm:$0xff] %v4648
    %4690 = vst [vmem:[#allocation3 + $0xe0] sm:$0xff] %v4533
    %4691 = vst [vmem:[#allocation3 + $0xe8] sm:$0xff] %v4572
    %4692 = vst [vmem:[#allocation3 + $0xf0] sm:$0xff] %v4611
    %4693 = vst [vmem:[#allocation3 + $0xf8] sm:$0xff] %v4650
    %4694 = vst [vmem:[#allocation3 + $0x100] sm:$0xff] %v4536
    %4695 = vst [vmem:[#allocation3 + $0x108] sm:$0xff] %v4575
    %4696 = vst [vmem:[#allocation3 + $0x110] sm:$0xff] %v4614
    %4697 = vst [vmem:[#allocation3 + $0x118] sm:$0xff] %v4653
    %4698 = vst [vmem:[#allocation3 + $0x120] sm:$0xff] %v4538
    %4699 = vst [vmem:[#allocation3 + $0x128] sm:$0xff] %v4577
    %4700 = vst [vmem:[#allocation3 + $0x130] sm:$0xff] %v4616
    %4701 = vst [vmem:[#allocation3 + $0x138] sm:$0xff] %v4655
    %4702 = vst [vmem:[#allocation3 + $0x140] sm:$0xff] %v4541
    %4703 = vst [vmem:[#allocation3 + $0x148] sm:$0xff] %v4580
    %4704 = vst [vmem:[#allocation3 + $0x150] sm:$0xff] %v4619
    %4705 = vst [vmem:[#allocation3 + $0x158] sm:$0xff] %v4658
    %4706 = vst [vmem:[#allocation3 + $0x160] sm:$0xff] %v4543
    %4707 = vst [vmem:[#allocation3 + $0x168] sm:$0xff] %v4582
    %4708 = vst [vmem:[#allocation3 + $0x170] sm:$0xff] %v4621
    %4709 = vst [vmem:[#allocation3 + $0x178] sm:$0xff] %v4660
    %s4710 = scalar_lea.vmem %s4, 8
    %v4711 = vld [vmem:[%s4710] sm:$0xff]
    %s4712 = scalar_lea.vmem %s5, 8
    %v4713 = vld [vmem:[%s4712] sm:$0xff]
    %v4714 = vld [vmem:[#allocation3] sm:$0xff]
    %v4715 = vld [vmem:[#allocation3 + $0x8] sm:$0xff]
    %v4716 = vld [vmem:[#allocation3 + $0x10] sm:$0xff]
    %v4717 = vld [vmem:[#allocation3 + $0x18] sm:$0xff]
    %v4718 = vpack.c.bf16 %v4711, %v4711
    %s4719 = scalar_lea.vmem %s2, 256
    %v4720 = vld [vmem:[%s4719] sm:$0xff]
    %v4721 = vld [vmem:[%s4719 + $0x8] sm:$0xff]
    %v4722 = vld [vmem:[%s4719 + $0x10] sm:$0xff]
    %v4723 = vld [vmem:[%s4719 + $0x18] sm:$0xff]
    %v4724 = vld [vmem:[%s4719 + $0x20] sm:$0xff]
    %v4725 = vld [vmem:[%s4719 + $0x28] sm:$0xff]
    %v4726 = vld [vmem:[%s4719 + $0x30] sm:$0xff]
    %v4727 = vld [vmem:[%s4719 + $0x38] sm:$0xff]
    %v4728 = vld [vmem:[%s4719 + $0x40] sm:$0xff]
    %v4729 = vld [vmem:[%s4719 + $0x48] sm:$0xff]
    %v4730 = vld [vmem:[%s4719 + $0x50] sm:$0xff]
    %v4731 = vld [vmem:[%s4719 + $0x58] sm:$0xff]
    %v4732 = vld [vmem:[%s4719 + $0x60] sm:$0xff]
    %v4733 = vld [vmem:[%s4719 + $0x68] sm:$0xff]
    %v4734 = vld [vmem:[%s4719 + $0x70] sm:$0xff]
    %v4735 = vld [vmem:[%s4719 + $0x78] sm:$0xff]
    %v4736 = vld [vmem:[%s4719 + $0x80] sm:$0xff]
    %v4737 = vld [vmem:[%s4719 + $0x88] sm:$0xff]
    %v4738 = vld [vmem:[%s4719 + $0x90] sm:$0xff]
    %v4739 = vld [vmem:[%s4719 + $0x98] sm:$0xff]
    %v4740 = vld [vmem:[%s4719 + $0xa0] sm:$0xff]
    %v4741 = vld [vmem:[%s4719 + $0xa8] sm:$0xff]
    %v4742 = vld [vmem:[%s4719 + $0xb0] sm:$0xff]
    %v4743 = vld [vmem:[%s4719 + $0xb8] sm:$0xff]
    %v4744 = vld [vmem:[%s4719 + $0xc0] sm:$0xff]
    %v4745 = vld [vmem:[%s4719 + $0xc8] sm:$0xff]
    %v4746 = vld [vmem:[%s4719 + $0xd0] sm:$0xff]
    %v4747 = vld [vmem:[%s4719 + $0xd8] sm:$0xff]
    %v4748 = vld [vmem:[%s4719 + $0xe0] sm:$0xff]
    %v4749 = vld [vmem:[%s4719 + $0xe8] sm:$0xff]
    %v4750 = vld [vmem:[%s4719 + $0xf0] sm:$0xff]
    %v4751 = vld [vmem:[%s4719 + $0xf8] sm:$0xff]
    %v4784 = vunpack.c.l.b16 %v4720
    %v4785 = vunpack.c.h.b16 %v4720
    %v4786 = vunpack.c.l.b16 %v4721
    %v4787 = vunpack.c.h.b16 %v4721
    %v4788 = vunpack.c.l.b16 %v4722
    %v4789 = vunpack.c.h.b16 %v4722
    %v4790 = vunpack.c.l.b16 %v4723
    %v4791 = vunpack.c.h.b16 %v4723
    %v4792 = vunpack.c.l.b16 %v4724
    %v4793 = vunpack.c.h.b16 %v4724
    %v4794 = vunpack.c.l.b16 %v4725
    %v4795 = vunpack.c.h.b16 %v4725
    %v4796 = vunpack.c.l.b16 %v4726
    %v4797 = vunpack.c.h.b16 %v4726
    %v4798 = vunpack.c.l.b16 %v4727
    %v4799 = vunpack.c.h.b16 %v4727
    %v4800 = vunpack.c.l.b16 %v4728
    %v4801 = vunpack.c.h.b16 %v4728
    %v4802 = vunpack.c.l.b16 %v4729
    %v4803 = vunpack.c.h.b16 %v4729
    %v4804 = vunpack.c.l.b16 %v4730
    %v4805 = vunpack.c.h.b16 %v4730
    %v4806 = vunpack.c.l.b16 %v4731
    %v4807 = vunpack.c.h.b16 %v4731
    %v4808 = vunpack.c.l.b16 %v4732
    %v4809 = vunpack.c.h.b16 %v4732
    %v4810 = vunpack.c.l.b16 %v4733
    %v4811 = vunpack.c.h.b16 %v4733
    %v4812 = vunpack.c.l.b16 %v4734
    %v4813 = vunpack.c.h.b16 %v4734
    %v4814 = vunpack.c.l.b16 %v4735
    %v4815 = vunpack.c.h.b16 %v4735
    %v4816 = vunpack.c.l.b16 %v4736
    %v4817 = vunpack.c.h.b16 %v4736
    %v4818 = vunpack.c.l.b16 %v4737
    %v4819 = vunpack.c.h.b16 %v4737
    %v4820 = vunpack.c.l.b16 %v4738
    %v4821 = vunpack.c.h.b16 %v4738
    %v4822 = vunpack.c.l.b16 %v4739
    %v4823 = vunpack.c.h.b16 %v4739
    %v4824 = vunpack.c.l.b16 %v4740
    %v4825 = vunpack.c.h.b16 %v4740
    %v4826 = vunpack.c.l.b16 %v4741
    %v4827 = vunpack.c.h.b16 %v4741
    %v4828 = vunpack.c.l.b16 %v4742
    %v4829 = vunpack.c.h.b16 %v4742
    %v4830 = vunpack.c.l.b16 %v4743
    %v4831 = vunpack.c.h.b16 %v4743
    %v4832 = vunpack.c.l.b16 %v4744
    %v4833 = vunpack.c.h.b16 %v4744
    %v4834 = vunpack.c.l.b16 %v4745
    %v4835 = vunpack.c.h.b16 %v4745
    %v4836 = vunpack.c.l.b16 %v4746
    %v4837 = vunpack.c.h.b16 %v4746
    %v4838 = vunpack.c.l.b16 %v4747
    %v4839 = vunpack.c.h.b16 %v4747
    %v4840 = vunpack.c.l.b16 %v4748
    %v4841 = vunpack.c.h.b16 %v4748
    %v4842 = vunpack.c.l.b16 %v4749
    %v4843 = vunpack.c.h.b16 %v4749
    %v4844 = vunpack.c.l.b16 %v4750
    %v4845 = vunpack.c.h.b16 %v4750
    %v4846 = vunpack.c.l.b16 %v4751
    %v4847 = vunpack.c.h.b16 %v4751
    %v4848 = vpack.c.b16 %v4788, %v4784
    %v4849 = vpack.c.b16 %v4789, %v4785
    %v4850 = vpack.c.b16 %v4790, %v4786
    %v4851 = vpack.c.b16 %v4791, %v4787
    %v4852 = vpack.c.b16 %v4796, %v4792
    %v4853 = vpack.c.b16 %v4797, %v4793
    %v4854 = vpack.c.b16 %v4798, %v4794
    %v4855 = vpack.c.b16 %v4799, %v4795
    %v4856 = vpack.c.b16 %v4804, %v4800
    %v4857 = vpack.c.b16 %v4805, %v4801
    %v4858 = vpack.c.b16 %v4806, %v4802
    %v4859 = vpack.c.b16 %v4807, %v4803
    %v4860 = vpack.c.b16 %v4812, %v4808
    %v4861 = vpack.c.b16 %v4813, %v4809
    %v4862 = vpack.c.b16 %v4814, %v4810
    %v4863 = vpack.c.b16 %v4815, %v4811
    %v4864 = vpack.c.b16 %v4820, %v4816
    %v4865 = vpack.c.b16 %v4821, %v4817
    %v4866 = vpack.c.b16 %v4822, %v4818
    %v4867 = vpack.c.b16 %v4823, %v4819
    %v4868 = vpack.c.b16 %v4828, %v4824
    %v4869 = vpack.c.b16 %v4829, %v4825
    %v4870 = vpack.c.b16 %v4830, %v4826
    %v4871 = vpack.c.b16 %v4831, %v4827
    %v4872 = vpack.c.b16 %v4836, %v4832
    %v4873 = vpack.c.b16 %v4837, %v4833
    %v4874 = vpack.c.b16 %v4838, %v4834
    %v4875 = vpack.c.b16 %v4839, %v4835
    %v4876 = vpack.c.b16 %v4844, %v4840
    %v4877 = vpack.c.b16 %v4845, %v4841
    %v4878 = vpack.c.b16 %v4846, %v4842
    %v4879 = vpack.c.b16 %v4847, %v4843
    %4912 = vmatpush.bf16.msra.mxu0 %v4876
    %4913 = vmatpush.bf16.msra.mxu0 %v4872
    %4914 = vmatpush.bf16.msra.mxu0 %v4868
    %4915 = vmatpush.bf16.msra.mxu0 %v4864
    %4916 = vmatpush.bf16.msra.mxu0 %v4860
    %4917 = vmatpush.bf16.msra.mxu0 %v4856
    %4918 = vmatpush.bf16.msra.mxu0 %v4852
    %4919 = vmatpush.bf16.msra.mxu0 %v4848
    %4920 = vmatmul.bf16.gmra.mxu0 %v4718
    %v4921 = vpop.f32.mrf.mxu0
    %v4922 = vadd.f32 0.0, %v4921
    %v4923 = vpop.f32.mrf.mxu0
    %4924 = vdwg.mxu0
    %4925 = vmatpush.bf16.msra.mxu0 %v4877
    %4926 = vmatpush.bf16.msra.mxu0 %v4873
    %4927 = vmatpush.bf16.msra.mxu0 %v4869
    %4928 = vmatpush.bf16.msra.mxu0 %v4865
    %4929 = vmatpush.bf16.msra.mxu0 %v4861
    %4930 = vmatpush.bf16.msra.mxu0 %v4857
    %4931 = vmatpush.bf16.msra.mxu0 %v4853
    %4932 = vmatpush.bf16.msra.mxu0 %v4849
    %4933 = vmatmul.bf16.gmra.mxu0 %v4718
    %v4934 = vpop.f32.mrf.mxu0
    %v4935 = vadd.f32 0.0, %v4934
    %v4936 = vpop.f32.mrf.mxu0
    %4937 = vdwg.mxu0
    %4938 = vmatpush.bf16.msra.mxu0 %v4878
    %4939 = vmatpush.bf16.msra.mxu0 %v4874
    %4940 = vmatpush.bf16.msra.mxu0 %v4870
    %4941 = vmatpush.bf16.msra.mxu0 %v4866
    %4942 = vmatpush.bf16.msra.mxu0 %v4862
    %4943 = vmatpush.bf16.msra.mxu0 %v4858
    %4944 = vmatpush.bf16.msra.mxu0 %v4854
    %4945 = vmatpush.bf16.msra.mxu0 %v4850
    %4946 = vmatmul.bf16.gmra.mxu0 %v4718
    %v4947 = vpop.f32.mrf.mxu0
    %v4948 = vadd.f32 0.0, %v4947
    %v4949 = vpop.f32.mrf.mxu0
    %4950 = vdwg.mxu0
    %4951 = vmatpush.bf16.msra.mxu0 %v4879
    %4952 = vmatpush.bf16.msra.mxu0 %v4875
    %4953 = vmatpush.bf16.msra.mxu0 %v4871
    %4954 = vmatpush.bf16.msra.mxu0 %v4867
    %4955 = vmatpush.bf16.msra.mxu0 %v4863
    %4956 = vmatpush.bf16.msra.mxu0 %v4859
    %4957 = vmatpush.bf16.msra.mxu0 %v4855
    %4958 = vmatpush.bf16.msra.mxu0 %v4851
    %4959 = vmatmul.bf16.gmra.mxu0 %v4718
    %v4960 = vpop.f32.mrf.mxu0
    %v4961 = vadd.f32 0.0, %v4960
    %v4962 = vpop.f32.mrf.mxu0
    %4963 = vdwg.mxu0
    %v4964 = vadd.f32 %v4714, %v4922
    %v4965 = vadd.f32 %v4715, %v4935
    %v4966 = vadd.f32 %v4716, %v4948
    %v4967 = vadd.f32 %v4717, %v4961
    %v4968 = vxor.u32 %v4964, 2147483648
    %v4969 = vmul.f32 %v4968, 1.442695
    %v4970 = vpow.pop %v4969
    %v4971 = vadd.f32 %v4970, 1.0
    %v4972 = vrcp.pop %v4971
    %v4973 = vmul.f32 %v4971, %v4972
    %v4974 = vsub.f32 1.0, %v4973
    %v4975 = vmul.f32 %v4972, %v4974
    %v4976 = vadd.f32 %v4972, %v4975
    %vm4977 = vweird.f32 %v4971
    %vm4978 = vweird.f32 %v4972
    %vm4979 = vmor %vm4977, %vm4978
    %v4980 = vsel %vm4979, %v4972, %v4976
    %v4981 = vand.u32 2147483647, %v4971
    %vm4982 = vcmp.eq.f32.partialorder %v4981, 8.507059e+37
    %v4983 = vand.u32 %v4971, 2147483648
    %v4984 = vor.u32 1.1754944e-38, %v4983
    %v4985 = vsel %vm4982, %v4984, %v4980
    %v4986 = vmul.f32 1.0, %v4985
    %v4987 = vxor.u32 %v4965, 2147483648
    %v4988 = vmul.f32 %v4987, 1.442695
    %v4989 = vpow.pop %v4988
    %v4990 = vadd.f32 %v4989, 1.0
    %v4991 = vrcp.pop %v4990
    %v4992 = vmul.f32 %v4990, %v4991
    %v4993 = vsub.f32 1.0, %v4992
    %v4994 = vmul.f32 %v4991, %v4993
    %v4995 = vadd.f32 %v4991, %v4994
    %vm4996 = vweird.f32 %v4990
    %vm4997 = vweird.f32 %v4991
    %vm4998 = vmor %vm4996, %vm4997
    %v4999 = vsel %vm4998, %v4991, %v4995
    %v5000 = vand.u32 2147483647, %v4990
    %vm5001 = vcmp.eq.f32.partialorder %v5000, 8.507059e+37
    %v5002 = vand.u32 %v4990, 2147483648
    %v5003 = vor.u32 1.1754944e-38, %v5002
    %v5004 = vsel %vm5001, %v5003, %v4999
    %v5005 = vmul.f32 1.0, %v5004
    %v5006 = vtanh.pop %v4966
    %v5007 = vxor.u32 %v4967, 2147483648
    %v5008 = vmul.f32 %v5007, 1.442695
    %v5009 = vpow.pop %v5008
    %v5010 = vadd.f32 %v5009, 1.0
    %v5011 = vrcp.pop %v5010
    %v5012 = vmul.f32 %v5010, %v5011
    %v5013 = vsub.f32 1.0, %v5012
    %v5014 = vmul.f32 %v5011, %v5013
    %v5015 = vadd.f32 %v5011, %v5014
    %vm5016 = vweird.f32 %v5010
    %vm5017 = vweird.f32 %v5011
    %vm5018 = vmor %vm5016, %vm5017
    %v5019 = vsel %vm5018, %v5011, %v5015
    %v5020 = vand.u32 2147483647, %v5010
    %vm5021 = vcmp.eq.f32.partialorder %v5020, 8.507059e+37
    %v5022 = vand.u32 %v5010, 2147483648
    %v5023 = vor.u32 1.1754944e-38, %v5022
    %v5024 = vsel %vm5021, %v5023, %v5019
    %v5025 = vmul.f32 1.0, %v5024
    %v5026 = vmul.f32 %v5005, %v4713
    %v5027 = vmul.f32 %v4986, %v5006
    %v5028 = vadd.f32 %v5026, %v5027
    %v5029 = vtanh.pop %v5028
    %v5030 = vmul.f32 %v5025, %v5029
    %5031 = vst [vmem:[#allocation2] sm:$0xff] %v5030
    %v5032 = vld [vmem:[#allocation3 + $0x20] sm:$0xff]
    %v5033 = vld [vmem:[#allocation3 + $0x28] sm:$0xff]
    %v5034 = vld [vmem:[#allocation3 + $0x30] sm:$0xff]
    %v5035 = vld [vmem:[#allocation3 + $0x38] sm:$0xff]
    %v5036 = vpack.c.bf16 %v5030, %v5030
    %v5037 = vld [vmem:[%s4719] sm:$0xff]
    %v5038 = vld [vmem:[%s4719 + $0x8] sm:$0xff]
    %v5039 = vld [vmem:[%s4719 + $0x10] sm:$0xff]
    %v5040 = vld [vmem:[%s4719 + $0x18] sm:$0xff]
    %v5041 = vld [vmem:[%s4719 + $0x20] sm:$0xff]
    %v5042 = vld [vmem:[%s4719 + $0x28] sm:$0xff]
    %v5043 = vld [vmem:[%s4719 + $0x30] sm:$0xff]
    %v5044 = vld [vmem:[%s4719 + $0x38] sm:$0xff]
    %v5045 = vld [vmem:[%s4719 + $0x40] sm:$0xff]
    %v5046 = vld [vmem:[%s4719 + $0x48] sm:$0xff]
    %v5047 = vld [vmem:[%s4719 + $0x50] sm:$0xff]
    %v5048 = vld [vmem:[%s4719 + $0x58] sm:$0xff]
    %v5049 = vld [vmem:[%s4719 + $0x60] sm:$0xff]
    %v5050 = vld [vmem:[%s4719 + $0x68] sm:$0xff]
    %v5051 = vld [vmem:[%s4719 + $0x70] sm:$0xff]
    %v5052 = vld [vmem:[%s4719 + $0x78] sm:$0xff]
    %v5053 = vld [vmem:[%s4719 + $0x80] sm:$0xff]
    %v5054 = vld [vmem:[%s4719 + $0x88] sm:$0xff]
    %v5055 = vld [vmem:[%s4719 + $0x90] sm:$0xff]
    %v5056 = vld [vmem:[%s4719 + $0x98] sm:$0xff]
    %v5057 = vld [vmem:[%s4719 + $0xa0] sm:$0xff]
    %v5058 = vld [vmem:[%s4719 + $0xa8] sm:$0xff]
    %v5059 = vld [vmem:[%s4719 + $0xb0] sm:$0xff]
    %v5060 = vld [vmem:[%s4719 + $0xb8] sm:$0xff]
    %v5061 = vld [vmem:[%s4719 + $0xc0] sm:$0xff]
    %v5062 = vld [vmem:[%s4719 + $0xc8] sm:$0xff]
    %v5063 = vld [vmem:[%s4719 + $0xd0] sm:$0xff]
    %v5064 = vld [vmem:[%s4719 + $0xd8] sm:$0xff]
    %v5065 = vld [vmem:[%s4719 + $0xe0] sm:$0xff]
    %v5066 = vld [vmem:[%s4719 + $0xe8] sm:$0xff]
    %v5067 = vld [vmem:[%s4719 + $0xf0] sm:$0xff]
    %v5068 = vld [vmem:[%s4719 + $0xf8] sm:$0xff]
    %v5101 = vunpack.c.l.b16 %v5037
    %v5102 = vunpack.c.h.b16 %v5037
    %v5103 = vunpack.c.l.b16 %v5038
    %v5104 = vunpack.c.h.b16 %v5038
    %v5105 = vunpack.c.l.b16 %v5039
    %v5106 = vunpack.c.h.b16 %v5039
    %v5107 = vunpack.c.l.b16 %v5040
    %v5108 = vunpack.c.h.b16 %v5040
    %v5109 = vunpack.c.l.b16 %v5041
    %v5110 = vunpack.c.h.b16 %v5041
    %v5111 = vunpack.c.l.b16 %v5042
    %v5112 = vunpack.c.h.b16 %v5042
    %v5113 = vunpack.c.l.b16 %v5043
    %v5114 = vunpack.c.h.b16 %v5043
    %v5115 = vunpack.c.l.b16 %v5044
    %v5116 = vunpack.c.h.b16 %v5044
    %v5117 = vunpack.c.l.b16 %v5045
    %v5118 = vunpack.c.h.b16 %v5045
    %v5119 = vunpack.c.l.b16 %v5046
    %v5120 = vunpack.c.h.b16 %v5046
    %v5121 = vunpack.c.l.b16 %v5047
    %v5122 = vunpack.c.h.b16 %v5047
    %v5123 = vunpack.c.l.b16 %v5048
    %v5124 = vunpack.c.h.b16 %v5048
    %v5125 = vunpack.c.l.b16 %v5049
    %v5126 = vunpack.c.h.b16 %v5049
    %v5127 = vunpack.c.l.b16 %v5050
    %v5128 = vunpack.c.h.b16 %v5050
    %v5129 = vunpack.c.l.b16 %v5051
    %v5130 = vunpack.c.h.b16 %v5051
    %v5131 = vunpack.c.l.b16 %v5052
    %v5132 = vunpack.c.h.b16 %v5052
    %v5133 = vunpack.c.l.b16 %v5053
    %v5134 = vunpack.c.h.b16 %v5053
    %v5135 = vunpack.c.l.b16 %v5054
    %v5136 = vunpack.c.h.b16 %v5054
    %v5137 = vunpack.c.l.b16 %v5055
    %v5138 = vunpack.c.h.b16 %v5055
    %v5139 = vunpack.c.l.b16 %v5056
    %v5140 = vunpack.c.h.b16 %v5056
    %v5141 = vunpack.c.l.b16 %v5057
    %v5142 = vunpack.c.h.b16 %v5057
    %v5143 = vunpack.c.l.b16 %v5058
    %v5144 = vunpack.c.h.b16 %v5058
    %v5145 = vunpack.c.l.b16 %v5059
    %v5146 = vunpack.c.h.b16 %v5059
    %v5147 = vunpack.c.l.b16 %v5060
    %v5148 = vunpack.c.h.b16 %v5060
    %v5149 = vunpack.c.l.b16 %v5061
    %v5150 = vunpack.c.h.b16 %v5061
    %v5151 = vunpack.c.l.b16 %v5062
    %v5152 = vunpack.c.h.b16 %v5062
    %v5153 = vunpack.c.l.b16 %v5063
    %v5154 = vunpack.c.h.b16 %v5063
    %v5155 = vunpack.c.l.b16 %v5064
    %v5156 = vunpack.c.h.b16 %v5064
    %v5157 = vunpack.c.l.b16 %v5065
    %v5158 = vunpack.c.h.b16 %v5065
    %v5159 = vunpack.c.l.b16 %v5066
    %v5160 = vunpack.c.h.b16 %v5066
    %v5161 = vunpack.c.l.b16 %v5067
    %v5162 = vunpack.c.h.b16 %v5067
    %v5163 = vunpack.c.l.b16 %v5068
    %v5164 = vunpack.c.h.b16 %v5068
    %v5165 = vpack.c.b16 %v5105, %v5101
    %v5166 = vpack.c.b16 %v5106, %v5102
    %v5167 = vpack.c.b16 %v5107, %v5103
    %v5168 = vpack.c.b16 %v5108, %v5104
    %v5169 = vpack.c.b16 %v5113, %v5109
    %v5170 = vpack.c.b16 %v5114, %v5110
    %v5171 = vpack.c.b16 %v5115, %v5111
    %v5172 = vpack.c.b16 %v5116, %v5112
    %v5173 = vpack.c.b16 %v5121, %v5117
    %v5174 = vpack.c.b16 %v5122, %v5118
    %v5175 = vpack.c.b16 %v5123, %v5119
    %v5176 = vpack.c.b16 %v5124, %v5120
    %v5177 = vpack.c.b16 %v5129, %v5125
    %v5178 = vpack.c.b16 %v5130, %v5126
    %v5179 = vpack.c.b16 %v5131, %v5127
    %v5180 = vpack.c.b16 %v5132, %v5128
    %v5181 = vpack.c.b16 %v5137, %v5133
    %v5182 = vpack.c.b16 %v5138, %v5134
    %v5183 = vpack.c.b16 %v5139, %v5135
    %v5184 = vpack.c.b16 %v5140, %v5136
    %v5185 = vpack.c.b16 %v5145, %v5141
    %v5186 = vpack.c.b16 %v5146, %v5142
    %v5187 = vpack.c.b16 %v5147, %v5143
    %v5188 = vpack.c.b16 %v5148, %v5144
    %v5189 = vpack.c.b16 %v5153, %v5149
    %v5190 = vpack.c.b16 %v5154, %v5150
    %v5191 = vpack.c.b16 %v5155, %v5151
    %v5192 = vpack.c.b16 %v5156, %v5152
    %v5193 = vpack.c.b16 %v5161, %v5157
    %v5194 = vpack.c.b16 %v5162, %v5158
    %v5195 = vpack.c.b16 %v5163, %v5159
    %v5196 = vpack.c.b16 %v5164, %v5160
    %5229 = vmatpush.bf16.msra.mxu0 %v5193
    %5230 = vmatpush.bf16.msra.mxu0 %v5189
    %5231 = vmatpush.bf16.msra.mxu0 %v5185
    %5232 = vmatpush.bf16.msra.mxu0 %v5181
    %5233 = vmatpush.bf16.msra.mxu0 %v5177
    %5234 = vmatpush.bf16.msra.mxu0 %v5173
    %5235 = vmatpush.bf16.msra.mxu0 %v5169
    %5236 = vmatpush.bf16.msra.mxu0 %v5165
    %5237 = vmatmul.bf16.gmra.mxu0 %v5036
    %v5238 = vpop.f32.mrf.mxu0
    %v5239 = vadd.f32 0.0, %v5238
    %v5240 = vpop.f32.mrf.mxu0
    %5241 = vdwg.mxu0
    %5242 = vmatpush.bf16.msra.mxu0 %v5194
    %5243 = vmatpush.bf16.msra.mxu0 %v5190
    %5244 = vmatpush.bf16.msra.mxu0 %v5186
    %5245 = vmatpush.bf16.msra.mxu0 %v5182
    %5246 = vmatpush.bf16.msra.mxu0 %v5178
    %5247 = vmatpush.bf16.msra.mxu0 %v5174
    %5248 = vmatpush.bf16.msra.mxu0 %v5170
    %5249 = vmatpush.bf16.msra.mxu0 %v5166
    %5250 = vmatmul.bf16.gmra.mxu0 %v5036
    %v5251 = vpop.f32.mrf.mxu0
    %v5252 = vadd.f32 0.0, %v5251
    %v5253 = vpop.f32.mrf.mxu0
    %5254 = vdwg.mxu0
    %5255 = vmatpush.bf16.msra.mxu0 %v5195
    %5256 = vmatpush.bf16.msra.mxu0 %v5191
    %5257 = vmatpush.bf16.msra.mxu0 %v5187
    %5258 = vmatpush.bf16.msra.mxu0 %v5183
    %5259 = vmatpush.bf16.msra.mxu0 %v5179
    %5260 = vmatpush.bf16.msra.mxu0 %v5175
    %5261 = vmatpush.bf16.msra.mxu0 %v5171
    %5262 = vmatpush.bf16.msra.mxu0 %v5167
    %5263 = vmatmul.bf16.gmra.mxu0 %v5036
    %v5264 = vpop.f32.mrf.mxu0
    %v5265 = vadd.f32 0.0, %v5264
    %v5266 = vpop.f32.mrf.mxu0
    %5267 = vdwg.mxu0
    %5268 = vmatpush.bf16.msra.mxu0 %v5196
    %5269 = vmatpush.bf16.msra.mxu0 %v5192
    %5270 = vmatpush.bf16.msra.mxu0 %v5188
    %5271 = vmatpush.bf16.msra.mxu0 %v5184
    %5272 = vmatpush.bf16.msra.mxu0 %v5180
    %5273 = vmatpush.bf16.msra.mxu0 %v5176
    %5274 = vmatpush.bf16.msra.mxu0 %v5172
    %5275 = vmatpush.bf16.msra.mxu0 %v5168
    %5276 = vmatmul.bf16.gmra.mxu0 %v5036
    %v5277 = vpop.f32.mrf.mxu0
    %v5278 = vadd.f32 0.0, %v5277
    %v5279 = vpop.f32.mrf.mxu0
    %5280 = vdwg.mxu0
    %v5281 = vadd.f32 %v5032, %v5239
    %v5282 = vadd.f32 %v5033, %v5252
    %v5283 = vadd.f32 %v5034, %v5265
    %v5284 = vadd.f32 %v5035, %v5278
    %v5285 = vxor.u32 %v5281, 2147483648
    %v5286 = vmul.f32 %v5285, 1.442695
    %v5287 = vpow.pop %v5286
    %v5288 = vadd.f32 %v5287, 1.0
    %v5289 = vrcp.pop %v5288
    %v5290 = vmul.f32 %v5288, %v5289
    %v5291 = vsub.f32 1.0, %v5290
    %v5292 = vmul.f32 %v5289, %v5291
    %v5293 = vadd.f32 %v5289, %v5292
    %vm5294 = vweird.f32 %v5288
    %vm5295 = vweird.f32 %v5289
    %vm5296 = vmor %vm5294, %vm5295
    %v5297 = vsel %vm5296, %v5289, %v5293
    %v5298 = vand.u32 2147483647, %v5288
    %vm5299 = vcmp.eq.f32.partialorder %v5298, 8.507059e+37
    %v5300 = vand.u32 %v5288, 2147483648
    %v5301 = vor.u32 1.1754944e-38, %v5300
    %v5302 = vsel %vm5299, %v5301, %v5297
    %v5303 = vmul.f32 1.0, %v5302
    %v5304 = vxor.u32 %v5282, 2147483648
    %v5305 = vmul.f32 %v5304, 1.442695
    %v5306 = vpow.pop %v5305
    %v5307 = vadd.f32 %v5306, 1.0
    %v5308 = vrcp.pop %v5307
    %v5309 = vmul.f32 %v5307, %v5308
    %v5310 = vsub.f32 1.0, %v5309
    %v5311 = vmul.f32 %v5308, %v5310
    %v5312 = vadd.f32 %v5308, %v5311
    %vm5313 = vweird.f32 %v5307
    %vm5314 = vweird.f32 %v5308
    %vm5315 = vmor %vm5313, %vm5314
    %v5316 = vsel %vm5315, %v5308, %v5312
    %v5317 = vand.u32 2147483647, %v5307
    %vm5318 = vcmp.eq.f32.partialorder %v5317, 8.507059e+37
    %v5319 = vand.u32 %v5307, 2147483648
    %v5320 = vor.u32 1.1754944e-38, %v5319
    %v5321 = vsel %vm5318, %v5320, %v5316
    %v5322 = vmul.f32 1.0, %v5321
    %v5323 = vtanh.pop %v5283
    %v5324 = vxor.u32 %v5284, 2147483648
    %v5325 = vmul.f32 %v5324, 1.442695
    %v5326 = vpow.pop %v5325
    %v5327 = vadd.f32 %v5326, 1.0
    %v5328 = vrcp.pop %v5327
    %v5329 = vmul.f32 %v5327, %v5328
    %v5330 = vsub.f32 1.0, %v5329
    %v5331 = vmul.f32 %v5328, %v5330
    %v5332 = vadd.f32 %v5328, %v5331
    %vm5333 = vweird.f32 %v5327
    %vm5334 = vweird.f32 %v5328
    %vm5335 = vmor %vm5333, %vm5334
    %v5336 = vsel %vm5335, %v5328, %v5332
    %v5337 = vand.u32 2147483647, %v5327
    %vm5338 = vcmp.eq.f32.partialorder %v5337, 8.507059e+37
    %v5339 = vand.u32 %v5327, 2147483648
    %v5340 = vor.u32 1.1754944e-38, %v5339
    %v5341 = vsel %vm5338, %v5340, %v5336
    %v5342 = vmul.f32 1.0, %v5341
    %v5343 = vmul.f32 %v5322, %v5028
    %v5344 = vmul.f32 %v5303, %v5323
    %v5345 = vadd.f32 %v5343, %v5344
    %v5346 = vtanh.pop %v5345
    %v5347 = vmul.f32 %v5342, %v5346
    %5348 = vst [vmem:[#allocation2 + $0x8] sm:$0xff] %v5347
    %v5349 = vld [vmem:[#allocation3 + $0x40] sm:$0xff]
    %v5350 = vld [vmem:[#allocation3 + $0x48] sm:$0xff]
    %v5351 = vld [vmem:[#allocation3 + $0x50] sm:$0xff]
    %v5352 = vld [vmem:[#allocation3 + $0x58] sm:$0xff]
    %v5353 = vpack.c.bf16 %v5347, %v5347
    %v5354 = vld [vmem:[%s4719] sm:$0xff]
    %v5355 = vld [vmem:[%s4719 + $0x8] sm:$0xff]
    %v5356 = vld [vmem:[%s4719 + $0x10] sm:$0xff]
    %v5357 = vld [vmem:[%s4719 + $0x18] sm:$0xff]
    %v5358 = vld [vmem:[%s4719 + $0x20] sm:$0xff]
    %v5359 = vld [vmem:[%s4719 + $0x28] sm:$0xff]
    %v5360 = vld [vmem:[%s4719 + $0x30] sm:$0xff]
    %v5361 = vld [vmem:[%s4719 + $0x38] sm:$0xff]
    %v5362 = vld [vmem:[%s4719 + $0x40] sm:$0xff]
    %v5363 = vld [vmem:[%s4719 + $0x48] sm:$0xff]
    %v5364 = vld [vmem:[%s4719 + $0x50] sm:$0xff]
    %v5365 = vld [vmem:[%s4719 + $0x58] sm:$0xff]
    %v5366 = vld [vmem:[%s4719 + $0x60] sm:$0xff]
    %v5367 = vld [vmem:[%s4719 + $0x68] sm:$0xff]
    %v5368 = vld [vmem:[%s4719 + $0x70] sm:$0xff]
    %v5369 = vld [vmem:[%s4719 + $0x78] sm:$0xff]
    %v5370 = vld [vmem:[%s4719 + $0x80] sm:$0xff]
    %v5371 = vld [vmem:[%s4719 + $0x88] sm:$0xff]
    %v5372 = vld [vmem:[%s4719 + $0x90] sm:$0xff]
    %v5373 = vld [vmem:[%s4719 + $0x98] sm:$0xff]
    %v5374 = vld [vmem:[%s4719 + $0xa0] sm:$0xff]
    %v5375 = vld [vmem:[%s4719 + $0xa8] sm:$0xff]
    %v5376 = vld [vmem:[%s4719 + $0xb0] sm:$0xff]
    %v5377 = vld [vmem:[%s4719 + $0xb8] sm:$0xff]
    %v5378 = vld [vmem:[%s4719 + $0xc0] sm:$0xff]
    %v5379 = vld [vmem:[%s4719 + $0xc8] sm:$0xff]
    %v5380 = vld [vmem:[%s4719 + $0xd0] sm:$0xff]
    %v5381 = vld [vmem:[%s4719 + $0xd8] sm:$0xff]
    %v5382 = vld [vmem:[%s4719 + $0xe0] sm:$0xff]
    %v5383 = vld [vmem:[%s4719 + $0xe8] sm:$0xff]
    %v5384 = vld [vmem:[%s4719 + $0xf0] sm:$0xff]
    %v5385 = vld [vmem:[%s4719 + $0xf8] sm:$0xff]
    %v5418 = vunpack.c.l.b16 %v5354
    %v5419 = vunpack.c.h.b16 %v5354
    %v5420 = vunpack.c.l.b16 %v5355
    %v5421 = vunpack.c.h.b16 %v5355
    %v5422 = vunpack.c.l.b16 %v5356
    %v5423 = vunpack.c.h.b16 %v5356
    %v5424 = vunpack.c.l.b16 %v5357
    %v5425 = vunpack.c.h.b16 %v5357
    %v5426 = vunpack.c.l.b16 %v5358
    %v5427 = vunpack.c.h.b16 %v5358
    %v5428 = vunpack.c.l.b16 %v5359
    %v5429 = vunpack.c.h.b16 %v5359
    %v5430 = vunpack.c.l.b16 %v5360
    %v5431 = vunpack.c.h.b16 %v5360
    %v5432 = vunpack.c.l.b16 %v5361
    %v5433 = vunpack.c.h.b16 %v5361
    %v5434 = vunpack.c.l.b16 %v5362
    %v5435 = vunpack.c.h.b16 %v5362
    %v5436 = vunpack.c.l.b16 %v5363
    %v5437 = vunpack.c.h.b16 %v5363
    %v5438 = vunpack.c.l.b16 %v5364
    %v5439 = vunpack.c.h.b16 %v5364
    %v5440 = vunpack.c.l.b16 %v5365
    %v5441 = vunpack.c.h.b16 %v5365
    %v5442 = vunpack.c.l.b16 %v5366
    %v5443 = vunpack.c.h.b16 %v5366
    %v5444 = vunpack.c.l.b16 %v5367
    %v5445 = vunpack.c.h.b16 %v5367
    %v5446 = vunpack.c.l.b16 %v5368
    %v5447 = vunpack.c.h.b16 %v5368
    %v5448 = vunpack.c.l.b16 %v5369
    %v5449 = vunpack.c.h.b16 %v5369
    %v5450 = vunpack.c.l.b16 %v5370
    %v5451 = vunpack.c.h.b16 %v5370
    %v5452 = vunpack.c.l.b16 %v5371
    %v5453 = vunpack.c.h.b16 %v5371
    %v5454 = vunpack.c.l.b16 %v5372
    %v5455 = vunpack.c.h.b16 %v5372
    %v5456 = vunpack.c.l.b16 %v5373
    %v5457 = vunpack.c.h.b16 %v5373
    %v5458 = vunpack.c.l.b16 %v5374
    %v5459 = vunpack.c.h.b16 %v5374
    %v5460 = vunpack.c.l.b16 %v5375
    %v5461 = vunpack.c.h.b16 %v5375
    %v5462 = vunpack.c.l.b16 %v5376
    %v5463 = vunpack.c.h.b16 %v5376
    %v5464 = vunpack.c.l.b16 %v5377
    %v5465 = vunpack.c.h.b16 %v5377
    %v5466 = vunpack.c.l.b16 %v5378
    %v5467 = vunpack.c.h.b16 %v5378
    %v5468 = vunpack.c.l.b16 %v5379
    %v5469 = vunpack.c.h.b16 %v5379
    %v5470 = vunpack.c.l.b16 %v5380
    %v5471 = vunpack.c.h.b16 %v5380
    %v5472 = vunpack.c.l.b16 %v5381
    %v5473 = vunpack.c.h.b16 %v5381
    %v5474 = vunpack.c.l.b16 %v5382
    %v5475 = vunpack.c.h.b16 %v5382
    %v5476 = vunpack.c.l.b16 %v5383
    %v5477 = vunpack.c.h.b16 %v5383
    %v5478 = vunpack.c.l.b16 %v5384
    %v5479 = vunpack.c.h.b16 %v5384
    %v5480 = vunpack.c.l.b16 %v5385
    %v5481 = vunpack.c.h.b16 %v5385
    %v5482 = vpack.c.b16 %v5422, %v5418
    %v5483 = vpack.c.b16 %v5423, %v5419
    %v5484 = vpack.c.b16 %v5424, %v5420
    %v5485 = vpack.c.b16 %v5425, %v5421
    %v5486 = vpack.c.b16 %v5430, %v5426
    %v5487 = vpack.c.b16 %v5431, %v5427
    %v5488 = vpack.c.b16 %v5432, %v5428
    %v5489 = vpack.c.b16 %v5433, %v5429
    %v5490 = vpack.c.b16 %v5438, %v5434
    %v5491 = vpack.c.b16 %v5439, %v5435
    %v5492 = vpack.c.b16 %v5440, %v5436
    %v5493 = vpack.c.b16 %v5441, %v5437
    %v5494 = vpack.c.b16 %v5446, %v5442
    %v5495 = vpack.c.b16 %v5447, %v5443
    %v5496 = vpack.c.b16 %v5448, %v5444
    %v5497 = vpack.c.b16 %v5449, %v5445
    %v5498 = vpack.c.b16 %v5454, %v5450
    %v5499 = vpack.c.b16 %v5455, %v5451
    %v5500 = vpack.c.b16 %v5456, %v5452
    %v5501 = vpack.c.b16 %v5457, %v5453
    %v5502 = vpack.c.b16 %v5462, %v5458
    %v5503 = vpack.c.b16 %v5463, %v5459
    %v5504 = vpack.c.b16 %v5464, %v5460
    %v5505 = vpack.c.b16 %v5465, %v5461
    %v5506 = vpack.c.b16 %v5470, %v5466
    %v5507 = vpack.c.b16 %v5471, %v5467
    %v5508 = vpack.c.b16 %v5472, %v5468
    %v5509 = vpack.c.b16 %v5473, %v5469
    %v5510 = vpack.c.b16 %v5478, %v5474
    %v5511 = vpack.c.b16 %v5479, %v5475
    %v5512 = vpack.c.b16 %v5480, %v5476
    %v5513 = vpack.c.b16 %v5481, %v5477
    %5546 = vmatpush.bf16.msra.mxu0 %v5510
    %5547 = vmatpush.bf16.msra.mxu0 %v5506
    %5548 = vmatpush.bf16.msra.mxu0 %v5502
    %5549 = vmatpush.bf16.msra.mxu0 %v5498
    %5550 = vmatpush.bf16.msra.mxu0 %v5494
    %5551 = vmatpush.bf16.msra.mxu0 %v5490
    %5552 = vmatpush.bf16.msra.mxu0 %v5486
    %5553 = vmatpush.bf16.msra.mxu0 %v5482
    %5554 = vmatmul.bf16.gmra.mxu0 %v5353
    %v5555 = vpop.f32.mrf.mxu0
    %v5556 = vadd.f32 0.0, %v5555
    %v5557 = vpop.f32.mrf.mxu0
    %5558 = vdwg.mxu0
    %5559 = vmatpush.bf16.msra.mxu0 %v5511
    %5560 = vmatpush.bf16.msra.mxu0 %v5507
    %5561 = vmatpush.bf16.msra.mxu0 %v5503
    %5562 = vmatpush.bf16.msra.mxu0 %v5499
    %5563 = vmatpush.bf16.msra.mxu0 %v5495
    %5564 = vmatpush.bf16.msra.mxu0 %v5491
    %5565 = vmatpush.bf16.msra.mxu0 %v5487
    %5566 = vmatpush.bf16.msra.mxu0 %v5483
    %5567 = vmatmul.bf16.gmra.mxu0 %v5353
    %v5568 = vpop.f32.mrf.mxu0
    %v5569 = vadd.f32 0.0, %v5568
    %v5570 = vpop.f32.mrf.mxu0
    %5571 = vdwg.mxu0
    %5572 = vmatpush.bf16.msra.mxu0 %v5512
    %5573 = vmatpush.bf16.msra.mxu0 %v5508
    %5574 = vmatpush.bf16.msra.mxu0 %v5504
    %5575 = vmatpush.bf16.msra.mxu0 %v5500
    %5576 = vmatpush.bf16.msra.mxu0 %v5496
    %5577 = vmatpush.bf16.msra.mxu0 %v5492
    %5578 = vmatpush.bf16.msra.mxu0 %v5488
    %5579 = vmatpush.bf16.msra.mxu0 %v5484
    %5580 = vmatmul.bf16.gmra.mxu0 %v5353
    %v5581 = vpop.f32.mrf.mxu0
    %v5582 = vadd.f32 0.0, %v5581
    %v5583 = vpop.f32.mrf.mxu0
    %5584 = vdwg.mxu0
    %5585 = vmatpush.bf16.msra.mxu0 %v5513
    %5586 = vmatpush.bf16.msra.mxu0 %v5509
    %5587 = vmatpush.bf16.msra.mxu0 %v5505
    %5588 = vmatpush.bf16.msra.mxu0 %v5501
    %5589 = vmatpush.bf16.msra.mxu0 %v5497
    %5590 = vmatpush.bf16.msra.mxu0 %v5493
    %5591 = vmatpush.bf16.msra.mxu0 %v5489
    %5592 = vmatpush.bf16.msra.mxu0 %v5485
    %5593 = vmatmul.bf16.gmra.mxu0 %v5353
    %v5594 = vpop.f32.mrf.mxu0
    %v5595 = vadd.f32 0.0, %v5594
    %v5596 = vpop.f32.mrf.mxu0
    %5597 = vdwg.mxu0
    %v5598 = vadd.f32 %v5349, %v5556
    %v5599 = vadd.f32 %v5350, %v5569
    %v5600 = vadd.f32 %v5351, %v5582
    %v5601 = vadd.f32 %v5352, %v5595
    %v5602 = vxor.u32 %v5598, 2147483648
    %v5603 = vmul.f32 %v5602, 1.442695
    %v5604 = vpow.pop %v5603
    %v5605 = vadd.f32 %v5604, 1.0
    %v5606 = vrcp.pop %v5605
    %v5607 = vmul.f32 %v5605, %v5606
    %v5608 = vsub.f32 1.0, %v5607
    %v5609 = vmul.f32 %v5606, %v5608
    %v5610 = vadd.f32 %v5606, %v5609
    %vm5611 = vweird.f32 %v5605
    %vm5612 = vweird.f32 %v5606
    %vm5613 = vmor %vm5611, %vm5612
    %v5614 = vsel %vm5613, %v5606, %v5610
    %v5615 = vand.u32 2147483647, %v5605
    %vm5616 = vcmp.eq.f32.partialorder %v5615, 8.507059e+37
    %v5617 = vand.u32 %v5605, 2147483648
    %v5618 = vor.u32 1.1754944e-38, %v5617
    %v5619 = vsel %vm5616, %v5618, %v5614
    %v5620 = vmul.f32 1.0, %v5619
    %v5621 = vxor.u32 %v5599, 2147483648
    %v5622 = vmul.f32 %v5621, 1.442695
    %v5623 = vpow.pop %v5622
    %v5624 = vadd.f32 %v5623, 1.0
    %v5625 = vrcp.pop %v5624
    %v5626 = vmul.f32 %v5624, %v5625
    %v5627 = vsub.f32 1.0, %v5626
    %v5628 = vmul.f32 %v5625, %v5627
    %v5629 = vadd.f32 %v5625, %v5628
    %vm5630 = vweird.f32 %v5624
    %vm5631 = vweird.f32 %v5625
    %vm5632 = vmor %vm5630, %vm5631
    %v5633 = vsel %vm5632, %v5625, %v5629
    %v5634 = vand.u32 2147483647, %v5624
    %vm5635 = vcmp.eq.f32.partialorder %v5634, 8.507059e+37
    %v5636 = vand.u32 %v5624, 2147483648
    %v5637 = vor.u32 1.1754944e-38, %v5636
    %v5638 = vsel %vm5635, %v5637, %v5633
    %v5639 = vmul.f32 1.0, %v5638
    %v5640 = vtanh.pop %v5600
    %v5641 = vxor.u32 %v5601, 2147483648
    %v5642 = vmul.f32 %v5641, 1.442695
    %v5643 = vpow.pop %v5642
    %v5644 = vadd.f32 %v5643, 1.0
    %v5645 = vrcp.pop %v5644
    %v5646 = vmul.f32 %v5644, %v5645
    %v5647 = vsub.f32 1.0, %v5646
    %v5648 = vmul.f32 %v5645, %v5647
    %v5649 = vadd.f32 %v5645, %v5648
    %vm5650 = vweird.f32 %v5644
    %vm5651 = vweird.f32 %v5645
    %vm5652 = vmor %vm5650, %vm5651
    %v5653 = vsel %vm5652, %v5645, %v5649
    %v5654 = vand.u32 2147483647, %v5644
    %vm5655 = vcmp.eq.f32.partialorder %v5654, 8.507059e+37
    %v5656 = vand.u32 %v5644, 2147483648
    %v5657 = vor.u32 1.1754944e-38, %v5656
    %v5658 = vsel %vm5655, %v5657, %v5653
    %v5659 = vmul.f32 1.0, %v5658
    %v5660 = vmul.f32 %v5639, %v5345
    %v5661 = vmul.f32 %v5620, %v5640
    %v5662 = vadd.f32 %v5660, %v5661
    %v5663 = vtanh.pop %v5662
    %v5664 = vmul.f32 %v5659, %v5663
    %5665 = vst [vmem:[#allocation2 + $0x10] sm:$0xff] %v5664
    %v5666 = vld [vmem:[#allocation3 + $0x60] sm:$0xff]
    %v5667 = vld [vmem:[#allocation3 + $0x68] sm:$0xff]
    %v5668 = vld [vmem:[#allocation3 + $0x70] sm:$0xff]
    %v5669 = vld [vmem:[#allocation3 + $0x78] sm:$0xff]
    %v5670 = vpack.c.bf16 %v5664, %v5664
    %v5671 = vld [vmem:[%s4719] sm:$0xff]
    %v5672 = vld [vmem:[%s4719 + $0x8] sm:$0xff]
    %v5673 = vld [vmem:[%s4719 + $0x10] sm:$0xff]
    %v5674 = vld [vmem:[%s4719 + $0x18] sm:$0xff]
    %v5675 = vld [vmem:[%s4719 + $0x20] sm:$0xff]
    %v5676 = vld [vmem:[%s4719 + $0x28] sm:$0xff]
    %v5677 = vld [vmem:[%s4719 + $0x30] sm:$0xff]
    %v5678 = vld [vmem:[%s4719 + $0x38] sm:$0xff]
    %v5679 = vld [vmem:[%s4719 + $0x40] sm:$0xff]
    %v5680 = vld [vmem:[%s4719 + $0x48] sm:$0xff]
    %v5681 = vld [vmem:[%s4719 + $0x50] sm:$0xff]
    %v5682 = vld [vmem:[%s4719 + $0x58] sm:$0xff]
    %v5683 = vld [vmem:[%s4719 + $0x60] sm:$0xff]
    %v5684 = vld [vmem:[%s4719 + $0x68] sm:$0xff]
    %v5685 = vld [vmem:[%s4719 + $0x70] sm:$0xff]
    %v5686 = vld [vmem:[%s4719 + $0x78] sm:$0xff]
    %v5687 = vld [vmem:[%s4719 + $0x80] sm:$0xff]
    %v5688 = vld [vmem:[%s4719 + $0x88] sm:$0xff]
    %v5689 = vld [vmem:[%s4719 + $0x90] sm:$0xff]
    %v5690 = vld [vmem:[%s4719 + $0x98] sm:$0xff]
    %v5691 = vld [vmem:[%s4719 + $0xa0] sm:$0xff]
    %v5692 = vld [vmem:[%s4719 + $0xa8] sm:$0xff]
    %v5693 = vld [vmem:[%s4719 + $0xb0] sm:$0xff]
    %v5694 = vld [vmem:[%s4719 + $0xb8] sm:$0xff]
    %v5695 = vld [vmem:[%s4719 + $0xc0] sm:$0xff]
    %v5696 = vld [vmem:[%s4719 + $0xc8] sm:$0xff]
    %v5697 = vld [vmem:[%s4719 + $0xd0] sm:$0xff]
    %v5698 = vld [vmem:[%s4719 + $0xd8] sm:$0xff]
    %v5699 = vld [vmem:[%s4719 + $0xe0] sm:$0xff]
    %v5700 = vld [vmem:[%s4719 + $0xe8] sm:$0xff]
    %v5701 = vld [vmem:[%s4719 + $0xf0] sm:$0xff]
    %v5702 = vld [vmem:[%s4719 + $0xf8] sm:$0xff]
    %v5735 = vunpack.c.l.b16 %v5671
    %v5736 = vunpack.c.h.b16 %v5671
    %v5737 = vunpack.c.l.b16 %v5672
    %v5738 = vunpack.c.h.b16 %v5672
    %v5739 = vunpack.c.l.b16 %v5673
    %v5740 = vunpack.c.h.b16 %v5673
    %v5741 = vunpack.c.l.b16 %v5674
    %v5742 = vunpack.c.h.b16 %v5674
    %v5743 = vunpack.c.l.b16 %v5675
    %v5744 = vunpack.c.h.b16 %v5675
    %v5745 = vunpack.c.l.b16 %v5676
    %v5746 = vunpack.c.h.b16 %v5676
    %v5747 = vunpack.c.l.b16 %v5677
    %v5748 = vunpack.c.h.b16 %v5677
    %v5749 = vunpack.c.l.b16 %v5678
    %v5750 = vunpack.c.h.b16 %v5678
    %v5751 = vunpack.c.l.b16 %v5679
    %v5752 = vunpack.c.h.b16 %v5679
    %v5753 = vunpack.c.l.b16 %v5680
    %v5754 = vunpack.c.h.b16 %v5680
    %v5755 = vunpack.c.l.b16 %v5681
    %v5756 = vunpack.c.h.b16 %v5681
    %v5757 = vunpack.c.l.b16 %v5682
    %v5758 = vunpack.c.h.b16 %v5682
    %v5759 = vunpack.c.l.b16 %v5683
    %v5760 = vunpack.c.h.b16 %v5683
    %v5761 = vunpack.c.l.b16 %v5684
    %v5762 = vunpack.c.h.b16 %v5684
    %v5763 = vunpack.c.l.b16 %v5685
    %v5764 = vunpack.c.h.b16 %v5685
    %v5765 = vunpack.c.l.b16 %v5686
    %v5766 = vunpack.c.h.b16 %v5686
    %v5767 = vunpack.c.l.b16 %v5687
    %v5768 = vunpack.c.h.b16 %v5687
    %v5769 = vunpack.c.l.b16 %v5688
    %v5770 = vunpack.c.h.b16 %v5688
    %v5771 = vunpack.c.l.b16 %v5689
    %v5772 = vunpack.c.h.b16 %v5689
    %v5773 = vunpack.c.l.b16 %v5690
    %v5774 = vunpack.c.h.b16 %v5690
    %v5775 = vunpack.c.l.b16 %v5691
    %v5776 = vunpack.c.h.b16 %v5691
    %v5777 = vunpack.c.l.b16 %v5692
    %v5778 = vunpack.c.h.b16 %v5692
    %v5779 = vunpack.c.l.b16 %v5693
    %v5780 = vunpack.c.h.b16 %v5693
    %v5781 = vunpack.c.l.b16 %v5694
    %v5782 = vunpack.c.h.b16 %v5694
    %v5783 = vunpack.c.l.b16 %v5695
    %v5784 = vunpack.c.h.b16 %v5695
    %v5785 = vunpack.c.l.b16 %v5696
    %v5786 = vunpack.c.h.b16 %v5696
    %v5787 = vunpack.c.l.b16 %v5697
    %v5788 = vunpack.c.h.b16 %v5697
    %v5789 = vunpack.c.l.b16 %v5698
    %v5790 = vunpack.c.h.b16 %v5698
    %v5791 = vunpack.c.l.b16 %v5699
    %v5792 = vunpack.c.h.b16 %v5699
    %v5793 = vunpack.c.l.b16 %v5700
    %v5794 = vunpack.c.h.b16 %v5700
    %v5795 = vunpack.c.l.b16 %v5701
    %v5796 = vunpack.c.h.b16 %v5701
    %v5797 = vunpack.c.l.b16 %v5702
    %v5798 = vunpack.c.h.b16 %v5702
    %v5799 = vpack.c.b16 %v5739, %v5735
    %v5800 = vpack.c.b16 %v5740, %v5736
    %v5801 = vpack.c.b16 %v5741, %v5737
    %v5802 = vpack.c.b16 %v5742, %v5738
    %v5803 = vpack.c.b16 %v5747, %v5743
    %v5804 = vpack.c.b16 %v5748, %v5744
    %v5805 = vpack.c.b16 %v5749, %v5745
    %v5806 = vpack.c.b16 %v5750, %v5746
    %v5807 = vpack.c.b16 %v5755, %v5751
    %v5808 = vpack.c.b16 %v5756, %v5752
    %v5809 = vpack.c.b16 %v5757, %v5753
    %v5810 = vpack.c.b16 %v5758, %v5754
    %v5811 = vpack.c.b16 %v5763, %v5759
    %v5812 = vpack.c.b16 %v5764, %v5760
    %v5813 = vpack.c.b16 %v5765, %v5761
    %v5814 = vpack.c.b16 %v5766, %v5762
    %v5815 = vpack.c.b16 %v5771, %v5767
    %v5816 = vpack.c.b16 %v5772, %v5768
    %v5817 = vpack.c.b16 %v5773, %v5769
    %v5818 = vpack.c.b16 %v5774, %v5770
    %v5819 = vpack.c.b16 %v5779, %v5775
    %v5820 = vpack.c.b16 %v5780, %v5776
    %v5821 = vpack.c.b16 %v5781, %v5777
    %v5822 = vpack.c.b16 %v5782, %v5778
    %v5823 = vpack.c.b16 %v5787, %v5783
    %v5824 = vpack.c.b16 %v5788, %v5784
    %v5825 = vpack.c.b16 %v5789, %v5785
    %v5826 = vpack.c.b16 %v5790, %v5786
    %v5827 = vpack.c.b16 %v5795, %v5791
    %v5828 = vpack.c.b16 %v5796, %v5792
    %v5829 = vpack.c.b16 %v5797, %v5793
    %v5830 = vpack.c.b16 %v5798, %v5794
    %5863 = vmatpush.bf16.msra.mxu0 %v5827
    %5864 = vmatpush.bf16.msra.mxu0 %v5823
    %5865 = vmatpush.bf16.msra.mxu0 %v5819
    %5866 = vmatpush.bf16.msra.mxu0 %v5815
    %5867 = vmatpush.bf16.msra.mxu0 %v5811
    %5868 = vmatpush.bf16.msra.mxu0 %v5807
    %5869 = vmatpush.bf16.msra.mxu0 %v5803
    %5870 = vmatpush.bf16.msra.mxu0 %v5799
    %5871 = vmatmul.bf16.gmra.mxu0 %v5670
    %v5872 = vpop.f32.mrf.mxu0
    %v5873 = vadd.f32 0.0, %v5872
    %v5874 = vpop.f32.mrf.mxu0
    %5875 = vdwg.mxu0
    %5876 = vmatpush.bf16.msra.mxu0 %v5828
    %5877 = vmatpush.bf16.msra.mxu0 %v5824
    %5878 = vmatpush.bf16.msra.mxu0 %v5820
    %5879 = vmatpush.bf16.msra.mxu0 %v5816
    %5880 = vmatpush.bf16.msra.mxu0 %v5812
    %5881 = vmatpush.bf16.msra.mxu0 %v5808
    %5882 = vmatpush.bf16.msra.mxu0 %v5804
    %5883 = vmatpush.bf16.msra.mxu0 %v5800
    %5884 = vmatmul.bf16.gmra.mxu0 %v5670
    %v5885 = vpop.f32.mrf.mxu0
    %v5886 = vadd.f32 0.0, %v5885
    %v5887 = vpop.f32.mrf.mxu0
    %5888 = vdwg.mxu0
    %5889 = vmatpush.bf16.msra.mxu0 %v5829
    %5890 = vmatpush.bf16.msra.mxu0 %v5825
    %5891 = vmatpush.bf16.msra.mxu0 %v5821
    %5892 = vmatpush.bf16.msra.mxu0 %v5817
    %5893 = vmatpush.bf16.msra.mxu0 %v5813
    %5894 = vmatpush.bf16.msra.mxu0 %v5809
    %5895 = vmatpush.bf16.msra.mxu0 %v5805
    %5896 = vmatpush.bf16.msra.mxu0 %v5801
    %5897 = vmatmul.bf16.gmra.mxu0 %v5670
    %v5898 = vpop.f32.mrf.mxu0
    %v5899 = vadd.f32 0.0, %v5898
    %v5900 = vpop.f32.mrf.mxu0
    %5901 = vdwg.mxu0
    %5902 = vmatpush.bf16.msra.mxu0 %v5830
    %5903 = vmatpush.bf16.msra.mxu0 %v5826
    %5904 = vmatpush.bf16.msra.mxu0 %v5822
    %5905 = vmatpush.bf16.msra.mxu0 %v5818
    %5906 = vmatpush.bf16.msra.mxu0 %v5814
    %5907 = vmatpush.bf16.msra.mxu0 %v5810
    %5908 = vmatpush.bf16.msra.mxu0 %v5806
    %5909 = vmatpush.bf16.msra.mxu0 %v5802
    %5910 = vmatmul.bf16.gmra.mxu0 %v5670
    %v5911 = vpop.f32.mrf.mxu0
    %v5912 = vadd.f32 0.0, %v5911
    %v5913 = vpop.f32.mrf.mxu0
    %5914 = vdwg.mxu0
    %v5915 = vadd.f32 %v5666, %v5873
    %v5916 = vadd.f32 %v5667, %v5886
    %v5917 = vadd.f32 %v5668, %v5899
    %v5918 = vadd.f32 %v5669, %v5912
    %v5919 = vxor.u32 %v5915, 2147483648
    %v5920 = vmul.f32 %v5919, 1.442695
    %v5921 = vpow.pop %v5920
    %v5922 = vadd.f32 %v5921, 1.0
    %v5923 = vrcp.pop %v5922
    %v5924 = vmul.f32 %v5922, %v5923
    %v5925 = vsub.f32 1.0, %v5924
    %v5926 = vmul.f32 %v5923, %v5925
    %v5927 = vadd.f32 %v5923, %v5926
    %vm5928 = vweird.f32 %v5922
    %vm5929 = vweird.f32 %v5923
    %vm5930 = vmor %vm5928, %vm5929
    %v5931 = vsel %vm5930, %v5923, %v5927
    %v5932 = vand.u32 2147483647, %v5922
    %vm5933 = vcmp.eq.f32.partialorder %v5932, 8.507059e+37
    %v5934 = vand.u32 %v5922, 2147483648
    %v5935 = vor.u32 1.1754944e-38, %v5934
    %v5936 = vsel %vm5933, %v5935, %v5931
    %v5937 = vmul.f32 1.0, %v5936
    %v5938 = vxor.u32 %v5916, 2147483648
    %v5939 = vmul.f32 %v5938, 1.442695
    %v5940 = vpow.pop %v5939
    %v5941 = vadd.f32 %v5940, 1.0
    %v5942 = vrcp.pop %v5941
    %v5943 = vmul.f32 %v5941, %v5942
    %v5944 = vsub.f32 1.0, %v5943
    %v5945 = vmul.f32 %v5942, %v5944
    %v5946 = vadd.f32 %v5942, %v5945
    %vm5947 = vweird.f32 %v5941
    %vm5948 = vweird.f32 %v5942
    %vm5949 = vmor %vm5947, %vm5948
    %v5950 = vsel %vm5949, %v5942, %v5946
    %v5951 = vand.u32 2147483647, %v5941
    %vm5952 = vcmp.eq.f32.partialorder %v5951, 8.507059e+37
    %v5953 = vand.u32 %v5941, 2147483648
    %v5954 = vor.u32 1.1754944e-38, %v5953
    %v5955 = vsel %vm5952, %v5954, %v5950
    %v5956 = vmul.f32 1.0, %v5955
    %v5957 = vtanh.pop %v5917
    %v5958 = vxor.u32 %v5918, 2147483648
    %v5959 = vmul.f32 %v5958, 1.442695
    %v5960 = vpow.pop %v5959
    %v5961 = vadd.f32 %v5960, 1.0
    %v5962 = vrcp.pop %v5961
    %v5963 = vmul.f32 %v5961, %v5962
    %v5964 = vsub.f32 1.0, %v5963
    %v5965 = vmul.f32 %v5962, %v5964
    %v5966 = vadd.f32 %v5962, %v5965
    %vm5967 = vweird.f32 %v5961
    %vm5968 = vweird.f32 %v5962
    %vm5969 = vmor %vm5967, %vm5968
    %v5970 = vsel %vm5969, %v5962, %v5966
    %v5971 = vand.u32 2147483647, %v5961
    %vm5972 = vcmp.eq.f32.partialorder %v5971, 8.507059e+37
    %v5973 = vand.u32 %v5961, 2147483648
    %v5974 = vor.u32 1.1754944e-38, %v5973
    %v5975 = vsel %vm5972, %v5974, %v5970
    %v5976 = vmul.f32 1.0, %v5975
    %v5977 = vmul.f32 %v5956, %v5662
    %v5978 = vmul.f32 %v5937, %v5957
    %v5979 = vadd.f32 %v5977, %v5978
    %v5980 = vtanh.pop %v5979
    %v5981 = vmul.f32 %v5976, %v5980
    %5982 = vst [vmem:[#allocation2 + $0x18] sm:$0xff] %v5981
    %v5983 = vld [vmem:[#allocation3 + $0x80] sm:$0xff]
    %v5984 = vld [vmem:[#allocation3 + $0x88] sm:$0xff]
    %v5985 = vld [vmem:[#allocation3 + $0x90] sm:$0xff]
    %v5986 = vld [vmem:[#allocation3 + $0x98] sm:$0xff]
    %v5987 = vpack.c.bf16 %v5981, %v5981
    %v5988 = vld [vmem:[%s4719] sm:$0xff]
    %v5989 = vld [vmem:[%s4719 + $0x8] sm:$0xff]
    %v5990 = vld [vmem:[%s4719 + $0x10] sm:$0xff]
    %v5991 = vld [vmem:[%s4719 + $0x18] sm:$0xff]
    %v5992 = vld [vmem:[%s4719 + $0x20] sm:$0xff]
    %v5993 = vld [vmem:[%s4719 + $0x28] sm:$0xff]
    %v5994 = vld [vmem:[%s4719 + $0x30] sm:$0xff]
    %v5995 = vld [vmem:[%s4719 + $0x38] sm:$0xff]
    %v5996 = vld [vmem:[%s4719 + $0x40] sm:$0xff]
    %v5997 = vld [vmem:[%s4719 + $0x48] sm:$0xff]
    %v5998 = vld [vmem:[%s4719 + $0x50] sm:$0xff]
    %v5999 = vld [vmem:[%s4719 + $0x58] sm:$0xff]
    %v6000 = vld [vmem:[%s4719 + $0x60] sm:$0xff]
    %v6001 = vld [vmem:[%s4719 + $0x68] sm:$0xff]
    %v6002 = vld [vmem:[%s4719 + $0x70] sm:$0xff]
    %v6003 = vld [vmem:[%s4719 + $0x78] sm:$0xff]
    %v6004 = vld [vmem:[%s4719 + $0x80] sm:$0xff]
    %v6005 = vld [vmem:[%s4719 + $0x88] sm:$0xff]
    %v6006 = vld [vmem:[%s4719 + $0x90] sm:$0xff]
    %v6007 = vld [vmem:[%s4719 + $0x98] sm:$0xff]
    %v6008 = vld [vmem:[%s4719 + $0xa0] sm:$0xff]
    %v6009 = vld [vmem:[%s4719 + $0xa8] sm:$0xff]
    %v6010 = vld [vmem:[%s4719 + $0xb0] sm:$0xff]
    %v6011 = vld [vmem:[%s4719 + $0xb8] sm:$0xff]
    %v6012 = vld [vmem:[%s4719 + $0xc0] sm:$0xff]
    %v6013 = vld [vmem:[%s4719 + $0xc8] sm:$0xff]
    %v6014 = vld [vmem:[%s4719 + $0xd0] sm:$0xff]
    %v6015 = vld [vmem:[%s4719 + $0xd8] sm:$0xff]
    %v6016 = vld [vmem:[%s4719 + $0xe0] sm:$0xff]
    %v6017 = vld [vmem:[%s4719 + $0xe8] sm:$0xff]
    %v6018 = vld [vmem:[%s4719 + $0xf0] sm:$0xff]
    %v6019 = vld [vmem:[%s4719 + $0xf8] sm:$0xff]
    %v6052 = vunpack.c.l.b16 %v5988
    %v6053 = vunpack.c.h.b16 %v5988
    %v6054 = vunpack.c.l.b16 %v5989
    %v6055 = vunpack.c.h.b16 %v5989
    %v6056 = vunpack.c.l.b16 %v5990
    %v6057 = vunpack.c.h.b16 %v5990
    %v6058 = vunpack.c.l.b16 %v5991
    %v6059 = vunpack.c.h.b16 %v5991
    %v6060 = vunpack.c.l.b16 %v5992
    %v6061 = vunpack.c.h.b16 %v5992
    %v6062 = vunpack.c.l.b16 %v5993
    %v6063 = vunpack.c.h.b16 %v5993
    %v6064 = vunpack.c.l.b16 %v5994
    %v6065 = vunpack.c.h.b16 %v5994
    %v6066 = vunpack.c.l.b16 %v5995
    %v6067 = vunpack.c.h.b16 %v5995
    %v6068 = vunpack.c.l.b16 %v5996
    %v6069 = vunpack.c.h.b16 %v5996
    %v6070 = vunpack.c.l.b16 %v5997
    %v6071 = vunpack.c.h.b16 %v5997
    %v6072 = vunpack.c.l.b16 %v5998
    %v6073 = vunpack.c.h.b16 %v5998
    %v6074 = vunpack.c.l.b16 %v5999
    %v6075 = vunpack.c.h.b16 %v5999
    %v6076 = vunpack.c.l.b16 %v6000
    %v6077 = vunpack.c.h.b16 %v6000
    %v6078 = vunpack.c.l.b16 %v6001
    %v6079 = vunpack.c.h.b16 %v6001
    %v6080 = vunpack.c.l.b16 %v6002
    %v6081 = vunpack.c.h.b16 %v6002
    %v6082 = vunpack.c.l.b16 %v6003
    %v6083 = vunpack.c.h.b16 %v6003
    %v6084 = vunpack.c.l.b16 %v6004
    %v6085 = vunpack.c.h.b16 %v6004
    %v6086 = vunpack.c.l.b16 %v6005
    %v6087 = vunpack.c.h.b16 %v6005
    %v6088 = vunpack.c.l.b16 %v6006
    %v6089 = vunpack.c.h.b16 %v6006
    %v6090 = vunpack.c.l.b16 %v6007
    %v6091 = vunpack.c.h.b16 %v6007
    %v6092 = vunpack.c.l.b16 %v6008
    %v6093 = vunpack.c.h.b16 %v6008
    %v6094 = vunpack.c.l.b16 %v6009
    %v6095 = vunpack.c.h.b16 %v6009
    %v6096 = vunpack.c.l.b16 %v6010
    %v6097 = vunpack.c.h.b16 %v6010
    %v6098 = vunpack.c.l.b16 %v6011
    %v6099 = vunpack.c.h.b16 %v6011
    %v6100 = vunpack.c.l.b16 %v6012
    %v6101 = vunpack.c.h.b16 %v6012
    %v6102 = vunpack.c.l.b16 %v6013
    %v6103 = vunpack.c.h.b16 %v6013
    %v6104 = vunpack.c.l.b16 %v6014
    %v6105 = vunpack.c.h.b16 %v6014
    %v6106 = vunpack.c.l.b16 %v6015
    %v6107 = vunpack.c.h.b16 %v6015
    %v6108 = vunpack.c.l.b16 %v6016
    %v6109 = vunpack.c.h.b16 %v6016
    %v6110 = vunpack.c.l.b16 %v6017
    %v6111 = vunpack.c.h.b16 %v6017
    %v6112 = vunpack.c.l.b16 %v6018
    %v6113 = vunpack.c.h.b16 %v6018
    %v6114 = vunpack.c.l.b16 %v6019
    %v6115 = vunpack.c.h.b16 %v6019
    %v6116 = vpack.c.b16 %v6056, %v6052
    %v6117 = vpack.c.b16 %v6057, %v6053
    %v6118 = vpack.c.b16 %v6058, %v6054
    %v6119 = vpack.c.b16 %v6059, %v6055
    %v6120 = vpack.c.b16 %v6064, %v6060
    %v6121 = vpack.c.b16 %v6065, %v6061
    %v6122 = vpack.c.b16 %v6066, %v6062
    %v6123 = vpack.c.b16 %v6067, %v6063
    %v6124 = vpack.c.b16 %v6072, %v6068
    %v6125 = vpack.c.b16 %v6073, %v6069
    %v6126 = vpack.c.b16 %v6074, %v6070
    %v6127 = vpack.c.b16 %v6075, %v6071
    %v6128 = vpack.c.b16 %v6080, %v6076
    %v6129 = vpack.c.b16 %v6081, %v6077
    %v6130 = vpack.c.b16 %v6082, %v6078
    %v6131 = vpack.c.b16 %v6083, %v6079
    %v6132 = vpack.c.b16 %v6088, %v6084
    %v6133 = vpack.c.b16 %v6089, %v6085
    %v6134 = vpack.c.b16 %v6090, %v6086
    %v6135 = vpack.c.b16 %v6091, %v6087
    %v6136 = vpack.c.b16 %v6096, %v6092
    %v6137 = vpack.c.b16 %v6097, %v6093
    %v6138 = vpack.c.b16 %v6098, %v6094
    %v6139 = vpack.c.b16 %v6099, %v6095
    %v6140 = vpack.c.b16 %v6104, %v6100
    %v6141 = vpack.c.b16 %v6105, %v6101
    %v6142 = vpack.c.b16 %v6106, %v6102
    %v6143 = vpack.c.b16 %v6107, %v6103
    %v6144 = vpack.c.b16 %v6112, %v6108
    %v6145 = vpack.c.b16 %v6113, %v6109
    %v6146 = vpack.c.b16 %v6114, %v6110
    %v6147 = vpack.c.b16 %v6115, %v6111
    %6180 = vmatpush.bf16.msra.mxu0 %v6144
    %6181 = vmatpush.bf16.msra.mxu0 %v6140
    %6182 = vmatpush.bf16.msra.mxu0 %v6136
    %6183 = vmatpush.bf16.msra.mxu0 %v6132
    %6184 = vmatpush.bf16.msra.mxu0 %v6128
    %6185 = vmatpush.bf16.msra.mxu0 %v6124
    %6186 = vmatpush.bf16.msra.mxu0 %v6120
    %6187 = vmatpush.bf16.msra.mxu0 %v6116
    %6188 = vmatmul.bf16.gmra.mxu0 %v5987
    %v6189 = vpop.f32.mrf.mxu0
    %v6190 = vadd.f32 0.0, %v6189
    %v6191 = vpop.f32.mrf.mxu0
    %6192 = vdwg.mxu0
    %6193 = vmatpush.bf16.msra.mxu0 %v6145
    %6194 = vmatpush.bf16.msra.mxu0 %v6141
    %6195 = vmatpush.bf16.msra.mxu0 %v6137
    %6196 = vmatpush.bf16.msra.mxu0 %v6133
    %6197 = vmatpush.bf16.msra.mxu0 %v6129
    %6198 = vmatpush.bf16.msra.mxu0 %v6125
    %6199 = vmatpush.bf16.msra.mxu0 %v6121
    %6200 = vmatpush.bf16.msra.mxu0 %v6117
    %6201 = vmatmul.bf16.gmra.mxu0 %v5987
    %v6202 = vpop.f32.mrf.mxu0
    %v6203 = vadd.f32 0.0, %v6202
    %v6204 = vpop.f32.mrf.mxu0
    %6205 = vdwg.mxu0
    %6206 = vmatpush.bf16.msra.mxu0 %v6146
    %6207 = vmatpush.bf16.msra.mxu0 %v6142
    %6208 = vmatpush.bf16.msra.mxu0 %v6138
    %6209 = vmatpush.bf16.msra.mxu0 %v6134
    %6210 = vmatpush.bf16.msra.mxu0 %v6130
    %6211 = vmatpush.bf16.msra.mxu0 %v6126
    %6212 = vmatpush.bf16.msra.mxu0 %v6122
    %6213 = vmatpush.bf16.msra.mxu0 %v6118
    %6214 = vmatmul.bf16.gmra.mxu0 %v5987
    %v6215 = vpop.f32.mrf.mxu0
    %v6216 = vadd.f32 0.0, %v6215
    %v6217 = vpop.f32.mrf.mxu0
    %6218 = vdwg.mxu0
    %6219 = vmatpush.bf16.msra.mxu0 %v6147
    %6220 = vmatpush.bf16.msra.mxu0 %v6143
    %6221 = vmatpush.bf16.msra.mxu0 %v6139
    %6222 = vmatpush.bf16.msra.mxu0 %v6135
    %6223 = vmatpush.bf16.msra.mxu0 %v6131
    %6224 = vmatpush.bf16.msra.mxu0 %v6127
    %6225 = vmatpush.bf16.msra.mxu0 %v6123
    %6226 = vmatpush.bf16.msra.mxu0 %v6119
    %6227 = vmatmul.bf16.gmra.mxu0 %v5987
    %v6228 = vpop.f32.mrf.mxu0
    %v6229 = vadd.f32 0.0, %v6228
    %v6230 = vpop.f32.mrf.mxu0
    %6231 = vdwg.mxu0
    %v6232 = vadd.f32 %v5983, %v6190
    %v6233 = vadd.f32 %v5984, %v6203
    %v6234 = vadd.f32 %v5985, %v6216
    %v6235 = vadd.f32 %v5986, %v6229
    %v6236 = vxor.u32 %v6232, 2147483648
    %v6237 = vmul.f32 %v6236, 1.442695
    %v6238 = vpow.pop %v6237
    %v6239 = vadd.f32 %v6238, 1.0
    %v6240 = vrcp.pop %v6239
    %v6241 = vmul.f32 %v6239, %v6240
    %v6242 = vsub.f32 1.0, %v6241
    %v6243 = vmul.f32 %v6240, %v6242
    %v6244 = vadd.f32 %v6240, %v6243
    %vm6245 = vweird.f32 %v6239
    %vm6246 = vweird.f32 %v6240
    %vm6247 = vmor %vm6245, %vm6246
    %v6248 = vsel %vm6247, %v6240, %v6244
    %v6249 = vand.u32 2147483647, %v6239
    %vm6250 = vcmp.eq.f32.partialorder %v6249, 8.507059e+37
    %v6251 = vand.u32 %v6239, 2147483648
    %v6252 = vor.u32 1.1754944e-38, %v6251
    %v6253 = vsel %vm6250, %v6252, %v6248
    %v6254 = vmul.f32 1.0, %v6253
    %v6255 = vxor.u32 %v6233, 2147483648
    %v6256 = vmul.f32 %v6255, 1.442695
    %v6257 = vpow.pop %v6256
    %v6258 = vadd.f32 %v6257, 1.0
    %v6259 = vrcp.pop %v6258
    %v6260 = vmul.f32 %v6258, %v6259
    %v6261 = vsub.f32 1.0, %v6260
    %v6262 = vmul.f32 %v6259, %v6261
    %v6263 = vadd.f32 %v6259, %v6262
    %vm6264 = vweird.f32 %v6258
    %vm6265 = vweird.f32 %v6259
    %vm6266 = vmor %vm6264, %vm6265
    %v6267 = vsel %vm6266, %v6259, %v6263
    %v6268 = vand.u32 2147483647, %v6258
    %vm6269 = vcmp.eq.f32.partialorder %v6268, 8.507059e+37
    %v6270 = vand.u32 %v6258, 2147483648
    %v6271 = vor.u32 1.1754944e-38, %v6270
    %v6272 = vsel %vm6269, %v6271, %v6267
    %v6273 = vmul.f32 1.0, %v6272
    %v6274 = vtanh.pop %v6234
    %v6275 = vxor.u32 %v6235, 2147483648
    %v6276 = vmul.f32 %v6275, 1.442695
    %v6277 = vpow.pop %v6276
    %v6278 = vadd.f32 %v6277, 1.0
    %v6279 = vrcp.pop %v6278
    %v6280 = vmul.f32 %v6278, %v6279
    %v6281 = vsub.f32 1.0, %v6280
    %v6282 = vmul.f32 %v6279, %v6281
    %v6283 = vadd.f32 %v6279, %v6282
    %vm6284 = vweird.f32 %v6278
    %vm6285 = vweird.f32 %v6279
    %vm6286 = vmor %vm6284, %vm6285
    %v6287 = vsel %vm6286, %v6279, %v6283
    %v6288 = vand.u32 2147483647, %v6278
    %vm6289 = vcmp.eq.f32.partialorder %v6288, 8.507059e+37
    %v6290 = vand.u32 %v6278, 2147483648
    %v6291 = vor.u32 1.1754944e-38, %v6290
    %v6292 = vsel %vm6289, %v6291, %v6287
    %v6293 = vmul.f32 1.0, %v6292
    %v6294 = vmul.f32 %v6273, %v5979
    %v6295 = vmul.f32 %v6254, %v6274
    %v6296 = vadd.f32 %v6294, %v6295
    %v6297 = vtanh.pop %v6296
    %v6298 = vmul.f32 %v6293, %v6297
    %6299 = vst [vmem:[#allocation2 + $0x20] sm:$0xff] %v6298
    %v6300 = vld [vmem:[#allocation3 + $0xa0] sm:$0xff]
    %v6301 = vld [vmem:[#allocation3 + $0xa8] sm:$0xff]
    %v6302 = vld [vmem:[#allocation3 + $0xb0] sm:$0xff]
    %v6303 = vld [vmem:[#allocation3 + $0xb8] sm:$0xff]
    %v6304 = vpack.c.bf16 %v6298, %v6298
    %v6305 = vld [vmem:[%s4719] sm:$0xff]
    %v6306 = vld [vmem:[%s4719 + $0x8] sm:$0xff]
    %v6307 = vld [vmem:[%s4719 + $0x10] sm:$0xff]
    %v6308 = vld [vmem:[%s4719 + $0x18] sm:$0xff]
    %v6309 = vld [vmem:[%s4719 + $0x20] sm:$0xff]
    %v6310 = vld [vmem:[%s4719 + $0x28] sm:$0xff]
    %v6311 = vld [vmem:[%s4719 + $0x30] sm:$0xff]
    %v6312 = vld [vmem:[%s4719 + $0x38] sm:$0xff]
    %v6313 = vld [vmem:[%s4719 + $0x40] sm:$0xff]
    %v6314 = vld [vmem:[%s4719 + $0x48] sm:$0xff]
    %v6315 = vld [vmem:[%s4719 + $0x50] sm:$0xff]
    %v6316 = vld [vmem:[%s4719 + $0x58] sm:$0xff]
    %v6317 = vld [vmem:[%s4719 + $0x60] sm:$0xff]
    %v6318 = vld [vmem:[%s4719 + $0x68] sm:$0xff]
    %v6319 = vld [vmem:[%s4719 + $0x70] sm:$0xff]
    %v6320 = vld [vmem:[%s4719 + $0x78] sm:$0xff]
    %v6321 = vld [vmem:[%s4719 + $0x80] sm:$0xff]
    %v6322 = vld [vmem:[%s4719 + $0x88] sm:$0xff]
    %v6323 = vld [vmem:[%s4719 + $0x90] sm:$0xff]
    %v6324 = vld [vmem:[%s4719 + $0x98] sm:$0xff]
    %v6325 = vld [vmem:[%s4719 + $0xa0] sm:$0xff]
    %v6326 = vld [vmem:[%s4719 + $0xa8] sm:$0xff]
    %v6327 = vld [vmem:[%s4719 + $0xb0] sm:$0xff]
    %v6328 = vld [vmem:[%s4719 + $0xb8] sm:$0xff]
    %v6329 = vld [vmem:[%s4719 + $0xc0] sm:$0xff]
    %v6330 = vld [vmem:[%s4719 + $0xc8] sm:$0xff]
    %v6331 = vld [vmem:[%s4719 + $0xd0] sm:$0xff]
    %v6332 = vld [vmem:[%s4719 + $0xd8] sm:$0xff]
    %v6333 = vld [vmem:[%s4719 + $0xe0] sm:$0xff]
    %v6334 = vld [vmem:[%s4719 + $0xe8] sm:$0xff]
    %v6335 = vld [vmem:[%s4719 + $0xf0] sm:$0xff]
    %v6336 = vld [vmem:[%s4719 + $0xf8] sm:$0xff]
    %v6369 = vunpack.c.l.b16 %v6305
    %v6370 = vunpack.c.h.b16 %v6305
    %v6371 = vunpack.c.l.b16 %v6306
    %v6372 = vunpack.c.h.b16 %v6306
    %v6373 = vunpack.c.l.b16 %v6307
    %v6374 = vunpack.c.h.b16 %v6307
    %v6375 = vunpack.c.l.b16 %v6308
    %v6376 = vunpack.c.h.b16 %v6308
    %v6377 = vunpack.c.l.b16 %v6309
    %v6378 = vunpack.c.h.b16 %v6309
    %v6379 = vunpack.c.l.b16 %v6310
    %v6380 = vunpack.c.h.b16 %v6310
    %v6381 = vunpack.c.l.b16 %v6311
    %v6382 = vunpack.c.h.b16 %v6311
    %v6383 = vunpack.c.l.b16 %v6312
    %v6384 = vunpack.c.h.b16 %v6312
    %v6385 = vunpack.c.l.b16 %v6313
    %v6386 = vunpack.c.h.b16 %v6313
    %v6387 = vunpack.c.l.b16 %v6314
    %v6388 = vunpack.c.h.b16 %v6314
    %v6389 = vunpack.c.l.b16 %v6315
    %v6390 = vunpack.c.h.b16 %v6315
    %v6391 = vunpack.c.l.b16 %v6316
    %v6392 = vunpack.c.h.b16 %v6316
    %v6393 = vunpack.c.l.b16 %v6317
    %v6394 = vunpack.c.h.b16 %v6317
    %v6395 = vunpack.c.l.b16 %v6318
    %v6396 = vunpack.c.h.b16 %v6318
    %v6397 = vunpack.c.l.b16 %v6319
    %v6398 = vunpack.c.h.b16 %v6319
    %v6399 = vunpack.c.l.b16 %v6320
    %v6400 = vunpack.c.h.b16 %v6320
    %v6401 = vunpack.c.l.b16 %v6321
    %v6402 = vunpack.c.h.b16 %v6321
    %v6403 = vunpack.c.l.b16 %v6322
    %v6404 = vunpack.c.h.b16 %v6322
    %v6405 = vunpack.c.l.b16 %v6323
    %v6406 = vunpack.c.h.b16 %v6323
    %v6407 = vunpack.c.l.b16 %v6324
    %v6408 = vunpack.c.h.b16 %v6324
    %v6409 = vunpack.c.l.b16 %v6325
    %v6410 = vunpack.c.h.b16 %v6325
    %v6411 = vunpack.c.l.b16 %v6326
    %v6412 = vunpack.c.h.b16 %v6326
    %v6413 = vunpack.c.l.b16 %v6327
    %v6414 = vunpack.c.h.b16 %v6327
    %v6415 = vunpack.c.l.b16 %v6328
    %v6416 = vunpack.c.h.b16 %v6328
    %v6417 = vunpack.c.l.b16 %v6329
    %v6418 = vunpack.c.h.b16 %v6329
    %v6419 = vunpack.c.l.b16 %v6330
    %v6420 = vunpack.c.h.b16 %v6330
    %v6421 = vunpack.c.l.b16 %v6331
    %v6422 = vunpack.c.h.b16 %v6331
    %v6423 = vunpack.c.l.b16 %v6332
    %v6424 = vunpack.c.h.b16 %v6332
    %v6425 = vunpack.c.l.b16 %v6333
    %v6426 = vunpack.c.h.b16 %v6333
    %v6427 = vunpack.c.l.b16 %v6334
    %v6428 = vunpack.c.h.b16 %v6334
    %v6429 = vunpack.c.l.b16 %v6335
    %v6430 = vunpack.c.h.b16 %v6335
    %v6431 = vunpack.c.l.b16 %v6336
    %v6432 = vunpack.c.h.b16 %v6336
    %v6433 = vpack.c.b16 %v6373, %v6369
    %v6434 = vpack.c.b16 %v6374, %v6370
    %v6435 = vpack.c.b16 %v6375, %v6371
    %v6436 = vpack.c.b16 %v6376, %v6372
    %v6437 = vpack.c.b16 %v6381, %v6377
    %v6438 = vpack.c.b16 %v6382, %v6378
    %v6439 = vpack.c.b16 %v6383, %v6379
    %v6440 = vpack.c.b16 %v6384, %v6380
    %v6441 = vpack.c.b16 %v6389, %v6385
    %v6442 = vpack.c.b16 %v6390, %v6386
    %v6443 = vpack.c.b16 %v6391, %v6387
    %v6444 = vpack.c.b16 %v6392, %v6388
    %v6445 = vpack.c.b16 %v6397, %v6393
    %v6446 = vpack.c.b16 %v6398, %v6394
    %v6447 = vpack.c.b16 %v6399, %v6395
    %v6448 = vpack.c.b16 %v6400, %v6396
    %v6449 = vpack.c.b16 %v6405, %v6401
    %v6450 = vpack.c.b16 %v6406, %v6402
    %v6451 = vpack.c.b16 %v6407, %v6403
    %v6452 = vpack.c.b16 %v6408, %v6404
    %v6453 = vpack.c.b16 %v6413, %v6409
    %v6454 = vpack.c.b16 %v6414, %v6410
    %v6455 = vpack.c.b16 %v6415, %v6411
    %v6456 = vpack.c.b16 %v6416, %v6412
    %v6457 = vpack.c.b16 %v6421, %v6417
    %v6458 = vpack.c.b16 %v6422, %v6418
    %v6459 = vpack.c.b16 %v6423, %v6419
    %v6460 = vpack.c.b16 %v6424, %v6420
    %v6461 = vpack.c.b16 %v6429, %v6425
    %v6462 = vpack.c.b16 %v6430, %v6426
    %v6463 = vpack.c.b16 %v6431, %v6427
    %v6464 = vpack.c.b16 %v6432, %v6428
    %6497 = vmatpush.bf16.msra.mxu0 %v6461
    %6498 = vmatpush.bf16.msra.mxu0 %v6457
    %6499 = vmatpush.bf16.msra.mxu0 %v6453
    %6500 = vmatpush.bf16.msra.mxu0 %v6449
    %6501 = vmatpush.bf16.msra.mxu0 %v6445
    %6502 = vmatpush.bf16.msra.mxu0 %v6441
    %6503 = vmatpush.bf16.msra.mxu0 %v6437
    %6504 = vmatpush.bf16.msra.mxu0 %v6433
    %6505 = vmatmul.bf16.gmra.mxu0 %v6304
    %v6506 = vpop.f32.mrf.mxu0
    %v6507 = vadd.f32 0.0, %v6506
    %v6508 = vpop.f32.mrf.mxu0
    %6509 = vdwg.mxu0
    %6510 = vmatpush.bf16.msra.mxu0 %v6462
    %6511 = vmatpush.bf16.msra.mxu0 %v6458
    %6512 = vmatpush.bf16.msra.mxu0 %v6454
    %6513 = vmatpush.bf16.msra.mxu0 %v6450
    %6514 = vmatpush.bf16.msra.mxu0 %v6446
    %6515 = vmatpush.bf16.msra.mxu0 %v6442
    %6516 = vmatpush.bf16.msra.mxu0 %v6438
    %6517 = vmatpush.bf16.msra.mxu0 %v6434
    %6518 = vmatmul.bf16.gmra.mxu0 %v6304
    %v6519 = vpop.f32.mrf.mxu0
    %v6520 = vadd.f32 0.0, %v6519
    %v6521 = vpop.f32.mrf.mxu0
    %6522 = vdwg.mxu0
    %6523 = vmatpush.bf16.msra.mxu0 %v6463
    %6524 = vmatpush.bf16.msra.mxu0 %v6459
    %6525 = vmatpush.bf16.msra.mxu0 %v6455
    %6526 = vmatpush.bf16.msra.mxu0 %v6451
    %6527 = vmatpush.bf16.msra.mxu0 %v6447
    %6528 = vmatpush.bf16.msra.mxu0 %v6443
    %6529 = vmatpush.bf16.msra.mxu0 %v6439
    %6530 = vmatpush.bf16.msra.mxu0 %v6435
    %6531 = vmatmul.bf16.gmra.mxu0 %v6304
    %v6532 = vpop.f32.mrf.mxu0
    %v6533 = vadd.f32 0.0, %v6532
    %v6534 = vpop.f32.mrf.mxu0
    %6535 = vdwg.mxu0
    %6536 = vmatpush.bf16.msra.mxu0 %v6464
    %6537 = vmatpush.bf16.msra.mxu0 %v6460
    %6538 = vmatpush.bf16.msra.mxu0 %v6456
    %6539 = vmatpush.bf16.msra.mxu0 %v6452
    %6540 = vmatpush.bf16.msra.mxu0 %v6448
    %6541 = vmatpush.bf16.msra.mxu0 %v6444
    %6542 = vmatpush.bf16.msra.mxu0 %v6440
    %6543 = vmatpush.bf16.msra.mxu0 %v6436
    %6544 = vmatmul.bf16.gmra.mxu0 %v6304
    %v6545 = vpop.f32.mrf.mxu0
    %v6546 = vadd.f32 0.0, %v6545
    %v6547 = vpop.f32.mrf.mxu0
    %6548 = vdwg.mxu0
    %v6549 = vadd.f32 %v6300, %v6507
    %v6550 = vadd.f32 %v6301, %v6520
    %v6551 = vadd.f32 %v6302, %v6533
    %v6552 = vadd.f32 %v6303, %v6546
    %v6553 = vxor.u32 %v6549, 2147483648
    %v6554 = vmul.f32 %v6553, 1.442695
    %v6555 = vpow.pop %v6554
    %v6556 = vadd.f32 %v6555, 1.0
    %v6557 = vrcp.pop %v6556
    %v6558 = vmul.f32 %v6556, %v6557
    %v6559 = vsub.f32 1.0, %v6558
    %v6560 = vmul.f32 %v6557, %v6559
    %v6561 = vadd.f32 %v6557, %v6560
    %vm6562 = vweird.f32 %v6556
    %vm6563 = vweird.f32 %v6557
    %vm6564 = vmor %vm6562, %vm6563
    %v6565 = vsel %vm6564, %v6557, %v6561
    %v6566 = vand.u32 2147483647, %v6556
    %vm6567 = vcmp.eq.f32.partialorder %v6566, 8.507059e+37
    %v6568 = vand.u32 %v6556, 2147483648
    %v6569 = vor.u32 1.1754944e-38, %v6568
    %v6570 = vsel %vm6567, %v6569, %v6565
    %v6571 = vmul.f32 1.0, %v6570
    %v6572 = vxor.u32 %v6550, 2147483648
    %v6573 = vmul.f32 %v6572, 1.442695
    %v6574 = vpow.pop %v6573
    %v6575 = vadd.f32 %v6574, 1.0
    %v6576 = vrcp.pop %v6575
    %v6577 = vmul.f32 %v6575, %v6576
    %v6578 = vsub.f32 1.0, %v6577
    %v6579 = vmul.f32 %v6576, %v6578
    %v6580 = vadd.f32 %v6576, %v6579
    %vm6581 = vweird.f32 %v6575
    %vm6582 = vweird.f32 %v6576
    %vm6583 = vmor %vm6581, %vm6582
    %v6584 = vsel %vm6583, %v6576, %v6580
    %v6585 = vand.u32 2147483647, %v6575
    %vm6586 = vcmp.eq.f32.partialorder %v6585, 8.507059e+37
    %v6587 = vand.u32 %v6575, 2147483648
    %v6588 = vor.u32 1.1754944e-38, %v6587
    %v6589 = vsel %vm6586, %v6588, %v6584
    %v6590 = vmul.f32 1.0, %v6589
    %v6591 = vtanh.pop %v6551
    %v6592 = vxor.u32 %v6552, 2147483648
    %v6593 = vmul.f32 %v6592, 1.442695
    %v6594 = vpow.pop %v6593
    %v6595 = vadd.f32 %v6594, 1.0
    %v6596 = vrcp.pop %v6595
    %v6597 = vmul.f32 %v6595, %v6596
    %v6598 = vsub.f32 1.0, %v6597
    %v6599 = vmul.f32 %v6596, %v6598
    %v6600 = vadd.f32 %v6596, %v6599
    %vm6601 = vweird.f32 %v6595
    %vm6602 = vweird.f32 %v6596
    %vm6603 = vmor %vm6601, %vm6602
    %v6604 = vsel %vm6603, %v6596, %v6600
    %v6605 = vand.u32 2147483647, %v6595
    %vm6606 = vcmp.eq.f32.partialorder %v6605, 8.507059e+37
    %v6607 = vand.u32 %v6595, 2147483648
    %v6608 = vor.u32 1.1754944e-38, %v6607
    %v6609 = vsel %vm6606, %v6608, %v6604
    %v6610 = vmul.f32 1.0, %v6609
    %v6611 = vmul.f32 %v6590, %v6296
    %v6612 = vmul.f32 %v6571, %v6591
    %v6613 = vadd.f32 %v6611, %v6612
    %v6614 = vtanh.pop %v6613
    %v6615 = vmul.f32 %v6610, %v6614
    %6616 = vst [vmem:[#allocation2 + $0x28] sm:$0xff] %v6615
    %v6617 = vld [vmem:[#allocation3 + $0xc0] sm:$0xff]
    %v6618 = vld [vmem:[#allocation3 + $0xc8] sm:$0xff]
    %v6619 = vld [vmem:[#allocation3 + $0xd0] sm:$0xff]
    %v6620 = vld [vmem:[#allocation3 + $0xd8] sm:$0xff]
    %v6621 = vpack.c.bf16 %v6615, %v6615
    %v6622 = vld [vmem:[%s4719] sm:$0xff]
    %v6623 = vld [vmem:[%s4719 + $0x8] sm:$0xff]
    %v6624 = vld [vmem:[%s4719 + $0x10] sm:$0xff]
    %v6625 = vld [vmem:[%s4719 + $0x18] sm:$0xff]
    %v6626 = vld [vmem:[%s4719 + $0x20] sm:$0xff]
    %v6627 = vld [vmem:[%s4719 + $0x28] sm:$0xff]
    %v6628 = vld [vmem:[%s4719 + $0x30] sm:$0xff]
    %v6629 = vld [vmem:[%s4719 + $0x38] sm:$0xff]
    %v6630 = vld [vmem:[%s4719 + $0x40] sm:$0xff]
    %v6631 = vld [vmem:[%s4719 + $0x48] sm:$0xff]
    %v6632 = vld [vmem:[%s4719 + $0x50] sm:$0xff]
    %v6633 = vld [vmem:[%s4719 + $0x58] sm:$0xff]
    %v6634 = vld [vmem:[%s4719 + $0x60] sm:$0xff]
    %v6635 = vld [vmem:[%s4719 + $0x68] sm:$0xff]
    %v6636 = vld [vmem:[%s4719 + $0x70] sm:$0xff]
    %v6637 = vld [vmem:[%s4719 + $0x78] sm:$0xff]
    %v6638 = vld [vmem:[%s4719 + $0x80] sm:$0xff]
    %v6639 = vld [vmem:[%s4719 + $0x88] sm:$0xff]
    %v6640 = vld [vmem:[%s4719 + $0x90] sm:$0xff]
    %v6641 = vld [vmem:[%s4719 + $0x98] sm:$0xff]
    %v6642 = vld [vmem:[%s4719 + $0xa0] sm:$0xff]
    %v6643 = vld [vmem:[%s4719 + $0xa8] sm:$0xff]
    %v6644 = vld [vmem:[%s4719 + $0xb0] sm:$0xff]
    %v6645 = vld [vmem:[%s4719 + $0xb8] sm:$0xff]
    %v6646 = vld [vmem:[%s4719 + $0xc0] sm:$0xff]
    %v6647 = vld [vmem:[%s4719 + $0xc8] sm:$0xff]
    %v6648 = vld [vmem:[%s4719 + $0xd0] sm:$0xff]
    %v6649 = vld [vmem:[%s4719 + $0xd8] sm:$0xff]
    %v6650 = vld [vmem:[%s4719 + $0xe0] sm:$0xff]
    %v6651 = vld [vmem:[%s4719 + $0xe8] sm:$0xff]
    %v6652 = vld [vmem:[%s4719 + $0xf0] sm:$0xff]
    %v6653 = vld [vmem:[%s4719 + $0xf8] sm:$0xff]
    %v6686 = vunpack.c.l.b16 %v6622
    %v6687 = vunpack.c.h.b16 %v6622
    %v6688 = vunpack.c.l.b16 %v6623
    %v6689 = vunpack.c.h.b16 %v6623
    %v6690 = vunpack.c.l.b16 %v6624
    %v6691 = vunpack.c.h.b16 %v6624
    %v6692 = vunpack.c.l.b16 %v6625
    %v6693 = vunpack.c.h.b16 %v6625
    %v6694 = vunpack.c.l.b16 %v6626
    %v6695 = vunpack.c.h.b16 %v6626
    %v6696 = vunpack.c.l.b16 %v6627
    %v6697 = vunpack.c.h.b16 %v6627
    %v6698 = vunpack.c.l.b16 %v6628
    %v6699 = vunpack.c.h.b16 %v6628
    %v6700 = vunpack.c.l.b16 %v6629
    %v6701 = vunpack.c.h.b16 %v6629
    %v6702 = vunpack.c.l.b16 %v6630
    %v6703 = vunpack.c.h.b16 %v6630
    %v6704 = vunpack.c.l.b16 %v6631
    %v6705 = vunpack.c.h.b16 %v6631
    %v6706 = vunpack.c.l.b16 %v6632
    %v6707 = vunpack.c.h.b16 %v6632
    %v6708 = vunpack.c.l.b16 %v6633
    %v6709 = vunpack.c.h.b16 %v6633
    %v6710 = vunpack.c.l.b16 %v6634
    %v6711 = vunpack.c.h.b16 %v6634
    %v6712 = vunpack.c.l.b16 %v6635
    %v6713 = vunpack.c.h.b16 %v6635
    %v6714 = vunpack.c.l.b16 %v6636
    %v6715 = vunpack.c.h.b16 %v6636
    %v6716 = vunpack.c.l.b16 %v6637
    %v6717 = vunpack.c.h.b16 %v6637
    %v6718 = vunpack.c.l.b16 %v6638
    %v6719 = vunpack.c.h.b16 %v6638
    %v6720 = vunpack.c.l.b16 %v6639
    %v6721 = vunpack.c.h.b16 %v6639
    %v6722 = vunpack.c.l.b16 %v6640
    %v6723 = vunpack.c.h.b16 %v6640
    %v6724 = vunpack.c.l.b16 %v6641
    %v6725 = vunpack.c.h.b16 %v6641
    %v6726 = vunpack.c.l.b16 %v6642
    %v6727 = vunpack.c.h.b16 %v6642
    %v6728 = vunpack.c.l.b16 %v6643
    %v6729 = vunpack.c.h.b16 %v6643
    %v6730 = vunpack.c.l.b16 %v6644
    %v6731 = vunpack.c.h.b16 %v6644
    %v6732 = vunpack.c.l.b16 %v6645
    %v6733 = vunpack.c.h.b16 %v6645
    %v6734 = vunpack.c.l.b16 %v6646
    %v6735 = vunpack.c.h.b16 %v6646
    %v6736 = vunpack.c.l.b16 %v6647
    %v6737 = vunpack.c.h.b16 %v6647
    %v6738 = vunpack.c.l.b16 %v6648
    %v6739 = vunpack.c.h.b16 %v6648
    %v6740 = vunpack.c.l.b16 %v6649
    %v6741 = vunpack.c.h.b16 %v6649
    %v6742 = vunpack.c.l.b16 %v6650
    %v6743 = vunpack.c.h.b16 %v6650
    %v6744 = vunpack.c.l.b16 %v6651
    %v6745 = vunpack.c.h.b16 %v6651
    %v6746 = vunpack.c.l.b16 %v6652
    %v6747 = vunpack.c.h.b16 %v6652
    %v6748 = vunpack.c.l.b16 %v6653
    %v6749 = vunpack.c.h.b16 %v6653
    %v6750 = vpack.c.b16 %v6690, %v6686
    %v6751 = vpack.c.b16 %v6691, %v6687
    %v6752 = vpack.c.b16 %v6692, %v6688
    %v6753 = vpack.c.b16 %v6693, %v6689
    %v6754 = vpack.c.b16 %v6698, %v6694
    %v6755 = vpack.c.b16 %v6699, %v6695
    %v6756 = vpack.c.b16 %v6700, %v6696
    %v6757 = vpack.c.b16 %v6701, %v6697
    %v6758 = vpack.c.b16 %v6706, %v6702
    %v6759 = vpack.c.b16 %v6707, %v6703
    %v6760 = vpack.c.b16 %v6708, %v6704
    %v6761 = vpack.c.b16 %v6709, %v6705
    %v6762 = vpack.c.b16 %v6714, %v6710
    %v6763 = vpack.c.b16 %v6715, %v6711
    %v6764 = vpack.c.b16 %v6716, %v6712
    %v6765 = vpack.c.b16 %v6717, %v6713
    %v6766 = vpack.c.b16 %v6722, %v6718
    %v6767 = vpack.c.b16 %v6723, %v6719
    %v6768 = vpack.c.b16 %v6724, %v6720
    %v6769 = vpack.c.b16 %v6725, %v6721
    %v6770 = vpack.c.b16 %v6730, %v6726
    %v6771 = vpack.c.b16 %v6731, %v6727
    %v6772 = vpack.c.b16 %v6732, %v6728
    %v6773 = vpack.c.b16 %v6733, %v6729
    %v6774 = vpack.c.b16 %v6738, %v6734
    %v6775 = vpack.c.b16 %v6739, %v6735
    %v6776 = vpack.c.b16 %v6740, %v6736
    %v6777 = vpack.c.b16 %v6741, %v6737
    %v6778 = vpack.c.b16 %v6746, %v6742
    %v6779 = vpack.c.b16 %v6747, %v6743
    %v6780 = vpack.c.b16 %v6748, %v6744
    %v6781 = vpack.c.b16 %v6749, %v6745
    %6814 = vmatpush.bf16.msra.mxu0 %v6778
    %6815 = vmatpush.bf16.msra.mxu0 %v6774
    %6816 = vmatpush.bf16.msra.mxu0 %v6770
    %6817 = vmatpush.bf16.msra.mxu0 %v6766
    %6818 = vmatpush.bf16.msra.mxu0 %v6762
    %6819 = vmatpush.bf16.msra.mxu0 %v6758
    %6820 = vmatpush.bf16.msra.mxu0 %v6754
    %6821 = vmatpush.bf16.msra.mxu0 %v6750
    %6822 = vmatmul.bf16.gmra.mxu0 %v6621
    %v6823 = vpop.f32.mrf.mxu0
    %v6824 = vadd.f32 0.0, %v6823
    %v6825 = vpop.f32.mrf.mxu0
    %6826 = vdwg.mxu0
    %6827 = vmatpush.bf16.msra.mxu0 %v6779
    %6828 = vmatpush.bf16.msra.mxu0 %v6775
    %6829 = vmatpush.bf16.msra.mxu0 %v6771
    %6830 = vmatpush.bf16.msra.mxu0 %v6767
    %6831 = vmatpush.bf16.msra.mxu0 %v6763
    %6832 = vmatpush.bf16.msra.mxu0 %v6759
    %6833 = vmatpush.bf16.msra.mxu0 %v6755
    %6834 = vmatpush.bf16.msra.mxu0 %v6751
    %6835 = vmatmul.bf16.gmra.mxu0 %v6621
    %v6836 = vpop.f32.mrf.mxu0
    %v6837 = vadd.f32 0.0, %v6836
    %v6838 = vpop.f32.mrf.mxu0
    %6839 = vdwg.mxu0
    %6840 = vmatpush.bf16.msra.mxu0 %v6780
    %6841 = vmatpush.bf16.msra.mxu0 %v6776
    %6842 = vmatpush.bf16.msra.mxu0 %v6772
    %6843 = vmatpush.bf16.msra.mxu0 %v6768
    %6844 = vmatpush.bf16.msra.mxu0 %v6764
    %6845 = vmatpush.bf16.msra.mxu0 %v6760
    %6846 = vmatpush.bf16.msra.mxu0 %v6756
    %6847 = vmatpush.bf16.msra.mxu0 %v6752
    %6848 = vmatmul.bf16.gmra.mxu0 %v6621
    %v6849 = vpop.f32.mrf.mxu0
    %v6850 = vadd.f32 0.0, %v6849
    %v6851 = vpop.f32.mrf.mxu0
    %6852 = vdwg.mxu0
    %6853 = vmatpush.bf16.msra.mxu0 %v6781
    %6854 = vmatpush.bf16.msra.mxu0 %v6777
    %6855 = vmatpush.bf16.msra.mxu0 %v6773
    %6856 = vmatpush.bf16.msra.mxu0 %v6769
    %6857 = vmatpush.bf16.msra.mxu0 %v6765
    %6858 = vmatpush.bf16.msra.mxu0 %v6761
    %6859 = vmatpush.bf16.msra.mxu0 %v6757
    %6860 = vmatpush.bf16.msra.mxu0 %v6753
    %6861 = vmatmul.bf16.gmra.mxu0 %v6621
    %v6862 = vpop.f32.mrf.mxu0
    %v6863 = vadd.f32 0.0, %v6862
    %v6864 = vpop.f32.mrf.mxu0
    %6865 = vdwg.mxu0
    %v6866 = vadd.f32 %v6617, %v6824
    %v6867 = vadd.f32 %v6618, %v6837
    %v6868 = vadd.f32 %v6619, %v6850
    %v6869 = vadd.f32 %v6620, %v6863
    %v6870 = vxor.u32 %v6866, 2147483648
    %v6871 = vmul.f32 %v6870, 1.442695
    %v6872 = vpow.pop %v6871
    %v6873 = vadd.f32 %v6872, 1.0
    %v6874 = vrcp.pop %v6873
    %v6875 = vmul.f32 %v6873, %v6874
    %v6876 = vsub.f32 1.0, %v6875
    %v6877 = vmul.f32 %v6874, %v6876
    %v6878 = vadd.f32 %v6874, %v6877
    %vm6879 = vweird.f32 %v6873
    %vm6880 = vweird.f32 %v6874
    %vm6881 = vmor %vm6879, %vm6880
    %v6882 = vsel %vm6881, %v6874, %v6878
    %v6883 = vand.u32 2147483647, %v6873
    %vm6884 = vcmp.eq.f32.partialorder %v6883, 8.507059e+37
    %v6885 = vand.u32 %v6873, 2147483648
    %v6886 = vor.u32 1.1754944e-38, %v6885
    %v6887 = vsel %vm6884, %v6886, %v6882
    %v6888 = vmul.f32 1.0, %v6887
    %v6889 = vxor.u32 %v6867, 2147483648
    %v6890 = vmul.f32 %v6889, 1.442695
    %v6891 = vpow.pop %v6890
    %v6892 = vadd.f32 %v6891, 1.0
    %v6893 = vrcp.pop %v6892
    %v6894 = vmul.f32 %v6892, %v6893
    %v6895 = vsub.f32 1.0, %v6894
    %v6896 = vmul.f32 %v6893, %v6895
    %v6897 = vadd.f32 %v6893, %v6896
    %vm6898 = vweird.f32 %v6892
    %vm6899 = vweird.f32 %v6893
    %vm6900 = vmor %vm6898, %vm6899
    %v6901 = vsel %vm6900, %v6893, %v6897
    %v6902 = vand.u32 2147483647, %v6892
    %vm6903 = vcmp.eq.f32.partialorder %v6902, 8.507059e+37
    %v6904 = vand.u32 %v6892, 2147483648
    %v6905 = vor.u32 1.1754944e-38, %v6904
    %v6906 = vsel %vm6903, %v6905, %v6901
    %v6907 = vmul.f32 1.0, %v6906
    %v6908 = vtanh.pop %v6868
    %v6909 = vxor.u32 %v6869, 2147483648
    %v6910 = vmul.f32 %v6909, 1.442695
    %v6911 = vpow.pop %v6910
    %v6912 = vadd.f32 %v6911, 1.0
    %v6913 = vrcp.pop %v6912
    %v6914 = vmul.f32 %v6912, %v6913
    %v6915 = vsub.f32 1.0, %v6914
    %v6916 = vmul.f32 %v6913, %v6915
    %v6917 = vadd.f32 %v6913, %v6916
    %vm6918 = vweird.f32 %v6912
    %vm6919 = vweird.f32 %v6913
    %vm6920 = vmor %vm6918, %vm6919
    %v6921 = vsel %vm6920, %v6913, %v6917
    %v6922 = vand.u32 2147483647, %v6912
    %vm6923 = vcmp.eq.f32.partialorder %v6922, 8.507059e+37
    %v6924 = vand.u32 %v6912, 2147483648
    %v6925 = vor.u32 1.1754944e-38, %v6924
    %v6926 = vsel %vm6923, %v6925, %v6921
    %v6927 = vmul.f32 1.0, %v6926
    %v6928 = vmul.f32 %v6907, %v6613
    %v6929 = vmul.f32 %v6888, %v6908
    %v6930 = vadd.f32 %v6928, %v6929
    %v6931 = vtanh.pop %v6930
    %v6932 = vmul.f32 %v6927, %v6931
    %6933 = vst [vmem:[#allocation2 + $0x30] sm:$0xff] %v6932
    %v6934 = vld [vmem:[#allocation3 + $0xe0] sm:$0xff]
    %v6935 = vld [vmem:[#allocation3 + $0xe8] sm:$0xff]
    %v6936 = vld [vmem:[#allocation3 + $0xf0] sm:$0xff]
    %v6937 = vld [vmem:[#allocation3 + $0xf8] sm:$0xff]
    %v6938 = vpack.c.bf16 %v6932, %v6932
    %v6939 = vld [vmem:[%s4719] sm:$0xff]
    %v6940 = vld [vmem:[%s4719 + $0x8] sm:$0xff]
    %v6941 = vld [vmem:[%s4719 + $0x10] sm:$0xff]
    %v6942 = vld [vmem:[%s4719 + $0x18] sm:$0xff]
    %v6943 = vld [vmem:[%s4719 + $0x20] sm:$0xff]
    %v6944 = vld [vmem:[%s4719 + $0x28] sm:$0xff]
    %v6945 = vld [vmem:[%s4719 + $0x30] sm:$0xff]
    %v6946 = vld [vmem:[%s4719 + $0x38] sm:$0xff]
    %v6947 = vld [vmem:[%s4719 + $0x40] sm:$0xff]
    %v6948 = vld [vmem:[%s4719 + $0x48] sm:$0xff]
    %v6949 = vld [vmem:[%s4719 + $0x50] sm:$0xff]
    %v6950 = vld [vmem:[%s4719 + $0x58] sm:$0xff]
    %v6951 = vld [vmem:[%s4719 + $0x60] sm:$0xff]
    %v6952 = vld [vmem:[%s4719 + $0x68] sm:$0xff]
    %v6953 = vld [vmem:[%s4719 + $0x70] sm:$0xff]
    %v6954 = vld [vmem:[%s4719 + $0x78] sm:$0xff]
    %v6955 = vld [vmem:[%s4719 + $0x80] sm:$0xff]
    %v6956 = vld [vmem:[%s4719 + $0x88] sm:$0xff]
    %v6957 = vld [vmem:[%s4719 + $0x90] sm:$0xff]
    %v6958 = vld [vmem:[%s4719 + $0x98] sm:$0xff]
    %v6959 = vld [vmem:[%s4719 + $0xa0] sm:$0xff]
    %v6960 = vld [vmem:[%s4719 + $0xa8] sm:$0xff]
    %v6961 = vld [vmem:[%s4719 + $0xb0] sm:$0xff]
    %v6962 = vld [vmem:[%s4719 + $0xb8] sm:$0xff]
    %v6963 = vld [vmem:[%s4719 + $0xc0] sm:$0xff]
    %v6964 = vld [vmem:[%s4719 + $0xc8] sm:$0xff]
    %v6965 = vld [vmem:[%s4719 + $0xd0] sm:$0xff]
    %v6966 = vld [vmem:[%s4719 + $0xd8] sm:$0xff]
    %v6967 = vld [vmem:[%s4719 + $0xe0] sm:$0xff]
    %v6968 = vld [vmem:[%s4719 + $0xe8] sm:$0xff]
    %v6969 = vld [vmem:[%s4719 + $0xf0] sm:$0xff]
    %v6970 = vld [vmem:[%s4719 + $0xf8] sm:$0xff]
    %v7003 = vunpack.c.l.b16 %v6939
    %v7004 = vunpack.c.h.b16 %v6939
    %v7005 = vunpack.c.l.b16 %v6940
    %v7006 = vunpack.c.h.b16 %v6940
    %v7007 = vunpack.c.l.b16 %v6941
    %v7008 = vunpack.c.h.b16 %v6941
    %v7009 = vunpack.c.l.b16 %v6942
    %v7010 = vunpack.c.h.b16 %v6942
    %v7011 = vunpack.c.l.b16 %v6943
    %v7012 = vunpack.c.h.b16 %v6943
    %v7013 = vunpack.c.l.b16 %v6944
    %v7014 = vunpack.c.h.b16 %v6944
    %v7015 = vunpack.c.l.b16 %v6945
    %v7016 = vunpack.c.h.b16 %v6945
    %v7017 = vunpack.c.l.b16 %v6946
    %v7018 = vunpack.c.h.b16 %v6946
    %v7019 = vunpack.c.l.b16 %v6947
    %v7020 = vunpack.c.h.b16 %v6947
    %v7021 = vunpack.c.l.b16 %v6948
    %v7022 = vunpack.c.h.b16 %v6948
    %v7023 = vunpack.c.l.b16 %v6949
    %v7024 = vunpack.c.h.b16 %v6949
    %v7025 = vunpack.c.l.b16 %v6950
    %v7026 = vunpack.c.h.b16 %v6950
    %v7027 = vunpack.c.l.b16 %v6951
    %v7028 = vunpack.c.h.b16 %v6951
    %v7029 = vunpack.c.l.b16 %v6952
    %v7030 = vunpack.c.h.b16 %v6952
    %v7031 = vunpack.c.l.b16 %v6953
    %v7032 = vunpack.c.h.b16 %v6953
    %v7033 = vunpack.c.l.b16 %v6954
    %v7034 = vunpack.c.h.b16 %v6954
    %v7035 = vunpack.c.l.b16 %v6955
    %v7036 = vunpack.c.h.b16 %v6955
    %v7037 = vunpack.c.l.b16 %v6956
    %v7038 = vunpack.c.h.b16 %v6956
    %v7039 = vunpack.c.l.b16 %v6957
    %v7040 = vunpack.c.h.b16 %v6957
    %v7041 = vunpack.c.l.b16 %v6958
    %v7042 = vunpack.c.h.b16 %v6958
    %v7043 = vunpack.c.l.b16 %v6959
    %v7044 = vunpack.c.h.b16 %v6959
    %v7045 = vunpack.c.l.b16 %v6960
    %v7046 = vunpack.c.h.b16 %v6960
    %v7047 = vunpack.c.l.b16 %v6961
    %v7048 = vunpack.c.h.b16 %v6961
    %v7049 = vunpack.c.l.b16 %v6962
    %v7050 = vunpack.c.h.b16 %v6962
    %v7051 = vunpack.c.l.b16 %v6963
    %v7052 = vunpack.c.h.b16 %v6963
    %v7053 = vunpack.c.l.b16 %v6964
    %v7054 = vunpack.c.h.b16 %v6964
    %v7055 = vunpack.c.l.b16 %v6965
    %v7056 = vunpack.c.h.b16 %v6965
    %v7057 = vunpack.c.l.b16 %v6966
    %v7058 = vunpack.c.h.b16 %v6966
    %v7059 = vunpack.c.l.b16 %v6967
    %v7060 = vunpack.c.h.b16 %v6967
    %v7061 = vunpack.c.l.b16 %v6968
    %v7062 = vunpack.c.h.b16 %v6968
    %v7063 = vunpack.c.l.b16 %v6969
    %v7064 = vunpack.c.h.b16 %v6969
    %v7065 = vunpack.c.l.b16 %v6970
    %v7066 = vunpack.c.h.b16 %v6970
    %v7067 = vpack.c.b16 %v7007, %v7003
    %v7068 = vpack.c.b16 %v7008, %v7004
    %v7069 = vpack.c.b16 %v7009, %v7005
    %v7070 = vpack.c.b16 %v7010, %v7006
    %v7071 = vpack.c.b16 %v7015, %v7011
    %v7072 = vpack.c.b16 %v7016, %v7012
    %v7073 = vpack.c.b16 %v7017, %v7013
    %v7074 = vpack.c.b16 %v7018, %v7014
    %v7075 = vpack.c.b16 %v7023, %v7019
    %v7076 = vpack.c.b16 %v7024, %v7020
    %v7077 = vpack.c.b16 %v7025, %v7021
    %v7078 = vpack.c.b16 %v7026, %v7022
    %v7079 = vpack.c.b16 %v7031, %v7027
    %v7080 = vpack.c.b16 %v7032, %v7028
    %v7081 = vpack.c.b16 %v7033, %v7029
    %v7082 = vpack.c.b16 %v7034, %v7030
    %v7083 = vpack.c.b16 %v7039, %v7035
    %v7084 = vpack.c.b16 %v7040, %v7036
    %v7085 = vpack.c.b16 %v7041, %v7037
    %v7086 = vpack.c.b16 %v7042, %v7038
    %v7087 = vpack.c.b16 %v7047, %v7043
    %v7088 = vpack.c.b16 %v7048, %v7044
    %v7089 = vpack.c.b16 %v7049, %v7045
    %v7090 = vpack.c.b16 %v7050, %v7046
    %v7091 = vpack.c.b16 %v7055, %v7051
    %v7092 = vpack.c.b16 %v7056, %v7052
    %v7093 = vpack.c.b16 %v7057, %v7053
    %v7094 = vpack.c.b16 %v7058, %v7054
    %v7095 = vpack.c.b16 %v7063, %v7059
    %v7096 = vpack.c.b16 %v7064, %v7060
    %v7097 = vpack.c.b16 %v7065, %v7061
    %v7098 = vpack.c.b16 %v7066, %v7062
    %7131 = vmatpush.bf16.msra.mxu0 %v7095
    %7132 = vmatpush.bf16.msra.mxu0 %v7091
    %7133 = vmatpush.bf16.msra.mxu0 %v7087
    %7134 = vmatpush.bf16.msra.mxu0 %v7083
    %7135 = vmatpush.bf16.msra.mxu0 %v7079
    %7136 = vmatpush.bf16.msra.mxu0 %v7075
    %7137 = vmatpush.bf16.msra.mxu0 %v7071
    %7138 = vmatpush.bf16.msra.mxu0 %v7067
    %7139 = vmatmul.bf16.gmra.mxu0 %v6938
    %v7140 = vpop.f32.mrf.mxu0
    %v7141 = vadd.f32 0.0, %v7140
    %v7142 = vpop.f32.mrf.mxu0
    %7143 = vdwg.mxu0
    %7144 = vmatpush.bf16.msra.mxu0 %v7096
    %7145 = vmatpush.bf16.msra.mxu0 %v7092
    %7146 = vmatpush.bf16.msra.mxu0 %v7088
    %7147 = vmatpush.bf16.msra.mxu0 %v7084
    %7148 = vmatpush.bf16.msra.mxu0 %v7080
    %7149 = vmatpush.bf16.msra.mxu0 %v7076
    %7150 = vmatpush.bf16.msra.mxu0 %v7072
    %7151 = vmatpush.bf16.msra.mxu0 %v7068
    %7152 = vmatmul.bf16.gmra.mxu0 %v6938
    %v7153 = vpop.f32.mrf.mxu0
    %v7154 = vadd.f32 0.0, %v7153
    %v7155 = vpop.f32.mrf.mxu0
    %7156 = vdwg.mxu0
    %7157 = vmatpush.bf16.msra.mxu0 %v7097
    %7158 = vmatpush.bf16.msra.mxu0 %v7093
    %7159 = vmatpush.bf16.msra.mxu0 %v7089
    %7160 = vmatpush.bf16.msra.mxu0 %v7085
    %7161 = vmatpush.bf16.msra.mxu0 %v7081
    %7162 = vmatpush.bf16.msra.mxu0 %v7077
    %7163 = vmatpush.bf16.msra.mxu0 %v7073
    %7164 = vmatpush.bf16.msra.mxu0 %v7069
    %7165 = vmatmul.bf16.gmra.mxu0 %v6938
    %v7166 = vpop.f32.mrf.mxu0
    %v7167 = vadd.f32 0.0, %v7166
    %v7168 = vpop.f32.mrf.mxu0
    %7169 = vdwg.mxu0
    %7170 = vmatpush.bf16.msra.mxu0 %v7098
    %7171 = vmatpush.bf16.msra.mxu0 %v7094
    %7172 = vmatpush.bf16.msra.mxu0 %v7090
    %7173 = vmatpush.bf16.msra.mxu0 %v7086
    %7174 = vmatpush.bf16.msra.mxu0 %v7082
    %7175 = vmatpush.bf16.msra.mxu0 %v7078
    %7176 = vmatpush.bf16.msra.mxu0 %v7074
    %7177 = vmatpush.bf16.msra.mxu0 %v7070
    %7178 = vmatmul.bf16.gmra.mxu0 %v6938
    %v7179 = vpop.f32.mrf.mxu0
    %v7180 = vadd.f32 0.0, %v7179
    %v7181 = vpop.f32.mrf.mxu0
    %7182 = vdwg.mxu0
    %v7183 = vadd.f32 %v6934, %v7141
    %v7184 = vadd.f32 %v6935, %v7154
    %v7185 = vadd.f32 %v6936, %v7167
    %v7186 = vadd.f32 %v6937, %v7180
    %v7187 = vxor.u32 %v7183, 2147483648
    %v7188 = vmul.f32 %v7187, 1.442695
    %v7189 = vpow.pop %v7188
    %v7190 = vadd.f32 %v7189, 1.0
    %v7191 = vrcp.pop %v7190
    %v7192 = vmul.f32 %v7190, %v7191
    %v7193 = vsub.f32 1.0, %v7192
    %v7194 = vmul.f32 %v7191, %v7193
    %v7195 = vadd.f32 %v7191, %v7194
    %vm7196 = vweird.f32 %v7190
    %vm7197 = vweird.f32 %v7191
    %vm7198 = vmor %vm7196, %vm7197
    %v7199 = vsel %vm7198, %v7191, %v7195
    %v7200 = vand.u32 2147483647, %v7190
    %vm7201 = vcmp.eq.f32.partialorder %v7200, 8.507059e+37
    %v7202 = vand.u32 %v7190, 2147483648
    %v7203 = vor.u32 1.1754944e-38, %v7202
    %v7204 = vsel %vm7201, %v7203, %v7199
    %v7205 = vmul.f32 1.0, %v7204
    %v7206 = vxor.u32 %v7184, 2147483648
    %v7207 = vmul.f32 %v7206, 1.442695
    %v7208 = vpow.pop %v7207
    %v7209 = vadd.f32 %v7208, 1.0
    %v7210 = vrcp.pop %v7209
    %v7211 = vmul.f32 %v7209, %v7210
    %v7212 = vsub.f32 1.0, %v7211
    %v7213 = vmul.f32 %v7210, %v7212
    %v7214 = vadd.f32 %v7210, %v7213
    %vm7215 = vweird.f32 %v7209
    %vm7216 = vweird.f32 %v7210
    %vm7217 = vmor %vm7215, %vm7216
    %v7218 = vsel %vm7217, %v7210, %v7214
    %v7219 = vand.u32 2147483647, %v7209
    %vm7220 = vcmp.eq.f32.partialorder %v7219, 8.507059e+37
    %v7221 = vand.u32 %v7209, 2147483648
    %v7222 = vor.u32 1.1754944e-38, %v7221
    %v7223 = vsel %vm7220, %v7222, %v7218
    %v7224 = vmul.f32 1.0, %v7223
    %v7225 = vtanh.pop %v7185
    %v7226 = vxor.u32 %v7186, 2147483648
    %v7227 = vmul.f32 %v7226, 1.442695
    %v7228 = vpow.pop %v7227
    %v7229 = vadd.f32 %v7228, 1.0
    %v7230 = vrcp.pop %v7229
    %v7231 = vmul.f32 %v7229, %v7230
    %v7232 = vsub.f32 1.0, %v7231
    %v7233 = vmul.f32 %v7230, %v7232
    %v7234 = vadd.f32 %v7230, %v7233
    %vm7235 = vweird.f32 %v7229
    %vm7236 = vweird.f32 %v7230
    %vm7237 = vmor %vm7235, %vm7236
    %v7238 = vsel %vm7237, %v7230, %v7234
    %v7239 = vand.u32 2147483647, %v7229
    %vm7240 = vcmp.eq.f32.partialorder %v7239, 8.507059e+37
    %v7241 = vand.u32 %v7229, 2147483648
    %v7242 = vor.u32 1.1754944e-38, %v7241
    %v7243 = vsel %vm7240, %v7242, %v7238
    %v7244 = vmul.f32 1.0, %v7243
    %v7245 = vmul.f32 %v7224, %v6930
    %v7246 = vmul.f32 %v7205, %v7225
    %v7247 = vadd.f32 %v7245, %v7246
    %v7248 = vtanh.pop %v7247
    %v7249 = vmul.f32 %v7244, %v7248
    %7250 = vst [vmem:[#allocation2 + $0x38] sm:$0xff] %v7249
    %v7251 = vld [vmem:[#allocation3 + $0x100] sm:$0xff]
    %v7252 = vld [vmem:[#allocation3 + $0x108] sm:$0xff]
    %v7253 = vld [vmem:[#allocation3 + $0x110] sm:$0xff]
    %v7254 = vld [vmem:[#allocation3 + $0x118] sm:$0xff]
    %v7255 = vpack.c.bf16 %v7249, %v7249
    %v7256 = vld [vmem:[%s4719] sm:$0xff]
    %v7257 = vld [vmem:[%s4719 + $0x8] sm:$0xff]
    %v7258 = vld [vmem:[%s4719 + $0x10] sm:$0xff]
    %v7259 = vld [vmem:[%s4719 + $0x18] sm:$0xff]
    %v7260 = vld [vmem:[%s4719 + $0x20] sm:$0xff]
    %v7261 = vld [vmem:[%s4719 + $0x28] sm:$0xff]
    %v7262 = vld [vmem:[%s4719 + $0x30] sm:$0xff]
    %v7263 = vld [vmem:[%s4719 + $0x38] sm:$0xff]
    %v7264 = vld [vmem:[%s4719 + $0x40] sm:$0xff]
    %v7265 = vld [vmem:[%s4719 + $0x48] sm:$0xff]
    %v7266 = vld [vmem:[%s4719 + $0x50] sm:$0xff]
    %v7267 = vld [vmem:[%s4719 + $0x58] sm:$0xff]
    %v7268 = vld [vmem:[%s4719 + $0x60] sm:$0xff]
    %v7269 = vld [vmem:[%s4719 + $0x68] sm:$0xff]
    %v7270 = vld [vmem:[%s4719 + $0x70] sm:$0xff]
    %v7271 = vld [vmem:[%s4719 + $0x78] sm:$0xff]
    %v7272 = vld [vmem:[%s4719 + $0x80] sm:$0xff]
    %v7273 = vld [vmem:[%s4719 + $0x88] sm:$0xff]
    %v7274 = vld [vmem:[%s4719 + $0x90] sm:$0xff]
    %v7275 = vld [vmem:[%s4719 + $0x98] sm:$0xff]
    %v7276 = vld [vmem:[%s4719 + $0xa0] sm:$0xff]
    %v7277 = vld [vmem:[%s4719 + $0xa8] sm:$0xff]
    %v7278 = vld [vmem:[%s4719 + $0xb0] sm:$0xff]
    %v7279 = vld [vmem:[%s4719 + $0xb8] sm:$0xff]
    %v7280 = vld [vmem:[%s4719 + $0xc0] sm:$0xff]
    %v7281 = vld [vmem:[%s4719 + $0xc8] sm:$0xff]
    %v7282 = vld [vmem:[%s4719 + $0xd0] sm:$0xff]
    %v7283 = vld [vmem:[%s4719 + $0xd8] sm:$0xff]
    %v7284 = vld [vmem:[%s4719 + $0xe0] sm:$0xff]
    %v7285 = vld [vmem:[%s4719 + $0xe8] sm:$0xff]
    %v7286 = vld [vmem:[%s4719 + $0xf0] sm:$0xff]
    %v7287 = vld [vmem:[%s4719 + $0xf8] sm:$0xff]
    %v7320 = vunpack.c.l.b16 %v7256
    %v7321 = vunpack.c.h.b16 %v7256
    %v7322 = vunpack.c.l.b16 %v7257
    %v7323 = vunpack.c.h.b16 %v7257
    %v7324 = vunpack.c.l.b16 %v7258
    %v7325 = vunpack.c.h.b16 %v7258
    %v7326 = vunpack.c.l.b16 %v7259
    %v7327 = vunpack.c.h.b16 %v7259
    %v7328 = vunpack.c.l.b16 %v7260
    %v7329 = vunpack.c.h.b16 %v7260
    %v7330 = vunpack.c.l.b16 %v7261
    %v7331 = vunpack.c.h.b16 %v7261
    %v7332 = vunpack.c.l.b16 %v7262
    %v7333 = vunpack.c.h.b16 %v7262
    %v7334 = vunpack.c.l.b16 %v7263
    %v7335 = vunpack.c.h.b16 %v7263
    %v7336 = vunpack.c.l.b16 %v7264
    %v7337 = vunpack.c.h.b16 %v7264
    %v7338 = vunpack.c.l.b16 %v7265
    %v7339 = vunpack.c.h.b16 %v7265
    %v7340 = vunpack.c.l.b16 %v7266
    %v7341 = vunpack.c.h.b16 %v7266
    %v7342 = vunpack.c.l.b16 %v7267
    %v7343 = vunpack.c.h.b16 %v7267
    %v7344 = vunpack.c.l.b16 %v7268
    %v7345 = vunpack.c.h.b16 %v7268
    %v7346 = vunpack.c.l.b16 %v7269
    %v7347 = vunpack.c.h.b16 %v7269
    %v7348 = vunpack.c.l.b16 %v7270
    %v7349 = vunpack.c.h.b16 %v7270
    %v7350 = vunpack.c.l.b16 %v7271
    %v7351 = vunpack.c.h.b16 %v7271
    %v7352 = vunpack.c.l.b16 %v7272
    %v7353 = vunpack.c.h.b16 %v7272
    %v7354 = vunpack.c.l.b16 %v7273
    %v7355 = vunpack.c.h.b16 %v7273
    %v7356 = vunpack.c.l.b16 %v7274
    %v7357 = vunpack.c.h.b16 %v7274
    %v7358 = vunpack.c.l.b16 %v7275
    %v7359 = vunpack.c.h.b16 %v7275
    %v7360 = vunpack.c.l.b16 %v7276
    %v7361 = vunpack.c.h.b16 %v7276
    %v7362 = vunpack.c.l.b16 %v7277
    %v7363 = vunpack.c.h.b16 %v7277
    %v7364 = vunpack.c.l.b16 %v7278
    %v7365 = vunpack.c.h.b16 %v7278
    %v7366 = vunpack.c.l.b16 %v7279
    %v7367 = vunpack.c.h.b16 %v7279
    %v7368 = vunpack.c.l.b16 %v7280
    %v7369 = vunpack.c.h.b16 %v7280
    %v7370 = vunpack.c.l.b16 %v7281
    %v7371 = vunpack.c.h.b16 %v7281
    %v7372 = vunpack.c.l.b16 %v7282
    %v7373 = vunpack.c.h.b16 %v7282
    %v7374 = vunpack.c.l.b16 %v7283
    %v7375 = vunpack.c.h.b16 %v7283
    %v7376 = vunpack.c.l.b16 %v7284
    %v7377 = vunpack.c.h.b16 %v7284
    %v7378 = vunpack.c.l.b16 %v7285
    %v7379 = vunpack.c.h.b16 %v7285
    %v7380 = vunpack.c.l.b16 %v7286
    %v7381 = vunpack.c.h.b16 %v7286
    %v7382 = vunpack.c.l.b16 %v7287
    %v7383 = vunpack.c.h.b16 %v7287
    %v7384 = vpack.c.b16 %v7324, %v7320
    %v7385 = vpack.c.b16 %v7325, %v7321
    %v7386 = vpack.c.b16 %v7326, %v7322
    %v7387 = vpack.c.b16 %v7327, %v7323
    %v7388 = vpack.c.b16 %v7332, %v7328
    %v7389 = vpack.c.b16 %v7333, %v7329
    %v7390 = vpack.c.b16 %v7334, %v7330
    %v7391 = vpack.c.b16 %v7335, %v7331
    %v7392 = vpack.c.b16 %v7340, %v7336
    %v7393 = vpack.c.b16 %v7341, %v7337
    %v7394 = vpack.c.b16 %v7342, %v7338
    %v7395 = vpack.c.b16 %v7343, %v7339
    %v7396 = vpack.c.b16 %v7348, %v7344
    %v7397 = vpack.c.b16 %v7349, %v7345
    %v7398 = vpack.c.b16 %v7350, %v7346
    %v7399 = vpack.c.b16 %v7351, %v7347
    %v7400 = vpack.c.b16 %v7356, %v7352
    %v7401 = vpack.c.b16 %v7357, %v7353
    %v7402 = vpack.c.b16 %v7358, %v7354
    %v7403 = vpack.c.b16 %v7359, %v7355
    %v7404 = vpack.c.b16 %v7364, %v7360
    %v7405 = vpack.c.b16 %v7365, %v7361
    %v7406 = vpack.c.b16 %v7366, %v7362
    %v7407 = vpack.c.b16 %v7367, %v7363
    %v7408 = vpack.c.b16 %v7372, %v7368
    %v7409 = vpack.c.b16 %v7373, %v7369
    %v7410 = vpack.c.b16 %v7374, %v7370
    %v7411 = vpack.c.b16 %v7375, %v7371
    %v7412 = vpack.c.b16 %v7380, %v7376
    %v7413 = vpack.c.b16 %v7381, %v7377
    %v7414 = vpack.c.b16 %v7382, %v7378
    %v7415 = vpack.c.b16 %v7383, %v7379
    %7448 = vmatpush.bf16.msra.mxu0 %v7412
    %7449 = vmatpush.bf16.msra.mxu0 %v7408
    %7450 = vmatpush.bf16.msra.mxu0 %v7404
    %7451 = vmatpush.bf16.msra.mxu0 %v7400
    %7452 = vmatpush.bf16.msra.mxu0 %v7396
    %7453 = vmatpush.bf16.msra.mxu0 %v7392
    %7454 = vmatpush.bf16.msra.mxu0 %v7388
    %7455 = vmatpush.bf16.msra.mxu0 %v7384
    %7456 = vmatmul.bf16.gmra.mxu0 %v7255
    %v7457 = vpop.f32.mrf.mxu0
    %v7458 = vadd.f32 0.0, %v7457
    %v7459 = vpop.f32.mrf.mxu0
    %7460 = vdwg.mxu0
    %7461 = vmatpush.bf16.msra.mxu0 %v7413
    %7462 = vmatpush.bf16.msra.mxu0 %v7409
    %7463 = vmatpush.bf16.msra.mxu0 %v7405
    %7464 = vmatpush.bf16.msra.mxu0 %v7401
    %7465 = vmatpush.bf16.msra.mxu0 %v7397
    %7466 = vmatpush.bf16.msra.mxu0 %v7393
    %7467 = vmatpush.bf16.msra.mxu0 %v7389
    %7468 = vmatpush.bf16.msra.mxu0 %v7385
    %7469 = vmatmul.bf16.gmra.mxu0 %v7255
    %v7470 = vpop.f32.mrf.mxu0
    %v7471 = vadd.f32 0.0, %v7470
    %v7472 = vpop.f32.mrf.mxu0
    %7473 = vdwg.mxu0
    %7474 = vmatpush.bf16.msra.mxu0 %v7414
    %7475 = vmatpush.bf16.msra.mxu0 %v7410
    %7476 = vmatpush.bf16.msra.mxu0 %v7406
    %7477 = vmatpush.bf16.msra.mxu0 %v7402
    %7478 = vmatpush.bf16.msra.mxu0 %v7398
    %7479 = vmatpush.bf16.msra.mxu0 %v7394
    %7480 = vmatpush.bf16.msra.mxu0 %v7390
    %7481 = vmatpush.bf16.msra.mxu0 %v7386
    %7482 = vmatmul.bf16.gmra.mxu0 %v7255
    %v7483 = vpop.f32.mrf.mxu0
    %v7484 = vadd.f32 0.0, %v7483
    %v7485 = vpop.f32.mrf.mxu0
    %7486 = vdwg.mxu0
    %7487 = vmatpush.bf16.msra.mxu0 %v7415
    %7488 = vmatpush.bf16.msra.mxu0 %v7411
    %7489 = vmatpush.bf16.msra.mxu0 %v7407
    %7490 = vmatpush.bf16.msra.mxu0 %v7403
    %7491 = vmatpush.bf16.msra.mxu0 %v7399
    %7492 = vmatpush.bf16.msra.mxu0 %v7395
    %7493 = vmatpush.bf16.msra.mxu0 %v7391
    %7494 = vmatpush.bf16.msra.mxu0 %v7387
    %7495 = vmatmul.bf16.gmra.mxu0 %v7255
    %v7496 = vpop.f32.mrf.mxu0
    %v7497 = vadd.f32 0.0, %v7496
    %v7498 = vpop.f32.mrf.mxu0
    %7499 = vdwg.mxu0
    %v7500 = vadd.f32 %v7251, %v7458
    %v7501 = vadd.f32 %v7252, %v7471
    %v7502 = vadd.f32 %v7253, %v7484
    %v7503 = vadd.f32 %v7254, %v7497
    %v7504 = vxor.u32 %v7500, 2147483648
    %v7505 = vmul.f32 %v7504, 1.442695
    %v7506 = vpow.pop %v7505
    %v7507 = vadd.f32 %v7506, 1.0
    %v7508 = vrcp.pop %v7507
    %v7509 = vmul.f32 %v7507, %v7508
    %v7510 = vsub.f32 1.0, %v7509
    %v7511 = vmul.f32 %v7508, %v7510
    %v7512 = vadd.f32 %v7508, %v7511
    %vm7513 = vweird.f32 %v7507
    %vm7514 = vweird.f32 %v7508
    %vm7515 = vmor %vm7513, %vm7514
    %v7516 = vsel %vm7515, %v7508, %v7512
    %v7517 = vand.u32 2147483647, %v7507
    %vm7518 = vcmp.eq.f32.partialorder %v7517, 8.507059e+37
    %v7519 = vand.u32 %v7507, 2147483648
    %v7520 = vor.u32 1.1754944e-38, %v7519
    %v7521 = vsel %vm7518, %v7520, %v7516
    %v7522 = vmul.f32 1.0, %v7521
    %v7523 = vxor.u32 %v7501, 2147483648
    %v7524 = vmul.f32 %v7523, 1.442695
    %v7525 = vpow.pop %v7524
    %v7526 = vadd.f32 %v7525, 1.0
    %v7527 = vrcp.pop %v7526
    %v7528 = vmul.f32 %v7526, %v7527
    %v7529 = vsub.f32 1.0, %v7528
    %v7530 = vmul.f32 %v7527, %v7529
    %v7531 = vadd.f32 %v7527, %v7530
    %vm7532 = vweird.f32 %v7526
    %vm7533 = vweird.f32 %v7527
    %vm7534 = vmor %vm7532, %vm7533
    %v7535 = vsel %vm7534, %v7527, %v7531
    %v7536 = vand.u32 2147483647, %v7526
    %vm7537 = vcmp.eq.f32.partialorder %v7536, 8.507059e+37
    %v7538 = vand.u32 %v7526, 2147483648
    %v7539 = vor.u32 1.1754944e-38, %v7538
    %v7540 = vsel %vm7537, %v7539, %v7535
    %v7541 = vmul.f32 1.0, %v7540
    %v7542 = vtanh.pop %v7502
    %v7543 = vxor.u32 %v7503, 2147483648
    %v7544 = vmul.f32 %v7543, 1.442695
    %v7545 = vpow.pop %v7544
    %v7546 = vadd.f32 %v7545, 1.0
    %v7547 = vrcp.pop %v7546
    %v7548 = vmul.f32 %v7546, %v7547
    %v7549 = vsub.f32 1.0, %v7548
    %v7550 = vmul.f32 %v7547, %v7549
    %v7551 = vadd.f32 %v7547, %v7550
    %vm7552 = vweird.f32 %v7546
    %vm7553 = vweird.f32 %v7547
    %vm7554 = vmor %vm7552, %vm7553
    %v7555 = vsel %vm7554, %v7547, %v7551
    %v7556 = vand.u32 2147483647, %v7546
    %vm7557 = vcmp.eq.f32.partialorder %v7556, 8.507059e+37
    %v7558 = vand.u32 %v7546, 2147483648
    %v7559 = vor.u32 1.1754944e-38, %v7558
    %v7560 = vsel %vm7557, %v7559, %v7555
    %v7561 = vmul.f32 1.0, %v7560
    %v7562 = vmul.f32 %v7541, %v7247
    %v7563 = vmul.f32 %v7522, %v7542
    %v7564 = vadd.f32 %v7562, %v7563
    %v7565 = vtanh.pop %v7564
    %v7566 = vmul.f32 %v7561, %v7565
    %7567 = vst [vmem:[#allocation2 + $0x40] sm:$0xff] %v7566
    %v7568 = vld [vmem:[#allocation3 + $0x120] sm:$0xff]
    %v7569 = vld [vmem:[#allocation3 + $0x128] sm:$0xff]
    %v7570 = vld [vmem:[#allocation3 + $0x130] sm:$0xff]
    %v7571 = vld [vmem:[#allocation3 + $0x138] sm:$0xff]
    %v7572 = vpack.c.bf16 %v7566, %v7566
    %v7573 = vld [vmem:[%s4719] sm:$0xff]
    %v7574 = vld [vmem:[%s4719 + $0x8] sm:$0xff]
    %v7575 = vld [vmem:[%s4719 + $0x10] sm:$0xff]
    %v7576 = vld [vmem:[%s4719 + $0x18] sm:$0xff]
    %v7577 = vld [vmem:[%s4719 + $0x20] sm:$0xff]
    %v7578 = vld [vmem:[%s4719 + $0x28] sm:$0xff]
    %v7579 = vld [vmem:[%s4719 + $0x30] sm:$0xff]
    %v7580 = vld [vmem:[%s4719 + $0x38] sm:$0xff]
    %v7581 = vld [vmem:[%s4719 + $0x40] sm:$0xff]
    %v7582 = vld [vmem:[%s4719 + $0x48] sm:$0xff]
    %v7583 = vld [vmem:[%s4719 + $0x50] sm:$0xff]
    %v7584 = vld [vmem:[%s4719 + $0x58] sm:$0xff]
    %v7585 = vld [vmem:[%s4719 + $0x60] sm:$0xff]
    %v7586 = vld [vmem:[%s4719 + $0x68] sm:$0xff]
    %v7587 = vld [vmem:[%s4719 + $0x70] sm:$0xff]
    %v7588 = vld [vmem:[%s4719 + $0x78] sm:$0xff]
    %v7589 = vld [vmem:[%s4719 + $0x80] sm:$0xff]
    %v7590 = vld [vmem:[%s4719 + $0x88] sm:$0xff]
    %v7591 = vld [vmem:[%s4719 + $0x90] sm:$0xff]
    %v7592 = vld [vmem:[%s4719 + $0x98] sm:$0xff]
    %v7593 = vld [vmem:[%s4719 + $0xa0] sm:$0xff]
    %v7594 = vld [vmem:[%s4719 + $0xa8] sm:$0xff]
    %v7595 = vld [vmem:[%s4719 + $0xb0] sm:$0xff]
    %v7596 = vld [vmem:[%s4719 + $0xb8] sm:$0xff]
    %v7597 = vld [vmem:[%s4719 + $0xc0] sm:$0xff]
    %v7598 = vld [vmem:[%s4719 + $0xc8] sm:$0xff]
    %v7599 = vld [vmem:[%s4719 + $0xd0] sm:$0xff]
    %v7600 = vld [vmem:[%s4719 + $0xd8] sm:$0xff]
    %v7601 = vld [vmem:[%s4719 + $0xe0] sm:$0xff]
    %v7602 = vld [vmem:[%s4719 + $0xe8] sm:$0xff]
    %v7603 = vld [vmem:[%s4719 + $0xf0] sm:$0xff]
    %v7604 = vld [vmem:[%s4719 + $0xf8] sm:$0xff]
    %v7637 = vunpack.c.l.b16 %v7573
    %v7638 = vunpack.c.h.b16 %v7573
    %v7639 = vunpack.c.l.b16 %v7574
    %v7640 = vunpack.c.h.b16 %v7574
    %v7641 = vunpack.c.l.b16 %v7575
    %v7642 = vunpack.c.h.b16 %v7575
    %v7643 = vunpack.c.l.b16 %v7576
    %v7644 = vunpack.c.h.b16 %v7576
    %v7645 = vunpack.c.l.b16 %v7577
    %v7646 = vunpack.c.h.b16 %v7577
    %v7647 = vunpack.c.l.b16 %v7578
    %v7648 = vunpack.c.h.b16 %v7578
    %v7649 = vunpack.c.l.b16 %v7579
    %v7650 = vunpack.c.h.b16 %v7579
    %v7651 = vunpack.c.l.b16 %v7580
    %v7652 = vunpack.c.h.b16 %v7580
    %v7653 = vunpack.c.l.b16 %v7581
    %v7654 = vunpack.c.h.b16 %v7581
    %v7655 = vunpack.c.l.b16 %v7582
    %v7656 = vunpack.c.h.b16 %v7582
    %v7657 = vunpack.c.l.b16 %v7583
    %v7658 = vunpack.c.h.b16 %v7583
    %v7659 = vunpack.c.l.b16 %v7584
    %v7660 = vunpack.c.h.b16 %v7584
    %v7661 = vunpack.c.l.b16 %v7585
    %v7662 = vunpack.c.h.b16 %v7585
    %v7663 = vunpack.c.l.b16 %v7586
    %v7664 = vunpack.c.h.b16 %v7586
    %v7665 = vunpack.c.l.b16 %v7587
    %v7666 = vunpack.c.h.b16 %v7587
    %v7667 = vunpack.c.l.b16 %v7588
    %v7668 = vunpack.c.h.b16 %v7588
    %v7669 = vunpack.c.l.b16 %v7589
    %v7670 = vunpack.c.h.b16 %v7589
    %v7671 = vunpack.c.l.b16 %v7590
    %v7672 = vunpack.c.h.b16 %v7590
    %v7673 = vunpack.c.l.b16 %v7591
    %v7674 = vunpack.c.h.b16 %v7591
    %v7675 = vunpack.c.l.b16 %v7592
    %v7676 = vunpack.c.h.b16 %v7592
    %v7677 = vunpack.c.l.b16 %v7593
    %v7678 = vunpack.c.h.b16 %v7593
    %v7679 = vunpack.c.l.b16 %v7594
    %v7680 = vunpack.c.h.b16 %v7594
    %v7681 = vunpack.c.l.b16 %v7595
    %v7682 = vunpack.c.h.b16 %v7595
    %v7683 = vunpack.c.l.b16 %v7596
    %v7684 = vunpack.c.h.b16 %v7596
    %v7685 = vunpack.c.l.b16 %v7597
    %v7686 = vunpack.c.h.b16 %v7597
    %v7687 = vunpack.c.l.b16 %v7598
    %v7688 = vunpack.c.h.b16 %v7598
    %v7689 = vunpack.c.l.b16 %v7599
    %v7690 = vunpack.c.h.b16 %v7599
    %v7691 = vunpack.c.l.b16 %v7600
    %v7692 = vunpack.c.h.b16 %v7600
    %v7693 = vunpack.c.l.b16 %v7601
    %v7694 = vunpack.c.h.b16 %v7601
    %v7695 = vunpack.c.l.b16 %v7602
    %v7696 = vunpack.c.h.b16 %v7602
    %v7697 = vunpack.c.l.b16 %v7603
    %v7698 = vunpack.c.h.b16 %v7603
    %v7699 = vunpack.c.l.b16 %v7604
    %v7700 = vunpack.c.h.b16 %v7604
    %v7701 = vpack.c.b16 %v7641, %v7637
    %v7702 = vpack.c.b16 %v7642, %v7638
    %v7703 = vpack.c.b16 %v7643, %v7639
    %v7704 = vpack.c.b16 %v7644, %v7640
    %v7705 = vpack.c.b16 %v7649, %v7645
    %v7706 = vpack.c.b16 %v7650, %v7646
    %v7707 = vpack.c.b16 %v7651, %v7647
    %v7708 = vpack.c.b16 %v7652, %v7648
    %v7709 = vpack.c.b16 %v7657, %v7653
    %v7710 = vpack.c.b16 %v7658, %v7654
    %v7711 = vpack.c.b16 %v7659, %v7655
    %v7712 = vpack.c.b16 %v7660, %v7656
    %v7713 = vpack.c.b16 %v7665, %v7661
    %v7714 = vpack.c.b16 %v7666, %v7662
    %v7715 = vpack.c.b16 %v7667, %v7663
    %v7716 = vpack.c.b16 %v7668, %v7664
    %v7717 = vpack.c.b16 %v7673, %v7669
    %v7718 = vpack.c.b16 %v7674, %v7670
    %v7719 = vpack.c.b16 %v7675, %v7671
    %v7720 = vpack.c.b16 %v7676, %v7672
    %v7721 = vpack.c.b16 %v7681, %v7677
    %v7722 = vpack.c.b16 %v7682, %v7678
    %v7723 = vpack.c.b16 %v7683, %v7679
    %v7724 = vpack.c.b16 %v7684, %v7680
    %v7725 = vpack.c.b16 %v7689, %v7685
    %v7726 = vpack.c.b16 %v7690, %v7686
    %v7727 = vpack.c.b16 %v7691, %v7687
    %v7728 = vpack.c.b16 %v7692, %v7688
    %v7729 = vpack.c.b16 %v7697, %v7693
    %v7730 = vpack.c.b16 %v7698, %v7694
    %v7731 = vpack.c.b16 %v7699, %v7695
    %v7732 = vpack.c.b16 %v7700, %v7696
    %7765 = vmatpush.bf16.msra.mxu0 %v7729
    %7766 = vmatpush.bf16.msra.mxu0 %v7725
    %7767 = vmatpush.bf16.msra.mxu0 %v7721
    %7768 = vmatpush.bf16.msra.mxu0 %v7717
    %7769 = vmatpush.bf16.msra.mxu0 %v7713
    %7770 = vmatpush.bf16.msra.mxu0 %v7709
    %7771 = vmatpush.bf16.msra.mxu0 %v7705
    %7772 = vmatpush.bf16.msra.mxu0 %v7701
    %7773 = vmatmul.bf16.gmra.mxu0 %v7572
    %v7774 = vpop.f32.mrf.mxu0
    %v7775 = vadd.f32 0.0, %v7774
    %v7776 = vpop.f32.mrf.mxu0
    %7777 = vdwg.mxu0
    %7778 = vmatpush.bf16.msra.mxu0 %v7730
    %7779 = vmatpush.bf16.msra.mxu0 %v7726
    %7780 = vmatpush.bf16.msra.mxu0 %v7722
    %7781 = vmatpush.bf16.msra.mxu0 %v7718
    %7782 = vmatpush.bf16.msra.mxu0 %v7714
    %7783 = vmatpush.bf16.msra.mxu0 %v7710
    %7784 = vmatpush.bf16.msra.mxu0 %v7706
    %7785 = vmatpush.bf16.msra.mxu0 %v7702
    %7786 = vmatmul.bf16.gmra.mxu0 %v7572
    %v7787 = vpop.f32.mrf.mxu0
    %v7788 = vadd.f32 0.0, %v7787
    %v7789 = vpop.f32.mrf.mxu0
    %7790 = vdwg.mxu0
    %7791 = vmatpush.bf16.msra.mxu0 %v7731
    %7792 = vmatpush.bf16.msra.mxu0 %v7727
    %7793 = vmatpush.bf16.msra.mxu0 %v7723
    %7794 = vmatpush.bf16.msra.mxu0 %v7719
    %7795 = vmatpush.bf16.msra.mxu0 %v7715
    %7796 = vmatpush.bf16.msra.mxu0 %v7711
    %7797 = vmatpush.bf16.msra.mxu0 %v7707
    %7798 = vmatpush.bf16.msra.mxu0 %v7703
    %7799 = vmatmul.bf16.gmra.mxu0 %v7572
    %v7800 = vpop.f32.mrf.mxu0
    %v7801 = vadd.f32 0.0, %v7800
    %v7802 = vpop.f32.mrf.mxu0
    %7803 = vdwg.mxu0
    %7804 = vmatpush.bf16.msra.mxu0 %v7732
    %7805 = vmatpush.bf16.msra.mxu0 %v7728
    %7806 = vmatpush.bf16.msra.mxu0 %v7724
    %7807 = vmatpush.bf16.msra.mxu0 %v7720
    %7808 = vmatpush.bf16.msra.mxu0 %v7716
    %7809 = vmatpush.bf16.msra.mxu0 %v7712
    %7810 = vmatpush.bf16.msra.mxu0 %v7708
    %7811 = vmatpush.bf16.msra.mxu0 %v7704
    %7812 = vmatmul.bf16.gmra.mxu0 %v7572
    %v7813 = vpop.f32.mrf.mxu0
    %v7814 = vadd.f32 0.0, %v7813
    %v7815 = vpop.f32.mrf.mxu0
    %7816 = vdwg.mxu0
    %v7817 = vadd.f32 %v7568, %v7775
    %v7818 = vadd.f32 %v7569, %v7788
    %v7819 = vadd.f32 %v7570, %v7801
    %v7820 = vadd.f32 %v7571, %v7814
    %v7821 = vxor.u32 %v7817, 2147483648
    %v7822 = vmul.f32 %v7821, 1.442695
    %v7823 = vpow.pop %v7822
    %v7824 = vadd.f32 %v7823, 1.0
    %v7825 = vrcp.pop %v7824
    %v7826 = vmul.f32 %v7824, %v7825
    %v7827 = vsub.f32 1.0, %v7826
    %v7828 = vmul.f32 %v7825, %v7827
    %v7829 = vadd.f32 %v7825, %v7828
    %vm7830 = vweird.f32 %v7824
    %vm7831 = vweird.f32 %v7825
    %vm7832 = vmor %vm7830, %vm7831
    %v7833 = vsel %vm7832, %v7825, %v7829
    %v7834 = vand.u32 2147483647, %v7824
    %vm7835 = vcmp.eq.f32.partialorder %v7834, 8.507059e+37
    %v7836 = vand.u32 %v7824, 2147483648
    %v7837 = vor.u32 1.1754944e-38, %v7836
    %v7838 = vsel %vm7835, %v7837, %v7833
    %v7839 = vmul.f32 1.0, %v7838
    %v7840 = vxor.u32 %v7818, 2147483648
    %v7841 = vmul.f32 %v7840, 1.442695
    %v7842 = vpow.pop %v7841
    %v7843 = vadd.f32 %v7842, 1.0
    %v7844 = vrcp.pop %v7843
    %v7845 = vmul.f32 %v7843, %v7844
    %v7846 = vsub.f32 1.0, %v7845
    %v7847 = vmul.f32 %v7844, %v7846
    %v7848 = vadd.f32 %v7844, %v7847
    %vm7849 = vweird.f32 %v7843
    %vm7850 = vweird.f32 %v7844
    %vm7851 = vmor %vm7849, %vm7850
    %v7852 = vsel %vm7851, %v7844, %v7848
    %v7853 = vand.u32 2147483647, %v7843
    %vm7854 = vcmp.eq.f32.partialorder %v7853, 8.507059e+37
    %v7855 = vand.u32 %v7843, 2147483648
    %v7856 = vor.u32 1.1754944e-38, %v7855
    %v7857 = vsel %vm7854, %v7856, %v7852
    %v7858 = vmul.f32 1.0, %v7857
    %v7859 = vtanh.pop %v7819
    %v7860 = vxor.u32 %v7820, 2147483648
    %v7861 = vmul.f32 %v7860, 1.442695
    %v7862 = vpow.pop %v7861
    %v7863 = vadd.f32 %v7862, 1.0
    %v7864 = vrcp.pop %v7863
    %v7865 = vmul.f32 %v7863, %v7864
    %v7866 = vsub.f32 1.0, %v7865
    %v7867 = vmul.f32 %v7864, %v7866
    %v7868 = vadd.f32 %v7864, %v7867
    %vm7869 = vweird.f32 %v7863
    %vm7870 = vweird.f32 %v7864
    %vm7871 = vmor %vm7869, %vm7870
    %v7872 = vsel %vm7871, %v7864, %v7868
    %v7873 = vand.u32 2147483647, %v7863
    %vm7874 = vcmp.eq.f32.partialorder %v7873, 8.507059e+37
    %v7875 = vand.u32 %v7863, 2147483648
    %v7876 = vor.u32 1.1754944e-38, %v7875
    %v7877 = vsel %vm7874, %v7876, %v7872
    %v7878 = vmul.f32 1.0, %v7877
    %v7879 = vmul.f32 %v7858, %v7564
    %v7880 = vmul.f32 %v7839, %v7859
    %v7881 = vadd.f32 %v7879, %v7880
    %v7882 = vtanh.pop %v7881
    %v7883 = vmul.f32 %v7878, %v7882
    %7884 = vst [vmem:[#allocation2 + $0x48] sm:$0xff] %v7883
    %v7885 = vld [vmem:[#allocation3 + $0x140] sm:$0xff]
    %v7886 = vld [vmem:[#allocation3 + $0x148] sm:$0xff]
    %v7887 = vld [vmem:[#allocation3 + $0x150] sm:$0xff]
    %v7888 = vld [vmem:[#allocation3 + $0x158] sm:$0xff]
    %v7889 = vpack.c.bf16 %v7883, %v7883
    %v7890 = vld [vmem:[%s4719] sm:$0xff]
    %v7891 = vld [vmem:[%s4719 + $0x8] sm:$0xff]
    %v7892 = vld [vmem:[%s4719 + $0x10] sm:$0xff]
    %v7893 = vld [vmem:[%s4719 + $0x18] sm:$0xff]
    %v7894 = vld [vmem:[%s4719 + $0x20] sm:$0xff]
    %v7895 = vld [vmem:[%s4719 + $0x28] sm:$0xff]
    %v7896 = vld [vmem:[%s4719 + $0x30] sm:$0xff]
    %v7897 = vld [vmem:[%s4719 + $0x38] sm:$0xff]
    %v7898 = vld [vmem:[%s4719 + $0x40] sm:$0xff]
    %v7899 = vld [vmem:[%s4719 + $0x48] sm:$0xff]
    %v7900 = vld [vmem:[%s4719 + $0x50] sm:$0xff]
    %v7901 = vld [vmem:[%s4719 + $0x58] sm:$0xff]
    %v7902 = vld [vmem:[%s4719 + $0x60] sm:$0xff]
    %v7903 = vld [vmem:[%s4719 + $0x68] sm:$0xff]
    %v7904 = vld [vmem:[%s4719 + $0x70] sm:$0xff]
    %v7905 = vld [vmem:[%s4719 + $0x78] sm:$0xff]
    %v7906 = vld [vmem:[%s4719 + $0x80] sm:$0xff]
    %v7907 = vld [vmem:[%s4719 + $0x88] sm:$0xff]
    %v7908 = vld [vmem:[%s4719 + $0x90] sm:$0xff]
    %v7909 = vld [vmem:[%s4719 + $0x98] sm:$0xff]
    %v7910 = vld [vmem:[%s4719 + $0xa0] sm:$0xff]
    %v7911 = vld [vmem:[%s4719 + $0xa8] sm:$0xff]
    %v7912 = vld [vmem:[%s4719 + $0xb0] sm:$0xff]
    %v7913 = vld [vmem:[%s4719 + $0xb8] sm:$0xff]
    %v7914 = vld [vmem:[%s4719 + $0xc0] sm:$0xff]
    %v7915 = vld [vmem:[%s4719 + $0xc8] sm:$0xff]
    %v7916 = vld [vmem:[%s4719 + $0xd0] sm:$0xff]
    %v7917 = vld [vmem:[%s4719 + $0xd8] sm:$0xff]
    %v7918 = vld [vmem:[%s4719 + $0xe0] sm:$0xff]
    %v7919 = vld [vmem:[%s4719 + $0xe8] sm:$0xff]
    %v7920 = vld [vmem:[%s4719 + $0xf0] sm:$0xff]
    %v7921 = vld [vmem:[%s4719 + $0xf8] sm:$0xff]
    %v7954 = vunpack.c.l.b16 %v7890
    %v7955 = vunpack.c.h.b16 %v7890
    %v7956 = vunpack.c.l.b16 %v7891
    %v7957 = vunpack.c.h.b16 %v7891
    %v7958 = vunpack.c.l.b16 %v7892
    %v7959 = vunpack.c.h.b16 %v7892
    %v7960 = vunpack.c.l.b16 %v7893
    %v7961 = vunpack.c.h.b16 %v7893
    %v7962 = vunpack.c.l.b16 %v7894
    %v7963 = vunpack.c.h.b16 %v7894
    %v7964 = vunpack.c.l.b16 %v7895
    %v7965 = vunpack.c.h.b16 %v7895
    %v7966 = vunpack.c.l.b16 %v7896
    %v7967 = vunpack.c.h.b16 %v7896
    %v7968 = vunpack.c.l.b16 %v7897
    %v7969 = vunpack.c.h.b16 %v7897
    %v7970 = vunpack.c.l.b16 %v7898
    %v7971 = vunpack.c.h.b16 %v7898
    %v7972 = vunpack.c.l.b16 %v7899
    %v7973 = vunpack.c.h.b16 %v7899
    %v7974 = vunpack.c.l.b16 %v7900
    %v7975 = vunpack.c.h.b16 %v7900
    %v7976 = vunpack.c.l.b16 %v7901
    %v7977 = vunpack.c.h.b16 %v7901
    %v7978 = vunpack.c.l.b16 %v7902
    %v7979 = vunpack.c.h.b16 %v7902
    %v7980 = vunpack.c.l.b16 %v7903
    %v7981 = vunpack.c.h.b16 %v7903
    %v7982 = vunpack.c.l.b16 %v7904
    %v7983 = vunpack.c.h.b16 %v7904
    %v7984 = vunpack.c.l.b16 %v7905
    %v7985 = vunpack.c.h.b16 %v7905
    %v7986 = vunpack.c.l.b16 %v7906
    %v7987 = vunpack.c.h.b16 %v7906
    %v7988 = vunpack.c.l.b16 %v7907
    %v7989 = vunpack.c.h.b16 %v7907
    %v7990 = vunpack.c.l.b16 %v7908
    %v7991 = vunpack.c.h.b16 %v7908
    %v7992 = vunpack.c.l.b16 %v7909
    %v7993 = vunpack.c.h.b16 %v7909
    %v7994 = vunpack.c.l.b16 %v7910
    %v7995 = vunpack.c.h.b16 %v7910
    %v7996 = vunpack.c.l.b16 %v7911
    %v7997 = vunpack.c.h.b16 %v7911
    %v7998 = vunpack.c.l.b16 %v7912
    %v7999 = vunpack.c.h.b16 %v7912
    %v8000 = vunpack.c.l.b16 %v7913
    %v8001 = vunpack.c.h.b16 %v7913
    %v8002 = vunpack.c.l.b16 %v7914
    %v8003 = vunpack.c.h.b16 %v7914
    %v8004 = vunpack.c.l.b16 %v7915
    %v8005 = vunpack.c.h.b16 %v7915
    %v8006 = vunpack.c.l.b16 %v7916
    %v8007 = vunpack.c.h.b16 %v7916
    %v8008 = vunpack.c.l.b16 %v7917
    %v8009 = vunpack.c.h.b16 %v7917
    %v8010 = vunpack.c.l.b16 %v7918
    %v8011 = vunpack.c.h.b16 %v7918
    %v8012 = vunpack.c.l.b16 %v7919
    %v8013 = vunpack.c.h.b16 %v7919
    %v8014 = vunpack.c.l.b16 %v7920
    %v8015 = vunpack.c.h.b16 %v7920
    %v8016 = vunpack.c.l.b16 %v7921
    %v8017 = vunpack.c.h.b16 %v7921
    %v8018 = vpack.c.b16 %v7958, %v7954
    %v8019 = vpack.c.b16 %v7959, %v7955
    %v8020 = vpack.c.b16 %v7960, %v7956
    %v8021 = vpack.c.b16 %v7961, %v7957
    %v8022 = vpack.c.b16 %v7966, %v7962
    %v8023 = vpack.c.b16 %v7967, %v7963
    %v8024 = vpack.c.b16 %v7968, %v7964
    %v8025 = vpack.c.b16 %v7969, %v7965
    %v8026 = vpack.c.b16 %v7974, %v7970
    %v8027 = vpack.c.b16 %v7975, %v7971
    %v8028 = vpack.c.b16 %v7976, %v7972
    %v8029 = vpack.c.b16 %v7977, %v7973
    %v8030 = vpack.c.b16 %v7982, %v7978
    %v8031 = vpack.c.b16 %v7983, %v7979
    %v8032 = vpack.c.b16 %v7984, %v7980
    %v8033 = vpack.c.b16 %v7985, %v7981
    %v8034 = vpack.c.b16 %v7990, %v7986
    %v8035 = vpack.c.b16 %v7991, %v7987
    %v8036 = vpack.c.b16 %v7992, %v7988
    %v8037 = vpack.c.b16 %v7993, %v7989
    %v8038 = vpack.c.b16 %v7998, %v7994
    %v8039 = vpack.c.b16 %v7999, %v7995
    %v8040 = vpack.c.b16 %v8000, %v7996
    %v8041 = vpack.c.b16 %v8001, %v7997
    %v8042 = vpack.c.b16 %v8006, %v8002
    %v8043 = vpack.c.b16 %v8007, %v8003
    %v8044 = vpack.c.b16 %v8008, %v8004
    %v8045 = vpack.c.b16 %v8009, %v8005
    %v8046 = vpack.c.b16 %v8014, %v8010
    %v8047 = vpack.c.b16 %v8015, %v8011
    %v8048 = vpack.c.b16 %v8016, %v8012
    %v8049 = vpack.c.b16 %v8017, %v8013
    %8082 = vmatpush.bf16.msra.mxu0 %v8046
    %8083 = vmatpush.bf16.msra.mxu0 %v8042
    %8084 = vmatpush.bf16.msra.mxu0 %v8038
    %8085 = vmatpush.bf16.msra.mxu0 %v8034
    %8086 = vmatpush.bf16.msra.mxu0 %v8030
    %8087 = vmatpush.bf16.msra.mxu0 %v8026
    %8088 = vmatpush.bf16.msra.mxu0 %v8022
    %8089 = vmatpush.bf16.msra.mxu0 %v8018
    %8090 = vmatmul.bf16.gmra.mxu0 %v7889
    %v8091 = vpop.f32.mrf.mxu0
    %v8092 = vadd.f32 0.0, %v8091
    %v8093 = vpop.f32.mrf.mxu0
    %8094 = vdwg.mxu0
    %8095 = vmatpush.bf16.msra.mxu0 %v8047
    %8096 = vmatpush.bf16.msra.mxu0 %v8043
    %8097 = vmatpush.bf16.msra.mxu0 %v8039
    %8098 = vmatpush.bf16.msra.mxu0 %v8035
    %8099 = vmatpush.bf16.msra.mxu0 %v8031
    %8100 = vmatpush.bf16.msra.mxu0 %v8027
    %8101 = vmatpush.bf16.msra.mxu0 %v8023
    %8102 = vmatpush.bf16.msra.mxu0 %v8019
    %8103 = vmatmul.bf16.gmra.mxu0 %v7889
    %v8104 = vpop.f32.mrf.mxu0
    %v8105 = vadd.f32 0.0, %v8104
    %v8106 = vpop.f32.mrf.mxu0
    %8107 = vdwg.mxu0
    %8108 = vmatpush.bf16.msra.mxu0 %v8048
    %8109 = vmatpush.bf16.msra.mxu0 %v8044
    %8110 = vmatpush.bf16.msra.mxu0 %v8040
    %8111 = vmatpush.bf16.msra.mxu0 %v8036
    %8112 = vmatpush.bf16.msra.mxu0 %v8032
    %8113 = vmatpush.bf16.msra.mxu0 %v8028
    %8114 = vmatpush.bf16.msra.mxu0 %v8024
    %8115 = vmatpush.bf16.msra.mxu0 %v8020
    %8116 = vmatmul.bf16.gmra.mxu0 %v7889
    %v8117 = vpop.f32.mrf.mxu0
    %v8118 = vadd.f32 0.0, %v8117
    %v8119 = vpop.f32.mrf.mxu0
    %8120 = vdwg.mxu0
    %8121 = vmatpush.bf16.msra.mxu0 %v8049
    %8122 = vmatpush.bf16.msra.mxu0 %v8045
    %8123 = vmatpush.bf16.msra.mxu0 %v8041
    %8124 = vmatpush.bf16.msra.mxu0 %v8037
    %8125 = vmatpush.bf16.msra.mxu0 %v8033
    %8126 = vmatpush.bf16.msra.mxu0 %v8029
    %8127 = vmatpush.bf16.msra.mxu0 %v8025
    %8128 = vmatpush.bf16.msra.mxu0 %v8021
    %8129 = vmatmul.bf16.gmra.mxu0 %v7889
    %v8130 = vpop.f32.mrf.mxu0
    %v8131 = vadd.f32 0.0, %v8130
    %v8132 = vpop.f32.mrf.mxu0
    %8133 = vdwg.mxu0
    %v8134 = vadd.f32 %v7885, %v8092
    %v8135 = vadd.f32 %v7886, %v8105
    %v8136 = vadd.f32 %v7887, %v8118
    %v8137 = vadd.f32 %v7888, %v8131
    %v8138 = vxor.u32 %v8134, 2147483648
    %v8139 = vmul.f32 %v8138, 1.442695
    %v8140 = vpow.pop %v8139
    %v8141 = vadd.f32 %v8140, 1.0
    %v8142 = vrcp.pop %v8141
    %v8143 = vmul.f32 %v8141, %v8142
    %v8144 = vsub.f32 1.0, %v8143
    %v8145 = vmul.f32 %v8142, %v8144
    %v8146 = vadd.f32 %v8142, %v8145
    %vm8147 = vweird.f32 %v8141
    %vm8148 = vweird.f32 %v8142
    %vm8149 = vmor %vm8147, %vm8148
    %v8150 = vsel %vm8149, %v8142, %v8146
    %v8151 = vand.u32 2147483647, %v8141
    %vm8152 = vcmp.eq.f32.partialorder %v8151, 8.507059e+37
    %v8153 = vand.u32 %v8141, 2147483648
    %v8154 = vor.u32 1.1754944e-38, %v8153
    %v8155 = vsel %vm8152, %v8154, %v8150
    %v8156 = vmul.f32 1.0, %v8155
    %v8157 = vxor.u32 %v8135, 2147483648
    %v8158 = vmul.f32 %v8157, 1.442695
    %v8159 = vpow.pop %v8158
    %v8160 = vadd.f32 %v8159, 1.0
    %v8161 = vrcp.pop %v8160
    %v8162 = vmul.f32 %v8160, %v8161
    %v8163 = vsub.f32 1.0, %v8162
    %v8164 = vmul.f32 %v8161, %v8163
    %v8165 = vadd.f32 %v8161, %v8164
    %vm8166 = vweird.f32 %v8160
    %vm8167 = vweird.f32 %v8161
    %vm8168 = vmor %vm8166, %vm8167
    %v8169 = vsel %vm8168, %v8161, %v8165
    %v8170 = vand.u32 2147483647, %v8160
    %vm8171 = vcmp.eq.f32.partialorder %v8170, 8.507059e+37
    %v8172 = vand.u32 %v8160, 2147483648
    %v8173 = vor.u32 1.1754944e-38, %v8172
    %v8174 = vsel %vm8171, %v8173, %v8169
    %v8175 = vmul.f32 1.0, %v8174
    %v8176 = vtanh.pop %v8136
    %v8177 = vxor.u32 %v8137, 2147483648
    %v8178 = vmul.f32 %v8177, 1.442695
    %v8179 = vpow.pop %v8178
    %v8180 = vadd.f32 %v8179, 1.0
    %v8181 = vrcp.pop %v8180
    %v8182 = vmul.f32 %v8180, %v8181
    %v8183 = vsub.f32 1.0, %v8182
    %v8184 = vmul.f32 %v8181, %v8183
    %v8185 = vadd.f32 %v8181, %v8184
    %vm8186 = vweird.f32 %v8180
    %vm8187 = vweird.f32 %v8181
    %vm8188 = vmor %vm8186, %vm8187
    %v8189 = vsel %vm8188, %v8181, %v8185
    %v8190 = vand.u32 2147483647, %v8180
    %vm8191 = vcmp.eq.f32.partialorder %v8190, 8.507059e+37
    %v8192 = vand.u32 %v8180, 2147483648
    %v8193 = vor.u32 1.1754944e-38, %v8192
    %v8194 = vsel %vm8191, %v8193, %v8189
    %v8195 = vmul.f32 1.0, %v8194
    %v8196 = vmul.f32 %v8175, %v7881
    %v8197 = vmul.f32 %v8156, %v8176
    %v8198 = vadd.f32 %v8196, %v8197
    %v8199 = vtanh.pop %v8198
    %v8200 = vmul.f32 %v8195, %v8199
    %8201 = vst [vmem:[#allocation2 + $0x50] sm:$0xff] %v8200
    %v8202 = vld [vmem:[#allocation3 + $0x160] sm:$0xff]
    %v8203 = vld [vmem:[#allocation3 + $0x168] sm:$0xff]
    %v8204 = vld [vmem:[#allocation3 + $0x170] sm:$0xff]
    %v8205 = vld [vmem:[#allocation3 + $0x178] sm:$0xff]
    %v8206 = vpack.c.bf16 %v8200, %v8200
    %v8207 = vld [vmem:[%s4719] sm:$0xff]
    %v8208 = vld [vmem:[%s4719 + $0x8] sm:$0xff]
    %v8209 = vld [vmem:[%s4719 + $0x10] sm:$0xff]
    %v8210 = vld [vmem:[%s4719 + $0x18] sm:$0xff]
    %v8211 = vld [vmem:[%s4719 + $0x20] sm:$0xff]
    %v8212 = vld [vmem:[%s4719 + $0x28] sm:$0xff]
    %v8213 = vld [vmem:[%s4719 + $0x30] sm:$0xff]
    %v8214 = vld [vmem:[%s4719 + $0x38] sm:$0xff]
    %v8215 = vld [vmem:[%s4719 + $0x40] sm:$0xff]
    %v8216 = vld [vmem:[%s4719 + $0x48] sm:$0xff]
    %v8217 = vld [vmem:[%s4719 + $0x50] sm:$0xff]
    %v8218 = vld [vmem:[%s4719 + $0x58] sm:$0xff]
    %v8219 = vld [vmem:[%s4719 + $0x60] sm:$0xff]
    %v8220 = vld [vmem:[%s4719 + $0x68] sm:$0xff]
    %v8221 = vld [vmem:[%s4719 + $0x70] sm:$0xff]
    %v8222 = vld [vmem:[%s4719 + $0x78] sm:$0xff]
    %v8223 = vld [vmem:[%s4719 + $0x80] sm:$0xff]
    %v8224 = vld [vmem:[%s4719 + $0x88] sm:$0xff]
    %v8225 = vld [vmem:[%s4719 + $0x90] sm:$0xff]
    %v8226 = vld [vmem:[%s4719 + $0x98] sm:$0xff]
    %v8227 = vld [vmem:[%s4719 + $0xa0] sm:$0xff]
    %v8228 = vld [vmem:[%s4719 + $0xa8] sm:$0xff]
    %v8229 = vld [vmem:[%s4719 + $0xb0] sm:$0xff]
    %v8230 = vld [vmem:[%s4719 + $0xb8] sm:$0xff]
    %v8231 = vld [vmem:[%s4719 + $0xc0] sm:$0xff]
    %v8232 = vld [vmem:[%s4719 + $0xc8] sm:$0xff]
    %v8233 = vld [vmem:[%s4719 + $0xd0] sm:$0xff]
    %v8234 = vld [vmem:[%s4719 + $0xd8] sm:$0xff]
    %v8235 = vld [vmem:[%s4719 + $0xe0] sm:$0xff]
    %v8236 = vld [vmem:[%s4719 + $0xe8] sm:$0xff]
    %v8237 = vld [vmem:[%s4719 + $0xf0] sm:$0xff]
    %v8238 = vld [vmem:[%s4719 + $0xf8] sm:$0xff]
    %v8271 = vunpack.c.l.b16 %v8207
    %v8272 = vunpack.c.h.b16 %v8207
    %v8273 = vunpack.c.l.b16 %v8208
    %v8274 = vunpack.c.h.b16 %v8208
    %v8275 = vunpack.c.l.b16 %v8209
    %v8276 = vunpack.c.h.b16 %v8209
    %v8277 = vunpack.c.l.b16 %v8210
    %v8278 = vunpack.c.h.b16 %v8210
    %v8279 = vunpack.c.l.b16 %v8211
    %v8280 = vunpack.c.h.b16 %v8211
    %v8281 = vunpack.c.l.b16 %v8212
    %v8282 = vunpack.c.h.b16 %v8212
    %v8283 = vunpack.c.l.b16 %v8213
    %v8284 = vunpack.c.h.b16 %v8213
    %v8285 = vunpack.c.l.b16 %v8214
    %v8286 = vunpack.c.h.b16 %v8214
    %v8287 = vunpack.c.l.b16 %v8215
    %v8288 = vunpack.c.h.b16 %v8215
    %v8289 = vunpack.c.l.b16 %v8216
    %v8290 = vunpack.c.h.b16 %v8216
    %v8291 = vunpack.c.l.b16 %v8217
    %v8292 = vunpack.c.h.b16 %v8217
    %v8293 = vunpack.c.l.b16 %v8218
    %v8294 = vunpack.c.h.b16 %v8218
    %v8295 = vunpack.c.l.b16 %v8219
    %v8296 = vunpack.c.h.b16 %v8219
    %v8297 = vunpack.c.l.b16 %v8220
    %v8298 = vunpack.c.h.b16 %v8220
    %v8299 = vunpack.c.l.b16 %v8221
    %v8300 = vunpack.c.h.b16 %v8221
    %v8301 = vunpack.c.l.b16 %v8222
    %v8302 = vunpack.c.h.b16 %v8222
    %v8303 = vunpack.c.l.b16 %v8223
    %v8304 = vunpack.c.h.b16 %v8223
    %v8305 = vunpack.c.l.b16 %v8224
    %v8306 = vunpack.c.h.b16 %v8224
    %v8307 = vunpack.c.l.b16 %v8225
    %v8308 = vunpack.c.h.b16 %v8225
    %v8309 = vunpack.c.l.b16 %v8226
    %v8310 = vunpack.c.h.b16 %v8226
    %v8311 = vunpack.c.l.b16 %v8227
    %v8312 = vunpack.c.h.b16 %v8227
    %v8313 = vunpack.c.l.b16 %v8228
    %v8314 = vunpack.c.h.b16 %v8228
    %v8315 = vunpack.c.l.b16 %v8229
    %v8316 = vunpack.c.h.b16 %v8229
    %v8317 = vunpack.c.l.b16 %v8230
    %v8318 = vunpack.c.h.b16 %v8230
    %v8319 = vunpack.c.l.b16 %v8231
    %v8320 = vunpack.c.h.b16 %v8231
    %v8321 = vunpack.c.l.b16 %v8232
    %v8322 = vunpack.c.h.b16 %v8232
    %v8323 = vunpack.c.l.b16 %v8233
    %v8324 = vunpack.c.h.b16 %v8233
    %v8325 = vunpack.c.l.b16 %v8234
    %v8326 = vunpack.c.h.b16 %v8234
    %v8327 = vunpack.c.l.b16 %v8235
    %v8328 = vunpack.c.h.b16 %v8235
    %v8329 = vunpack.c.l.b16 %v8236
    %v8330 = vunpack.c.h.b16 %v8236
    %v8331 = vunpack.c.l.b16 %v8237
    %v8332 = vunpack.c.h.b16 %v8237
    %v8333 = vunpack.c.l.b16 %v8238
    %v8334 = vunpack.c.h.b16 %v8238
    %v8335 = vpack.c.b16 %v8275, %v8271
    %v8336 = vpack.c.b16 %v8276, %v8272
    %v8337 = vpack.c.b16 %v8277, %v8273
    %v8338 = vpack.c.b16 %v8278, %v8274
    %v8339 = vpack.c.b16 %v8283, %v8279
    %v8340 = vpack.c.b16 %v8284, %v8280
    %v8341 = vpack.c.b16 %v8285, %v8281
    %v8342 = vpack.c.b16 %v8286, %v8282
    %v8343 = vpack.c.b16 %v8291, %v8287
    %v8344 = vpack.c.b16 %v8292, %v8288
    %v8345 = vpack.c.b16 %v8293, %v8289
    %v8346 = vpack.c.b16 %v8294, %v8290
    %v8347 = vpack.c.b16 %v8299, %v8295
    %v8348 = vpack.c.b16 %v8300, %v8296
    %v8349 = vpack.c.b16 %v8301, %v8297
    %v8350 = vpack.c.b16 %v8302, %v8298
    %v8351 = vpack.c.b16 %v8307, %v8303
    %v8352 = vpack.c.b16 %v8308, %v8304
    %v8353 = vpack.c.b16 %v8309, %v8305
    %v8354 = vpack.c.b16 %v8310, %v8306
    %v8355 = vpack.c.b16 %v8315, %v8311
    %v8356 = vpack.c.b16 %v8316, %v8312
    %v8357 = vpack.c.b16 %v8317, %v8313
    %v8358 = vpack.c.b16 %v8318, %v8314
    %v8359 = vpack.c.b16 %v8323, %v8319
    %v8360 = vpack.c.b16 %v8324, %v8320
    %v8361 = vpack.c.b16 %v8325, %v8321
    %v8362 = vpack.c.b16 %v8326, %v8322
    %v8363 = vpack.c.b16 %v8331, %v8327
    %v8364 = vpack.c.b16 %v8332, %v8328
    %v8365 = vpack.c.b16 %v8333, %v8329
    %v8366 = vpack.c.b16 %v8334, %v8330
    %8399 = vmatpush.bf16.msra.mxu0 %v8363
    %8400 = vmatpush.bf16.msra.mxu0 %v8359
    %8401 = vmatpush.bf16.msra.mxu0 %v8355
    %8402 = vmatpush.bf16.msra.mxu0 %v8351
    %8403 = vmatpush.bf16.msra.mxu0 %v8347
    %8404 = vmatpush.bf16.msra.mxu0 %v8343
    %8405 = vmatpush.bf16.msra.mxu0 %v8339
    %8406 = vmatpush.bf16.msra.mxu0 %v8335
    %8407 = vmatmul.bf16.gmra.mxu0 %v8206
    %v8408 = vpop.f32.mrf.mxu0
    %v8409 = vadd.f32 0.0, %v8408
    %v8410 = vpop.f32.mrf.mxu0
    %8411 = vdwg.mxu0
    %8412 = vmatpush.bf16.msra.mxu0 %v8364
    %8413 = vmatpush.bf16.msra.mxu0 %v8360
    %8414 = vmatpush.bf16.msra.mxu0 %v8356
    %8415 = vmatpush.bf16.msra.mxu0 %v8352
    %8416 = vmatpush.bf16.msra.mxu0 %v8348
    %8417 = vmatpush.bf16.msra.mxu0 %v8344
    %8418 = vmatpush.bf16.msra.mxu0 %v8340
    %8419 = vmatpush.bf16.msra.mxu0 %v8336
    %8420 = vmatmul.bf16.gmra.mxu0 %v8206
    %v8421 = vpop.f32.mrf.mxu0
    %v8422 = vadd.f32 0.0, %v8421
    %v8423 = vpop.f32.mrf.mxu0
    %8424 = vdwg.mxu0
    %8425 = vmatpush.bf16.msra.mxu0 %v8365
    %8426 = vmatpush.bf16.msra.mxu0 %v8361
    %8427 = vmatpush.bf16.msra.mxu0 %v8357
    %8428 = vmatpush.bf16.msra.mxu0 %v8353
    %8429 = vmatpush.bf16.msra.mxu0 %v8349
    %8430 = vmatpush.bf16.msra.mxu0 %v8345
    %8431 = vmatpush.bf16.msra.mxu0 %v8341
    %8432 = vmatpush.bf16.msra.mxu0 %v8337
    %8433 = vmatmul.bf16.gmra.mxu0 %v8206
    %v8434 = vpop.f32.mrf.mxu0
    %v8435 = vadd.f32 0.0, %v8434
    %v8436 = vpop.f32.mrf.mxu0
    %8437 = vdwg.mxu0
    %8438 = vmatpush.bf16.msra.mxu0 %v8366
    %8439 = vmatpush.bf16.msra.mxu0 %v8362
    %8440 = vmatpush.bf16.msra.mxu0 %v8358
    %8441 = vmatpush.bf16.msra.mxu0 %v8354
    %8442 = vmatpush.bf16.msra.mxu0 %v8350
    %8443 = vmatpush.bf16.msra.mxu0 %v8346
    %8444 = vmatpush.bf16.msra.mxu0 %v8342
    %8445 = vmatpush.bf16.msra.mxu0 %v8338
    %8446 = vmatmul.bf16.gmra.mxu0 %v8206
    %v8447 = vpop.f32.mrf.mxu0
    %v8448 = vadd.f32 0.0, %v8447
    %v8449 = vpop.f32.mrf.mxu0
    %8450 = vdwg.mxu0
    %v8451 = vadd.f32 %v8202, %v8409
    %v8452 = vadd.f32 %v8203, %v8422
    %v8453 = vadd.f32 %v8204, %v8435
    %v8454 = vadd.f32 %v8205, %v8448
    %v8455 = vxor.u32 %v8451, 2147483648
    %v8456 = vmul.f32 %v8455, 1.442695
    %v8457 = vpow.pop %v8456
    %v8458 = vadd.f32 %v8457, 1.0
    %v8459 = vrcp.pop %v8458
    %v8460 = vmul.f32 %v8458, %v8459
    %v8461 = vsub.f32 1.0, %v8460
    %v8462 = vmul.f32 %v8459, %v8461
    %v8463 = vadd.f32 %v8459, %v8462
    %vm8464 = vweird.f32 %v8458
    %vm8465 = vweird.f32 %v8459
    %vm8466 = vmor %vm8464, %vm8465
    %v8467 = vsel %vm8466, %v8459, %v8463
    %v8468 = vand.u32 2147483647, %v8458
    %vm8469 = vcmp.eq.f32.partialorder %v8468, 8.507059e+37
    %v8470 = vand.u32 %v8458, 2147483648
    %v8471 = vor.u32 1.1754944e-38, %v8470
    %v8472 = vsel %vm8469, %v8471, %v8467
    %v8473 = vmul.f32 1.0, %v8472
    %v8474 = vxor.u32 %v8452, 2147483648
    %v8475 = vmul.f32 %v8474, 1.442695
    %v8476 = vpow.pop %v8475
    %v8477 = vadd.f32 %v8476, 1.0
    %v8478 = vrcp.pop %v8477
    %v8479 = vmul.f32 %v8477, %v8478
    %v8480 = vsub.f32 1.0, %v8479
    %v8481 = vmul.f32 %v8478, %v8480
    %v8482 = vadd.f32 %v8478, %v8481
    %vm8483 = vweird.f32 %v8477
    %vm8484 = vweird.f32 %v8478
    %vm8485 = vmor %vm8483, %vm8484
    %v8486 = vsel %vm8485, %v8478, %v8482
    %v8487 = vand.u32 2147483647, %v8477
    %vm8488 = vcmp.eq.f32.partialorder %v8487, 8.507059e+37
    %v8489 = vand.u32 %v8477, 2147483648
    %v8490 = vor.u32 1.1754944e-38, %v8489
    %v8491 = vsel %vm8488, %v8490, %v8486
    %v8492 = vmul.f32 1.0, %v8491
    %v8493 = vtanh.pop %v8453
    %v8494 = vxor.u32 %v8454, 2147483648
    %v8495 = vmul.f32 %v8494, 1.442695
    %v8496 = vpow.pop %v8495
    %v8497 = vadd.f32 %v8496, 1.0
    %v8498 = vrcp.pop %v8497
    %v8499 = vmul.f32 %v8497, %v8498
    %v8500 = vsub.f32 1.0, %v8499
    %v8501 = vmul.f32 %v8498, %v8500
    %v8502 = vadd.f32 %v8498, %v8501
    %vm8503 = vweird.f32 %v8497
    %vm8504 = vweird.f32 %v8498
    %vm8505 = vmor %vm8503, %vm8504
    %v8506 = vsel %vm8505, %v8498, %v8502
    %v8507 = vand.u32 2147483647, %v8497
    %vm8508 = vcmp.eq.f32.partialorder %v8507, 8.507059e+37
    %v8509 = vand.u32 %v8497, 2147483648
    %v8510 = vor.u32 1.1754944e-38, %v8509
    %v8511 = vsel %vm8508, %v8510, %v8506
    %v8512 = vmul.f32 1.0, %v8511
    %v8513 = vmul.f32 %v8492, %v8198
    %v8514 = vmul.f32 %v8473, %v8493
    %v8515 = vadd.f32 %v8513, %v8514
    %v8516 = vtanh.pop %v8515
    %v8517 = vmul.f32 %v8512, %v8516
    %8518 = vst [vmem:[#allocation2 + $0x58] sm:$0xff] %v8517
    %s8519 = scalar_lea.vmem [#allocation4], 8
    %8520 = vst [vmem:[%s8519] sm:$0xff] %v8517
    %s8521 = scalar_lea.vmem [#allocation6], 8
    %8522 = vst [vmem:[%s8521] sm:$0xff] %v8515
    %v8523 = vld [vmem:[#allocation2] sm:$0xff]
    %v8524 = vld [vmem:[#allocation2 + $0x8] sm:$0xff]
    %v8525 = vld [vmem:[#allocation2 + $0x10] sm:$0xff]
    %v8526 = vld [vmem:[#allocation2 + $0x18] sm:$0xff]
    %v8527 = vld [vmem:[#allocation2 + $0x20] sm:$0xff]
    %v8528 = vld [vmem:[#allocation2 + $0x28] sm:$0xff]
    %v8529 = vld [vmem:[#allocation2 + $0x30] sm:$0xff]
    %v8530 = vld [vmem:[#allocation2 + $0x38] sm:$0xff]
    %v8531 = vld [vmem:[#allocation2 + $0x40] sm:$0xff]
    %v8532 = vld [vmem:[#allocation2 + $0x48] sm:$0xff]
    %v8533 = vld [vmem:[#allocation2 + $0x50] sm:$0xff]
    %v8534 = vld [vmem:[#allocation2 + $0x58] sm:$0xff]
    %8535 = vst [vmem:[%s6] sm:$0xff] %v8523
    %8536 = vst [vmem:[%s6 + $0x8] sm:$0xff] %v8524
    %8537 = vst [vmem:[%s6 + $0x10] sm:$0xff] %v8525
    %8538 = vst [vmem:[%s6 + $0x18] sm:$0xff] %v8526
    %8539 = vst [vmem:[%s6 + $0x20] sm:$0xff] %v8527
    %8540 = vst [vmem:[%s6 + $0x28] sm:$0xff] %v8528
    %8541 = vst [vmem:[%s6 + $0x30] sm:$0xff] %v8529
    %8542 = vst [vmem:[%s6 + $0x38] sm:$0xff] %v8530
    %8543 = vst [vmem:[%s6 + $0x40] sm:$0xff] %v8531
    %8544 = vst [vmem:[%s6 + $0x48] sm:$0xff] %v8532
    %8545 = vst [vmem:[%s6 + $0x50] sm:$0xff] %v8533
    %8546 = vst [vmem:[%s6 + $0x58] sm:$0xff] %v8534
    // Predicated region
    $region26: #{lstm_forward.2} parent=1 // pred_check
      _
    $region27: #{lstm_forward.2} parent=1 // pred_check_branch
      %8548 = sbr.rel (0) target = $region29
    $region28: #{lstm_forward.2} parent=1 // pred_region
      _
    $region29: #{lstm_forward.2} parent=1 // pred_fallthru
      _
    // Predicated region
    $region30: #{lstm_forward.2} parent=1 // pred_check
      _
    $region31: #{lstm_forward.2} parent=1 // pred_check_branch
      %8550 = sbr.rel (0) target = $region33
    $region32: #{lstm_forward.2} parent=1 // pred_region
      %8552 = vsyncadd [#allocation5], 0
      %s8553 = sshll.u32 [#allocation4], 4
      %s8554 = int_to_ptr.vmem [resolvable:$true] %s8553
      %s8555 = sshll.u32 %s7, 4
      %s8556 = int_to_ptr.hbm [resolvable:$true] %s8555
      %8561 = dma.vmem_to_hbm [thread:$0]  %s8554, 256, %s8556, [#allocation5], 128, 128, 8
    $region33: #{lstm_forward.2} parent=1 // pred_fallthru
      _
    // Predicated region
    $region34: #{lstm_forward.2} parent=1 // pred_check
      _
    $region35: #{lstm_forward.2} parent=1 // pred_check_branch
      %8563 = sbr.rel (0) target = $region37
    $region36: #{lstm_forward.2} parent=1 // pred_region
      %8565 = vsyncadd [#allocation7], 0
      %s8566 = sshll.u32 [#allocation6], 4
      %s8567 = int_to_ptr.vmem [resolvable:$true] %s8566
      %s8568 = sshll.u32 %s8, 4
      %s8569 = int_to_ptr.hbm [resolvable:$true] %s8568
      %8574 = dma.vmem_to_hbm [thread:$0]  %s8567, 256, %s8569, [#allocation7], 128, 128, 8
    $region37: #{lstm_forward.2} parent=1 // pred_fallthru
      _
    // Predicated region
    $region38: #{lstm_forward.2} parent=1 // pred_check
      _
    $region39: #{lstm_forward.2} parent=1 // pred_check_branch
      %8576 = sbr.rel (0) target = $region41
    $region40: #{lstm_forward.2} parent=1 // pred_region
      _
    $region41: #{lstm_forward.2} parent=1 // pred_fallthru
      _
    // Predicated region
    $region42: #{lstm_forward.2} parent=1 // pred_check
      _
    $region43: #{lstm_forward.2} parent=1 // pred_check_branch
      %8578 = sbr.rel (0) target = $region45
    $region44: #{lstm_forward.2} parent=1 // pred_region
      %8580 = dma.done [#allocation5], 256
    $region45: #{lstm_forward.2} parent=1 // pred_fallthru
      _
    // Predicated region
    $region46: #{lstm_forward.2} parent=1 // pred_check
      _
    $region47: #{lstm_forward.2} parent=1 // pred_check_branch
      %8582 = sbr.rel (0) target = $region49
    $region48: #{lstm_forward.2} parent=1 // pred_region
      %8584 = dma.done [#allocation7], 256
    $region49: #{lstm_forward.2} parent=1 // pred_fallthru
      _
    %8585 = vsyncpa [#allocation5], 1
    %8586 = vsyncpa [#allocation7], 1

</llo_original>
